<compile_context>
chip_gen: v6e
topology: v6e:2x2x1
jax: 0.10.0
libtpu: 0.0.40
codegen_flags: <defaults>
</compile_context>

<pallas_src>
import jax
import jax.numpy as jnp
from jax.experimental import pallas as pl
from jax.experimental.pallas import tpu as pltpu


def _leaky_relu(x, slope=0.2):
    return jnp.where(x > 0, x, slope * x)


def discriminator_kernel(x_ref,
                         w0_ref, b0_ref,
                         w1_ref, b1_ref,
                         w2_ref, b2_ref,
                         w3_ref, b3_ref,
                         o_ref):
    # hidden0: Linear(784 -> 1024) + LeakyReLU(0.2)  [+ Dropout = identity in eval]
    x = x_ref[...].astype(jnp.bfloat16)
    h = jnp.dot(x, w0_ref[...], preferred_element_type=jnp.float32) + b0_ref[...]
    h = _leaky_relu(h)

    # hidden1: Linear(1024 -> 512) + LeakyReLU(0.2)
    h = jnp.dot(h.astype(jnp.bfloat16), w1_ref[...],
                preferred_element_type=jnp.float32) + b1_ref[...]
    h = _leaky_relu(h)

    # hidden2: Linear(512 -> 256) + LeakyReLU(0.2)
    h = jnp.dot(h.astype(jnp.bfloat16), w2_ref[...],
                preferred_element_type=jnp.float32) + b2_ref[...]
    h = _leaky_relu(h)

    # out: Linear(256 -> 1) + Sigmoid, computed as (1,256) x (TM,256)^T -> (1, TM)
    # so the result lands directly in a lane-dense row (no masked column stores).
    z = jax.lax.dot_general(
        w3_ref[...], h.astype(jnp.bfloat16),
        dimension_numbers=(((1,), (1,)), ((), ())),
        preferred_element_type=jnp.float32)           # (1, TM)
    z = z + b3_ref[...]                               # b3 is (1,1), broadcasts
    o_ref[...] = jax.nn.sigmoid(z)


def _pick_tm(batch, tm_max=512, tm_min=128):
    """Largest 128-multiple tile <= tm_max that still leaves >= 2 grid steps
    (so v7x's 2 TensorCores both get work). Degenerates to tm_min for tiny B."""
    if batch <= tm_min:
        return tm_min
    tm = (pl.cdiv(batch, 2) // tm_min) * tm_min
    return int(max(tm_min, min(tm_max, tm)))


def discriminator_forward(x, params, *, tm=None):
    """x: [B, 784] f32. params: prepared (bf16 weights, f32 biases, w3 as row)."""
    (w0, b0, w1, b1, w2, b2, w3, b3) = params
    B, F = x.shape
    if tm is None:
        tm = _pick_tm(B)

    # Pad batch to a multiple of the tile size; slice back afterwards.
    b_pad = pl.cdiv(B, tm) * tm
    if b_pad != B:
        x = jnp.pad(x, ((0, b_pad - B), (0, 0)))
    num_tiles = b_pad // tm
    grid = (num_tiles,)

    def resident(arr):
        # Whole array in VMEM; constant block index -> DMA'd once, stays resident.
        # Single-buffered: no point double-buffering a never-refetched block.
        return pl.BlockSpec(arr.shape,
                            lambda i, _nd=arr.ndim: (0,) * _nd,
                            pipeline_mode=pl.Buffered(1))

    weights = (w0, b0, w1, b1, w2, b2, w3, b3)

    out = pl.pallas_call(
        discriminator_kernel,
        out_shape=jax.ShapeDtypeStruct((1, b_pad), jnp.float32),
        grid_spec=pltpu.PrefetchScalarGridSpec(
            num_scalar_prefetch=0,
            grid=grid,
            in_specs=[pl.BlockSpec((tm, F), lambda i: (i, 0))]
                     + [resident(a) for a in weights],
            # Lane-dense output row per batch tile: block (1, tm) along the lane axis.
            out_specs=pl.BlockSpec((1, tm), lambda i: (0, i)),
        ),
        compiler_params=pltpu.CompilerParams(
            dimension_semantics=("parallel",),   # shards batch tiles across TCs on v7x
            vmem_limit_bytes=32 * 1024 * 1024,   # v7x-safe; TM=512 uses ~10 MiB
        ),
    )(x, *weights)

    return jnp.reshape(out[0, :B], (B, 1))


def init_params(key):
    """Deterministic synthetic f32 parameters matching DiscriminatorNet shapes.

    Weight layout is [in_features, out_features] (transposed vs PyTorch) so the
    kernel computes x @ W + b — identical math to x @ W_pt.T + b.
    """
    n_features = 28 * 28  # 784
    dims = [(n_features, 1024), (1024, 512), (512, 256), (256, 1)]
    params = []
    for fin, fout in dims:
        kw, kb, key = jax.random.split(key, 3)
        bound = 1.0 / jnp.sqrt(fin)  # PyTorch nn.Linear default uniform bound
        w = jax.random.uniform(kw, (fin, fout), jnp.float32, -bound, bound)
        b = jax.random.uniform(kb, (1, fout), jnp.float32, -bound, bound)
        params += [w, b]
    return tuple(params)


def prepare_params(params):
    """Cast weights to bf16 for the MXU; reshape w3 to a (1, 256) row for the
    final-layer row-matmul. Biases stay f32."""
    (w0, b0, w1, b1, w2, b2, w3, b3) = params
    return (w0.astype(jnp.bfloat16), b0,
            w1.astype(jnp.bfloat16), b1,
            w2.astype(jnp.bfloat16), b2,
            jnp.transpose(w3).astype(jnp.bfloat16), b3)  # (256,1) -> (1,256)


def reference_forward(x, prepared):
    """Plain-JAX reference with identical precision (bf16 matmul inputs, f32 acc)."""
    (w0, b0, w1, b1, w2, b2, w3, b3) = prepared
    h = _leaky_relu(jnp.dot(x.astype(jnp.bfloat16), w0,
                            preferred_element_type=jnp.float32) + b0)
    h = _leaky_relu(jnp.dot(h.astype(jnp.bfloat16), w1,
                            preferred_element_type=jnp.float32) + b1)
    h = _leaky_relu(jnp.dot(h.astype(jnp.bfloat16), w2,
                            preferred_element_type=jnp.float32) + b2)
    z = jnp.dot(h.astype(jnp.bfloat16), jnp.transpose(w3),
                preferred_element_type=jnp.float32) + b3   # (B,1); b3 is (1,1)
    return jax.nn.sigmoid(z)


if __name__ == "__main__":
    key = jax.random.PRNGKey(0)
    kx, kp = jax.random.split(key)

    B = 256  # -> TM=128, grid of 2: exercises multi-tile, weight residency, 2 TCs
    x = jax.random.normal(kx, (B, 28 * 28), dtype=jnp.float32)
    params = prepare_params(init_params(kp))

    out = discriminator_forward(x, params)
    out = jax.block_until_ready(out)

    ref = reference_forward(x, params)
    assert out.shape == (B, 1)
    assert jnp.allclose(out, ref, atol=1e-3, rtol=1e-2), "mismatch vs reference"

    print("KERNEL_OK")
</pallas_src>

<mosaic_0001>
module attributes {stable_mosaic.version = 11 : i64} {
  func.func @discriminator_kernel(%arg0: i32, %arg1: memref<128x784xf32, #tpu.memory_space<vmem>>, %arg2: memref<784x1024xbf16, #tpu.memory_space<vmem>>, %arg3: memref<1x1024xf32, #tpu.memory_space<vmem>>, %arg4: memref<1024x512xbf16, #tpu.memory_space<vmem>>, %arg5: memref<1x512xf32, #tpu.memory_space<vmem>>, %arg6: memref<512x256xbf16, #tpu.memory_space<vmem>>, %arg7: memref<1x256xf32, #tpu.memory_space<vmem>>, %arg8: memref<1x256xbf16, #tpu.memory_space<vmem>>, %arg9: memref<1x1xf32, #tpu.memory_space<vmem>>, %arg10: memref<1x128xf32, #tpu.memory_space<vmem>>) attributes {dimension_semantics = [#tpu.dimension_semantics<parallel>], iteration_bounds = array<i64: 2>, scalar_prefetch = 0 : i64, scratch_operands = 0 : i64, tpu.core_type = #tpu.core_type<tc>, window_params = [{transform_indices = @transform_0, window_bounds = array<i64: 128, 784>}, {pipeline_mode = #tpu.pipeline_mode<synchronous>, transform_indices = @transform_1, window_bounds = array<i64: 784, 1024>}, {pipeline_mode = #tpu.pipeline_mode<synchronous>, transform_indices = @transform_2, window_bounds = array<i64: 1, 1024>}, {pipeline_mode = #tpu.pipeline_mode<synchronous>, transform_indices = @transform_3, window_bounds = array<i64: 1024, 512>}, {pipeline_mode = #tpu.pipeline_mode<synchronous>, transform_indices = @transform_4, window_bounds = array<i64: 1, 512>}, {pipeline_mode = #tpu.pipeline_mode<synchronous>, transform_indices = @transform_5, window_bounds = array<i64: 512, 256>}, {pipeline_mode = #tpu.pipeline_mode<synchronous>, transform_indices = @transform_6, window_bounds = array<i64: 1, 256>}, {pipeline_mode = #tpu.pipeline_mode<synchronous>, transform_indices = @transform_7, window_bounds = array<i64: 1, 256>}, {pipeline_mode = #tpu.pipeline_mode<synchronous>, transform_indices = @transform_8, window_bounds = array<i64: 1, 1>}, {transform_indices = @transform_9, window_bounds = array<i64: 1, 128>}]} {
    %c0 = arith.constant 0 : index
    %c0_0 = arith.constant 0 : index
    %0 = vector.load %arg1[%c0, %c0_0] : memref<128x784xf32, #tpu.memory_space<vmem>>, vector<128x784xf32>
    %1 = arith.truncf %0 : vector<128x784xf32> to vector<128x784xbf16>
    %c0_1 = arith.constant 0 : index
    %c0_2 = arith.constant 0 : index
    %2 = vector.load %arg2[%c0_1, %c0_2] : memref<784x1024xbf16, #tpu.memory_space<vmem>>, vector<784x1024xbf16>
    %cst = arith.constant dense<0.000000e+00> : vector<128x1024xf32>
    %3 = tpu.matmul %1, %2, %cst {dimension_numbers = #tpu.dot_dimension_numbers<[1], [0], [0], [1], [0, 0, 1, 1], [], []>} : vector<128x784xbf16>, vector<784x1024xbf16>, vector<128x1024xf32> -> vector<128x1024xf32>
    %c0_3 = arith.constant 0 : index
    %c0_4 = arith.constant 0 : index
    %4 = vector.load %arg3[%c0_3, %c0_4] : memref<1x1024xf32, #tpu.memory_space<vmem>>, vector<1x1024xf32>
    %5 = vector.broadcast %4 : vector<1x1024xf32> to vector<128x1024xf32>
    %6 = arith.addf %3, %5 : vector<128x1024xf32>
    %cst_5 = arith.constant 0.000000e+00 : f32
    %7 = vector.broadcast %cst_5 : f32 to vector<128x1024xf32>
    %8 = arith.cmpf ogt, %6, %7 : vector<128x1024xf32>
    %cst_6 = arith.constant 2.000000e-01 : f32
    %9 = vector.broadcast %cst_6 : f32 to vector<128x1024xf32>
    %10 = arith.mulf %9, %6 : vector<128x1024xf32>
    %11 = arith.select %8, %6, %10 : vector<128x1024xi1>, vector<128x1024xf32>
    %12 = arith.truncf %11 : vector<128x1024xf32> to vector<128x1024xbf16>
    %c0_7 = arith.constant 0 : index
    %c0_8 = arith.constant 0 : index
    %13 = vector.load %arg4[%c0_7, %c0_8] : memref<1024x512xbf16, #tpu.memory_space<vmem>>, vector<1024x512xbf16>
    %cst_9 = arith.constant dense<0.000000e+00> : vector<128x512xf32>
    %14 = tpu.matmul %12, %13, %cst_9 {dimension_numbers = #tpu.dot_dimension_numbers<[1], [0], [0], [1], [0, 0, 1, 1], [], []>} : vector<128x1024xbf16>, vector<1024x512xbf16>, vector<128x512xf32> -> vector<128x512xf32>
    %c0_10 = arith.constant 0 : index
    %c0_11 = arith.constant 0 : index
    %15 = vector.load %arg5[%c0_10, %c0_11] : memref<1x512xf32, #tpu.memory_space<vmem>>, vector<1x512xf32>
    %16 = vector.broadcast %15 : vector<1x512xf32> to vector<128x512xf32>
    %17 = arith.addf %14, %16 : vector<128x512xf32>
    %cst_12 = arith.constant 0.000000e+00 : f32
    %18 = vector.broadcast %cst_12 : f32 to vector<128x512xf32>
    %19 = arith.cmpf ogt, %17, %18 : vector<128x512xf32>
    %cst_13 = arith.constant 2.000000e-01 : f32
    %20 = vector.broadcast %cst_13 : f32 to vector<128x512xf32>
    %21 = arith.mulf %20, %17 : vector<128x512xf32>
    %22 = arith.select %19, %17, %21 : vector<128x512xi1>, vector<128x512xf32>
    %23 = arith.truncf %22 : vector<128x512xf32> to vector<128x512xbf16>
    %c0_14 = arith.constant 0 : index
    %c0_15 = arith.constant 0 : index
    %24 = vector.load %arg6[%c0_14, %c0_15] : memref<512x256xbf16, #tpu.memory_space<vmem>>, vector<512x256xbf16>
    %cst_16 = arith.constant dense<0.000000e+00> : vector<128x256xf32>
    %25 = tpu.matmul %23, %24, %cst_16 {dimension_numbers = #tpu.dot_dimension_numbers<[1], [0], [0], [1], [0, 0, 1, 1], [], []>} : vector<128x512xbf16>, vector<512x256xbf16>, vector<128x256xf32> -> vector<128x256xf32>
    %c0_17 = arith.constant 0 : index
    %c0_18 = arith.constant 0 : index
    %26 = vector.load %arg7[%c0_17, %c0_18] : memref<1x256xf32, #tpu.memory_space<vmem>>, vector<1x256xf32>
    %27 = vector.broadcast %26 : vector<1x256xf32> to vector<128x256xf32>
    %28 = arith.addf %25, %27 : vector<128x256xf32>
    %cst_19 = arith.constant 0.000000e+00 : f32
    %29 = vector.broadcast %cst_19 : f32 to vector<128x256xf32>
    %30 = arith.cmpf ogt, %28, %29 : vector<128x256xf32>
    %cst_20 = arith.constant 2.000000e-01 : f32
    %31 = vector.broadcast %cst_20 : f32 to vector<128x256xf32>
    %32 = arith.mulf %31, %28 : vector<128x256xf32>
    %33 = arith.select %30, %28, %32 : vector<128x256xi1>, vector<128x256xf32>
    %c0_21 = arith.constant 0 : index
    %c0_22 = arith.constant 0 : index
    %34 = vector.load %arg8[%c0_21, %c0_22] : memref<1x256xbf16, #tpu.memory_space<vmem>>, vector<1x256xbf16>
    %35 = arith.truncf %33 : vector<128x256xf32> to vector<128x256xbf16>
    %cst_23 = arith.constant dense<0.000000e+00> : vector<1x128xf32>
    %36 = tpu.matmul %34, %35, %cst_23 {dimension_numbers = #tpu.dot_dimension_numbers<[1], [1], [0], [0], [0, 0, 1, 0], [], []>} : vector<1x256xbf16>, vector<128x256xbf16>, vector<1x128xf32> -> vector<1x128xf32>
    %c0_24 = arith.constant 0 : index
    %c0_25 = arith.constant 0 : index
    %37 = vector.load %arg9[%c0_24, %c0_25] : memref<1x1xf32, #tpu.memory_space<vmem>>, vector<1x1xf32>
    %38 = vector.broadcast %37 : vector<1x1xf32> to vector<1x128xf32>
    %39 = arith.addf %36, %38 : vector<1x128xf32>
    %40 = arith.negf %39 : vector<1x128xf32>
    %41 = math.exp %40 : vector<1x128xf32>
    %cst_26 = arith.constant 1.000000e+00 : f32
    %42 = vector.broadcast %cst_26 : f32 to vector<1x128xf32>
    %43 = arith.addf %42, %41 : vector<1x128xf32>
    %44 = arith.divf %42, %43 : vector<1x128xf32>
    %c0_27 = arith.constant 0 : index
    %c0_28 = arith.constant 0 : index
    %45 = vector.load %arg10[%c0_27, %c0_28] : memref<1x128xf32, #tpu.memory_space<vmem>>, vector<1x128xf32>
    tpu.vector_store %arg10[%c0_27, %c0_28], %44 {strides = array<i32>} : memref<1x128xf32, #tpu.memory_space<vmem>>, vector<1x128xf32>,
    return
  }
  func.func @transform_0(%arg0: i32) -> (i32, i32) {
    %c0_i32 = arith.constant 0 : i32
    %c0_i32_0 = arith.constant 0 : i32
    return %arg0, %c0_i32 : i32, i32
  }
  func.func @transform_1(%arg0: i32) -> (i32, i32) {
    %c0_i32 = arith.constant 0 : i32
    %c0_i32_0 = arith.constant 0 : i32
    %c0_i32_1 = arith.constant 0 : i32
    return %c0_i32, %c0_i32_0 : i32, i32
  }
  func.func @transform_2(%arg0: i32) -> (i32, i32) {
    %c0_i32 = arith.constant 0 : i32
    %c0_i32_0 = arith.constant 0 : i32
    %c0_i32_1 = arith.constant 0 : i32
    return %c0_i32, %c0_i32_0 : i32, i32
  }
  func.func @transform_3(%arg0: i32) -> (i32, i32) {
    %c0_i32 = arith.constant 0 : i32
    %c0_i32_0 = arith.constant 0 : i32
    %c0_i32_1 = arith.constant 0 : i32
    return %c0_i32, %c0_i32_0 : i32, i32
  }
  func.func @transform_4(%arg0: i32) -> (i32, i32) {
    %c0_i32 = arith.constant 0 : i32
    %c0_i32_0 = arith.constant 0 : i32
    %c0_i32_1 = arith.constant 0 : i32
    return %c0_i32, %c0_i32_0 : i32, i32
  }
  func.func @transform_5(%arg0: i32) -> (i32, i32) {
    %c0_i32 = arith.constant 0 : i32
    %c0_i32_0 = arith.constant 0 : i32
    %c0_i32_1 = arith.constant 0 : i32
    return %c0_i32, %c0_i32_0 : i32, i32
  }
  func.func @transform_6(%arg0: i32) -> (i32, i32) {
    %c0_i32 = arith.constant 0 : i32
    %c0_i32_0 = arith.constant 0 : i32
    %c0_i32_1 = arith.constant 0 : i32
    return %c0_i32, %c0_i32_0 : i32, i32
  }
  func.func @transform_7(%arg0: i32) -> (i32, i32) {
    %c0_i32 = arith.constant 0 : i32
    %c0_i32_0 = arith.constant 0 : i32
    %c0_i32_1 = arith.constant 0 : i32
    return %c0_i32, %c0_i32_0 : i32, i32
  }
  func.func @transform_8(%arg0: i32) -> (i32, i32) {
    %c0_i32 = arith.constant 0 : i32
    %c0_i32_0 = arith.constant 0 : i32
    %c0_i32_1 = arith.constant 0 : i32
    return %c0_i32, %c0_i32_0 : i32, i32
  }
  func.func @transform_9(%arg0: i32) -> (i32, i32) {
    %c0_i32 = arith.constant 0 : i32
    %c0_i32_0 = arith.constant 0 : i32
    return %c0_i32, %arg0 : i32, i32
  }
}

</mosaic_0001>

<llo_original>
// kernel: tpu_custom_call.1
$region0: #{tpu_custom_call.1}
  #allocation0 [shape = 'u32[]', space=smem, size = 0x4, offset = 0x4, fixed_abs, tag = 'smem constant byte address 0x4 - core index']
  #allocation1 [shape = 'u32[144,128]{1,0:T(1,128)}', space=vmem, size = 0x12000, scoped, tag = 'internal scratch']
  #allocation2 [shape = 'f32[1,1]{1,0:T(1,128)S(1)}', space=vmem, size = 0x200, scoped, tag = 'scoped memory for tpu_custom_call.1']
  %s0 = inlined_call_operand.vmem [shape: f32[256,784], index: 0, kind: input, shape index: {}]
  %s1 = inlined_call_operand.vmem [shape: bf16[784,1024], index: 1, kind: input, shape index: {}]
  %s2 = inlined_call_operand.vmem [shape: f32[1,1024], index: 2, kind: input, shape index: {}]
  %s3 = inlined_call_operand.hbm [shape: bf16[1024,512], index: 3, kind: input, shape index: {}]
  %s4 = inlined_call_operand.vmem [shape: f32[1,512], index: 4, kind: input, shape index: {}]
  %s5 = inlined_call_operand.hbm [shape: bf16[512,256], index: 5, kind: input, shape index: {}]
  %s6 = inlined_call_operand.vmem [shape: f32[1,256], index: 6, kind: input, shape index: {}]
  %s7 = inlined_call_operand.vmem [shape: bf16[1,256], index: 7, kind: input, shape index: {}]
  %s8 = inlined_call_operand.<no memory space> [shape: f32[1,1], index: 8, kind: input, shape index: {}]
  %s9 = inlined_call_operand.hbm [shape: f32[1,256], index: 9, kind: output, shape index: {}]
  %s10 = sld [smem:[#allocation0]]
  $region77: #{tpu_custom_call.1} parent=0
    _
  %s12 = ssub.s32 1, %s10
  %s13 = scalar_select 0, %s12, %s10
  %v14 = vstv %s8
  %15 = vst [vmem:[#allocation2] sm:$0x1] %v14
  $region1: #{tpu_custom_call.1} parent=0
    #allocation3 [shape = 'u8[1048576]{0}', space=vmem, size = 0x100000, scoped, tag = 'input window, operand 3, single buffered']
    #allocation4 [shape = 's32[2]{0}', space=sflag, size = 0x8, scoped, tag = 'scoped memory for tpu_custom_call.1']
    #allocation5 [shape = 's32[2]{0}', space=sflag, size = 0x8, scoped, tag = 'scoped memory for tpu_custom_call.1']
    #allocation6 [shape = 'u8[262144]{0}', space=vmem, size = 0x40000, scoped, tag = 'input window, operand 5, single buffered']
    #allocation7 [shape = 's32[1]{0}', space=sflag, size = 0x4, scoped, tag = 'scoped memory for tpu_custom_call.1']
    #allocation8 [shape = 'u8[1024]{0}', space=vmem, size = 0x400, scoped, tag = 'output window, operand 0']
    %16 = vsyncpa [#allocation4], 0
    %17 = vsyncpa [#allocation7], 0
    %18 = vsyncpa [#allocation5], 0
    %s19 = scalar_lea.sflag [#allocation5], 1
    %20 = vsyncpa %s19, 0
    loop: start=0, step=1, limit=4
    $region2: #{tpu_custom_call.1} parent=1 // loop_pre_header
      _
    $region3: #{tpu_custom_call.1} parent=1 // loop_header
      %s22 = sphi 0, %s26
      %p23 = scmp.ge.s32.totalorder %s22, 4
      %s32 = sphi 0, %s34
      %s35 = sphi 0, %s32
      %s36 = sphi 0, %s35
      %s52 = sphi 0, %s36
      %s56 = sphi 0, %s56
      %s58 = sphi 0, %s56
      %s59 = sphi 0, %s58
      %s73 = sphi 0, %s59
      %s77 = sphi 0, %s77
      %s79 = sphi 0, %s77
      %s80 = sphi 0, %s79
      %s94 = sphi 0, %s80
      %s98 = sphi 0, %s98
      %s100 = sphi 0, %s98
      %s101 = sphi 0, %s100
      %s115 = sphi 0, %s101
      %s119 = sphi 0, %s119
      %s121 = sphi 0, %s119
      %s122 = sphi 0, %s121
      %s136 = sphi 0, %s122
      %s140 = sphi 0, %s140
      %s142 = sphi 0, %s140
      %s143 = sphi 0, %s142
      %s157 = sphi 0, %s143
      %s161 = sphi 0, %s161
      %s163 = sphi 0, %s161
      %s164 = sphi 0, %s163
      %s178 = sphi 0, %s164
      %s182 = sphi 0, %s182
      %s184 = sphi 0, %s182
      %s185 = sphi 0, %s184
      %s199 = sphi 0, %s185
      %s203 = sphi 0, %s203
      %s205 = sphi 0, %s203
      %s206 = sphi 0, %s205
      %s220 = sphi 0, %s206
      %s226 = sphi 0, %s228
      %s229 = sphi 0, %s226
      %s230 = sphi 0, %s229
      %s246 = sphi 0, %s230
    $region4: #{tpu_custom_call.1} parent=1 // loop_header_branch
      %25 = sbr.rel (%p23) target = $region8
    $region5: #{tpu_custom_call.1} parent=1 // loop_body
      %s27 = ssub.s32 %s22, 1
      %s28 = ssub.s32 %s22, 2
      %s29 = sadd.s32 %s22, 1
      %s30 = ssub.s32 %s22, %s29
      %p31 = scmp.eq.s32.totalorder %s30, 0
      %s33 = sadd.s32 %s32, 1
      %s34 = scalar_select %p31, %s32, %s33
      %p37 = pneg %p31
      %p38 = scmp.eq.s32.totalorder %s22, 1
      %p39 = por %p37, %p38
      %p40 = scmp.ne.s32.totalorder %s32, %s35
      %p41 = scmp.eq.s32.totalorder %s22, 0
      %p42 = por %p40, %p41
      %p43 = scmp.ne.s32.totalorder %s32, %s35
      %p44 = scmp.eq.s32.totalorder %s27, 1
      %p45 = por %p43, %p44
      %p46 = scmp.ne.s32.totalorder %s35, %s36
      %p47 = scmp.eq.s32.totalorder %s27, 0
      %p48 = por %p46, %p47
      %p49 = scmp.ne.s32.totalorder %s35, %s36
      %p50 = scmp.eq.s32.totalorder %s28, 1
      %p51 = por %p49, %p50
      %p53 = scmp.ne.s32.totalorder %s36, %s52
      %p54 = scmp.eq.s32.totalorder %s28, 0
      %p55 = por %p53, %p54
      %s57 = sadd.s32 %s56, 1
      %p60 = scmp.eq.s32.totalorder %s22, 1
      %p61 = scmp.ne.s32.totalorder %s56, %s58
      %p62 = scmp.eq.s32.totalorder %s22, 0
      %p63 = por %p61, %p62
      %p64 = scmp.ne.s32.totalorder %s56, %s58
      %p65 = scmp.eq.s32.totalorder %s27, 1
      %p66 = por %p64, %p65
      %p67 = scmp.ne.s32.totalorder %s58, %s59
      %p68 = scmp.eq.s32.totalorder %s27, 0
      %p69 = por %p67, %p68
      %p70 = scmp.ne.s32.totalorder %s58, %s59
      %p71 = scmp.eq.s32.totalorder %s28, 1
      %p72 = por %p70, %p71
      %p74 = scmp.ne.s32.totalorder %s59, %s73
      %p75 = scmp.eq.s32.totalorder %s28, 0
      %p76 = por %p74, %p75
      %s78 = sadd.s32 %s77, 1
      %p81 = scmp.eq.s32.totalorder %s22, 1
      %p82 = scmp.ne.s32.totalorder %s77, %s79
      %p83 = scmp.eq.s32.totalorder %s22, 0
      %p84 = por %p82, %p83
      %p85 = scmp.ne.s32.totalorder %s77, %s79
      %p86 = scmp.eq.s32.totalorder %s27, 1
      %p87 = por %p85, %p86
      %p88 = scmp.ne.s32.totalorder %s79, %s80
      %p89 = scmp.eq.s32.totalorder %s27, 0
      %p90 = por %p88, %p89
      %p91 = scmp.ne.s32.totalorder %s79, %s80
      %p92 = scmp.eq.s32.totalorder %s28, 1
      %p93 = por %p91, %p92
      %p95 = scmp.ne.s32.totalorder %s80, %s94
      %p96 = scmp.eq.s32.totalorder %s28, 0
      %p97 = por %p95, %p96
      %s99 = sadd.s32 %s98, 1
      %p102 = scmp.eq.s32.totalorder %s22, 1
      %p103 = scmp.ne.s32.totalorder %s98, %s100
      %p104 = scmp.eq.s32.totalorder %s22, 0
      %p105 = por %p103, %p104
      %p106 = scmp.ne.s32.totalorder %s98, %s100
      %p107 = scmp.eq.s32.totalorder %s27, 1
      %p108 = por %p106, %p107
      %p109 = scmp.ne.s32.totalorder %s100, %s101
      %p110 = scmp.eq.s32.totalorder %s27, 0
      %p111 = por %p109, %p110
      %p112 = scmp.ne.s32.totalorder %s100, %s101
      %p113 = scmp.eq.s32.totalorder %s28, 1
      %p114 = por %p112, %p113
      %p116 = scmp.ne.s32.totalorder %s101, %s115
      %p117 = scmp.eq.s32.totalorder %s28, 0
      %p118 = por %p116, %p117
      %s120 = sadd.s32 %s119, 1
      %p123 = scmp.eq.s32.totalorder %s22, 1
      %p124 = scmp.ne.s32.totalorder %s119, %s121
      %p125 = scmp.eq.s32.totalorder %s22, 0
      %p126 = por %p124, %p125
      %p127 = scmp.ne.s32.totalorder %s119, %s121
      %p128 = scmp.eq.s32.totalorder %s27, 1
      %p129 = por %p127, %p128
      %p130 = scmp.ne.s32.totalorder %s121, %s122
      %p131 = scmp.eq.s32.totalorder %s27, 0
      %p132 = por %p130, %p131
      %p133 = scmp.ne.s32.totalorder %s121, %s122
      %p134 = scmp.eq.s32.totalorder %s28, 1
      %p135 = por %p133, %p134
      %p137 = scmp.ne.s32.totalorder %s122, %s136
      %p138 = scmp.eq.s32.totalorder %s28, 0
      %p139 = por %p137, %p138
      %s141 = sadd.s32 %s140, 1
      %p144 = scmp.eq.s32.totalorder %s22, 1
      %p145 = scmp.ne.s32.totalorder %s140, %s142
      %p146 = scmp.eq.s32.totalorder %s22, 0
      %p147 = por %p145, %p146
      %p148 = scmp.ne.s32.totalorder %s140, %s142
      %p149 = scmp.eq.s32.totalorder %s27, 1
      %p150 = por %p148, %p149
      %p151 = scmp.ne.s32.totalorder %s142, %s143
      %p152 = scmp.eq.s32.totalorder %s27, 0
      %p153 = por %p151, %p152
      %p154 = scmp.ne.s32.totalorder %s142, %s143
      %p155 = scmp.eq.s32.totalorder %s28, 1
      %p156 = por %p154, %p155
      %p158 = scmp.ne.s32.totalorder %s143, %s157
      %p159 = scmp.eq.s32.totalorder %s28, 0
      %p160 = por %p158, %p159
      %s162 = sadd.s32 %s161, 1
      %p165 = scmp.eq.s32.totalorder %s22, 1
      %p166 = scmp.ne.s32.totalorder %s161, %s163
      %p167 = scmp.eq.s32.totalorder %s22, 0
      %p168 = por %p166, %p167
      %p169 = scmp.ne.s32.totalorder %s161, %s163
      %p170 = scmp.eq.s32.totalorder %s27, 1
      %p171 = por %p169, %p170
      %p172 = scmp.ne.s32.totalorder %s163, %s164
      %p173 = scmp.eq.s32.totalorder %s27, 0
      %p174 = por %p172, %p173
      %p175 = scmp.ne.s32.totalorder %s163, %s164
      %p176 = scmp.eq.s32.totalorder %s28, 1
      %p177 = por %p175, %p176
      %p179 = scmp.ne.s32.totalorder %s164, %s178
      %p180 = scmp.eq.s32.totalorder %s28, 0
      %p181 = por %p179, %p180
      %s183 = sadd.s32 %s182, 1
      %p186 = scmp.eq.s32.totalorder %s22, 1
      %p187 = scmp.ne.s32.totalorder %s182, %s184
      %p188 = scmp.eq.s32.totalorder %s22, 0
      %p189 = por %p187, %p188
      %p190 = scmp.ne.s32.totalorder %s182, %s184
      %p191 = scmp.eq.s32.totalorder %s27, 1
      %p192 = por %p190, %p191
      %p193 = scmp.ne.s32.totalorder %s184, %s185
      %p194 = scmp.eq.s32.totalorder %s27, 0
      %p195 = por %p193, %p194
      %p196 = scmp.ne.s32.totalorder %s184, %s185
      %p197 = scmp.eq.s32.totalorder %s28, 1
      %p198 = por %p196, %p197
      %p200 = scmp.ne.s32.totalorder %s185, %s199
      %p201 = scmp.eq.s32.totalorder %s28, 0
      %p202 = por %p200, %p201
      %s204 = sadd.s32 %s203, 1
      %p207 = scmp.eq.s32.totalorder %s22, 1
      %p208 = scmp.ne.s32.totalorder %s203, %s205
      %p209 = scmp.eq.s32.totalorder %s22, 0
      %p210 = por %p208, %p209
      %p211 = scmp.ne.s32.totalorder %s203, %s205
      %p212 = scmp.eq.s32.totalorder %s27, 1
      %p213 = por %p211, %p212
      %p214 = scmp.ne.s32.totalorder %s205, %s206
      %p215 = scmp.eq.s32.totalorder %s27, 0
      %p216 = por %p214, %p215
      %p217 = scmp.ne.s32.totalorder %s205, %s206
      %p218 = scmp.eq.s32.totalorder %s28, 1
      %p219 = por %p217, %p218
      %p221 = scmp.ne.s32.totalorder %s206, %s220
      %p222 = scmp.eq.s32.totalorder %s28, 0
      %p223 = por %p221, %p222
      %s224 = ssub.s32 %s22, %s29
      %p225 = scmp.eq.s32.totalorder %s224, 0
      %s227 = sadd.s32 %s226, 1
      %s228 = scalar_select %p225, %s226, %s227
      %p231 = pneg %p225
      %p232 = scmp.eq.s32.totalorder %s22, 1
      %p233 = por %p231, %p232
      %p234 = scmp.ne.s32.totalorder %s226, %s229
      %p235 = scmp.eq.s32.totalorder %s22, 0
      %p236 = por %p234, %p235
      %p237 = scmp.ne.s32.totalorder %s226, %s229
      %p238 = scmp.eq.s32.totalorder %s27, 1
      %p239 = por %p237, %p238
      %p240 = scmp.ne.s32.totalorder %s229, %s230
      %p241 = scmp.eq.s32.totalorder %s27, 0
      %p242 = por %p240, %p241
      %p243 = scmp.ne.s32.totalorder %s229, %s230
      %p244 = scmp.eq.s32.totalorder %s28, 1
      %p245 = por %p243, %p244
      %p247 = scmp.ne.s32.totalorder %s230, %s246
      %p248 = scmp.eq.s32.totalorder %s28, 0
      %p249 = por %p247, %p248
      %p250 = scmp.le.s32.totalorder 1, %s22
      %p251 = scmp.lt.s32.totalorder %s22, 3
      %p252 = pnand %p250, %p251
      %p253 = pneg %p252
      // Predicated region
      $region9: #{tpu_custom_call.1} parent=5 // pred_check
        _
      $region10: #{tpu_custom_call.1} parent=5 // pred_check_branch
        %255 = sbr.rel (%p252) target = $region12
      $region11: #{tpu_custom_call.1} parent=5 // pred_region
        %s256 = ssub.s32 %s22, 1
        // Predicated region
        $region13: #{tpu_custom_call.1} parent=11 // pred_check
          %p257 = pneg %p69
        $region14: #{tpu_custom_call.1} parent=11 // pred_check_branch
          %259 = sbr.rel (%p257) target = $region16
        $region15: #{tpu_custom_call.1} parent=11 // pred_region
          _
        $region16: #{tpu_custom_call.1} parent=11 // pred_fallthru
          _
        // Predicated region
        $region17: #{tpu_custom_call.1} parent=11 // pred_check
          %p260 = pneg %p90
        $region18: #{tpu_custom_call.1} parent=11 // pred_check_branch
          %262 = sbr.rel (%p260) target = $region20
        $region19: #{tpu_custom_call.1} parent=11 // pred_region
          _
        $region20: #{tpu_custom_call.1} parent=11 // pred_fallthru
          _
        // Predicated region
        $region21: #{tpu_custom_call.1} parent=11 // pred_check
          %p263 = pneg %p111
        $region22: #{tpu_custom_call.1} parent=11 // pred_check_branch
          %265 = sbr.rel (%p263) target = $region24
        $region23: #{tpu_custom_call.1} parent=11 // pred_region
          %s267 = ssub.s32 32768, 32768
          %268 = vsyncadd [#allocation4], %s267
          %s269 = sshll.u32 [#allocation3], 4
          %s270 = int_to_ptr.vmem [resolvable:$true] %s269
          %275 = dma.hbm_to_vmem [thread:$0]  %s3, 32768, %s270, [#allocation4], 256, 256, 16
        $region24: #{tpu_custom_call.1} parent=11 // pred_fallthru
          _
        // Predicated region
        $region25: #{tpu_custom_call.1} parent=11 // pred_check
          %p276 = pneg %p132
        $region26: #{tpu_custom_call.1} parent=11 // pred_check_branch
          %278 = sbr.rel (%p276) target = $region28
        $region27: #{tpu_custom_call.1} parent=11 // pred_region
          _
        $region28: #{tpu_custom_call.1} parent=11 // pred_fallthru
          _
        // Predicated region
        $region29: #{tpu_custom_call.1} parent=11 // pred_check
          %p279 = pneg %p153
        $region30: #{tpu_custom_call.1} parent=11 // pred_check_branch
          %281 = sbr.rel (%p279) target = $region32
        $region31: #{tpu_custom_call.1} parent=11 // pred_region
          %s283 = ssub.s32 8192, 8192
          %284 = vsyncadd [#allocation7], %s283
          %s285 = sshll.u32 [#allocation6], 4
          %s286 = int_to_ptr.vmem [resolvable:$true] %s285
          %291 = dma.hbm_to_vmem [thread:$0]  %s5, 8192, %s286, [#allocation7], 128, 128, 8
        $region32: #{tpu_custom_call.1} parent=11 // pred_fallthru
          _
        // Predicated region
        $region33: #{tpu_custom_call.1} parent=11 // pred_check
          %p292 = pneg %p174
        $region34: #{tpu_custom_call.1} parent=11 // pred_check_branch
          %294 = sbr.rel (%p292) target = $region36
        $region35: #{tpu_custom_call.1} parent=11 // pred_region
          _
        $region36: #{tpu_custom_call.1} parent=11 // pred_fallthru
          _
        // Predicated region
        $region37: #{tpu_custom_call.1} parent=11 // pred_check
          %p295 = pneg %p195
        $region38: #{tpu_custom_call.1} parent=11 // pred_check_branch
          %297 = sbr.rel (%p295) target = $region40
        $region39: #{tpu_custom_call.1} parent=11 // pred_region
          _
        $region40: #{tpu_custom_call.1} parent=11 // pred_fallthru
          _
        // Predicated region
        $region41: #{tpu_custom_call.1} parent=11 // pred_check
          %p298 = pneg %p216
        $region42: #{tpu_custom_call.1} parent=11 // pred_check_branch
          %300 = sbr.rel (%p298) target = $region44
        $region43: #{tpu_custom_call.1} parent=11 // pred_region
          _
        $region44: #{tpu_custom_call.1} parent=11 // pred_fallthru
          _
      $region12: #{tpu_custom_call.1} parent=5 // pred_fallthru
        _
      %p301 = scmp.lt.s32.totalorder %s22, 2
      // Predicated region
      $region45: #{tpu_custom_call.1} parent=5 // pred_check
        %p302 = pneg %p301
      $region46: #{tpu_custom_call.1} parent=5 // pred_check_branch
        %304 = sbr.rel (%p302) target = $region48
      $region47: #{tpu_custom_call.1} parent=5 // pred_region
        // Predicated region
        $region49: #{tpu_custom_call.1} parent=47 // pred_check
          %p305 = pneg %p42
        $region50: #{tpu_custom_call.1} parent=47 // pred_check_branch
          %307 = sbr.rel (%p305) target = $region52
        $region51: #{tpu_custom_call.1} parent=47 // pred_region
          %s308 = smul.u32 16, %s22
          %p309 = scmp.lt.s32.totalorder %s308, 31
          %s310 = scalar_select %p309, %s308, 31
          %s311 = smul.addr %s310, 7
          %s312 = smul.addr %s311, 8
          %s313 = scalar_lea.vmem %s0, %s312
          %s314 = smul.u32 16, %s22
        $region52: #{tpu_custom_call.1} parent=47 // pred_fallthru
          _
      $region48: #{tpu_custom_call.1} parent=5 // pred_fallthru
        _
      %p315 = scmp.le.s32.totalorder 1, %s22
      %p316 = scmp.lt.s32.totalorder %s22, 3
      %p317 = pnand %p315, %p316
      %p318 = pneg %p317
      // Predicated region
      $region53: #{tpu_custom_call.1} parent=5 // pred_check
        _
      $region54: #{tpu_custom_call.1} parent=5 // pred_check_branch
        %320 = sbr.rel (%p317) target = $region56
      $region55: #{tpu_custom_call.1} parent=5 // pred_region
        %s321 = ssub.s32 %s22, 1
        // Predicated region
        $region57: #{tpu_custom_call.1} parent=55 // pred_check
          %p322 = pneg %p111
        $region58: #{tpu_custom_call.1} parent=55 // pred_check_branch
          %324 = sbr.rel (%p322) target = $region60
        $region59: #{tpu_custom_call.1} parent=55 // pred_region
          %325 = dma.done [#allocation4], 32768
        $region60: #{tpu_custom_call.1} parent=55 // pred_fallthru
          _
        // Predicated region
        $region61: #{tpu_custom_call.1} parent=55 // pred_check
          %p326 = pneg %p153
        $region62: #{tpu_custom_call.1} parent=55 // pred_check_branch
          %328 = sbr.rel (%p326) target = $region64
        $region63: #{tpu_custom_call.1} parent=55 // pred_region
          %329 = dma.done [#allocation7], 8192
        $region64: #{tpu_custom_call.1} parent=55 // pred_fallthru
          _
        %s330 = smul.u32 16, %s27
        %p331 = scmp.lt.s32.totalorder %s330, 31
        %s332 = scalar_select %p331, %s330, 31
        %s333 = smul.addr %s332, 7
        %s334 = smul.addr %s333, 8
        %s335 = scalar_lea.vmem %s0, %s334
        %p336 = pneg %p48
        %p337 = pneg %p45
        %p338 = pneg %p69
        %p339 = pneg %p66
        %p340 = pneg %p90
        %p341 = pneg %p87
        %p342 = pneg %p111
        %p343 = pneg %p108
        %p344 = pneg %p132
        %p345 = pneg %p129
        %p346 = pneg %p153
        %p347 = pneg %p150
        %p348 = pneg %p174
        %p349 = pneg %p171
        %p350 = pneg %p195
        %p351 = pneg %p192
        %p352 = pneg %p216
        %p353 = pneg %p213
        %p354 = pneg %p242
        %p355 = pneg %p239
        %s356 = sand.u32 %s229, 1
        %s357 = scalar_lea.sflag [#allocation5], %s356
        %s358 = sand.u32 %s229, 1
        %s359 = scalar_lea.vmem [#allocation8], %s358
        %s360 = smul.u32 16, %s27
        %p361 = scmp.lt.s32.totalorder %s360, 31
        %s362 = scalar_select %p361, %s360, 31
        %s363 = smul.addr %s362, 7
        %s364 = smul.addr %s363, 8
        %s365 = scalar_lea.vmem %s0, %s364
        %s366 = smul.u32 16, %s27
        %v368 = vld [vmem:[%s365] sm:$0xff]
        %v369 = vld [vmem:[%s365 + $0x8] sm:$0xff]
        %v370 = vld [vmem:[%s365 + $0x10] sm:$0xff]
        %v371 = vld [vmem:[%s365 + $0x18] sm:$0xff]
        %v372 = vld [vmem:[%s365 + $0x20] sm:$0xff]
        %v373 = vld [vmem:[%s365 + $0x28] sm:$0xff]
        %v374 = vld [vmem:[%s365 + $0x30] sm:$0xff]
        %v375 = vld [vmem:[%s365 + $0x38] sm:$0xff]
        %v376 = vld [vmem:[%s365 + $0x40] sm:$0xff]
        %v377 = vld [vmem:[%s365 + $0x48] sm:$0xff]
        %v378 = vld [vmem:[%s365 + $0x50] sm:$0xff]
        %v379 = vld [vmem:[%s365 + $0x58] sm:$0xff]
        %v380 = vld [vmem:[%s365 + $0x60] sm:$0xff]
        %v381 = vld [vmem:[%s365 + $0x68] sm:$0xff]
        %v382 = vld [vmem:[%s365 + $0x70] sm:$0xff]
        %v383 = vld [vmem:[%s365 + $0x78] sm:$0xff]
        %v384 = vld [vmem:[%s365 + $0x80] sm:$0xff]
        %v385 = vld [vmem:[%s365 + $0x88] sm:$0xff]
        %v386 = vld [vmem:[%s365 + $0x90] sm:$0xff]
        %v387 = vld [vmem:[%s365 + $0x98] sm:$0xff]
        %v388 = vld [vmem:[%s365 + $0xa0] sm:$0xff]
        %v389 = vld [vmem:[%s365 + $0xa8] sm:$0xff]
        %v390 = vld [vmem:[%s365 + $0xb0] sm:$0xff]
        %v391 = vld [vmem:[%s365 + $0xb8] sm:$0xff]
        %v392 = vld [vmem:[%s365 + $0xc0] sm:$0xff]
        %v393 = vld [vmem:[%s365 + $0xc8] sm:$0xff]
        %v394 = vld [vmem:[%s365 + $0xd0] sm:$0xff]
        %v395 = vld [vmem:[%s365 + $0xd8] sm:$0xff]
        %v396 = vld [vmem:[%s365 + $0xe0] sm:$0xff]
        %v397 = vld [vmem:[%s365 + $0xe8] sm:$0xff]
        %v398 = vld [vmem:[%s365 + $0xf0] sm:$0xff]
        %v399 = vld [vmem:[%s365 + $0xf8] sm:$0xff]
        %v400 = vld [vmem:[%s365 + $0x100] sm:$0xff]
        %v401 = vld [vmem:[%s365 + $0x108] sm:$0xff]
        %v402 = vld [vmem:[%s365 + $0x110] sm:$0xff]
        %v403 = vld [vmem:[%s365 + $0x118] sm:$0xff]
        %v404 = vld [vmem:[%s365 + $0x120] sm:$0xff]
        %v405 = vld [vmem:[%s365 + $0x128] sm:$0xff]
        %v406 = vld [vmem:[%s365 + $0x130] sm:$0xff]
        %v407 = vld [vmem:[%s365 + $0x138] sm:$0xff]
        %v408 = vld [vmem:[%s365 + $0x140] sm:$0xff]
        %v409 = vld [vmem:[%s365 + $0x148] sm:$0xff]
        %v410 = vld [vmem:[%s365 + $0x150] sm:$0xff]
        %v411 = vld [vmem:[%s365 + $0x158] sm:$0xff]
        %v412 = vld [vmem:[%s365 + $0x160] sm:$0xff]
        %v413 = vld [vmem:[%s365 + $0x168] sm:$0xff]
        %v414 = vld [vmem:[%s365 + $0x170] sm:$0xff]
        %v415 = vld [vmem:[%s365 + $0x178] sm:$0xff]
        %v416 = vld [vmem:[%s365 + $0x180] sm:$0xff]
        %v417 = vld [vmem:[%s365 + $0x188] sm:$0xff]
        %v418 = vld [vmem:[%s365 + $0x190] sm:$0xff]
        %v419 = vld [vmem:[%s365 + $0x198] sm:$0xff]
        %v420 = vld [vmem:[%s365 + $0x1a0] sm:$0xff]
        %v421 = vld [vmem:[%s365 + $0x1a8] sm:$0xff]
        %v422 = vld [vmem:[%s365 + $0x1b0] sm:$0xff]
        %v423 = vld [vmem:[%s365 + $0x1b8] sm:$0xff]
        %v424 = vld [vmem:[%s365 + $0x1c0] sm:$0xff]
        %v425 = vld [vmem:[%s365 + $0x1c8] sm:$0xff]
        %v426 = vld [vmem:[%s365 + $0x1d0] sm:$0xff]
        %v427 = vld [vmem:[%s365 + $0x1d8] sm:$0xff]
        %v428 = vld [vmem:[%s365 + $0x1e0] sm:$0xff]
        %v429 = vld [vmem:[%s365 + $0x1e8] sm:$0xff]
        %v430 = vld [vmem:[%s365 + $0x1f0] sm:$0xff]
        %v431 = vld [vmem:[%s365 + $0x1f8] sm:$0xff]
        %v432 = vld [vmem:[%s365 + $0x200] sm:$0xff]
        %v433 = vld [vmem:[%s365 + $0x208] sm:$0xff]
        %v434 = vld [vmem:[%s365 + $0x210] sm:$0xff]
        %v435 = vld [vmem:[%s365 + $0x218] sm:$0xff]
        %v436 = vld [vmem:[%s365 + $0x220] sm:$0xff]
        %v437 = vld [vmem:[%s365 + $0x228] sm:$0xff]
        %v438 = vld [vmem:[%s365 + $0x230] sm:$0xff]
        %v439 = vld [vmem:[%s365 + $0x238] sm:$0xff]
        %v440 = vld [vmem:[%s365 + $0x240] sm:$0xff]
        %v441 = vld [vmem:[%s365 + $0x248] sm:$0xff]
        %v442 = vld [vmem:[%s365 + $0x250] sm:$0xff]
        %v443 = vld [vmem:[%s365 + $0x258] sm:$0xff]
        %v444 = vld [vmem:[%s365 + $0x260] sm:$0xff]
        %v445 = vld [vmem:[%s365 + $0x268] sm:$0xff]
        %v446 = vld [vmem:[%s365 + $0x270] sm:$0xff]
        %v447 = vld [vmem:[%s365 + $0x278] sm:$0xff]
        %v448 = vld [vmem:[%s365 + $0x280] sm:$0xff]
        %v449 = vld [vmem:[%s365 + $0x288] sm:$0xff]
        %v450 = vld [vmem:[%s365 + $0x290] sm:$0xff]
        %v451 = vld [vmem:[%s365 + $0x298] sm:$0xff]
        %v452 = vld [vmem:[%s365 + $0x2a0] sm:$0xff]
        %v453 = vld [vmem:[%s365 + $0x2a8] sm:$0xff]
        %v454 = vld [vmem:[%s365 + $0x2b0] sm:$0xff]
        %v455 = vld [vmem:[%s365 + $0x2b8] sm:$0xff]
        %v456 = vld [vmem:[%s365 + $0x2c0] sm:$0xff]
        %v457 = vld [vmem:[%s365 + $0x2c8] sm:$0xff]
        %v458 = vld [vmem:[%s365 + $0x2d0] sm:$0xff]
        %v459 = vld [vmem:[%s365 + $0x2d8] sm:$0xff]
        %v460 = vld [vmem:[%s365 + $0x2e0] sm:$0xff]
        %v461 = vld [vmem:[%s365 + $0x2e8] sm:$0xff]
        %v462 = vld [vmem:[%s365 + $0x2f0] sm:$0xff]
        %v463 = vld [vmem:[%s365 + $0x2f8] sm:$0xff]
        %v464 = vld [vmem:[%s365 + $0x300] sm:$0xff]
        %v465 = vld [vmem:[%s365 + $0x308] sm:$0xff]
        %v466 = vld [vmem:[%s365 + $0x310] sm:$0xff]
        %v467 = vld [vmem:[%s365 + $0x318] sm:$0xff]
        %v468 = vld [vmem:[%s365 + $0x320] sm:$0xff]
        %v469 = vld [vmem:[%s365 + $0x328] sm:$0xff]
        %v470 = vld [vmem:[%s365 + $0x330] sm:$0xff]
        %v471 = vld [vmem:[%s365 + $0x338] sm:$0xff]
        %v472 = vld [vmem:[%s365 + $0x340] sm:$0xff]
        %v473 = vld [vmem:[%s365 + $0x348] sm:$0xff]
        %v474 = vld [vmem:[%s365 + $0x350] sm:$0xff]
        %v475 = vld [vmem:[%s365 + $0x358] sm:$0xff]
        %v476 = vld [vmem:[%s365 + $0x360] sm:$0xff]
        %v477 = vld [vmem:[%s365 + $0x368] sm:$0xff]
        %v478 = vld [vmem:[%s365 + $0x370] sm:$0xff]
        %v479 = vld [vmem:[%s365 + $0x378] sm:$0xff]
        %v480 = vpack.c.bf16 %v375, %v368
        %v481 = vpack.c.bf16 %v376, %v369
        %v482 = vpack.c.bf16 %v377, %v370
        %v483 = vpack.c.bf16 %v378, %v371
        %v484 = vpack.c.bf16 %v379, %v372
        %v485 = vpack.c.bf16 %v380, %v373
        %v486 = vpack.c.bf16 %v381, %v374
        %v487 = vpack.c.bf16 %v389, %v382
        %v488 = vpack.c.bf16 %v390, %v383
        %v489 = vpack.c.bf16 %v391, %v384
        %v490 = vpack.c.bf16 %v392, %v385
        %v491 = vpack.c.bf16 %v393, %v386
        %v492 = vpack.c.bf16 %v394, %v387
        %v493 = vpack.c.bf16 %v395, %v388
        %v494 = vpack.c.bf16 %v403, %v396
        %v495 = vpack.c.bf16 %v404, %v397
        %v496 = vpack.c.bf16 %v405, %v398
        %v497 = vpack.c.bf16 %v406, %v399
        %v498 = vpack.c.bf16 %v407, %v400
        %v499 = vpack.c.bf16 %v408, %v401
        %v500 = vpack.c.bf16 %v409, %v402
        %v501 = vpack.c.bf16 %v417, %v410
        %v502 = vpack.c.bf16 %v418, %v411
        %v503 = vpack.c.bf16 %v419, %v412
        %v504 = vpack.c.bf16 %v420, %v413
        %v505 = vpack.c.bf16 %v421, %v414
        %v506 = vpack.c.bf16 %v422, %v415
        %v507 = vpack.c.bf16 %v423, %v416
        %v508 = vpack.c.bf16 %v431, %v424
        %v509 = vpack.c.bf16 %v432, %v425
        %v510 = vpack.c.bf16 %v433, %v426
        %v511 = vpack.c.bf16 %v434, %v427
        %v512 = vpack.c.bf16 %v435, %v428
        %v513 = vpack.c.bf16 %v436, %v429
        %v514 = vpack.c.bf16 %v437, %v430
        %v515 = vpack.c.bf16 %v445, %v438
        %v516 = vpack.c.bf16 %v446, %v439
        %v517 = vpack.c.bf16 %v447, %v440
        %v518 = vpack.c.bf16 %v448, %v441
        %v519 = vpack.c.bf16 %v449, %v442
        %v520 = vpack.c.bf16 %v450, %v443
        %v521 = vpack.c.bf16 %v451, %v444
        %v522 = vpack.c.bf16 %v459, %v452
        %v523 = vpack.c.bf16 %v460, %v453
        %v524 = vpack.c.bf16 %v461, %v454
        %v525 = vpack.c.bf16 %v462, %v455
        %v526 = vpack.c.bf16 %v463, %v456
        %v527 = vpack.c.bf16 %v464, %v457
        %v528 = vpack.c.bf16 %v465, %v458
        %v529 = vpack.c.bf16 %v473, %v466
        %v530 = vpack.c.bf16 %v474, %v467
        %v531 = vpack.c.bf16 %v475, %v468
        %v532 = vpack.c.bf16 %v476, %v469
        %v533 = vpack.c.bf16 %v477, %v470
        %v534 = vpack.c.bf16 %v478, %v471
        %v535 = vpack.c.bf16 %v479, %v472
        %v536 = vld [vmem:[%s1] sm:$0xff]
        %v537 = vld [vmem:[%s1 + $0x8] sm:$0xff]
        %v538 = vld [vmem:[%s1 + $0x10] sm:$0xff]
        %v539 = vld [vmem:[%s1 + $0x18] sm:$0xff]
        %v540 = vld [vmem:[%s1 + $0x20] sm:$0xff]
        %v541 = vld [vmem:[%s1 + $0x28] sm:$0xff]
        %v542 = vld [vmem:[%s1 + $0x30] sm:$0xff]
        %v543 = vld [vmem:[%s1 + $0x38] sm:$0xff]
        %v544 = vld [vmem:[%s1 + $0x40] sm:$0xff]
        %v545 = vld [vmem:[%s1 + $0x48] sm:$0xff]
        %v546 = vld [vmem:[%s1 + $0x50] sm:$0xff]
        %v547 = vld [vmem:[%s1 + $0x58] sm:$0xff]
        %v548 = vld [vmem:[%s1 + $0x60] sm:$0xff]
        %v549 = vld [vmem:[%s1 + $0x68] sm:$0xff]
        %v550 = vld [vmem:[%s1 + $0x70] sm:$0xff]
        %v551 = vld [vmem:[%s1 + $0x78] sm:$0xff]
        %v552 = vld [vmem:[%s1 + $0x80] sm:$0xff]
        %v553 = vld [vmem:[%s1 + $0x88] sm:$0xff]
        %v554 = vld [vmem:[%s1 + $0x90] sm:$0xff]
        %v555 = vld [vmem:[%s1 + $0x98] sm:$0xff]
        %v556 = vld [vmem:[%s1 + $0xa0] sm:$0xff]
        %v557 = vld [vmem:[%s1 + $0xa8] sm:$0xff]
        %v558 = vld [vmem:[%s1 + $0xb0] sm:$0xff]
        %v559 = vld [vmem:[%s1 + $0xb8] sm:$0xff]
        %v560 = vld [vmem:[%s1 + $0xc0] sm:$0xff]
        %v561 = vld [vmem:[%s1 + $0xc8] sm:$0xff]
        %v562 = vld [vmem:[%s1 + $0xd0] sm:$0xff]
        %v563 = vld [vmem:[%s1 + $0xd8] sm:$0xff]
        %v564 = vld [vmem:[%s1 + $0xe0] sm:$0xff]
        %v565 = vld [vmem:[%s1 + $0xe8] sm:$0xff]
        %v566 = vld [vmem:[%s1 + $0xf0] sm:$0xff]
        %v567 = vld [vmem:[%s1 + $0xf8] sm:$0xff]
        %v568 = vld [vmem:[%s1 + $0x100] sm:$0xff]
        %v569 = vld [vmem:[%s1 + $0x108] sm:$0xff]
        %v570 = vld [vmem:[%s1 + $0x110] sm:$0xff]
        %v571 = vld [vmem:[%s1 + $0x118] sm:$0xff]
        %v572 = vld [vmem:[%s1 + $0x120] sm:$0xff]
        %v573 = vld [vmem:[%s1 + $0x128] sm:$0xff]
        %v574 = vld [vmem:[%s1 + $0x130] sm:$0xff]
        %v575 = vld [vmem:[%s1 + $0x138] sm:$0xff]
        %v576 = vld [vmem:[%s1 + $0x140] sm:$0xff]
        %v577 = vld [vmem:[%s1 + $0x148] sm:$0xff]
        %v578 = vld [vmem:[%s1 + $0x150] sm:$0xff]
        %v579 = vld [vmem:[%s1 + $0x158] sm:$0xff]
        %v580 = vld [vmem:[%s1 + $0x160] sm:$0xff]
        %v581 = vld [vmem:[%s1 + $0x168] sm:$0xff]
        %v582 = vld [vmem:[%s1 + $0x170] sm:$0xff]
        %v583 = vld [vmem:[%s1 + $0x178] sm:$0xff]
        %v584 = vld [vmem:[%s1 + $0x180] sm:$0xff]
        %v585 = vld [vmem:[%s1 + $0x188] sm:$0xff]
        %v586 = vld [vmem:[%s1 + $0x190] sm:$0xff]
        %v587 = vld [vmem:[%s1 + $0x198] sm:$0xff]
        %v588 = vld [vmem:[%s1 + $0x1a0] sm:$0xff]
        %v589 = vld [vmem:[%s1 + $0x1a8] sm:$0xff]
        %v590 = vld [vmem:[%s1 + $0x1b0] sm:$0xff]
        %v591 = vld [vmem:[%s1 + $0x1b8] sm:$0xff]
        %v592 = vld [vmem:[%s1 + $0x1c0] sm:$0xff]
        %v593 = vld [vmem:[%s1 + $0x1c8] sm:$0xff]
        %v594 = vld [vmem:[%s1 + $0x1d0] sm:$0xff]
        %v595 = vld [vmem:[%s1 + $0x1d8] sm:$0xff]
        %v596 = vld [vmem:[%s1 + $0x1e0] sm:$0xff]
        %v597 = vld [vmem:[%s1 + $0x1e8] sm:$0xff]
        %v598 = vld [vmem:[%s1 + $0x1f0] sm:$0xff]
        %v599 = vld [vmem:[%s1 + $0x1f8] sm:$0xff]
        %v600 = vld [vmem:[%s1 + $0x200] sm:$0xff]
        %v601 = vld [vmem:[%s1 + $0x208] sm:$0xff]
        %v602 = vld [vmem:[%s1 + $0x210] sm:$0xff]
        %v603 = vld [vmem:[%s1 + $0x218] sm:$0xff]
        %v604 = vld [vmem:[%s1 + $0x220] sm:$0xff]
        %v605 = vld [vmem:[%s1 + $0x228] sm:$0xff]
        %v606 = vld [vmem:[%s1 + $0x230] sm:$0xff]
        %v607 = vld [vmem:[%s1 + $0x238] sm:$0xff]
        %v608 = vld [vmem:[%s1 + $0x240] sm:$0xff]
        %v609 = vld [vmem:[%s1 + $0x248] sm:$0xff]
        %v610 = vld [vmem:[%s1 + $0x250] sm:$0xff]
        %v611 = vld [vmem:[%s1 + $0x258] sm:$0xff]
        %v612 = vld [vmem:[%s1 + $0x260] sm:$0xff]
        %v613 = vld [vmem:[%s1 + $0x268] sm:$0xff]
        %v614 = vld [vmem:[%s1 + $0x270] sm:$0xff]
        %v615 = vld [vmem:[%s1 + $0x278] sm:$0xff]
        %v616 = vld [vmem:[%s1 + $0x280] sm:$0xff]
        %v617 = vld [vmem:[%s1 + $0x288] sm:$0xff]
        %v618 = vld [vmem:[%s1 + $0x290] sm:$0xff]
        %v619 = vld [vmem:[%s1 + $0x298] sm:$0xff]
        %v620 = vld [vmem:[%s1 + $0x2a0] sm:$0xff]
        %v621 = vld [vmem:[%s1 + $0x2a8] sm:$0xff]
        %v622 = vld [vmem:[%s1 + $0x2b0] sm:$0xff]
        %v623 = vld [vmem:[%s1 + $0x2b8] sm:$0xff]
        %v624 = vld [vmem:[%s1 + $0x2c0] sm:$0xff]
        %v625 = vld [vmem:[%s1 + $0x2c8] sm:$0xff]
        %v626 = vld [vmem:[%s1 + $0x2d0] sm:$0xff]
        %v627 = vld [vmem:[%s1 + $0x2d8] sm:$0xff]
        %v628 = vld [vmem:[%s1 + $0x2e0] sm:$0xff]
        %v629 = vld [vmem:[%s1 + $0x2e8] sm:$0xff]
        %v630 = vld [vmem:[%s1 + $0x2f0] sm:$0xff]
        %v631 = vld [vmem:[%s1 + $0x2f8] sm:$0xff]
        %v632 = vld [vmem:[%s1 + $0x300] sm:$0xff]
        %v633 = vld [vmem:[%s1 + $0x308] sm:$0xff]
        %v634 = vld [vmem:[%s1 + $0x310] sm:$0xff]
        %v635 = vld [vmem:[%s1 + $0x318] sm:$0xff]
        %v636 = vld [vmem:[%s1 + $0x320] sm:$0xff]
        %v637 = vld [vmem:[%s1 + $0x328] sm:$0xff]
        %v638 = vld [vmem:[%s1 + $0x330] sm:$0xff]
        %v639 = vld [vmem:[%s1 + $0x338] sm:$0xff]
        %v640 = vld [vmem:[%s1 + $0x340] sm:$0xff]
        %v641 = vld [vmem:[%s1 + $0x348] sm:$0xff]
        %v642 = vld [vmem:[%s1 + $0x350] sm:$0xff]
        %v643 = vld [vmem:[%s1 + $0x358] sm:$0xff]
        %v644 = vld [vmem:[%s1 + $0x360] sm:$0xff]
        %v645 = vld [vmem:[%s1 + $0x368] sm:$0xff]
        %v646 = vld [vmem:[%s1 + $0x370] sm:$0xff]
        %v647 = vld [vmem:[%s1 + $0x378] sm:$0xff]
        %v648 = vld [vmem:[%s1 + $0x380] sm:$0xff]
        %v649 = vld [vmem:[%s1 + $0x388] sm:$0xff]
        %v650 = vld [vmem:[%s1 + $0x390] sm:$0xff]
        %v651 = vld [vmem:[%s1 + $0x398] sm:$0xff]
        %v652 = vld [vmem:[%s1 + $0x3a0] sm:$0xff]
        %v653 = vld [vmem:[%s1 + $0x3a8] sm:$0xff]
        %v654 = vld [vmem:[%s1 + $0x3b0] sm:$0xff]
        %v655 = vld [vmem:[%s1 + $0x3b8] sm:$0xff]
        %v656 = vld [vmem:[%s1 + $0x3c0] sm:$0xff]
        %v657 = vld [vmem:[%s1 + $0x3c8] sm:$0xff]
        %v658 = vld [vmem:[%s1 + $0x3d0] sm:$0xff]
        %v659 = vld [vmem:[%s1 + $0x3d8] sm:$0xff]
        %v660 = vld [vmem:[%s1 + $0x3e0] sm:$0xff]
        %v661 = vld [vmem:[%s1 + $0x3e8] sm:$0xff]
        %v662 = vld [vmem:[%s1 + $0x3f0] sm:$0xff]
        %v663 = vld [vmem:[%s1 + $0x3f8] sm:$0xff]
        %v664 = vld [vmem:[%s1 + $0x400] sm:$0xff]
        %v665 = vld [vmem:[%s1 + $0x408] sm:$0xff]
        %v666 = vld [vmem:[%s1 + $0x410] sm:$0xff]
        %v667 = vld [vmem:[%s1 + $0x418] sm:$0xff]
        %v668 = vld [vmem:[%s1 + $0x420] sm:$0xff]
        %v669 = vld [vmem:[%s1 + $0x428] sm:$0xff]
        %v670 = vld [vmem:[%s1 + $0x430] sm:$0xff]
        %v671 = vld [vmem:[%s1 + $0x438] sm:$0xff]
        %v672 = vld [vmem:[%s1 + $0x440] sm:$0xff]
        %v673 = vld [vmem:[%s1 + $0x448] sm:$0xff]
        %v674 = vld [vmem:[%s1 + $0x450] sm:$0xff]
        %v675 = vld [vmem:[%s1 + $0x458] sm:$0xff]
        %v676 = vld [vmem:[%s1 + $0x460] sm:$0xff]
        %v677 = vld [vmem:[%s1 + $0x468] sm:$0xff]
        %v678 = vld [vmem:[%s1 + $0x470] sm:$0xff]
        %v679 = vld [vmem:[%s1 + $0x478] sm:$0xff]
        %v680 = vld [vmem:[%s1 + $0x480] sm:$0xff]
        %v681 = vld [vmem:[%s1 + $0x488] sm:$0xff]
        %v682 = vld [vmem:[%s1 + $0x490] sm:$0xff]
        %v683 = vld [vmem:[%s1 + $0x498] sm:$0xff]
        %v684 = vld [vmem:[%s1 + $0x4a0] sm:$0xff]
        %v685 = vld [vmem:[%s1 + $0x4a8] sm:$0xff]
        %v686 = vld [vmem:[%s1 + $0x4b0] sm:$0xff]
        %v687 = vld [vmem:[%s1 + $0x4b8] sm:$0xff]
        %v688 = vld [vmem:[%s1 + $0x4c0] sm:$0xff]
        %v689 = vld [vmem:[%s1 + $0x4c8] sm:$0xff]
        %v690 = vld [vmem:[%s1 + $0x4d0] sm:$0xff]
        %v691 = vld [vmem:[%s1 + $0x4d8] sm:$0xff]
        %v692 = vld [vmem:[%s1 + $0x4e0] sm:$0xff]
        %v693 = vld [vmem:[%s1 + $0x4e8] sm:$0xff]
        %v694 = vld [vmem:[%s1 + $0x4f0] sm:$0xff]
        %v695 = vld [vmem:[%s1 + $0x4f8] sm:$0xff]
        %v696 = vld [vmem:[%s1 + $0x500] sm:$0xff]
        %v697 = vld [vmem:[%s1 + $0x508] sm:$0xff]
        %v698 = vld [vmem:[%s1 + $0x510] sm:$0xff]
        %v699 = vld [vmem:[%s1 + $0x518] sm:$0xff]
        %v700 = vld [vmem:[%s1 + $0x520] sm:$0xff]
        %v701 = vld [vmem:[%s1 + $0x528] sm:$0xff]
        %v702 = vld [vmem:[%s1 + $0x530] sm:$0xff]
        %v703 = vld [vmem:[%s1 + $0x538] sm:$0xff]
        %v704 = vld [vmem:[%s1 + $0x540] sm:$0xff]
        %v705 = vld [vmem:[%s1 + $0x548] sm:$0xff]
        %v706 = vld [vmem:[%s1 + $0x550] sm:$0xff]
        %v707 = vld [vmem:[%s1 + $0x558] sm:$0xff]
        %v708 = vld [vmem:[%s1 + $0x560] sm:$0xff]
        %v709 = vld [vmem:[%s1 + $0x568] sm:$0xff]
        %v710 = vld [vmem:[%s1 + $0x570] sm:$0xff]
        %v711 = vld [vmem:[%s1 + $0x578] sm:$0xff]
        %v712 = vld [vmem:[%s1 + $0x580] sm:$0xff]
        %v713 = vld [vmem:[%s1 + $0x588] sm:$0xff]
        %v714 = vld [vmem:[%s1 + $0x590] sm:$0xff]
        %v715 = vld [vmem:[%s1 + $0x598] sm:$0xff]
        %v716 = vld [vmem:[%s1 + $0x5a0] sm:$0xff]
        %v717 = vld [vmem:[%s1 + $0x5a8] sm:$0xff]
        %v718 = vld [vmem:[%s1 + $0x5b0] sm:$0xff]
        %v719 = vld [vmem:[%s1 + $0x5b8] sm:$0xff]
        %v720 = vld [vmem:[%s1 + $0x5c0] sm:$0xff]
        %v721 = vld [vmem:[%s1 + $0x5c8] sm:$0xff]
        %v722 = vld [vmem:[%s1 + $0x5d0] sm:$0xff]
        %v723 = vld [vmem:[%s1 + $0x5d8] sm:$0xff]
        %v724 = vld [vmem:[%s1 + $0x5e0] sm:$0xff]
        %v725 = vld [vmem:[%s1 + $0x5e8] sm:$0xff]
        %v726 = vld [vmem:[%s1 + $0x5f0] sm:$0xff]
        %v727 = vld [vmem:[%s1 + $0x5f8] sm:$0xff]
        %v728 = vld [vmem:[%s1 + $0x600] sm:$0xff]
        %v729 = vld [vmem:[%s1 + $0x608] sm:$0xff]
        %v730 = vld [vmem:[%s1 + $0x610] sm:$0xff]
        %v731 = vld [vmem:[%s1 + $0x618] sm:$0xff]
        %v732 = vld [vmem:[%s1 + $0x620] sm:$0xff]
        %v733 = vld [vmem:[%s1 + $0x628] sm:$0xff]
        %v734 = vld [vmem:[%s1 + $0x630] sm:$0xff]
        %v735 = vld [vmem:[%s1 + $0x638] sm:$0xff]
        %v736 = vld [vmem:[%s1 + $0x640] sm:$0xff]
        %v737 = vld [vmem:[%s1 + $0x648] sm:$0xff]
        %v738 = vld [vmem:[%s1 + $0x650] sm:$0xff]
        %v739 = vld [vmem:[%s1 + $0x658] sm:$0xff]
        %v740 = vld [vmem:[%s1 + $0x660] sm:$0xff]
        %v741 = vld [vmem:[%s1 + $0x668] sm:$0xff]
        %v742 = vld [vmem:[%s1 + $0x670] sm:$0xff]
        %v743 = vld [vmem:[%s1 + $0x678] sm:$0xff]
        %v744 = vld [vmem:[%s1 + $0x680] sm:$0xff]
        %v745 = vld [vmem:[%s1 + $0x688] sm:$0xff]
        %v746 = vld [vmem:[%s1 + $0x690] sm:$0xff]
        %v747 = vld [vmem:[%s1 + $0x698] sm:$0xff]
        %v748 = vld [vmem:[%s1 + $0x6a0] sm:$0xff]
        %v749 = vld [vmem:[%s1 + $0x6a8] sm:$0xff]
        %v750 = vld [vmem:[%s1 + $0x6b0] sm:$0xff]
        %v751 = vld [vmem:[%s1 + $0x6b8] sm:$0xff]
        %v752 = vld [vmem:[%s1 + $0x6c0] sm:$0xff]
        %v753 = vld [vmem:[%s1 + $0x6c8] sm:$0xff]
        %v754 = vld [vmem:[%s1 + $0x6d0] sm:$0xff]
        %v755 = vld [vmem:[%s1 + $0x6d8] sm:$0xff]
        %v756 = vld [vmem:[%s1 + $0x6e0] sm:$0xff]
        %v757 = vld [vmem:[%s1 + $0x6e8] sm:$0xff]
        %v758 = vld [vmem:[%s1 + $0x6f0] sm:$0xff]
        %v759 = vld [vmem:[%s1 + $0x6f8] sm:$0xff]
        %v760 = vld [vmem:[%s1 + $0x700] sm:$0xff]
        %v761 = vld [vmem:[%s1 + $0x708] sm:$0xff]
        %v762 = vld [vmem:[%s1 + $0x710] sm:$0xff]
        %v763 = vld [vmem:[%s1 + $0x718] sm:$0xff]
        %v764 = vld [vmem:[%s1 + $0x720] sm:$0xff]
        %v765 = vld [vmem:[%s1 + $0x728] sm:$0xff]
        %v766 = vld [vmem:[%s1 + $0x730] sm:$0xff]
        %v767 = vld [vmem:[%s1 + $0x738] sm:$0xff]
        %v768 = vld [vmem:[%s1 + $0x740] sm:$0xff]
        %v769 = vld [vmem:[%s1 + $0x748] sm:$0xff]
        %v770 = vld [vmem:[%s1 + $0x750] sm:$0xff]
        %v771 = vld [vmem:[%s1 + $0x758] sm:$0xff]
        %v772 = vld [vmem:[%s1 + $0x760] sm:$0xff]
        %v773 = vld [vmem:[%s1 + $0x768] sm:$0xff]
        %v774 = vld [vmem:[%s1 + $0x770] sm:$0xff]
        %v775 = vld [vmem:[%s1 + $0x778] sm:$0xff]
        %v776 = vld [vmem:[%s1 + $0x780] sm:$0xff]
        %v777 = vld [vmem:[%s1 + $0x788] sm:$0xff]
        %v778 = vld [vmem:[%s1 + $0x790] sm:$0xff]
        %v779 = vld [vmem:[%s1 + $0x798] sm:$0xff]
        %v780 = vld [vmem:[%s1 + $0x7a0] sm:$0xff]
        %v781 = vld [vmem:[%s1 + $0x7a8] sm:$0xff]
        %v782 = vld [vmem:[%s1 + $0x7b0] sm:$0xff]
        %v783 = vld [vmem:[%s1 + $0x7b8] sm:$0xff]
        %v784 = vld [vmem:[%s1 + $0x7c0] sm:$0xff]
        %v785 = vld [vmem:[%s1 + $0x7c8] sm:$0xff]
        %v786 = vld [vmem:[%s1 + $0x7d0] sm:$0xff]
        %v787 = vld [vmem:[%s1 + $0x7d8] sm:$0xff]
        %v788 = vld [vmem:[%s1 + $0x7e0] sm:$0xff]
        %v789 = vld [vmem:[%s1 + $0x7e8] sm:$0xff]
        %v790 = vld [vmem:[%s1 + $0x7f0] sm:$0xff]
        %v791 = vld [vmem:[%s1 + $0x7f8] sm:$0xff]
        %v792 = vld [vmem:[%s1 + $0x800] sm:$0xff]
        %v793 = vld [vmem:[%s1 + $0x808] sm:$0xff]
        %v794 = vld [vmem:[%s1 + $0x810] sm:$0xff]
        %v795 = vld [vmem:[%s1 + $0x818] sm:$0xff]
        %v796 = vld [vmem:[%s1 + $0x820] sm:$0xff]
        %v797 = vld [vmem:[%s1 + $0x828] sm:$0xff]
        %v798 = vld [vmem:[%s1 + $0x830] sm:$0xff]
        %v799 = vld [vmem:[%s1 + $0x838] sm:$0xff]
        %v800 = vld [vmem:[%s1 + $0x840] sm:$0xff]
        %v801 = vld [vmem:[%s1 + $0x848] sm:$0xff]
        %v802 = vld [vmem:[%s1 + $0x850] sm:$0xff]
        %v803 = vld [vmem:[%s1 + $0x858] sm:$0xff]
        %v804 = vld [vmem:[%s1 + $0x860] sm:$0xff]
        %v805 = vld [vmem:[%s1 + $0x868] sm:$0xff]
        %v806 = vld [vmem:[%s1 + $0x870] sm:$0xff]
        %v807 = vld [vmem:[%s1 + $0x878] sm:$0xff]
        %v808 = vld [vmem:[%s1 + $0x880] sm:$0xff]
        %v809 = vld [vmem:[%s1 + $0x888] sm:$0xff]
        %v810 = vld [vmem:[%s1 + $0x890] sm:$0xff]
        %v811 = vld [vmem:[%s1 + $0x898] sm:$0xff]
        %v812 = vld [vmem:[%s1 + $0x8a0] sm:$0xff]
        %v813 = vld [vmem:[%s1 + $0x8a8] sm:$0xff]
        %v814 = vld [vmem:[%s1 + $0x8b0] sm:$0xff]
        %v815 = vld [vmem:[%s1 + $0x8b8] sm:$0xff]
        %v816 = vld [vmem:[%s1 + $0x8c0] sm:$0xff]
        %v817 = vld [vmem:[%s1 + $0x8c8] sm:$0xff]
        %v818 = vld [vmem:[%s1 + $0x8d0] sm:$0xff]
        %v819 = vld [vmem:[%s1 + $0x8d8] sm:$0xff]
        %v820 = vld [vmem:[%s1 + $0x8e0] sm:$0xff]
        %v821 = vld [vmem:[%s1 + $0x8e8] sm:$0xff]
        %v822 = vld [vmem:[%s1 + $0x8f0] sm:$0xff]
        %v823 = vld [vmem:[%s1 + $0x8f8] sm:$0xff]
        %v824 = vld [vmem:[%s1 + $0x900] sm:$0xff]
        %v825 = vld [vmem:[%s1 + $0x908] sm:$0xff]
        %v826 = vld [vmem:[%s1 + $0x910] sm:$0xff]
        %v827 = vld [vmem:[%s1 + $0x918] sm:$0xff]
        %v828 = vld [vmem:[%s1 + $0x920] sm:$0xff]
        %v829 = vld [vmem:[%s1 + $0x928] sm:$0xff]
        %v830 = vld [vmem:[%s1 + $0x930] sm:$0xff]
        %v831 = vld [vmem:[%s1 + $0x938] sm:$0xff]
        %v832 = vld [vmem:[%s1 + $0x940] sm:$0xff]
        %v833 = vld [vmem:[%s1 + $0x948] sm:$0xff]
        %v834 = vld [vmem:[%s1 + $0x950] sm:$0xff]
        %v835 = vld [vmem:[%s1 + $0x958] sm:$0xff]
        %v836 = vld [vmem:[%s1 + $0x960] sm:$0xff]
        %v837 = vld [vmem:[%s1 + $0x968] sm:$0xff]
        %v838 = vld [vmem:[%s1 + $0x970] sm:$0xff]
        %v839 = vld [vmem:[%s1 + $0x978] sm:$0xff]
        %v840 = vld [vmem:[%s1 + $0x980] sm:$0xff]
        %v841 = vld [vmem:[%s1 + $0x988] sm:$0xff]
        %v842 = vld [vmem:[%s1 + $0x990] sm:$0xff]
        %v843 = vld [vmem:[%s1 + $0x998] sm:$0xff]
        %v844 = vld [vmem:[%s1 + $0x9a0] sm:$0xff]
        %v845 = vld [vmem:[%s1 + $0x9a8] sm:$0xff]
        %v846 = vld [vmem:[%s1 + $0x9b0] sm:$0xff]
        %v847 = vld [vmem:[%s1 + $0x9b8] sm:$0xff]
        %v848 = vld [vmem:[%s1 + $0x9c0] sm:$0xff]
        %v849 = vld [vmem:[%s1 + $0x9c8] sm:$0xff]
        %v850 = vld [vmem:[%s1 + $0x9d0] sm:$0xff]
        %v851 = vld [vmem:[%s1 + $0x9d8] sm:$0xff]
        %v852 = vld [vmem:[%s1 + $0x9e0] sm:$0xff]
        %v853 = vld [vmem:[%s1 + $0x9e8] sm:$0xff]
        %v854 = vld [vmem:[%s1 + $0x9f0] sm:$0xff]
        %v855 = vld [vmem:[%s1 + $0x9f8] sm:$0xff]
        %v856 = vld [vmem:[%s1 + $0xa00] sm:$0xff]
        %v857 = vld [vmem:[%s1 + $0xa08] sm:$0xff]
        %v858 = vld [vmem:[%s1 + $0xa10] sm:$0xff]
        %v859 = vld [vmem:[%s1 + $0xa18] sm:$0xff]
        %v860 = vld [vmem:[%s1 + $0xa20] sm:$0xff]
        %v861 = vld [vmem:[%s1 + $0xa28] sm:$0xff]
        %v862 = vld [vmem:[%s1 + $0xa30] sm:$0xff]
        %v863 = vld [vmem:[%s1 + $0xa38] sm:$0xff]
        %v864 = vld [vmem:[%s1 + $0xa40] sm:$0xff]
        %v865 = vld [vmem:[%s1 + $0xa48] sm:$0xff]
        %v866 = vld [vmem:[%s1 + $0xa50] sm:$0xff]
        %v867 = vld [vmem:[%s1 + $0xa58] sm:$0xff]
        %v868 = vld [vmem:[%s1 + $0xa60] sm:$0xff]
        %v869 = vld [vmem:[%s1 + $0xa68] sm:$0xff]
        %v870 = vld [vmem:[%s1 + $0xa70] sm:$0xff]
        %v871 = vld [vmem:[%s1 + $0xa78] sm:$0xff]
        %v872 = vld [vmem:[%s1 + $0xa80] sm:$0xff]
        %v873 = vld [vmem:[%s1 + $0xa88] sm:$0xff]
        %v874 = vld [vmem:[%s1 + $0xa90] sm:$0xff]
        %v875 = vld [vmem:[%s1 + $0xa98] sm:$0xff]
        %v876 = vld [vmem:[%s1 + $0xaa0] sm:$0xff]
        %v877 = vld [vmem:[%s1 + $0xaa8] sm:$0xff]
        %v878 = vld [vmem:[%s1 + $0xab0] sm:$0xff]
        %v879 = vld [vmem:[%s1 + $0xab8] sm:$0xff]
        %v880 = vld [vmem:[%s1 + $0xac0] sm:$0xff]
        %v881 = vld [vmem:[%s1 + $0xac8] sm:$0xff]
        %v882 = vld [vmem:[%s1 + $0xad0] sm:$0xff]
        %v883 = vld [vmem:[%s1 + $0xad8] sm:$0xff]
        %v884 = vld [vmem:[%s1 + $0xae0] sm:$0xff]
        %v885 = vld [vmem:[%s1 + $0xae8] sm:$0xff]
        %v886 = vld [vmem:[%s1 + $0xaf0] sm:$0xff]
        %v887 = vld [vmem:[%s1 + $0xaf8] sm:$0xff]
        %v888 = vld [vmem:[%s1 + $0xb00] sm:$0xff]
        %v889 = vld [vmem:[%s1 + $0xb08] sm:$0xff]
        %v890 = vld [vmem:[%s1 + $0xb10] sm:$0xff]
        %v891 = vld [vmem:[%s1 + $0xb18] sm:$0xff]
        %v892 = vld [vmem:[%s1 + $0xb20] sm:$0xff]
        %v893 = vld [vmem:[%s1 + $0xb28] sm:$0xff]
        %v894 = vld [vmem:[%s1 + $0xb30] sm:$0xff]
        %v895 = vld [vmem:[%s1 + $0xb38] sm:$0xff]
        %v896 = vld [vmem:[%s1 + $0xb40] sm:$0xff]
        %v897 = vld [vmem:[%s1 + $0xb48] sm:$0xff]
        %v898 = vld [vmem:[%s1 + $0xb50] sm:$0xff]
        %v899 = vld [vmem:[%s1 + $0xb58] sm:$0xff]
        %v900 = vld [vmem:[%s1 + $0xb60] sm:$0xff]
        %v901 = vld [vmem:[%s1 + $0xb68] sm:$0xff]
        %v902 = vld [vmem:[%s1 + $0xb70] sm:$0xff]
        %v903 = vld [vmem:[%s1 + $0xb78] sm:$0xff]
        %v904 = vld [vmem:[%s1 + $0xb80] sm:$0xff]
        %v905 = vld [vmem:[%s1 + $0xb88] sm:$0xff]
        %v906 = vld [vmem:[%s1 + $0xb90] sm:$0xff]
        %v907 = vld [vmem:[%s1 + $0xb98] sm:$0xff]
        %v908 = vld [vmem:[%s1 + $0xba0] sm:$0xff]
        %v909 = vld [vmem:[%s1 + $0xba8] sm:$0xff]
        %v910 = vld [vmem:[%s1 + $0xbb0] sm:$0xff]
        %v911 = vld [vmem:[%s1 + $0xbb8] sm:$0xff]
        %v912 = vld [vmem:[%s1 + $0xbc0] sm:$0xff]
        %v913 = vld [vmem:[%s1 + $0xbc8] sm:$0xff]
        %v914 = vld [vmem:[%s1 + $0xbd0] sm:$0xff]
        %v915 = vld [vmem:[%s1 + $0xbd8] sm:$0xff]
        %v916 = vld [vmem:[%s1 + $0xbe0] sm:$0xff]
        %v917 = vld [vmem:[%s1 + $0xbe8] sm:$0xff]
        %v918 = vld [vmem:[%s1 + $0xbf0] sm:$0xff]
        %v919 = vld [vmem:[%s1 + $0xbf8] sm:$0xff]
        %v920 = vld [vmem:[%s1 + $0xc00] sm:$0xff]
        %v921 = vld [vmem:[%s1 + $0xc08] sm:$0xff]
        %v922 = vld [vmem:[%s1 + $0xc10] sm:$0xff]
        %v923 = vld [vmem:[%s1 + $0xc18] sm:$0xff]
        %v924 = vld [vmem:[%s1 + $0xc20] sm:$0xff]
        %v925 = vld [vmem:[%s1 + $0xc28] sm:$0xff]
        %v926 = vld [vmem:[%s1 + $0xc30] sm:$0xff]
        %v927 = vld [vmem:[%s1 + $0xc38] sm:$0xff]
        %v928 = vld [vmem:[%s2] sm:$0xff]
        %v930 = vlaneseq
        %v931 = vshrl.u32 %v930, 7
        %v932 = vsub.s32 0, %v931
        %v933 = vrot.slane %v928, %v932
        %v934 = vlaneseq
        %v935 = vshrl.u32 %v934, 7
        %v936 = vsub.s32 1, %v935
        %v937 = vrot.slane %v928, %v936
        %v938 = vlaneseq
        %v939 = vshrl.u32 %v938, 7
        %v940 = vsub.s32 2, %v939
        %v941 = vrot.slane %v928, %v940
        %v942 = vlaneseq
        %v943 = vshrl.u32 %v942, 7
        %v944 = vsub.s32 3, %v943
        %v945 = vrot.slane %v928, %v944
        %v946 = vlaneseq
        %v947 = vshrl.u32 %v946, 7
        %v948 = vsub.s32 4, %v947
        %v949 = vrot.slane %v928, %v948
        %v950 = vlaneseq
        %v951 = vshrl.u32 %v950, 7
        %v952 = vsub.s32 5, %v951
        %v953 = vrot.slane %v928, %v952
        %v954 = vlaneseq
        %v955 = vshrl.u32 %v954, 7
        %v956 = vsub.s32 6, %v955
        %v957 = vrot.slane %v928, %v956
        %v958 = vlaneseq
        %v959 = vshrl.u32 %v958, 7
        %v960 = vsub.s32 7, %v959
        %v961 = vrot.slane %v928, %v960
        %v1362 = vunpack.c.l.b16 %v536
        %v1363 = vunpack.c.h.b16 %v536
        %v1364 = vunpack.c.l.b16 %v537
        %v1365 = vunpack.c.h.b16 %v537
        %v1366 = vunpack.c.l.b16 %v538
        %v1367 = vunpack.c.h.b16 %v538
        %v1368 = vunpack.c.l.b16 %v539
        %v1369 = vunpack.c.h.b16 %v539
        %v1370 = vunpack.c.l.b16 %v540
        %v1371 = vunpack.c.h.b16 %v540
        %v1372 = vunpack.c.l.b16 %v541
        %v1373 = vunpack.c.h.b16 %v541
        %v1374 = vunpack.c.l.b16 %v542
        %v1375 = vunpack.c.h.b16 %v542
        %v1376 = vunpack.c.l.b16 %v543
        %v1377 = vunpack.c.h.b16 %v543
        %v1378 = vunpack.c.l.b16 %v544
        %v1379 = vunpack.c.h.b16 %v544
        %v1380 = vunpack.c.l.b16 %v545
        %v1381 = vunpack.c.h.b16 %v545
        %v1382 = vunpack.c.l.b16 %v546
        %v1383 = vunpack.c.h.b16 %v546
        %v1384 = vunpack.c.l.b16 %v547
        %v1385 = vunpack.c.h.b16 %v547
        %v1386 = vunpack.c.l.b16 %v548
        %v1387 = vunpack.c.h.b16 %v548
        %v1388 = vunpack.c.l.b16 %v549
        %v1389 = vunpack.c.h.b16 %v549
        %v1390 = vunpack.c.l.b16 %v550
        %v1391 = vunpack.c.h.b16 %v550
        %v1392 = vunpack.c.l.b16 %v551
        %v1393 = vunpack.c.h.b16 %v551
        %v1394 = vunpack.c.l.b16 %v552
        %v1395 = vunpack.c.h.b16 %v552
        %v1396 = vunpack.c.l.b16 %v553
        %v1397 = vunpack.c.h.b16 %v553
        %v1398 = vunpack.c.l.b16 %v554
        %v1399 = vunpack.c.h.b16 %v554
        %v1400 = vunpack.c.l.b16 %v555
        %v1401 = vunpack.c.h.b16 %v555
        %v1402 = vunpack.c.l.b16 %v556
        %v1403 = vunpack.c.h.b16 %v556
        %v1404 = vunpack.c.l.b16 %v557
        %v1405 = vunpack.c.h.b16 %v557
        %v1406 = vunpack.c.l.b16 %v558
        %v1407 = vunpack.c.h.b16 %v558
        %v1408 = vunpack.c.l.b16 %v559
        %v1409 = vunpack.c.h.b16 %v559
        %v1410 = vunpack.c.l.b16 %v560
        %v1411 = vunpack.c.h.b16 %v560
        %v1412 = vunpack.c.l.b16 %v561
        %v1413 = vunpack.c.h.b16 %v561
        %v1414 = vunpack.c.l.b16 %v562
        %v1415 = vunpack.c.h.b16 %v562
        %v1416 = vunpack.c.l.b16 %v563
        %v1417 = vunpack.c.h.b16 %v563
        %v1418 = vunpack.c.l.b16 %v564
        %v1419 = vunpack.c.h.b16 %v564
        %v1420 = vunpack.c.l.b16 %v565
        %v1421 = vunpack.c.h.b16 %v565
        %v1422 = vunpack.c.l.b16 %v566
        %v1423 = vunpack.c.h.b16 %v566
        %v1424 = vunpack.c.l.b16 %v567
        %v1425 = vunpack.c.h.b16 %v567
        %v1426 = vunpack.c.l.b16 %v568
        %v1427 = vunpack.c.h.b16 %v568
        %v1428 = vunpack.c.l.b16 %v569
        %v1429 = vunpack.c.h.b16 %v569
        %v1430 = vunpack.c.l.b16 %v570
        %v1431 = vunpack.c.h.b16 %v570
        %v1432 = vunpack.c.l.b16 %v571
        %v1433 = vunpack.c.h.b16 %v571
        %v1434 = vunpack.c.l.b16 %v572
        %v1435 = vunpack.c.h.b16 %v572
        %v1436 = vunpack.c.l.b16 %v573
        %v1437 = vunpack.c.h.b16 %v573
        %v1438 = vunpack.c.l.b16 %v574
        %v1439 = vunpack.c.h.b16 %v574
        %v1440 = vunpack.c.l.b16 %v575
        %v1441 = vunpack.c.h.b16 %v575
        %v1442 = vunpack.c.l.b16 %v576
        %v1443 = vunpack.c.h.b16 %v576
        %v1444 = vunpack.c.l.b16 %v577
        %v1445 = vunpack.c.h.b16 %v577
        %v1446 = vunpack.c.l.b16 %v578
        %v1447 = vunpack.c.h.b16 %v578
        %v1448 = vunpack.c.l.b16 %v579
        %v1449 = vunpack.c.h.b16 %v579
        %v1450 = vunpack.c.l.b16 %v580
        %v1451 = vunpack.c.h.b16 %v580
        %v1452 = vunpack.c.l.b16 %v581
        %v1453 = vunpack.c.h.b16 %v581
        %v1454 = vunpack.c.l.b16 %v582
        %v1455 = vunpack.c.h.b16 %v582
        %v1456 = vunpack.c.l.b16 %v583
        %v1457 = vunpack.c.h.b16 %v583
        %v1458 = vunpack.c.l.b16 %v584
        %v1459 = vunpack.c.h.b16 %v584
        %v1460 = vunpack.c.l.b16 %v585
        %v1461 = vunpack.c.h.b16 %v585
        %v1462 = vunpack.c.l.b16 %v586
        %v1463 = vunpack.c.h.b16 %v586
        %v1464 = vunpack.c.l.b16 %v587
        %v1465 = vunpack.c.h.b16 %v587
        %v1466 = vunpack.c.l.b16 %v588
        %v1467 = vunpack.c.h.b16 %v588
        %v1468 = vunpack.c.l.b16 %v589
        %v1469 = vunpack.c.h.b16 %v589
        %v1470 = vunpack.c.l.b16 %v590
        %v1471 = vunpack.c.h.b16 %v590
        %v1472 = vunpack.c.l.b16 %v591
        %v1473 = vunpack.c.h.b16 %v591
        %v1474 = vunpack.c.l.b16 %v592
        %v1475 = vunpack.c.h.b16 %v592
        %v1476 = vunpack.c.l.b16 %v593
        %v1477 = vunpack.c.h.b16 %v593
        %v1478 = vunpack.c.l.b16 %v594
        %v1479 = vunpack.c.h.b16 %v594
        %v1480 = vunpack.c.l.b16 %v595
        %v1481 = vunpack.c.h.b16 %v595
        %v1482 = vunpack.c.l.b16 %v596
        %v1483 = vunpack.c.h.b16 %v596
        %v1484 = vunpack.c.l.b16 %v597
        %v1485 = vunpack.c.h.b16 %v597
        %v1486 = vunpack.c.l.b16 %v598
        %v1487 = vunpack.c.h.b16 %v598
        %v1488 = vunpack.c.l.b16 %v599
        %v1489 = vunpack.c.h.b16 %v599
        %v1490 = vunpack.c.l.b16 %v600
        %v1491 = vunpack.c.h.b16 %v600
        %v1492 = vunpack.c.l.b16 %v601
        %v1493 = vunpack.c.h.b16 %v601
        %v1494 = vunpack.c.l.b16 %v602
        %v1495 = vunpack.c.h.b16 %v602
        %v1496 = vunpack.c.l.b16 %v603
        %v1497 = vunpack.c.h.b16 %v603
        %v1498 = vunpack.c.l.b16 %v604
        %v1499 = vunpack.c.h.b16 %v604
        %v1500 = vunpack.c.l.b16 %v605
        %v1501 = vunpack.c.h.b16 %v605
        %v1502 = vunpack.c.l.b16 %v606
        %v1503 = vunpack.c.h.b16 %v606
        %v1504 = vunpack.c.l.b16 %v607
        %v1505 = vunpack.c.h.b16 %v607
        %v1506 = vunpack.c.l.b16 %v608
        %v1507 = vunpack.c.h.b16 %v608
        %v1508 = vunpack.c.l.b16 %v609
        %v1509 = vunpack.c.h.b16 %v609
        %v1510 = vunpack.c.l.b16 %v610
        %v1511 = vunpack.c.h.b16 %v610
        %v1512 = vunpack.c.l.b16 %v611
        %v1513 = vunpack.c.h.b16 %v611
        %v1514 = vunpack.c.l.b16 %v612
        %v1515 = vunpack.c.h.b16 %v612
        %v1516 = vunpack.c.l.b16 %v613
        %v1517 = vunpack.c.h.b16 %v613
        %v1518 = vunpack.c.l.b16 %v614
        %v1519 = vunpack.c.h.b16 %v614
        %v1520 = vunpack.c.l.b16 %v615
        %v1521 = vunpack.c.h.b16 %v615
        %v1522 = vunpack.c.l.b16 %v616
        %v1523 = vunpack.c.h.b16 %v616
        %v1524 = vunpack.c.l.b16 %v617
        %v1525 = vunpack.c.h.b16 %v617
        %v1526 = vunpack.c.l.b16 %v618
        %v1527 = vunpack.c.h.b16 %v618
        %v1528 = vunpack.c.l.b16 %v619
        %v1529 = vunpack.c.h.b16 %v619
        %v1530 = vunpack.c.l.b16 %v620
        %v1531 = vunpack.c.h.b16 %v620
        %v1532 = vunpack.c.l.b16 %v621
        %v1533 = vunpack.c.h.b16 %v621
        %v1534 = vunpack.c.l.b16 %v622
        %v1535 = vunpack.c.h.b16 %v622
        %v1536 = vunpack.c.l.b16 %v623
        %v1537 = vunpack.c.h.b16 %v623
        %v1538 = vunpack.c.l.b16 %v624
        %v1539 = vunpack.c.h.b16 %v624
        %v1540 = vunpack.c.l.b16 %v625
        %v1541 = vunpack.c.h.b16 %v625
        %v1542 = vunpack.c.l.b16 %v626
        %v1543 = vunpack.c.h.b16 %v626
        %v1544 = vunpack.c.l.b16 %v627
        %v1545 = vunpack.c.h.b16 %v627
        %v1546 = vunpack.c.l.b16 %v628
        %v1547 = vunpack.c.h.b16 %v628
        %v1548 = vunpack.c.l.b16 %v629
        %v1549 = vunpack.c.h.b16 %v629
        %v1550 = vunpack.c.l.b16 %v630
        %v1551 = vunpack.c.h.b16 %v630
        %v1552 = vunpack.c.l.b16 %v631
        %v1553 = vunpack.c.h.b16 %v631
        %v1554 = vunpack.c.l.b16 %v632
        %v1555 = vunpack.c.h.b16 %v632
        %v1556 = vunpack.c.l.b16 %v633
        %v1557 = vunpack.c.h.b16 %v633
        %v1558 = vunpack.c.l.b16 %v634
        %v1559 = vunpack.c.h.b16 %v634
        %v1560 = vunpack.c.l.b16 %v635
        %v1561 = vunpack.c.h.b16 %v635
        %v1562 = vunpack.c.l.b16 %v636
        %v1563 = vunpack.c.h.b16 %v636
        %v1564 = vunpack.c.l.b16 %v637
        %v1565 = vunpack.c.h.b16 %v637
        %v1566 = vunpack.c.l.b16 %v638
        %v1567 = vunpack.c.h.b16 %v638
        %v1568 = vunpack.c.l.b16 %v639
        %v1569 = vunpack.c.h.b16 %v639
        %v1570 = vunpack.c.l.b16 %v640
        %v1571 = vunpack.c.h.b16 %v640
        %v1572 = vunpack.c.l.b16 %v641
        %v1573 = vunpack.c.h.b16 %v641
        %v1574 = vunpack.c.l.b16 %v642
        %v1575 = vunpack.c.h.b16 %v642
        %v1576 = vunpack.c.l.b16 %v643
        %v1577 = vunpack.c.h.b16 %v643
        %v1578 = vunpack.c.l.b16 %v644
        %v1579 = vunpack.c.h.b16 %v644
        %v1580 = vunpack.c.l.b16 %v645
        %v1581 = vunpack.c.h.b16 %v645
        %v1582 = vunpack.c.l.b16 %v646
        %v1583 = vunpack.c.h.b16 %v646
        %v1584 = vunpack.c.l.b16 %v647
        %v1585 = vunpack.c.h.b16 %v647
        %v1586 = vunpack.c.l.b16 %v648
        %v1587 = vunpack.c.h.b16 %v648
        %v1588 = vunpack.c.l.b16 %v649
        %v1589 = vunpack.c.h.b16 %v649
        %v1590 = vunpack.c.l.b16 %v650
        %v1591 = vunpack.c.h.b16 %v650
        %v1592 = vunpack.c.l.b16 %v651
        %v1593 = vunpack.c.h.b16 %v651
        %v1594 = vunpack.c.l.b16 %v652
        %v1595 = vunpack.c.h.b16 %v652
        %v1596 = vunpack.c.l.b16 %v653
        %v1597 = vunpack.c.h.b16 %v653
        %v1598 = vunpack.c.l.b16 %v654
        %v1599 = vunpack.c.h.b16 %v654
        %v1600 = vunpack.c.l.b16 %v655
        %v1601 = vunpack.c.h.b16 %v655
        %v1602 = vunpack.c.l.b16 %v656
        %v1603 = vunpack.c.h.b16 %v656
        %v1604 = vunpack.c.l.b16 %v657
        %v1605 = vunpack.c.h.b16 %v657
        %v1606 = vunpack.c.l.b16 %v658
        %v1607 = vunpack.c.h.b16 %v658
        %v1608 = vunpack.c.l.b16 %v659
        %v1609 = vunpack.c.h.b16 %v659
        %v1610 = vunpack.c.l.b16 %v660
        %v1611 = vunpack.c.h.b16 %v660
        %v1612 = vunpack.c.l.b16 %v661
        %v1613 = vunpack.c.h.b16 %v661
        %v1614 = vunpack.c.l.b16 %v662
        %v1615 = vunpack.c.h.b16 %v662
        %v1616 = vunpack.c.l.b16 %v663
        %v1617 = vunpack.c.h.b16 %v663
        %v1618 = vunpack.c.l.b16 %v664
        %v1619 = vunpack.c.h.b16 %v664
        %v1620 = vunpack.c.l.b16 %v665
        %v1621 = vunpack.c.h.b16 %v665
        %v1622 = vunpack.c.l.b16 %v666
        %v1623 = vunpack.c.h.b16 %v666
        %v1624 = vunpack.c.l.b16 %v667
        %v1625 = vunpack.c.h.b16 %v667
        %v1626 = vunpack.c.l.b16 %v668
        %v1627 = vunpack.c.h.b16 %v668
        %v1628 = vunpack.c.l.b16 %v669
        %v1629 = vunpack.c.h.b16 %v669
        %v1630 = vunpack.c.l.b16 %v670
        %v1631 = vunpack.c.h.b16 %v670
        %v1632 = vunpack.c.l.b16 %v671
        %v1633 = vunpack.c.h.b16 %v671
        %v1634 = vunpack.c.l.b16 %v672
        %v1635 = vunpack.c.h.b16 %v672
        %v1636 = vunpack.c.l.b16 %v673
        %v1637 = vunpack.c.h.b16 %v673
        %v1638 = vunpack.c.l.b16 %v674
        %v1639 = vunpack.c.h.b16 %v674
        %v1640 = vunpack.c.l.b16 %v675
        %v1641 = vunpack.c.h.b16 %v675
        %v1642 = vunpack.c.l.b16 %v676
        %v1643 = vunpack.c.h.b16 %v676
        %v1644 = vunpack.c.l.b16 %v677
        %v1645 = vunpack.c.h.b16 %v677
        %v1646 = vunpack.c.l.b16 %v678
        %v1647 = vunpack.c.h.b16 %v678
        %v1648 = vunpack.c.l.b16 %v679
        %v1649 = vunpack.c.h.b16 %v679
        %v1650 = vunpack.c.l.b16 %v680
        %v1651 = vunpack.c.h.b16 %v680
        %v1652 = vunpack.c.l.b16 %v681
        %v1653 = vunpack.c.h.b16 %v681
        %v1654 = vunpack.c.l.b16 %v682
        %v1655 = vunpack.c.h.b16 %v682
        %v1656 = vunpack.c.l.b16 %v683
        %v1657 = vunpack.c.h.b16 %v683
        %v1658 = vunpack.c.l.b16 %v684
        %v1659 = vunpack.c.h.b16 %v684
        %v1660 = vunpack.c.l.b16 %v685
        %v1661 = vunpack.c.h.b16 %v685
        %v1662 = vunpack.c.l.b16 %v686
        %v1663 = vunpack.c.h.b16 %v686
        %v1664 = vunpack.c.l.b16 %v687
        %v1665 = vunpack.c.h.b16 %v687
        %v1666 = vunpack.c.l.b16 %v688
        %v1667 = vunpack.c.h.b16 %v688
        %v1668 = vunpack.c.l.b16 %v689
        %v1669 = vunpack.c.h.b16 %v689
        %v1670 = vunpack.c.l.b16 %v690
        %v1671 = vunpack.c.h.b16 %v690
        %v1672 = vunpack.c.l.b16 %v691
        %v1673 = vunpack.c.h.b16 %v691
        %v1674 = vunpack.c.l.b16 %v692
        %v1675 = vunpack.c.h.b16 %v692
        %v1676 = vunpack.c.l.b16 %v693
        %v1677 = vunpack.c.h.b16 %v693
        %v1678 = vunpack.c.l.b16 %v694
        %v1679 = vunpack.c.h.b16 %v694
        %v1680 = vunpack.c.l.b16 %v695
        %v1681 = vunpack.c.h.b16 %v695
        %v1682 = vunpack.c.l.b16 %v696
        %v1683 = vunpack.c.h.b16 %v696
        %v1684 = vunpack.c.l.b16 %v697
        %v1685 = vunpack.c.h.b16 %v697
        %v1686 = vunpack.c.l.b16 %v698
        %v1687 = vunpack.c.h.b16 %v698
        %v1688 = vunpack.c.l.b16 %v699
        %v1689 = vunpack.c.h.b16 %v699
        %v1690 = vunpack.c.l.b16 %v700
        %v1691 = vunpack.c.h.b16 %v700
        %v1692 = vunpack.c.l.b16 %v701
        %v1693 = vunpack.c.h.b16 %v701
        %v1694 = vunpack.c.l.b16 %v702
        %v1695 = vunpack.c.h.b16 %v702
        %v1696 = vunpack.c.l.b16 %v703
        %v1697 = vunpack.c.h.b16 %v703
        %v1698 = vunpack.c.l.b16 %v704
        %v1699 = vunpack.c.h.b16 %v704
        %v1700 = vunpack.c.l.b16 %v705
        %v1701 = vunpack.c.h.b16 %v705
        %v1702 = vunpack.c.l.b16 %v706
        %v1703 = vunpack.c.h.b16 %v706
        %v1704 = vunpack.c.l.b16 %v707
        %v1705 = vunpack.c.h.b16 %v707
        %v1706 = vunpack.c.l.b16 %v708
        %v1707 = vunpack.c.h.b16 %v708
        %v1708 = vunpack.c.l.b16 %v709
        %v1709 = vunpack.c.h.b16 %v709
        %v1710 = vunpack.c.l.b16 %v710
        %v1711 = vunpack.c.h.b16 %v710
        %v1712 = vunpack.c.l.b16 %v711
        %v1713 = vunpack.c.h.b16 %v711
        %v1714 = vunpack.c.l.b16 %v712
        %v1715 = vunpack.c.h.b16 %v712
        %v1716 = vunpack.c.l.b16 %v713
        %v1717 = vunpack.c.h.b16 %v713
        %v1718 = vunpack.c.l.b16 %v714
        %v1719 = vunpack.c.h.b16 %v714
        %v1720 = vunpack.c.l.b16 %v715
        %v1721 = vunpack.c.h.b16 %v715
        %v1722 = vunpack.c.l.b16 %v716
        %v1723 = vunpack.c.h.b16 %v716
        %v1724 = vunpack.c.l.b16 %v717
        %v1725 = vunpack.c.h.b16 %v717
        %v1726 = vunpack.c.l.b16 %v718
        %v1727 = vunpack.c.h.b16 %v718
        %v1728 = vunpack.c.l.b16 %v719
        %v1729 = vunpack.c.h.b16 %v719
        %v1730 = vunpack.c.l.b16 %v720
        %v1731 = vunpack.c.h.b16 %v720
        %v1732 = vunpack.c.l.b16 %v721
        %v1733 = vunpack.c.h.b16 %v721
        %v1734 = vunpack.c.l.b16 %v722
        %v1735 = vunpack.c.h.b16 %v722
        %v1736 = vunpack.c.l.b16 %v723
        %v1737 = vunpack.c.h.b16 %v723
        %v1738 = vunpack.c.l.b16 %v724
        %v1739 = vunpack.c.h.b16 %v724
        %v1740 = vunpack.c.l.b16 %v725
        %v1741 = vunpack.c.h.b16 %v725
        %v1742 = vunpack.c.l.b16 %v726
        %v1743 = vunpack.c.h.b16 %v726
        %v1744 = vunpack.c.l.b16 %v727
        %v1745 = vunpack.c.h.b16 %v727
        %v1746 = vunpack.c.l.b16 %v728
        %v1747 = vunpack.c.h.b16 %v728
        %v1748 = vunpack.c.l.b16 %v729
        %v1749 = vunpack.c.h.b16 %v729
        %v1750 = vunpack.c.l.b16 %v730
        %v1751 = vunpack.c.h.b16 %v730
        %v1752 = vunpack.c.l.b16 %v731
        %v1753 = vunpack.c.h.b16 %v731
        %v1754 = vunpack.c.l.b16 %v732
        %v1755 = vunpack.c.h.b16 %v732
        %v1756 = vunpack.c.l.b16 %v733
        %v1757 = vunpack.c.h.b16 %v733
        %v1758 = vunpack.c.l.b16 %v734
        %v1759 = vunpack.c.h.b16 %v734
        %v1760 = vunpack.c.l.b16 %v735
        %v1761 = vunpack.c.h.b16 %v735
        %v1762 = vunpack.c.l.b16 %v736
        %v1763 = vunpack.c.h.b16 %v736
        %v1764 = vunpack.c.l.b16 %v737
        %v1765 = vunpack.c.h.b16 %v737
        %v1766 = vunpack.c.l.b16 %v738
        %v1767 = vunpack.c.h.b16 %v738
        %v1768 = vunpack.c.l.b16 %v739
        %v1769 = vunpack.c.h.b16 %v739
        %v1770 = vunpack.c.l.b16 %v740
        %v1771 = vunpack.c.h.b16 %v740
        %v1772 = vunpack.c.l.b16 %v741
        %v1773 = vunpack.c.h.b16 %v741
        %v1774 = vunpack.c.l.b16 %v742
        %v1775 = vunpack.c.h.b16 %v742
        %v1776 = vunpack.c.l.b16 %v743
        %v1777 = vunpack.c.h.b16 %v743
        %v1778 = vunpack.c.l.b16 %v744
        %v1779 = vunpack.c.h.b16 %v744
        %v1780 = vunpack.c.l.b16 %v745
        %v1781 = vunpack.c.h.b16 %v745
        %v1782 = vunpack.c.l.b16 %v746
        %v1783 = vunpack.c.h.b16 %v746
        %v1784 = vunpack.c.l.b16 %v747
        %v1785 = vunpack.c.h.b16 %v747
        %v1786 = vunpack.c.l.b16 %v748
        %v1787 = vunpack.c.h.b16 %v748
        %v1788 = vunpack.c.l.b16 %v749
        %v1789 = vunpack.c.h.b16 %v749
        %v1790 = vunpack.c.l.b16 %v750
        %v1791 = vunpack.c.h.b16 %v750
        %v1792 = vunpack.c.l.b16 %v751
        %v1793 = vunpack.c.h.b16 %v751
        %v1794 = vunpack.c.l.b16 %v752
        %v1795 = vunpack.c.h.b16 %v752
        %v1796 = vunpack.c.l.b16 %v753
        %v1797 = vunpack.c.h.b16 %v753
        %v1798 = vunpack.c.l.b16 %v754
        %v1799 = vunpack.c.h.b16 %v754
        %v1800 = vunpack.c.l.b16 %v755
        %v1801 = vunpack.c.h.b16 %v755
        %v1802 = vunpack.c.l.b16 %v756
        %v1803 = vunpack.c.h.b16 %v756
        %v1804 = vunpack.c.l.b16 %v757
        %v1805 = vunpack.c.h.b16 %v757
        %v1806 = vunpack.c.l.b16 %v758
        %v1807 = vunpack.c.h.b16 %v758
        %v1808 = vunpack.c.l.b16 %v759
        %v1809 = vunpack.c.h.b16 %v759
        %v1810 = vunpack.c.l.b16 %v760
        %v1811 = vunpack.c.h.b16 %v760
        %v1812 = vunpack.c.l.b16 %v761
        %v1813 = vunpack.c.h.b16 %v761
        %v1814 = vunpack.c.l.b16 %v762
        %v1815 = vunpack.c.h.b16 %v762
        %v1816 = vunpack.c.l.b16 %v763
        %v1817 = vunpack.c.h.b16 %v763
        %v1818 = vunpack.c.l.b16 %v764
        %v1819 = vunpack.c.h.b16 %v764
        %v1820 = vunpack.c.l.b16 %v765
        %v1821 = vunpack.c.h.b16 %v765
        %v1822 = vunpack.c.l.b16 %v766
        %v1823 = vunpack.c.h.b16 %v766
        %v1824 = vunpack.c.l.b16 %v767
        %v1825 = vunpack.c.h.b16 %v767
        %v1826 = vunpack.c.l.b16 %v768
        %v1827 = vunpack.c.h.b16 %v768
        %v1828 = vunpack.c.l.b16 %v769
        %v1829 = vunpack.c.h.b16 %v769
        %v1830 = vunpack.c.l.b16 %v770
        %v1831 = vunpack.c.h.b16 %v770
        %v1832 = vunpack.c.l.b16 %v771
        %v1833 = vunpack.c.h.b16 %v771
        %v1834 = vunpack.c.l.b16 %v772
        %v1835 = vunpack.c.h.b16 %v772
        %v1836 = vunpack.c.l.b16 %v773
        %v1837 = vunpack.c.h.b16 %v773
        %v1838 = vunpack.c.l.b16 %v774
        %v1839 = vunpack.c.h.b16 %v774
        %v1840 = vunpack.c.l.b16 %v775
        %v1841 = vunpack.c.h.b16 %v775
        %v1842 = vunpack.c.l.b16 %v776
        %v1843 = vunpack.c.h.b16 %v776
        %v1844 = vunpack.c.l.b16 %v777
        %v1845 = vunpack.c.h.b16 %v777
        %v1846 = vunpack.c.l.b16 %v778
        %v1847 = vunpack.c.h.b16 %v778
        %v1848 = vunpack.c.l.b16 %v779
        %v1849 = vunpack.c.h.b16 %v779
        %v1850 = vunpack.c.l.b16 %v780
        %v1851 = vunpack.c.h.b16 %v780
        %v1852 = vunpack.c.l.b16 %v781
        %v1853 = vunpack.c.h.b16 %v781
        %v1854 = vunpack.c.l.b16 %v782
        %v1855 = vunpack.c.h.b16 %v782
        %v1856 = vunpack.c.l.b16 %v783
        %v1857 = vunpack.c.h.b16 %v783
        %v1858 = vunpack.c.l.b16 %v784
        %v1859 = vunpack.c.h.b16 %v784
        %v1860 = vunpack.c.l.b16 %v785
        %v1861 = vunpack.c.h.b16 %v785
        %v1862 = vunpack.c.l.b16 %v786
        %v1863 = vunpack.c.h.b16 %v786
        %v1864 = vunpack.c.l.b16 %v787
        %v1865 = vunpack.c.h.b16 %v787
        %v1866 = vunpack.c.l.b16 %v788
        %v1867 = vunpack.c.h.b16 %v788
        %v1868 = vunpack.c.l.b16 %v789
        %v1869 = vunpack.c.h.b16 %v789
        %v1870 = vunpack.c.l.b16 %v790
        %v1871 = vunpack.c.h.b16 %v790
        %v1872 = vunpack.c.l.b16 %v791
        %v1873 = vunpack.c.h.b16 %v791
        %v1874 = vunpack.c.l.b16 %v792
        %v1875 = vunpack.c.h.b16 %v792
        %v1876 = vunpack.c.l.b16 %v793
        %v1877 = vunpack.c.h.b16 %v793
        %v1878 = vunpack.c.l.b16 %v794
        %v1879 = vunpack.c.h.b16 %v794
        %v1880 = vunpack.c.l.b16 %v795
        %v1881 = vunpack.c.h.b16 %v795
        %v1882 = vunpack.c.l.b16 %v796
        %v1883 = vunpack.c.h.b16 %v796
        %v1884 = vunpack.c.l.b16 %v797
        %v1885 = vunpack.c.h.b16 %v797
        %v1886 = vunpack.c.l.b16 %v798
        %v1887 = vunpack.c.h.b16 %v798
        %v1888 = vunpack.c.l.b16 %v799
        %v1889 = vunpack.c.h.b16 %v799
        %v1890 = vunpack.c.l.b16 %v800
        %v1891 = vunpack.c.h.b16 %v800
        %v1892 = vunpack.c.l.b16 %v801
        %v1893 = vunpack.c.h.b16 %v801
        %v1894 = vunpack.c.l.b16 %v802
        %v1895 = vunpack.c.h.b16 %v802
        %v1896 = vunpack.c.l.b16 %v803
        %v1897 = vunpack.c.h.b16 %v803
        %v1898 = vunpack.c.l.b16 %v804
        %v1899 = vunpack.c.h.b16 %v804
        %v1900 = vunpack.c.l.b16 %v805
        %v1901 = vunpack.c.h.b16 %v805
        %v1902 = vunpack.c.l.b16 %v806
        %v1903 = vunpack.c.h.b16 %v806
        %v1904 = vunpack.c.l.b16 %v807
        %v1905 = vunpack.c.h.b16 %v807
        %v1906 = vunpack.c.l.b16 %v808
        %v1907 = vunpack.c.h.b16 %v808
        %v1908 = vunpack.c.l.b16 %v809
        %v1909 = vunpack.c.h.b16 %v809
        %v1910 = vunpack.c.l.b16 %v810
        %v1911 = vunpack.c.h.b16 %v810
        %v1912 = vunpack.c.l.b16 %v811
        %v1913 = vunpack.c.h.b16 %v811
        %v1914 = vunpack.c.l.b16 %v812
        %v1915 = vunpack.c.h.b16 %v812
        %v1916 = vunpack.c.l.b16 %v813
        %v1917 = vunpack.c.h.b16 %v813
        %v1918 = vunpack.c.l.b16 %v814
        %v1919 = vunpack.c.h.b16 %v814
        %v1920 = vunpack.c.l.b16 %v815
        %v1921 = vunpack.c.h.b16 %v815
        %v1922 = vunpack.c.l.b16 %v816
        %v1923 = vunpack.c.h.b16 %v816
        %v1924 = vunpack.c.l.b16 %v817
        %v1925 = vunpack.c.h.b16 %v817
        %v1926 = vunpack.c.l.b16 %v818
        %v1927 = vunpack.c.h.b16 %v818
        %v1928 = vunpack.c.l.b16 %v819
        %v1929 = vunpack.c.h.b16 %v819
        %v1930 = vunpack.c.l.b16 %v820
        %v1931 = vunpack.c.h.b16 %v820
        %v1932 = vunpack.c.l.b16 %v821
        %v1933 = vunpack.c.h.b16 %v821
        %v1934 = vunpack.c.l.b16 %v822
        %v1935 = vunpack.c.h.b16 %v822
        %v1936 = vunpack.c.l.b16 %v823
        %v1937 = vunpack.c.h.b16 %v823
        %v1938 = vunpack.c.l.b16 %v824
        %v1939 = vunpack.c.h.b16 %v824
        %v1940 = vunpack.c.l.b16 %v825
        %v1941 = vunpack.c.h.b16 %v825
        %v1942 = vunpack.c.l.b16 %v826
        %v1943 = vunpack.c.h.b16 %v826
        %v1944 = vunpack.c.l.b16 %v827
        %v1945 = vunpack.c.h.b16 %v827
        %v1946 = vunpack.c.l.b16 %v828
        %v1947 = vunpack.c.h.b16 %v828
        %v1948 = vunpack.c.l.b16 %v829
        %v1949 = vunpack.c.h.b16 %v829
        %v1950 = vunpack.c.l.b16 %v830
        %v1951 = vunpack.c.h.b16 %v830
        %v1952 = vunpack.c.l.b16 %v831
        %v1953 = vunpack.c.h.b16 %v831
        %v1954 = vunpack.c.l.b16 %v832
        %v1955 = vunpack.c.h.b16 %v832
        %v1956 = vunpack.c.l.b16 %v833
        %v1957 = vunpack.c.h.b16 %v833
        %v1958 = vunpack.c.l.b16 %v834
        %v1959 = vunpack.c.h.b16 %v834
        %v1960 = vunpack.c.l.b16 %v835
        %v1961 = vunpack.c.h.b16 %v835
        %v1962 = vunpack.c.l.b16 %v836
        %v1963 = vunpack.c.h.b16 %v836
        %v1964 = vunpack.c.l.b16 %v837
        %v1965 = vunpack.c.h.b16 %v837
        %v1966 = vunpack.c.l.b16 %v838
        %v1967 = vunpack.c.h.b16 %v838
        %v1968 = vunpack.c.l.b16 %v839
        %v1969 = vunpack.c.h.b16 %v839
        %v1970 = vunpack.c.l.b16 %v840
        %v1971 = vunpack.c.h.b16 %v840
        %v1972 = vunpack.c.l.b16 %v841
        %v1973 = vunpack.c.h.b16 %v841
        %v1974 = vunpack.c.l.b16 %v842
        %v1975 = vunpack.c.h.b16 %v842
        %v1976 = vunpack.c.l.b16 %v843
        %v1977 = vunpack.c.h.b16 %v843
        %v1978 = vunpack.c.l.b16 %v844
        %v1979 = vunpack.c.h.b16 %v844
        %v1980 = vunpack.c.l.b16 %v845
        %v1981 = vunpack.c.h.b16 %v845
        %v1982 = vunpack.c.l.b16 %v846
        %v1983 = vunpack.c.h.b16 %v846
        %v1984 = vunpack.c.l.b16 %v847
        %v1985 = vunpack.c.h.b16 %v847
        %v1986 = vunpack.c.l.b16 %v848
        %v1987 = vunpack.c.h.b16 %v848
        %v1988 = vunpack.c.l.b16 %v849
        %v1989 = vunpack.c.h.b16 %v849
        %v1990 = vunpack.c.l.b16 %v850
        %v1991 = vunpack.c.h.b16 %v850
        %v1992 = vunpack.c.l.b16 %v851
        %v1993 = vunpack.c.h.b16 %v851
        %v1994 = vunpack.c.l.b16 %v852
        %v1995 = vunpack.c.h.b16 %v852
        %v1996 = vunpack.c.l.b16 %v853
        %v1997 = vunpack.c.h.b16 %v853
        %v1998 = vunpack.c.l.b16 %v854
        %v1999 = vunpack.c.h.b16 %v854
        %v2000 = vunpack.c.l.b16 %v855
        %v2001 = vunpack.c.h.b16 %v855
        %v2002 = vunpack.c.l.b16 %v856
        %v2003 = vunpack.c.h.b16 %v856
        %v2004 = vunpack.c.l.b16 %v857
        %v2005 = vunpack.c.h.b16 %v857
        %v2006 = vunpack.c.l.b16 %v858
        %v2007 = vunpack.c.h.b16 %v858
        %v2008 = vunpack.c.l.b16 %v859
        %v2009 = vunpack.c.h.b16 %v859
        %v2010 = vunpack.c.l.b16 %v860
        %v2011 = vunpack.c.h.b16 %v860
        %v2012 = vunpack.c.l.b16 %v861
        %v2013 = vunpack.c.h.b16 %v861
        %v2014 = vunpack.c.l.b16 %v862
        %v2015 = vunpack.c.h.b16 %v862
        %v2016 = vunpack.c.l.b16 %v863
        %v2017 = vunpack.c.h.b16 %v863
        %v2018 = vunpack.c.l.b16 %v864
        %v2019 = vunpack.c.h.b16 %v864
        %v2020 = vunpack.c.l.b16 %v865
        %v2021 = vunpack.c.h.b16 %v865
        %v2022 = vunpack.c.l.b16 %v866
        %v2023 = vunpack.c.h.b16 %v866
        %v2024 = vunpack.c.l.b16 %v867
        %v2025 = vunpack.c.h.b16 %v867
        %v2026 = vunpack.c.l.b16 %v868
        %v2027 = vunpack.c.h.b16 %v868
        %v2028 = vunpack.c.l.b16 %v869
        %v2029 = vunpack.c.h.b16 %v869
        %v2030 = vunpack.c.l.b16 %v870
        %v2031 = vunpack.c.h.b16 %v870
        %v2032 = vunpack.c.l.b16 %v871
        %v2033 = vunpack.c.h.b16 %v871
        %v2034 = vunpack.c.l.b16 %v872
        %v2035 = vunpack.c.h.b16 %v872
        %v2036 = vunpack.c.l.b16 %v873
        %v2037 = vunpack.c.h.b16 %v873
        %v2038 = vunpack.c.l.b16 %v874
        %v2039 = vunpack.c.h.b16 %v874
        %v2040 = vunpack.c.l.b16 %v875
        %v2041 = vunpack.c.h.b16 %v875
        %v2042 = vunpack.c.l.b16 %v876
        %v2043 = vunpack.c.h.b16 %v876
        %v2044 = vunpack.c.l.b16 %v877
        %v2045 = vunpack.c.h.b16 %v877
        %v2046 = vunpack.c.l.b16 %v878
        %v2047 = vunpack.c.h.b16 %v878
        %v2048 = vunpack.c.l.b16 %v879
        %v2049 = vunpack.c.h.b16 %v879
        %v2050 = vunpack.c.l.b16 %v880
        %v2051 = vunpack.c.h.b16 %v880
        %v2052 = vunpack.c.l.b16 %v881
        %v2053 = vunpack.c.h.b16 %v881
        %v2054 = vunpack.c.l.b16 %v882
        %v2055 = vunpack.c.h.b16 %v882
        %v2056 = vunpack.c.l.b16 %v883
        %v2057 = vunpack.c.h.b16 %v883
        %v2058 = vunpack.c.l.b16 %v884
        %v2059 = vunpack.c.h.b16 %v884
        %v2060 = vunpack.c.l.b16 %v885
        %v2061 = vunpack.c.h.b16 %v885
        %v2062 = vunpack.c.l.b16 %v886
        %v2063 = vunpack.c.h.b16 %v886
        %v2064 = vunpack.c.l.b16 %v887
        %v2065 = vunpack.c.h.b16 %v887
        %v2066 = vunpack.c.l.b16 %v888
        %v2067 = vunpack.c.h.b16 %v888
        %v2068 = vunpack.c.l.b16 %v889
        %v2069 = vunpack.c.h.b16 %v889
        %v2070 = vunpack.c.l.b16 %v890
        %v2071 = vunpack.c.h.b16 %v890
        %v2072 = vunpack.c.l.b16 %v891
        %v2073 = vunpack.c.h.b16 %v891
        %v2074 = vunpack.c.l.b16 %v892
        %v2075 = vunpack.c.h.b16 %v892
        %v2076 = vunpack.c.l.b16 %v893
        %v2077 = vunpack.c.h.b16 %v893
        %v2078 = vunpack.c.l.b16 %v894
        %v2079 = vunpack.c.h.b16 %v894
        %v2080 = vunpack.c.l.b16 %v895
        %v2081 = vunpack.c.h.b16 %v895
        %v2082 = vunpack.c.l.b16 %v896
        %v2083 = vunpack.c.h.b16 %v896
        %v2084 = vunpack.c.l.b16 %v897
        %v2085 = vunpack.c.h.b16 %v897
        %v2086 = vunpack.c.l.b16 %v898
        %v2087 = vunpack.c.h.b16 %v898
        %v2088 = vunpack.c.l.b16 %v899
        %v2089 = vunpack.c.h.b16 %v899
        %v2090 = vunpack.c.l.b16 %v900
        %v2091 = vunpack.c.h.b16 %v900
        %v2092 = vunpack.c.l.b16 %v901
        %v2093 = vunpack.c.h.b16 %v901
        %v2094 = vunpack.c.l.b16 %v902
        %v2095 = vunpack.c.h.b16 %v902
        %v2096 = vunpack.c.l.b16 %v903
        %v2097 = vunpack.c.h.b16 %v903
        %v2098 = vunpack.c.l.b16 %v904
        %v2099 = vunpack.c.h.b16 %v904
        %v2100 = vunpack.c.l.b16 %v905
        %v2101 = vunpack.c.h.b16 %v905
        %v2102 = vunpack.c.l.b16 %v906
        %v2103 = vunpack.c.h.b16 %v906
        %v2104 = vunpack.c.l.b16 %v907
        %v2105 = vunpack.c.h.b16 %v907
        %v2106 = vunpack.c.l.b16 %v908
        %v2107 = vunpack.c.h.b16 %v908
        %v2108 = vunpack.c.l.b16 %v909
        %v2109 = vunpack.c.h.b16 %v909
        %v2110 = vunpack.c.l.b16 %v910
        %v2111 = vunpack.c.h.b16 %v910
        %v2112 = vunpack.c.l.b16 %v911
        %v2113 = vunpack.c.h.b16 %v911
        %v2114 = vunpack.c.l.b16 %v912
        %v2115 = vunpack.c.h.b16 %v912
        %v2116 = vunpack.c.l.b16 %v913
        %v2117 = vunpack.c.h.b16 %v913
        %v2118 = vunpack.c.l.b16 %v914
        %v2119 = vunpack.c.h.b16 %v914
        %v2120 = vunpack.c.l.b16 %v915
        %v2121 = vunpack.c.h.b16 %v915
        %v2122 = vunpack.c.l.b16 %v916
        %v2123 = vunpack.c.h.b16 %v916
        %v2124 = vunpack.c.l.b16 %v917
        %v2125 = vunpack.c.h.b16 %v917
        %v2126 = vunpack.c.l.b16 %v918
        %v2127 = vunpack.c.h.b16 %v918
        %v2128 = vunpack.c.l.b16 %v919
        %v2129 = vunpack.c.h.b16 %v919
        %v2130 = vunpack.c.l.b16 %v920
        %v2131 = vunpack.c.h.b16 %v920
        %v2132 = vunpack.c.l.b16 %v921
        %v2133 = vunpack.c.h.b16 %v921
        %v2134 = vunpack.c.l.b16 %v922
        %v2135 = vunpack.c.h.b16 %v922
        %v2136 = vunpack.c.l.b16 %v923
        %v2137 = vunpack.c.h.b16 %v923
        %v2138 = vunpack.c.l.b16 %v924
        %v2139 = vunpack.c.h.b16 %v924
        %v2140 = vunpack.c.l.b16 %v925
        %v2141 = vunpack.c.h.b16 %v925
        %v2142 = vunpack.c.l.b16 %v926
        %v2143 = vunpack.c.h.b16 %v926
        %v2144 = vunpack.c.l.b16 %v927
        %v2145 = vunpack.c.h.b16 %v927
        %v2146 = vpack.c.b16 %v1370, %v1362
        %v2147 = vpack.c.b16 %v1371, %v1363
        %v2148 = vpack.c.b16 %v1372, %v1364
        %v2149 = vpack.c.b16 %v1373, %v1365
        %v2150 = vpack.c.b16 %v1374, %v1366
        %v2151 = vpack.c.b16 %v1375, %v1367
        %v2152 = vpack.c.b16 %v1376, %v1368
        %v2153 = vpack.c.b16 %v1377, %v1369
        %v2154 = vpack.c.b16 %v1386, %v1378
        %v2155 = vpack.c.b16 %v1387, %v1379
        %v2156 = vpack.c.b16 %v1388, %v1380
        %v2157 = vpack.c.b16 %v1389, %v1381
        %v2158 = vpack.c.b16 %v1390, %v1382
        %v2159 = vpack.c.b16 %v1391, %v1383
        %v2160 = vpack.c.b16 %v1392, %v1384
        %v2161 = vpack.c.b16 %v1393, %v1385
        %v2162 = vpack.c.b16 %v1402, %v1394
        %v2163 = vpack.c.b16 %v1403, %v1395
        %v2164 = vpack.c.b16 %v1404, %v1396
        %v2165 = vpack.c.b16 %v1405, %v1397
        %v2166 = vpack.c.b16 %v1406, %v1398
        %v2167 = vpack.c.b16 %v1407, %v1399
        %v2168 = vpack.c.b16 %v1408, %v1400
        %v2169 = vpack.c.b16 %v1409, %v1401
        %v2170 = vpack.c.b16 %v1418, %v1410
        %v2171 = vpack.c.b16 %v1419, %v1411
        %v2172 = vpack.c.b16 %v1420, %v1412
        %v2173 = vpack.c.b16 %v1421, %v1413
        %v2174 = vpack.c.b16 %v1422, %v1414
        %v2175 = vpack.c.b16 %v1423, %v1415
        %v2176 = vpack.c.b16 %v1424, %v1416
        %v2177 = vpack.c.b16 %v1425, %v1417
        %v2178 = vpack.c.b16 %v1434, %v1426
        %v2179 = vpack.c.b16 %v1435, %v1427
        %v2180 = vpack.c.b16 %v1436, %v1428
        %v2181 = vpack.c.b16 %v1437, %v1429
        %v2182 = vpack.c.b16 %v1438, %v1430
        %v2183 = vpack.c.b16 %v1439, %v1431
        %v2184 = vpack.c.b16 %v1440, %v1432
        %v2185 = vpack.c.b16 %v1441, %v1433
        %v2186 = vpack.c.b16 %v1450, %v1442
        %v2187 = vpack.c.b16 %v1451, %v1443
        %v2188 = vpack.c.b16 %v1452, %v1444
        %v2189 = vpack.c.b16 %v1453, %v1445
        %v2190 = vpack.c.b16 %v1454, %v1446
        %v2191 = vpack.c.b16 %v1455, %v1447
        %v2192 = vpack.c.b16 %v1456, %v1448
        %v2193 = vpack.c.b16 %v1457, %v1449
        %v2194 = vpack.c.b16 %v1466, %v1458
        %v2195 = vpack.c.b16 %v1467, %v1459
        %v2196 = vpack.c.b16 %v1468, %v1460
        %v2197 = vpack.c.b16 %v1469, %v1461
        %v2198 = vpack.c.b16 %v1470, %v1462
        %v2199 = vpack.c.b16 %v1471, %v1463
        %v2200 = vpack.c.b16 %v1472, %v1464
        %v2201 = vpack.c.b16 %v1473, %v1465
        %v2202 = vpack.c.b16 %v1482, %v1474
        %v2203 = vpack.c.b16 %v1483, %v1475
        %v2204 = vpack.c.b16 %v1484, %v1476
        %v2205 = vpack.c.b16 %v1485, %v1477
        %v2206 = vpack.c.b16 %v1486, %v1478
        %v2207 = vpack.c.b16 %v1487, %v1479
        %v2208 = vpack.c.b16 %v1488, %v1480
        %v2209 = vpack.c.b16 %v1489, %v1481
        %v2210 = vpack.c.b16 %v1498, %v1490
        %v2211 = vpack.c.b16 %v1499, %v1491
        %v2212 = vpack.c.b16 %v1500, %v1492
        %v2213 = vpack.c.b16 %v1501, %v1493
        %v2214 = vpack.c.b16 %v1502, %v1494
        %v2215 = vpack.c.b16 %v1503, %v1495
        %v2216 = vpack.c.b16 %v1504, %v1496
        %v2217 = vpack.c.b16 %v1505, %v1497
        %v2218 = vpack.c.b16 %v1514, %v1506
        %v2219 = vpack.c.b16 %v1515, %v1507
        %v2220 = vpack.c.b16 %v1516, %v1508
        %v2221 = vpack.c.b16 %v1517, %v1509
        %v2222 = vpack.c.b16 %v1518, %v1510
        %v2223 = vpack.c.b16 %v1519, %v1511
        %v2224 = vpack.c.b16 %v1520, %v1512
        %v2225 = vpack.c.b16 %v1521, %v1513
        %v2226 = vpack.c.b16 %v1530, %v1522
        %v2227 = vpack.c.b16 %v1531, %v1523
        %v2228 = vpack.c.b16 %v1532, %v1524
        %v2229 = vpack.c.b16 %v1533, %v1525
        %v2230 = vpack.c.b16 %v1534, %v1526
        %v2231 = vpack.c.b16 %v1535, %v1527
        %v2232 = vpack.c.b16 %v1536, %v1528
        %v2233 = vpack.c.b16 %v1537, %v1529
        %v2234 = vpack.c.b16 %v1546, %v1538
        %v2235 = vpack.c.b16 %v1547, %v1539
        %v2236 = vpack.c.b16 %v1548, %v1540
        %v2237 = vpack.c.b16 %v1549, %v1541
        %v2238 = vpack.c.b16 %v1550, %v1542
        %v2239 = vpack.c.b16 %v1551, %v1543
        %v2240 = vpack.c.b16 %v1552, %v1544
        %v2241 = vpack.c.b16 %v1553, %v1545
        %v2242 = vpack.c.b16 %v1562, %v1554
        %v2243 = vpack.c.b16 %v1563, %v1555
        %v2244 = vpack.c.b16 %v1564, %v1556
        %v2245 = vpack.c.b16 %v1565, %v1557
        %v2246 = vpack.c.b16 %v1566, %v1558
        %v2247 = vpack.c.b16 %v1567, %v1559
        %v2248 = vpack.c.b16 %v1568, %v1560
        %v2249 = vpack.c.b16 %v1569, %v1561
        %v2250 = vpack.c.b16 %v1578, %v1570
        %v2251 = vpack.c.b16 %v1579, %v1571
        %v2252 = vpack.c.b16 %v1580, %v1572
        %v2253 = vpack.c.b16 %v1581, %v1573
        %v2254 = vpack.c.b16 %v1582, %v1574
        %v2255 = vpack.c.b16 %v1583, %v1575
        %v2256 = vpack.c.b16 %v1584, %v1576
        %v2257 = vpack.c.b16 %v1585, %v1577
        %v2258 = vpack.c.b16 %v1594, %v1586
        %v2259 = vpack.c.b16 %v1595, %v1587
        %v2260 = vpack.c.b16 %v1596, %v1588
        %v2261 = vpack.c.b16 %v1597, %v1589
        %v2262 = vpack.c.b16 %v1598, %v1590
        %v2263 = vpack.c.b16 %v1599, %v1591
        %v2264 = vpack.c.b16 %v1600, %v1592
        %v2265 = vpack.c.b16 %v1601, %v1593
        %v2266 = vpack.c.b16 %v1610, %v1602
        %v2267 = vpack.c.b16 %v1611, %v1603
        %v2268 = vpack.c.b16 %v1612, %v1604
        %v2269 = vpack.c.b16 %v1613, %v1605
        %v2270 = vpack.c.b16 %v1614, %v1606
        %v2271 = vpack.c.b16 %v1615, %v1607
        %v2272 = vpack.c.b16 %v1616, %v1608
        %v2273 = vpack.c.b16 %v1617, %v1609
        %v2274 = vpack.c.b16 %v1626, %v1618
        %v2275 = vpack.c.b16 %v1627, %v1619
        %v2276 = vpack.c.b16 %v1628, %v1620
        %v2277 = vpack.c.b16 %v1629, %v1621
        %v2278 = vpack.c.b16 %v1630, %v1622
        %v2279 = vpack.c.b16 %v1631, %v1623
        %v2280 = vpack.c.b16 %v1632, %v1624
        %v2281 = vpack.c.b16 %v1633, %v1625
        %v2282 = vpack.c.b16 %v1642, %v1634
        %v2283 = vpack.c.b16 %v1643, %v1635
        %v2284 = vpack.c.b16 %v1644, %v1636
        %v2285 = vpack.c.b16 %v1645, %v1637
        %v2286 = vpack.c.b16 %v1646, %v1638
        %v2287 = vpack.c.b16 %v1647, %v1639
        %v2288 = vpack.c.b16 %v1648, %v1640
        %v2289 = vpack.c.b16 %v1649, %v1641
        %v2290 = vpack.c.b16 %v1658, %v1650
        %v2291 = vpack.c.b16 %v1659, %v1651
        %v2292 = vpack.c.b16 %v1660, %v1652
        %v2293 = vpack.c.b16 %v1661, %v1653
        %v2294 = vpack.c.b16 %v1662, %v1654
        %v2295 = vpack.c.b16 %v1663, %v1655
        %v2296 = vpack.c.b16 %v1664, %v1656
        %v2297 = vpack.c.b16 %v1665, %v1657
        %v2298 = vpack.c.b16 %v1674, %v1666
        %v2299 = vpack.c.b16 %v1675, %v1667
        %v2300 = vpack.c.b16 %v1676, %v1668
        %v2301 = vpack.c.b16 %v1677, %v1669
        %v2302 = vpack.c.b16 %v1678, %v1670
        %v2303 = vpack.c.b16 %v1679, %v1671
        %v2304 = vpack.c.b16 %v1680, %v1672
        %v2305 = vpack.c.b16 %v1681, %v1673
        %v2306 = vpack.c.b16 %v1690, %v1682
        %v2307 = vpack.c.b16 %v1691, %v1683
        %v2308 = vpack.c.b16 %v1692, %v1684
        %v2309 = vpack.c.b16 %v1693, %v1685
        %v2310 = vpack.c.b16 %v1694, %v1686
        %v2311 = vpack.c.b16 %v1695, %v1687
        %v2312 = vpack.c.b16 %v1696, %v1688
        %v2313 = vpack.c.b16 %v1697, %v1689
        %v2314 = vpack.c.b16 %v1706, %v1698
        %v2315 = vpack.c.b16 %v1707, %v1699
        %v2316 = vpack.c.b16 %v1708, %v1700
        %v2317 = vpack.c.b16 %v1709, %v1701
        %v2318 = vpack.c.b16 %v1710, %v1702
        %v2319 = vpack.c.b16 %v1711, %v1703
        %v2320 = vpack.c.b16 %v1712, %v1704
        %v2321 = vpack.c.b16 %v1713, %v1705
        %v2322 = vpack.c.b16 %v1722, %v1714
        %v2323 = vpack.c.b16 %v1723, %v1715
        %v2324 = vpack.c.b16 %v1724, %v1716
        %v2325 = vpack.c.b16 %v1725, %v1717
        %v2326 = vpack.c.b16 %v1726, %v1718
        %v2327 = vpack.c.b16 %v1727, %v1719
        %v2328 = vpack.c.b16 %v1728, %v1720
        %v2329 = vpack.c.b16 %v1729, %v1721
        %v2330 = vpack.c.b16 %v1738, %v1730
        %v2331 = vpack.c.b16 %v1739, %v1731
        %v2332 = vpack.c.b16 %v1740, %v1732
        %v2333 = vpack.c.b16 %v1741, %v1733
        %v2334 = vpack.c.b16 %v1742, %v1734
        %v2335 = vpack.c.b16 %v1743, %v1735
        %v2336 = vpack.c.b16 %v1744, %v1736
        %v2337 = vpack.c.b16 %v1745, %v1737
        %v2338 = vpack.c.b16 %v1754, %v1746
        %v2339 = vpack.c.b16 %v1755, %v1747
        %v2340 = vpack.c.b16 %v1756, %v1748
        %v2341 = vpack.c.b16 %v1757, %v1749
        %v2342 = vpack.c.b16 %v1758, %v1750
        %v2343 = vpack.c.b16 %v1759, %v1751
        %v2344 = vpack.c.b16 %v1760, %v1752
        %v2345 = vpack.c.b16 %v1761, %v1753
        %v2346 = vpack.c.b16 %v1770, %v1762
        %v2347 = vpack.c.b16 %v1771, %v1763
        %v2348 = vpack.c.b16 %v1772, %v1764
        %v2349 = vpack.c.b16 %v1773, %v1765
        %v2350 = vpack.c.b16 %v1774, %v1766
        %v2351 = vpack.c.b16 %v1775, %v1767
        %v2352 = vpack.c.b16 %v1776, %v1768
        %v2353 = vpack.c.b16 %v1777, %v1769
        %v2354 = vpack.c.b16 %v1786, %v1778
        %v2355 = vpack.c.b16 %v1787, %v1779
        %v2356 = vpack.c.b16 %v1788, %v1780
        %v2357 = vpack.c.b16 %v1789, %v1781
        %v2358 = vpack.c.b16 %v1790, %v1782
        %v2359 = vpack.c.b16 %v1791, %v1783
        %v2360 = vpack.c.b16 %v1792, %v1784
        %v2361 = vpack.c.b16 %v1793, %v1785
        %v2362 = vpack.c.b16 %v1802, %v1794
        %v2363 = vpack.c.b16 %v1803, %v1795
        %v2364 = vpack.c.b16 %v1804, %v1796
        %v2365 = vpack.c.b16 %v1805, %v1797
        %v2366 = vpack.c.b16 %v1806, %v1798
        %v2367 = vpack.c.b16 %v1807, %v1799
        %v2368 = vpack.c.b16 %v1808, %v1800
        %v2369 = vpack.c.b16 %v1809, %v1801
        %v2370 = vpack.c.b16 %v1818, %v1810
        %v2371 = vpack.c.b16 %v1819, %v1811
        %v2372 = vpack.c.b16 %v1820, %v1812
        %v2373 = vpack.c.b16 %v1821, %v1813
        %v2374 = vpack.c.b16 %v1822, %v1814
        %v2375 = vpack.c.b16 %v1823, %v1815
        %v2376 = vpack.c.b16 %v1824, %v1816
        %v2377 = vpack.c.b16 %v1825, %v1817
        %v2378 = vpack.c.b16 %v1834, %v1826
        %v2379 = vpack.c.b16 %v1835, %v1827
        %v2380 = vpack.c.b16 %v1836, %v1828
        %v2381 = vpack.c.b16 %v1837, %v1829
        %v2382 = vpack.c.b16 %v1838, %v1830
        %v2383 = vpack.c.b16 %v1839, %v1831
        %v2384 = vpack.c.b16 %v1840, %v1832
        %v2385 = vpack.c.b16 %v1841, %v1833
        %v2386 = vpack.c.b16 %v1850, %v1842
        %v2387 = vpack.c.b16 %v1851, %v1843
        %v2388 = vpack.c.b16 %v1852, %v1844
        %v2389 = vpack.c.b16 %v1853, %v1845
        %v2390 = vpack.c.b16 %v1854, %v1846
        %v2391 = vpack.c.b16 %v1855, %v1847
        %v2392 = vpack.c.b16 %v1856, %v1848
        %v2393 = vpack.c.b16 %v1857, %v1849
        %v2394 = vpack.c.b16 %v1866, %v1858
        %v2395 = vpack.c.b16 %v1867, %v1859
        %v2396 = vpack.c.b16 %v1868, %v1860
        %v2397 = vpack.c.b16 %v1869, %v1861
        %v2398 = vpack.c.b16 %v1870, %v1862
        %v2399 = vpack.c.b16 %v1871, %v1863
        %v2400 = vpack.c.b16 %v1872, %v1864
        %v2401 = vpack.c.b16 %v1873, %v1865
        %v2402 = vpack.c.b16 %v1882, %v1874
        %v2403 = vpack.c.b16 %v1883, %v1875
        %v2404 = vpack.c.b16 %v1884, %v1876
        %v2405 = vpack.c.b16 %v1885, %v1877
        %v2406 = vpack.c.b16 %v1886, %v1878
        %v2407 = vpack.c.b16 %v1887, %v1879
        %v2408 = vpack.c.b16 %v1888, %v1880
        %v2409 = vpack.c.b16 %v1889, %v1881
        %v2410 = vpack.c.b16 %v1898, %v1890
        %v2411 = vpack.c.b16 %v1899, %v1891
        %v2412 = vpack.c.b16 %v1900, %v1892
        %v2413 = vpack.c.b16 %v1901, %v1893
        %v2414 = vpack.c.b16 %v1902, %v1894
        %v2415 = vpack.c.b16 %v1903, %v1895
        %v2416 = vpack.c.b16 %v1904, %v1896
        %v2417 = vpack.c.b16 %v1905, %v1897
        %v2418 = vpack.c.b16 %v1914, %v1906
        %v2419 = vpack.c.b16 %v1915, %v1907
        %v2420 = vpack.c.b16 %v1916, %v1908
        %v2421 = vpack.c.b16 %v1917, %v1909
        %v2422 = vpack.c.b16 %v1918, %v1910
        %v2423 = vpack.c.b16 %v1919, %v1911
        %v2424 = vpack.c.b16 %v1920, %v1912
        %v2425 = vpack.c.b16 %v1921, %v1913
        %v2426 = vpack.c.b16 %v1930, %v1922
        %v2427 = vpack.c.b16 %v1931, %v1923
        %v2428 = vpack.c.b16 %v1932, %v1924
        %v2429 = vpack.c.b16 %v1933, %v1925
        %v2430 = vpack.c.b16 %v1934, %v1926
        %v2431 = vpack.c.b16 %v1935, %v1927
        %v2432 = vpack.c.b16 %v1936, %v1928
        %v2433 = vpack.c.b16 %v1937, %v1929
        %v2434 = vpack.c.b16 %v1946, %v1938
        %v2435 = vpack.c.b16 %v1947, %v1939
        %v2436 = vpack.c.b16 %v1948, %v1940
        %v2437 = vpack.c.b16 %v1949, %v1941
        %v2438 = vpack.c.b16 %v1950, %v1942
        %v2439 = vpack.c.b16 %v1951, %v1943
        %v2440 = vpack.c.b16 %v1952, %v1944
        %v2441 = vpack.c.b16 %v1953, %v1945
        %v2442 = vpack.c.b16 %v1962, %v1954
        %v2443 = vpack.c.b16 %v1963, %v1955
        %v2444 = vpack.c.b16 %v1964, %v1956
        %v2445 = vpack.c.b16 %v1965, %v1957
        %v2446 = vpack.c.b16 %v1966, %v1958
        %v2447 = vpack.c.b16 %v1967, %v1959
        %v2448 = vpack.c.b16 %v1968, %v1960
        %v2449 = vpack.c.b16 %v1969, %v1961
        %v2450 = vpack.c.b16 %v1978, %v1970
        %v2451 = vpack.c.b16 %v1979, %v1971
        %v2452 = vpack.c.b16 %v1980, %v1972
        %v2453 = vpack.c.b16 %v1981, %v1973
        %v2454 = vpack.c.b16 %v1982, %v1974
        %v2455 = vpack.c.b16 %v1983, %v1975
        %v2456 = vpack.c.b16 %v1984, %v1976
        %v2457 = vpack.c.b16 %v1985, %v1977
        %v2458 = vpack.c.b16 %v1994, %v1986
        %v2459 = vpack.c.b16 %v1995, %v1987
        %v2460 = vpack.c.b16 %v1996, %v1988
        %v2461 = vpack.c.b16 %v1997, %v1989
        %v2462 = vpack.c.b16 %v1998, %v1990
        %v2463 = vpack.c.b16 %v1999, %v1991
        %v2464 = vpack.c.b16 %v2000, %v1992
        %v2465 = vpack.c.b16 %v2001, %v1993
        %v2466 = vpack.c.b16 %v2010, %v2002
        %v2467 = vpack.c.b16 %v2011, %v2003
        %v2468 = vpack.c.b16 %v2012, %v2004
        %v2469 = vpack.c.b16 %v2013, %v2005
        %v2470 = vpack.c.b16 %v2014, %v2006
        %v2471 = vpack.c.b16 %v2015, %v2007
        %v2472 = vpack.c.b16 %v2016, %v2008
        %v2473 = vpack.c.b16 %v2017, %v2009
        %v2474 = vpack.c.b16 %v2026, %v2018
        %v2475 = vpack.c.b16 %v2027, %v2019
        %v2476 = vpack.c.b16 %v2028, %v2020
        %v2477 = vpack.c.b16 %v2029, %v2021
        %v2478 = vpack.c.b16 %v2030, %v2022
        %v2479 = vpack.c.b16 %v2031, %v2023
        %v2480 = vpack.c.b16 %v2032, %v2024
        %v2481 = vpack.c.b16 %v2033, %v2025
        %v2482 = vpack.c.b16 %v2042, %v2034
        %v2483 = vpack.c.b16 %v2043, %v2035
        %v2484 = vpack.c.b16 %v2044, %v2036
        %v2485 = vpack.c.b16 %v2045, %v2037
        %v2486 = vpack.c.b16 %v2046, %v2038
        %v2487 = vpack.c.b16 %v2047, %v2039
        %v2488 = vpack.c.b16 %v2048, %v2040
        %v2489 = vpack.c.b16 %v2049, %v2041
        %v2490 = vpack.c.b16 %v2058, %v2050
        %v2491 = vpack.c.b16 %v2059, %v2051
        %v2492 = vpack.c.b16 %v2060, %v2052
        %v2493 = vpack.c.b16 %v2061, %v2053
        %v2494 = vpack.c.b16 %v2062, %v2054
        %v2495 = vpack.c.b16 %v2063, %v2055
        %v2496 = vpack.c.b16 %v2064, %v2056
        %v2497 = vpack.c.b16 %v2065, %v2057
        %v2498 = vpack.c.b16 %v2074, %v2066
        %v2499 = vpack.c.b16 %v2075, %v2067
        %v2500 = vpack.c.b16 %v2076, %v2068
        %v2501 = vpack.c.b16 %v2077, %v2069
        %v2502 = vpack.c.b16 %v2078, %v2070
        %v2503 = vpack.c.b16 %v2079, %v2071
        %v2504 = vpack.c.b16 %v2080, %v2072
        %v2505 = vpack.c.b16 %v2081, %v2073
        %v2506 = vpack.c.b16 %v2090, %v2082
        %v2507 = vpack.c.b16 %v2091, %v2083
        %v2508 = vpack.c.b16 %v2092, %v2084
        %v2509 = vpack.c.b16 %v2093, %v2085
        %v2510 = vpack.c.b16 %v2094, %v2086
        %v2511 = vpack.c.b16 %v2095, %v2087
        %v2512 = vpack.c.b16 %v2096, %v2088
        %v2513 = vpack.c.b16 %v2097, %v2089
        %v2514 = vpack.c.b16 %v2106, %v2098
        %v2515 = vpack.c.b16 %v2107, %v2099
        %v2516 = vpack.c.b16 %v2108, %v2100
        %v2517 = vpack.c.b16 %v2109, %v2101
        %v2518 = vpack.c.b16 %v2110, %v2102
        %v2519 = vpack.c.b16 %v2111, %v2103
        %v2520 = vpack.c.b16 %v2112, %v2104
        %v2521 = vpack.c.b16 %v2113, %v2105
        %v2522 = vpack.c.b16 %v2122, %v2114
        %v2523 = vpack.c.b16 %v2123, %v2115
        %v2524 = vpack.c.b16 %v2124, %v2116
        %v2525 = vpack.c.b16 %v2125, %v2117
        %v2526 = vpack.c.b16 %v2126, %v2118
        %v2527 = vpack.c.b16 %v2127, %v2119
        %v2528 = vpack.c.b16 %v2128, %v2120
        %v2529 = vpack.c.b16 %v2129, %v2121
        %v2530 = vpack.c.b16 %v2138, %v2130
        %v2531 = vpack.c.b16 %v2139, %v2131
        %v2532 = vpack.c.b16 %v2140, %v2132
        %v2533 = vpack.c.b16 %v2141, %v2133
        %v2534 = vpack.c.b16 %v2142, %v2134
        %v2535 = vpack.c.b16 %v2143, %v2135
        %v2536 = vpack.c.b16 %v2144, %v2136
        %v2537 = vpack.c.b16 %v2145, %v2137
        %vm2930 = vcmask 130048
        %v2932 = vsel %vm2930, %v486, 0
        %v2935 = vsel %vm2930, %v493, 0
        %v2938 = vsel %vm2930, %v500, 0
        %v2941 = vsel %vm2930, %v507, 0
        %v2944 = vsel %vm2930, %v514, 0
        %v2947 = vsel %vm2930, %v521, 0
        %v2950 = vsel %vm2930, %v528, 0
        %v2953 = vsel %vm2930, %v535, 0
        %2955 = vmatprep.subr.bf16.mxu0 %v2203
        %2956 = vmatpush1.bf16.msra.mxu0 %v2202
        %2957 = vmatprep.subr.bf16.mxu0 %v2195
        %2958 = vmatpush1.bf16.msra.mxu0 %v2194
        %2959 = vmatprep.subr.bf16.mxu0 %v2187
        %2960 = vmatpush1.bf16.msra.mxu0 %v2186
        %2961 = vmatprep.subr.bf16.mxu0 %v2179
        %2962 = vmatpush1.bf16.msra.mxu0 %v2178
        %2963 = vmatprep.subr.bf16.mxu0 %v2171
        %2964 = vmatpush1.bf16.msra.mxu0 %v2170
        %2965 = vmatprep.subr.bf16.mxu0 %v2163
        %2966 = vmatpush1.bf16.msra.mxu0 %v2162
        %2967 = vmatprep.subr.bf16.mxu0 %v2155
        %2968 = vmatpush1.bf16.msra.mxu0 %v2154
        %2969 = vmatprep.subr.bf16.mxu0 %v2147
        %2970 = vmatpush1.bf16.msra.mxu0 %v2146
        %2971 = vmatprep.subr.bf16.mxu0 %v2267
        %2972 = vmatpush2.bf16.msra.mxu0 %v2266
        %2973 = vmatprep.subr.bf16.mxu0 %v2259
        %2974 = vmatpush2.bf16.msra.mxu0 %v2258
        %2975 = vmatprep.subr.bf16.mxu0 %v2251
        %2976 = vmatpush2.bf16.msra.mxu0 %v2250
        %2977 = vmatprep.subr.bf16.mxu0 %v2243
        %2978 = vmatpush2.bf16.msra.mxu0 %v2242
        %2979 = vmatprep.subr.bf16.mxu0 %v2235
        %2980 = vmatpush2.bf16.msra.mxu0 %v2234
        %2981 = vmatprep.subr.bf16.mxu0 %v2227
        %2982 = vmatpush2.bf16.msra.mxu0 %v2226
        %2983 = vmatprep.subr.bf16.mxu0 %v2219
        %2984 = vmatpush2.bf16.msra.mxu0 %v2218
        %2985 = vmatprep.subr.bf16.mxu0 %v2211
        %2986 = vmatpush2.bf16.msra.mxu0 %v2210
        %2987 = vmatprep.mubr.bf16.mxu0 %v481
        %2988 = vmatmul.mubr.bf16.gmra.mxu0 %v480
        %v2989 = vpop.f32.mrf.mxu0
        %v2990 = vadd.f32 %v933, %v2989
        %v2991 = vpop.f32.mrf.mxu0
        %v2992 = vadd.f32 %v937, %v2991
        %v2993 = vpop.f32.mrf.mxu0
        %v2994 = vadd.f32 %v933, %v2993
        %v2995 = vpop.f32.mrf.mxu0
        %v2996 = vadd.f32 %v937, %v2995
        %2997 = vmatprep.mubr.bf16.mxu0 %v488
        %2998 = vmatmul.mubr.bf16.gmra.mxu0 %v487
        %v2999 = vpop.f32.mrf.mxu0
        %v3000 = vadd.f32 %v933, %v2999
        %v3001 = vpop.f32.mrf.mxu0
        %v3002 = vadd.f32 %v937, %v3001
        %v3003 = vpop.f32.mrf.mxu0
        %v3004 = vadd.f32 %v933, %v3003
        %v3005 = vpop.f32.mrf.mxu0
        %v3006 = vadd.f32 %v937, %v3005
        %3007 = vmatprep.mubr.bf16.mxu0 %v495
        %3008 = vmatmul.mubr.bf16.gmra.mxu0 %v494
        %v3009 = vpop.f32.mrf.mxu0
        %v3010 = vadd.f32 %v933, %v3009
        %v3011 = vpop.f32.mrf.mxu0
        %v3012 = vadd.f32 %v937, %v3011
        %v3013 = vpop.f32.mrf.mxu0
        %v3014 = vadd.f32 %v933, %v3013
        %v3015 = vpop.f32.mrf.mxu0
        %v3016 = vadd.f32 %v937, %v3015
        %3017 = vmatprep.mubr.bf16.mxu0 %v502
        %3018 = vmatmul.mubr.bf16.gmra.mxu0 %v501
        %v3019 = vpop.f32.mrf.mxu0
        %v3020 = vadd.f32 %v933, %v3019
        %v3021 = vpop.f32.mrf.mxu0
        %v3022 = vadd.f32 %v937, %v3021
        %v3023 = vpop.f32.mrf.mxu0
        %v3024 = vadd.f32 %v933, %v3023
        %v3025 = vpop.f32.mrf.mxu0
        %v3026 = vadd.f32 %v937, %v3025
        %3027 = vmatprep.mubr.bf16.mxu0 %v509
        %3028 = vmatmul.mubr.bf16.gmra.mxu0 %v508
        %v3029 = vpop.f32.mrf.mxu0
        %v3030 = vadd.f32 %v933, %v3029
        %v3031 = vpop.f32.mrf.mxu0
        %v3032 = vadd.f32 %v937, %v3031
        %v3033 = vpop.f32.mrf.mxu0
        %v3034 = vadd.f32 %v933, %v3033
        %v3035 = vpop.f32.mrf.mxu0
        %v3036 = vadd.f32 %v937, %v3035
        %3037 = vmatprep.mubr.bf16.mxu0 %v516
        %3038 = vmatmul.mubr.bf16.gmra.mxu0 %v515
        %v3039 = vpop.f32.mrf.mxu0
        %v3040 = vadd.f32 %v933, %v3039
        %v3041 = vpop.f32.mrf.mxu0
        %v3042 = vadd.f32 %v937, %v3041
        %v3043 = vpop.f32.mrf.mxu0
        %v3044 = vadd.f32 %v933, %v3043
        %v3045 = vpop.f32.mrf.mxu0
        %v3046 = vadd.f32 %v937, %v3045
        %3047 = vmatprep.mubr.bf16.mxu0 %v523
        %3048 = vmatmul.mubr.bf16.gmra.mxu0 %v522
        %v3049 = vpop.f32.mrf.mxu0
        %v3050 = vadd.f32 %v933, %v3049
        %v3051 = vpop.f32.mrf.mxu0
        %v3052 = vadd.f32 %v937, %v3051
        %v3053 = vpop.f32.mrf.mxu0
        %v3054 = vadd.f32 %v933, %v3053
        %v3055 = vpop.f32.mrf.mxu0
        %v3056 = vadd.f32 %v937, %v3055
        %3057 = vmatprep.mubr.bf16.mxu0 %v530
        %3058 = vmatmul.mubr.bf16.gmra.mxu0 %v529
        %v3059 = vpop.f32.mrf.mxu0
        %v3060 = vadd.f32 %v933, %v3059
        %v3061 = vpop.f32.mrf.mxu0
        %v3062 = vadd.f32 %v937, %v3061
        %v3063 = vpop.f32.mrf.mxu0
        %v3064 = vadd.f32 %v933, %v3063
        %v3065 = vpop.f32.mrf.mxu0
        %v3066 = vadd.f32 %v937, %v3065
        %3067 = vdwg.mxu0
        %3068 = vmatprep.subr.bf16.mxu0 %v2331
        %3069 = vmatpush1.bf16.msra.mxu0 %v2330
        %3070 = vmatprep.subr.bf16.mxu0 %v2323
        %3071 = vmatpush1.bf16.msra.mxu0 %v2322
        %3072 = vmatprep.subr.bf16.mxu0 %v2315
        %3073 = vmatpush1.bf16.msra.mxu0 %v2314
        %3074 = vmatprep.subr.bf16.mxu0 %v2307
        %3075 = vmatpush1.bf16.msra.mxu0 %v2306
        %3076 = vmatprep.subr.bf16.mxu0 %v2299
        %3077 = vmatpush1.bf16.msra.mxu0 %v2298
        %3078 = vmatprep.subr.bf16.mxu0 %v2291
        %3079 = vmatpush1.bf16.msra.mxu0 %v2290
        %3080 = vmatprep.subr.bf16.mxu0 %v2283
        %3081 = vmatpush1.bf16.msra.mxu0 %v2282
        %3082 = vmatprep.subr.bf16.mxu0 %v2275
        %3083 = vmatpush1.bf16.msra.mxu0 %v2274
        %3084 = vmatprep.subr.bf16.mxu0 %v2395
        %3085 = vmatpush2.bf16.msra.mxu0 %v2394
        %3086 = vmatprep.subr.bf16.mxu0 %v2387
        %3087 = vmatpush2.bf16.msra.mxu0 %v2386
        %3088 = vmatprep.subr.bf16.mxu0 %v2379
        %3089 = vmatpush2.bf16.msra.mxu0 %v2378
        %3090 = vmatprep.subr.bf16.mxu0 %v2371
        %3091 = vmatpush2.bf16.msra.mxu0 %v2370
        %3092 = vmatprep.subr.bf16.mxu0 %v2363
        %3093 = vmatpush2.bf16.msra.mxu0 %v2362
        %3094 = vmatprep.subr.bf16.mxu0 %v2355
        %3095 = vmatpush2.bf16.msra.mxu0 %v2354
        %3096 = vmatprep.subr.bf16.mxu0 %v2347
        %3097 = vmatpush2.bf16.msra.mxu0 %v2346
        %3098 = vmatprep.subr.bf16.mxu0 %v2339
        %3099 = vmatpush2.bf16.msra.mxu0 %v2338
        %3100 = vmatprep.mubr.bf16.mxu0 %v483
        %3101 = vmatmul.mubr.bf16.gmra.mxu0 %v482
        %v3102 = vpop.f32.mrf.mxu0
        %v3103 = vadd.f32 %v2990, %v3102
        %v3104 = vpop.f32.mrf.mxu0
        %v3105 = vadd.f32 %v2992, %v3104
        %v3106 = vpop.f32.mrf.mxu0
        %v3107 = vadd.f32 %v2994, %v3106
        %v3108 = vpop.f32.mrf.mxu0
        %v3109 = vadd.f32 %v2996, %v3108
        %3110 = vmatprep.mubr.bf16.mxu0 %v490
        %3111 = vmatmul.mubr.bf16.gmra.mxu0 %v489
        %v3112 = vpop.f32.mrf.mxu0
        %v3113 = vadd.f32 %v3000, %v3112
        %v3114 = vpop.f32.mrf.mxu0
        %v3115 = vadd.f32 %v3002, %v3114
        %v3116 = vpop.f32.mrf.mxu0
        %v3117 = vadd.f32 %v3004, %v3116
        %v3118 = vpop.f32.mrf.mxu0
        %v3119 = vadd.f32 %v3006, %v3118
        %3120 = vmatprep.mubr.bf16.mxu0 %v497
        %3121 = vmatmul.mubr.bf16.gmra.mxu0 %v496
        %v3122 = vpop.f32.mrf.mxu0
        %v3123 = vadd.f32 %v3010, %v3122
        %v3124 = vpop.f32.mrf.mxu0
        %v3125 = vadd.f32 %v3012, %v3124
        %v3126 = vpop.f32.mrf.mxu0
        %v3127 = vadd.f32 %v3014, %v3126
        %v3128 = vpop.f32.mrf.mxu0
        %v3129 = vadd.f32 %v3016, %v3128
        %3130 = vmatprep.mubr.bf16.mxu0 %v504
        %3131 = vmatmul.mubr.bf16.gmra.mxu0 %v503
        %v3132 = vpop.f32.mrf.mxu0
        %v3133 = vadd.f32 %v3020, %v3132
        %v3134 = vpop.f32.mrf.mxu0
        %v3135 = vadd.f32 %v3022, %v3134
        %v3136 = vpop.f32.mrf.mxu0
        %v3137 = vadd.f32 %v3024, %v3136
        %v3138 = vpop.f32.mrf.mxu0
        %v3139 = vadd.f32 %v3026, %v3138
        %3140 = vmatprep.mubr.bf16.mxu0 %v511
        %3141 = vmatmul.mubr.bf16.gmra.mxu0 %v510
        %v3142 = vpop.f32.mrf.mxu0
        %v3143 = vadd.f32 %v3030, %v3142
        %v3144 = vpop.f32.mrf.mxu0
        %v3145 = vadd.f32 %v3032, %v3144
        %v3146 = vpop.f32.mrf.mxu0
        %v3147 = vadd.f32 %v3034, %v3146
        %v3148 = vpop.f32.mrf.mxu0
        %v3149 = vadd.f32 %v3036, %v3148
        %3150 = vmatprep.mubr.bf16.mxu0 %v518
        %3151 = vmatmul.mubr.bf16.gmra.mxu0 %v517
        %v3152 = vpop.f32.mrf.mxu0
        %v3153 = vadd.f32 %v3040, %v3152
        %v3154 = vpop.f32.mrf.mxu0
        %v3155 = vadd.f32 %v3042, %v3154
        %v3156 = vpop.f32.mrf.mxu0
        %v3157 = vadd.f32 %v3044, %v3156
        %v3158 = vpop.f32.mrf.mxu0
        %v3159 = vadd.f32 %v3046, %v3158
        %3160 = vmatprep.mubr.bf16.mxu0 %v525
        %3161 = vmatmul.mubr.bf16.gmra.mxu0 %v524
        %v3162 = vpop.f32.mrf.mxu0
        %v3163 = vadd.f32 %v3050, %v3162
        %v3164 = vpop.f32.mrf.mxu0
        %v3165 = vadd.f32 %v3052, %v3164
        %v3166 = vpop.f32.mrf.mxu0
        %v3167 = vadd.f32 %v3054, %v3166
        %v3168 = vpop.f32.mrf.mxu0
        %v3169 = vadd.f32 %v3056, %v3168
        %3170 = vmatprep.mubr.bf16.mxu0 %v532
        %3171 = vmatmul.mubr.bf16.gmra.mxu0 %v531
        %v3172 = vpop.f32.mrf.mxu0
        %v3173 = vadd.f32 %v3060, %v3172
        %v3174 = vpop.f32.mrf.mxu0
        %v3175 = vadd.f32 %v3062, %v3174
        %v3176 = vpop.f32.mrf.mxu0
        %v3177 = vadd.f32 %v3064, %v3176
        %v3178 = vpop.f32.mrf.mxu0
        %v3179 = vadd.f32 %v3066, %v3178
        %3180 = vdwg.mxu0
        %3181 = vmatprep.subr.bf16.mxu0 %v2459
        %3182 = vmatpush1.bf16.msra.mxu0 %v2458
        %3183 = vmatprep.subr.bf16.mxu0 %v2451
        %3184 = vmatpush1.bf16.msra.mxu0 %v2450
        %3185 = vmatprep.subr.bf16.mxu0 %v2443
        %3186 = vmatpush1.bf16.msra.mxu0 %v2442
        %3187 = vmatprep.subr.bf16.mxu0 %v2435
        %3188 = vmatpush1.bf16.msra.mxu0 %v2434
        %3189 = vmatprep.subr.bf16.mxu0 %v2427
        %3190 = vmatpush1.bf16.msra.mxu0 %v2426
        %3191 = vmatprep.subr.bf16.mxu0 %v2419
        %3192 = vmatpush1.bf16.msra.mxu0 %v2418
        %3193 = vmatprep.subr.bf16.mxu0 %v2411
        %3194 = vmatpush1.bf16.msra.mxu0 %v2410
        %3195 = vmatprep.subr.bf16.mxu0 %v2403
        %3196 = vmatpush1.bf16.msra.mxu0 %v2402
        %3197 = vmatprep.subr.bf16.mxu0 %v2523
        %3198 = vmatpush2.bf16.msra.mxu0 %v2522
        %3199 = vmatprep.subr.bf16.mxu0 %v2515
        %3200 = vmatpush2.bf16.msra.mxu0 %v2514
        %3201 = vmatprep.subr.bf16.mxu0 %v2507
        %3202 = vmatpush2.bf16.msra.mxu0 %v2506
        %3203 = vmatprep.subr.bf16.mxu0 %v2499
        %3204 = vmatpush2.bf16.msra.mxu0 %v2498
        %3205 = vmatprep.subr.bf16.mxu0 %v2491
        %3206 = vmatpush2.bf16.msra.mxu0 %v2490
        %3207 = vmatprep.subr.bf16.mxu0 %v2483
        %3208 = vmatpush2.bf16.msra.mxu0 %v2482
        %3209 = vmatprep.subr.bf16.mxu0 %v2475
        %3210 = vmatpush2.bf16.msra.mxu0 %v2474
        %3211 = vmatprep.subr.bf16.mxu0 %v2467
        %3212 = vmatpush2.bf16.msra.mxu0 %v2466
        %3213 = vmatprep.mubr.bf16.mxu0 %v485
        %3214 = vmatmul.mubr.bf16.gmra.mxu0 %v484
        %v3215 = vpop.f32.mrf.mxu0
        %v3216 = vadd.f32 %v3103, %v3215
        %v3217 = vpop.f32.mrf.mxu0
        %v3218 = vadd.f32 %v3105, %v3217
        %v3219 = vpop.f32.mrf.mxu0
        %v3220 = vadd.f32 %v3107, %v3219
        %v3221 = vpop.f32.mrf.mxu0
        %v3222 = vadd.f32 %v3109, %v3221
        %3223 = vmatprep.mubr.bf16.mxu0 %v492
        %3224 = vmatmul.mubr.bf16.gmra.mxu0 %v491
        %v3225 = vpop.f32.mrf.mxu0
        %v3226 = vadd.f32 %v3113, %v3225
        %v3227 = vpop.f32.mrf.mxu0
        %v3228 = vadd.f32 %v3115, %v3227
        %v3229 = vpop.f32.mrf.mxu0
        %v3230 = vadd.f32 %v3117, %v3229
        %v3231 = vpop.f32.mrf.mxu0
        %v3232 = vadd.f32 %v3119, %v3231
        %3233 = vmatprep.mubr.bf16.mxu0 %v499
        %3234 = vmatmul.mubr.bf16.gmra.mxu0 %v498
        %v3235 = vpop.f32.mrf.mxu0
        %v3236 = vadd.f32 %v3123, %v3235
        %v3237 = vpop.f32.mrf.mxu0
        %v3238 = vadd.f32 %v3125, %v3237
        %v3239 = vpop.f32.mrf.mxu0
        %v3240 = vadd.f32 %v3127, %v3239
        %v3241 = vpop.f32.mrf.mxu0
        %v3242 = vadd.f32 %v3129, %v3241
        %3243 = vmatprep.mubr.bf16.mxu0 %v506
        %3244 = vmatmul.mubr.bf16.gmra.mxu0 %v505
        %v3245 = vpop.f32.mrf.mxu0
        %v3246 = vadd.f32 %v3133, %v3245
        %v3247 = vpop.f32.mrf.mxu0
        %v3248 = vadd.f32 %v3135, %v3247
        %v3249 = vpop.f32.mrf.mxu0
        %v3250 = vadd.f32 %v3137, %v3249
        %v3251 = vpop.f32.mrf.mxu0
        %v3252 = vadd.f32 %v3139, %v3251
        %3253 = vmatprep.mubr.bf16.mxu0 %v513
        %3254 = vmatmul.mubr.bf16.gmra.mxu0 %v512
        %v3255 = vpop.f32.mrf.mxu0
        %v3256 = vadd.f32 %v3143, %v3255
        %v3257 = vpop.f32.mrf.mxu0
        %v3258 = vadd.f32 %v3145, %v3257
        %v3259 = vpop.f32.mrf.mxu0
        %v3260 = vadd.f32 %v3147, %v3259
        %v3261 = vpop.f32.mrf.mxu0
        %v3262 = vadd.f32 %v3149, %v3261
        %3263 = vmatprep.mubr.bf16.mxu0 %v520
        %3264 = vmatmul.mubr.bf16.gmra.mxu0 %v519
        %v3265 = vpop.f32.mrf.mxu0
        %v3266 = vadd.f32 %v3153, %v3265
        %v3267 = vpop.f32.mrf.mxu0
        %v3268 = vadd.f32 %v3155, %v3267
        %v3269 = vpop.f32.mrf.mxu0
        %v3270 = vadd.f32 %v3157, %v3269
        %v3271 = vpop.f32.mrf.mxu0
        %v3272 = vadd.f32 %v3159, %v3271
        %3273 = vmatprep.mubr.bf16.mxu0 %v527
        %3274 = vmatmul.mubr.bf16.gmra.mxu0 %v526
        %v3275 = vpop.f32.mrf.mxu0
        %v3276 = vadd.f32 %v3163, %v3275
        %v3277 = vpop.f32.mrf.mxu0
        %v3278 = vadd.f32 %v3165, %v3277
        %v3279 = vpop.f32.mrf.mxu0
        %v3280 = vadd.f32 %v3167, %v3279
        %v3281 = vpop.f32.mrf.mxu0
        %v3282 = vadd.f32 %v3169, %v3281
        %3283 = vmatprep.mubr.bf16.mxu0 %v534
        %3284 = vmatmul.mubr.bf16.gmra.mxu0 %v533
        %v3285 = vpop.f32.mrf.mxu0
        %v3286 = vadd.f32 %v3173, %v3285
        %v3287 = vpop.f32.mrf.mxu0
        %v3288 = vadd.f32 %v3175, %v3287
        %v3289 = vpop.f32.mrf.mxu0
        %v3290 = vadd.f32 %v3177, %v3289
        %v3291 = vpop.f32.mrf.mxu0
        %v3292 = vadd.f32 %v3179, %v3291
        %3293 = vdwg.mxu0
        %3294 = vmatprep.subr.bf16.mxu0 0
        %3295 = vmatpush1.bf16.msra.mxu0 0
        %3296 = vmatprep.subr.bf16.mxu0 0
        %3297 = vmatpush1.bf16.msra.mxu0 0
        %3298 = vmatprep.subr.bf16.mxu0 0
        %3299 = vmatpush1.bf16.msra.mxu0 0
        %3300 = vmatprep.subr.bf16.mxu0 0
        %3301 = vmatpush1.bf16.msra.mxu0 0
        %3302 = vmatprep.subr.bf16.mxu0 0
        %3303 = vmatpush1.bf16.msra.mxu0 0
        %3304 = vmatprep.subr.bf16.mxu0 0
        %3305 = vmatpush1.bf16.msra.mxu0 0
        %3306 = vmatprep.subr.bf16.mxu0 0
        %3307 = vmatpush1.bf16.msra.mxu0 0
        %3308 = vmatprep.subr.bf16.mxu0 %v2531
        %3309 = vmatpush1.bf16.msra.mxu0 %v2530
        %3310 = vmatprep.subr.bf16.mxu0 0
        %3311 = vmatpush2.bf16.msra.mxu0 0
        %3312 = vmatprep.subr.bf16.mxu0 0
        %3313 = vmatpush2.bf16.msra.mxu0 0
        %3314 = vmatprep.subr.bf16.mxu0 0
        %3315 = vmatpush2.bf16.msra.mxu0 0
        %3316 = vmatprep.subr.bf16.mxu0 0
        %3317 = vmatpush2.bf16.msra.mxu0 0
        %3318 = vmatprep.subr.bf16.mxu0 0
        %3319 = vmatpush2.bf16.msra.mxu0 0
        %3320 = vmatprep.subr.bf16.mxu0 0
        %3321 = vmatpush2.bf16.msra.mxu0 0
        %3322 = vmatprep.subr.bf16.mxu0 0
        %3323 = vmatpush2.bf16.msra.mxu0 0
        %3324 = vmatprep.subr.bf16.mxu0 0
        %3325 = vmatpush2.bf16.msra.mxu0 0
        %3326 = vmatprep.mubr.bf16.mxu0 0
        %3327 = vmatmul.mubr.bf16.gmra.mxu0 %v2932
        %v3328 = vpop.f32.mrf.mxu0
        %v3329 = vadd.f32 %v3216, %v3328
        %v3330 = vpop.f32.mrf.mxu0
        %v3331 = vadd.f32 %v3218, %v3330
        %v3332 = vpop.f32.mrf.mxu0
        %v3333 = vadd.f32 %v3220, %v3332
        %v3334 = vpop.f32.mrf.mxu0
        %v3335 = vadd.f32 %v3222, %v3334
        %3336 = vmatprep.mubr.bf16.mxu0 0
        %3337 = vmatmul.mubr.bf16.gmra.mxu0 %v2935
        %v3338 = vpop.f32.mrf.mxu0
        %v3339 = vadd.f32 %v3226, %v3338
        %v3340 = vpop.f32.mrf.mxu0
        %v3341 = vadd.f32 %v3228, %v3340
        %v3342 = vpop.f32.mrf.mxu0
        %v3343 = vadd.f32 %v3230, %v3342
        %v3344 = vpop.f32.mrf.mxu0
        %v3345 = vadd.f32 %v3232, %v3344
        %3346 = vmatprep.mubr.bf16.mxu0 0
        %3347 = vmatmul.mubr.bf16.gmra.mxu0 %v2938
        %v3348 = vpop.f32.mrf.mxu0
        %v3349 = vadd.f32 %v3236, %v3348
        %v3350 = vpop.f32.mrf.mxu0
        %v3351 = vadd.f32 %v3238, %v3350
        %v3352 = vpop.f32.mrf.mxu0
        %v3353 = vadd.f32 %v3240, %v3352
        %v3354 = vpop.f32.mrf.mxu0
        %v3355 = vadd.f32 %v3242, %v3354
        %3356 = vmatprep.mubr.bf16.mxu0 0
        %3357 = vmatmul.mubr.bf16.gmra.mxu0 %v2941
        %v3358 = vpop.f32.mrf.mxu0
        %v3359 = vadd.f32 %v3246, %v3358
        %v3360 = vpop.f32.mrf.mxu0
        %v3361 = vadd.f32 %v3248, %v3360
        %v3362 = vpop.f32.mrf.mxu0
        %v3363 = vadd.f32 %v3250, %v3362
        %v3364 = vpop.f32.mrf.mxu0
        %v3365 = vadd.f32 %v3252, %v3364
        %3366 = vmatprep.mubr.bf16.mxu0 0
        %3367 = vmatmul.mubr.bf16.gmra.mxu0 %v2944
        %v3368 = vpop.f32.mrf.mxu0
        %v3369 = vadd.f32 %v3256, %v3368
        %v3370 = vpop.f32.mrf.mxu0
        %v3371 = vadd.f32 %v3258, %v3370
        %v3372 = vpop.f32.mrf.mxu0
        %v3373 = vadd.f32 %v3260, %v3372
        %v3374 = vpop.f32.mrf.mxu0
        %v3375 = vadd.f32 %v3262, %v3374
        %3376 = vmatprep.mubr.bf16.mxu0 0
        %3377 = vmatmul.mubr.bf16.gmra.mxu0 %v2947
        %v3378 = vpop.f32.mrf.mxu0
        %v3379 = vadd.f32 %v3266, %v3378
        %v3380 = vpop.f32.mrf.mxu0
        %v3381 = vadd.f32 %v3268, %v3380
        %v3382 = vpop.f32.mrf.mxu0
        %v3383 = vadd.f32 %v3270, %v3382
        %v3384 = vpop.f32.mrf.mxu0
        %v3385 = vadd.f32 %v3272, %v3384
        %3386 = vmatprep.mubr.bf16.mxu0 0
        %3387 = vmatmul.mubr.bf16.gmra.mxu0 %v2950
        %v3388 = vpop.f32.mrf.mxu0
        %v3389 = vadd.f32 %v3276, %v3388
        %v3390 = vpop.f32.mrf.mxu0
        %v3391 = vadd.f32 %v3278, %v3390
        %v3392 = vpop.f32.mrf.mxu0
        %v3393 = vadd.f32 %v3280, %v3392
        %v3394 = vpop.f32.mrf.mxu0
        %v3395 = vadd.f32 %v3282, %v3394
        %3396 = vmatprep.mubr.bf16.mxu0 0
        %3397 = vmatmul.mubr.bf16.gmra.mxu0 %v2953
        %v3398 = vpop.f32.mrf.mxu0
        %v3399 = vadd.f32 %v3286, %v3398
        %v3400 = vpop.f32.mrf.mxu0
        %v3401 = vadd.f32 %v3288, %v3400
        %v3402 = vpop.f32.mrf.mxu0
        %v3403 = vadd.f32 %v3290, %v3402
        %v3404 = vpop.f32.mrf.mxu0
        %v3405 = vadd.f32 %v3292, %v3404
        %3406 = vdwg.mxu0
        %3407 = vmatprep.subr.bf16.mxu0 %v2205
        %3408 = vmatpush1.bf16.msra.mxu0 %v2204
        %3409 = vmatprep.subr.bf16.mxu0 %v2197
        %3410 = vmatpush1.bf16.msra.mxu0 %v2196
        %3411 = vmatprep.subr.bf16.mxu0 %v2189
        %3412 = vmatpush1.bf16.msra.mxu0 %v2188
        %3413 = vmatprep.subr.bf16.mxu0 %v2181
        %3414 = vmatpush1.bf16.msra.mxu0 %v2180
        %3415 = vmatprep.subr.bf16.mxu0 %v2173
        %3416 = vmatpush1.bf16.msra.mxu0 %v2172
        %3417 = vmatprep.subr.bf16.mxu0 %v2165
        %3418 = vmatpush1.bf16.msra.mxu0 %v2164
        %3419 = vmatprep.subr.bf16.mxu0 %v2157
        %3420 = vmatpush1.bf16.msra.mxu0 %v2156
        %3421 = vmatprep.subr.bf16.mxu0 %v2149
        %3422 = vmatpush1.bf16.msra.mxu0 %v2148
        %3423 = vmatprep.subr.bf16.mxu0 %v2269
        %3424 = vmatpush2.bf16.msra.mxu0 %v2268
        %3425 = vmatprep.subr.bf16.mxu0 %v2261
        %3426 = vmatpush2.bf16.msra.mxu0 %v2260
        %3427 = vmatprep.subr.bf16.mxu0 %v2253
        %3428 = vmatpush2.bf16.msra.mxu0 %v2252
        %3429 = vmatprep.subr.bf16.mxu0 %v2245
        %3430 = vmatpush2.bf16.msra.mxu0 %v2244
        %3431 = vmatprep.subr.bf16.mxu0 %v2237
        %3432 = vmatpush2.bf16.msra.mxu0 %v2236
        %3433 = vmatprep.subr.bf16.mxu0 %v2229
        %3434 = vmatpush2.bf16.msra.mxu0 %v2228
        %3435 = vmatprep.subr.bf16.mxu0 %v2221
        %3436 = vmatpush2.bf16.msra.mxu0 %v2220
        %3437 = vmatprep.subr.bf16.mxu0 %v2213
        %3438 = vmatpush2.bf16.msra.mxu0 %v2212
        %3439 = vmatprep.mubr.bf16.mxu0 %v481
        %3440 = vmatmul.mubr.bf16.gmra.mxu0 %v480
        %v3441 = vpop.f32.mrf.mxu0
        %v3442 = vadd.f32 %v941, %v3441
        %v3443 = vpop.f32.mrf.mxu0
        %v3444 = vadd.f32 %v945, %v3443
        %v3445 = vpop.f32.mrf.mxu0
        %v3446 = vadd.f32 %v941, %v3445
        %v3447 = vpop.f32.mrf.mxu0
        %v3448 = vadd.f32 %v945, %v3447
        %3449 = vmatprep.mubr.bf16.mxu0 %v488
        %3450 = vmatmul.mubr.bf16.gmra.mxu0 %v487
        %v3451 = vpop.f32.mrf.mxu0
        %v3452 = vadd.f32 %v941, %v3451
        %v3453 = vpop.f32.mrf.mxu0
        %v3454 = vadd.f32 %v945, %v3453
        %v3455 = vpop.f32.mrf.mxu0
        %v3456 = vadd.f32 %v941, %v3455
        %v3457 = vpop.f32.mrf.mxu0
        %v3458 = vadd.f32 %v945, %v3457
        %3459 = vmatprep.mubr.bf16.mxu0 %v495
        %3460 = vmatmul.mubr.bf16.gmra.mxu0 %v494
        %v3461 = vpop.f32.mrf.mxu0
        %v3462 = vadd.f32 %v941, %v3461
        %v3463 = vpop.f32.mrf.mxu0
        %v3464 = vadd.f32 %v945, %v3463
        %v3465 = vpop.f32.mrf.mxu0
        %v3466 = vadd.f32 %v941, %v3465
        %v3467 = vpop.f32.mrf.mxu0
        %v3468 = vadd.f32 %v945, %v3467
        %3469 = vmatprep.mubr.bf16.mxu0 %v502
        %3470 = vmatmul.mubr.bf16.gmra.mxu0 %v501
        %v3471 = vpop.f32.mrf.mxu0
        %v3472 = vadd.f32 %v941, %v3471
        %v3473 = vpop.f32.mrf.mxu0
        %v3474 = vadd.f32 %v945, %v3473
        %v3475 = vpop.f32.mrf.mxu0
        %v3476 = vadd.f32 %v941, %v3475
        %v3477 = vpop.f32.mrf.mxu0
        %v3478 = vadd.f32 %v945, %v3477
        %3479 = vmatprep.mubr.bf16.mxu0 %v509
        %3480 = vmatmul.mubr.bf16.gmra.mxu0 %v508
        %v3481 = vpop.f32.mrf.mxu0
        %v3482 = vadd.f32 %v941, %v3481
        %v3483 = vpop.f32.mrf.mxu0
        %v3484 = vadd.f32 %v945, %v3483
        %v3485 = vpop.f32.mrf.mxu0
        %v3486 = vadd.f32 %v941, %v3485
        %v3487 = vpop.f32.mrf.mxu0
        %v3488 = vadd.f32 %v945, %v3487
        %3489 = vmatprep.mubr.bf16.mxu0 %v516
        %3490 = vmatmul.mubr.bf16.gmra.mxu0 %v515
        %v3491 = vpop.f32.mrf.mxu0
        %v3492 = vadd.f32 %v941, %v3491
        %v3493 = vpop.f32.mrf.mxu0
        %v3494 = vadd.f32 %v945, %v3493
        %v3495 = vpop.f32.mrf.mxu0
        %v3496 = vadd.f32 %v941, %v3495
        %v3497 = vpop.f32.mrf.mxu0
        %v3498 = vadd.f32 %v945, %v3497
        %3499 = vmatprep.mubr.bf16.mxu0 %v523
        %3500 = vmatmul.mubr.bf16.gmra.mxu0 %v522
        %v3501 = vpop.f32.mrf.mxu0
        %v3502 = vadd.f32 %v941, %v3501
        %v3503 = vpop.f32.mrf.mxu0
        %v3504 = vadd.f32 %v945, %v3503
        %v3505 = vpop.f32.mrf.mxu0
        %v3506 = vadd.f32 %v941, %v3505
        %v3507 = vpop.f32.mrf.mxu0
        %v3508 = vadd.f32 %v945, %v3507
        %3509 = vmatprep.mubr.bf16.mxu0 %v530
        %3510 = vmatmul.mubr.bf16.gmra.mxu0 %v529
        %v3511 = vpop.f32.mrf.mxu0
        %v3512 = vadd.f32 %v941, %v3511
        %v3513 = vpop.f32.mrf.mxu0
        %v3514 = vadd.f32 %v945, %v3513
        %v3515 = vpop.f32.mrf.mxu0
        %v3516 = vadd.f32 %v941, %v3515
        %v3517 = vpop.f32.mrf.mxu0
        %v3518 = vadd.f32 %v945, %v3517
        %3519 = vdwg.mxu0
        %3520 = vmatprep.subr.bf16.mxu0 %v2333
        %3521 = vmatpush1.bf16.msra.mxu0 %v2332
        %3522 = vmatprep.subr.bf16.mxu0 %v2325
        %3523 = vmatpush1.bf16.msra.mxu0 %v2324
        %3524 = vmatprep.subr.bf16.mxu0 %v2317
        %3525 = vmatpush1.bf16.msra.mxu0 %v2316
        %3526 = vmatprep.subr.bf16.mxu0 %v2309
        %3527 = vmatpush1.bf16.msra.mxu0 %v2308
        %3528 = vmatprep.subr.bf16.mxu0 %v2301
        %3529 = vmatpush1.bf16.msra.mxu0 %v2300
        %3530 = vmatprep.subr.bf16.mxu0 %v2293
        %3531 = vmatpush1.bf16.msra.mxu0 %v2292
        %3532 = vmatprep.subr.bf16.mxu0 %v2285
        %3533 = vmatpush1.bf16.msra.mxu0 %v2284
        %3534 = vmatprep.subr.bf16.mxu0 %v2277
        %3535 = vmatpush1.bf16.msra.mxu0 %v2276
        %3536 = vmatprep.subr.bf16.mxu0 %v2397
        %3537 = vmatpush2.bf16.msra.mxu0 %v2396
        %3538 = vmatprep.subr.bf16.mxu0 %v2389
        %3539 = vmatpush2.bf16.msra.mxu0 %v2388
        %3540 = vmatprep.subr.bf16.mxu0 %v2381
        %3541 = vmatpush2.bf16.msra.mxu0 %v2380
        %3542 = vmatprep.subr.bf16.mxu0 %v2373
        %3543 = vmatpush2.bf16.msra.mxu0 %v2372
        %3544 = vmatprep.subr.bf16.mxu0 %v2365
        %3545 = vmatpush2.bf16.msra.mxu0 %v2364
        %3546 = vmatprep.subr.bf16.mxu0 %v2357
        %3547 = vmatpush2.bf16.msra.mxu0 %v2356
        %3548 = vmatprep.subr.bf16.mxu0 %v2349
        %3549 = vmatpush2.bf16.msra.mxu0 %v2348
        %3550 = vmatprep.subr.bf16.mxu0 %v2341
        %3551 = vmatpush2.bf16.msra.mxu0 %v2340
        %3552 = vmatprep.mubr.bf16.mxu0 %v483
        %3553 = vmatmul.mubr.bf16.gmra.mxu0 %v482
        %v3554 = vpop.f32.mrf.mxu0
        %v3555 = vadd.f32 %v3442, %v3554
        %v3556 = vpop.f32.mrf.mxu0
        %v3557 = vadd.f32 %v3444, %v3556
        %v3558 = vpop.f32.mrf.mxu0
        %v3559 = vadd.f32 %v3446, %v3558
        %v3560 = vpop.f32.mrf.mxu0
        %v3561 = vadd.f32 %v3448, %v3560
        %3562 = vmatprep.mubr.bf16.mxu0 %v490
        %3563 = vmatmul.mubr.bf16.gmra.mxu0 %v489
        %v3564 = vpop.f32.mrf.mxu0
        %v3565 = vadd.f32 %v3452, %v3564
        %v3566 = vpop.f32.mrf.mxu0
        %v3567 = vadd.f32 %v3454, %v3566
        %v3568 = vpop.f32.mrf.mxu0
        %v3569 = vadd.f32 %v3456, %v3568
        %v3570 = vpop.f32.mrf.mxu0
        %v3571 = vadd.f32 %v3458, %v3570
        %3572 = vmatprep.mubr.bf16.mxu0 %v497
        %3573 = vmatmul.mubr.bf16.gmra.mxu0 %v496
        %v3574 = vpop.f32.mrf.mxu0
        %v3575 = vadd.f32 %v3462, %v3574
        %v3576 = vpop.f32.mrf.mxu0
        %v3577 = vadd.f32 %v3464, %v3576
        %v3578 = vpop.f32.mrf.mxu0
        %v3579 = vadd.f32 %v3466, %v3578
        %v3580 = vpop.f32.mrf.mxu0
        %v3581 = vadd.f32 %v3468, %v3580
        %3582 = vmatprep.mubr.bf16.mxu0 %v504
        %3583 = vmatmul.mubr.bf16.gmra.mxu0 %v503
        %v3584 = vpop.f32.mrf.mxu0
        %v3585 = vadd.f32 %v3472, %v3584
        %v3586 = vpop.f32.mrf.mxu0
        %v3587 = vadd.f32 %v3474, %v3586
        %v3588 = vpop.f32.mrf.mxu0
        %v3589 = vadd.f32 %v3476, %v3588
        %v3590 = vpop.f32.mrf.mxu0
        %v3591 = vadd.f32 %v3478, %v3590
        %3592 = vmatprep.mubr.bf16.mxu0 %v511
        %3593 = vmatmul.mubr.bf16.gmra.mxu0 %v510
        %v3594 = vpop.f32.mrf.mxu0
        %v3595 = vadd.f32 %v3482, %v3594
        %v3596 = vpop.f32.mrf.mxu0
        %v3597 = vadd.f32 %v3484, %v3596
        %v3598 = vpop.f32.mrf.mxu0
        %v3599 = vadd.f32 %v3486, %v3598
        %v3600 = vpop.f32.mrf.mxu0
        %v3601 = vadd.f32 %v3488, %v3600
        %3602 = vmatprep.mubr.bf16.mxu0 %v518
        %3603 = vmatmul.mubr.bf16.gmra.mxu0 %v517
        %v3604 = vpop.f32.mrf.mxu0
        %v3605 = vadd.f32 %v3492, %v3604
        %v3606 = vpop.f32.mrf.mxu0
        %v3607 = vadd.f32 %v3494, %v3606
        %v3608 = vpop.f32.mrf.mxu0
        %v3609 = vadd.f32 %v3496, %v3608
        %v3610 = vpop.f32.mrf.mxu0
        %v3611 = vadd.f32 %v3498, %v3610
        %3612 = vmatprep.mubr.bf16.mxu0 %v525
        %3613 = vmatmul.mubr.bf16.gmra.mxu0 %v524
        %v3614 = vpop.f32.mrf.mxu0
        %v3615 = vadd.f32 %v3502, %v3614
        %v3616 = vpop.f32.mrf.mxu0
        %v3617 = vadd.f32 %v3504, %v3616
        %v3618 = vpop.f32.mrf.mxu0
        %v3619 = vadd.f32 %v3506, %v3618
        %v3620 = vpop.f32.mrf.mxu0
        %v3621 = vadd.f32 %v3508, %v3620
        %3622 = vmatprep.mubr.bf16.mxu0 %v532
        %3623 = vmatmul.mubr.bf16.gmra.mxu0 %v531
        %v3624 = vpop.f32.mrf.mxu0
        %v3625 = vadd.f32 %v3512, %v3624
        %v3626 = vpop.f32.mrf.mxu0
        %v3627 = vadd.f32 %v3514, %v3626
        %v3628 = vpop.f32.mrf.mxu0
        %v3629 = vadd.f32 %v3516, %v3628
        %v3630 = vpop.f32.mrf.mxu0
        %v3631 = vadd.f32 %v3518, %v3630
        %3632 = vdwg.mxu0
        %3633 = vmatprep.subr.bf16.mxu0 %v2461
        %3634 = vmatpush1.bf16.msra.mxu0 %v2460
        %3635 = vmatprep.subr.bf16.mxu0 %v2453
        %3636 = vmatpush1.bf16.msra.mxu0 %v2452
        %3637 = vmatprep.subr.bf16.mxu0 %v2445
        %3638 = vmatpush1.bf16.msra.mxu0 %v2444
        %3639 = vmatprep.subr.bf16.mxu0 %v2437
        %3640 = vmatpush1.bf16.msra.mxu0 %v2436
        %3641 = vmatprep.subr.bf16.mxu0 %v2429
        %3642 = vmatpush1.bf16.msra.mxu0 %v2428
        %3643 = vmatprep.subr.bf16.mxu0 %v2421
        %3644 = vmatpush1.bf16.msra.mxu0 %v2420
        %3645 = vmatprep.subr.bf16.mxu0 %v2413
        %3646 = vmatpush1.bf16.msra.mxu0 %v2412
        %3647 = vmatprep.subr.bf16.mxu0 %v2405
        %3648 = vmatpush1.bf16.msra.mxu0 %v2404
        %3649 = vmatprep.subr.bf16.mxu0 %v2525
        %3650 = vmatpush2.bf16.msra.mxu0 %v2524
        %3651 = vmatprep.subr.bf16.mxu0 %v2517
        %3652 = vmatpush2.bf16.msra.mxu0 %v2516
        %3653 = vmatprep.subr.bf16.mxu0 %v2509
        %3654 = vmatpush2.bf16.msra.mxu0 %v2508
        %3655 = vmatprep.subr.bf16.mxu0 %v2501
        %3656 = vmatpush2.bf16.msra.mxu0 %v2500
        %3657 = vmatprep.subr.bf16.mxu0 %v2493
        %3658 = vmatpush2.bf16.msra.mxu0 %v2492
        %3659 = vmatprep.subr.bf16.mxu0 %v2485
        %3660 = vmatpush2.bf16.msra.mxu0 %v2484
        %3661 = vmatprep.subr.bf16.mxu0 %v2477
        %3662 = vmatpush2.bf16.msra.mxu0 %v2476
        %3663 = vmatprep.subr.bf16.mxu0 %v2469
        %3664 = vmatpush2.bf16.msra.mxu0 %v2468
        %3665 = vmatprep.mubr.bf16.mxu0 %v485
        %3666 = vmatmul.mubr.bf16.gmra.mxu0 %v484
        %v3667 = vpop.f32.mrf.mxu0
        %v3668 = vadd.f32 %v3555, %v3667
        %v3669 = vpop.f32.mrf.mxu0
        %v3670 = vadd.f32 %v3557, %v3669
        %v3671 = vpop.f32.mrf.mxu0
        %v3672 = vadd.f32 %v3559, %v3671
        %v3673 = vpop.f32.mrf.mxu0
        %v3674 = vadd.f32 %v3561, %v3673
        %3675 = vmatprep.mubr.bf16.mxu0 %v492
        %3676 = vmatmul.mubr.bf16.gmra.mxu0 %v491
        %v3677 = vpop.f32.mrf.mxu0
        %v3678 = vadd.f32 %v3565, %v3677
        %v3679 = vpop.f32.mrf.mxu0
        %v3680 = vadd.f32 %v3567, %v3679
        %v3681 = vpop.f32.mrf.mxu0
        %v3682 = vadd.f32 %v3569, %v3681
        %v3683 = vpop.f32.mrf.mxu0
        %v3684 = vadd.f32 %v3571, %v3683
        %3685 = vmatprep.mubr.bf16.mxu0 %v499
        %3686 = vmatmul.mubr.bf16.gmra.mxu0 %v498
        %v3687 = vpop.f32.mrf.mxu0
        %v3688 = vadd.f32 %v3575, %v3687
        %v3689 = vpop.f32.mrf.mxu0
        %v3690 = vadd.f32 %v3577, %v3689
        %v3691 = vpop.f32.mrf.mxu0
        %v3692 = vadd.f32 %v3579, %v3691
        %v3693 = vpop.f32.mrf.mxu0
        %v3694 = vadd.f32 %v3581, %v3693
        %3695 = vmatprep.mubr.bf16.mxu0 %v506
        %3696 = vmatmul.mubr.bf16.gmra.mxu0 %v505
        %v3697 = vpop.f32.mrf.mxu0
        %v3698 = vadd.f32 %v3585, %v3697
        %v3699 = vpop.f32.mrf.mxu0
        %v3700 = vadd.f32 %v3587, %v3699
        %v3701 = vpop.f32.mrf.mxu0
        %v3702 = vadd.f32 %v3589, %v3701
        %v3703 = vpop.f32.mrf.mxu0
        %v3704 = vadd.f32 %v3591, %v3703
        %3705 = vmatprep.mubr.bf16.mxu0 %v513
        %3706 = vmatmul.mubr.bf16.gmra.mxu0 %v512
        %v3707 = vpop.f32.mrf.mxu0
        %v3708 = vadd.f32 %v3595, %v3707
        %v3709 = vpop.f32.mrf.mxu0
        %v3710 = vadd.f32 %v3597, %v3709
        %v3711 = vpop.f32.mrf.mxu0
        %v3712 = vadd.f32 %v3599, %v3711
        %v3713 = vpop.f32.mrf.mxu0
        %v3714 = vadd.f32 %v3601, %v3713
        %3715 = vmatprep.mubr.bf16.mxu0 %v520
        %3716 = vmatmul.mubr.bf16.gmra.mxu0 %v519
        %v3717 = vpop.f32.mrf.mxu0
        %v3718 = vadd.f32 %v3605, %v3717
        %v3719 = vpop.f32.mrf.mxu0
        %v3720 = vadd.f32 %v3607, %v3719
        %v3721 = vpop.f32.mrf.mxu0
        %v3722 = vadd.f32 %v3609, %v3721
        %v3723 = vpop.f32.mrf.mxu0
        %v3724 = vadd.f32 %v3611, %v3723
        %3725 = vmatprep.mubr.bf16.mxu0 %v527
        %3726 = vmatmul.mubr.bf16.gmra.mxu0 %v526
        %v3727 = vpop.f32.mrf.mxu0
        %v3728 = vadd.f32 %v3615, %v3727
        %v3729 = vpop.f32.mrf.mxu0
        %v3730 = vadd.f32 %v3617, %v3729
        %v3731 = vpop.f32.mrf.mxu0
        %v3732 = vadd.f32 %v3619, %v3731
        %v3733 = vpop.f32.mrf.mxu0
        %v3734 = vadd.f32 %v3621, %v3733
        %3735 = vmatprep.mubr.bf16.mxu0 %v534
        %3736 = vmatmul.mubr.bf16.gmra.mxu0 %v533
        %v3737 = vpop.f32.mrf.mxu0
        %v3738 = vadd.f32 %v3625, %v3737
        %v3739 = vpop.f32.mrf.mxu0
        %v3740 = vadd.f32 %v3627, %v3739
        %v3741 = vpop.f32.mrf.mxu0
        %v3742 = vadd.f32 %v3629, %v3741
        %v3743 = vpop.f32.mrf.mxu0
        %v3744 = vadd.f32 %v3631, %v3743
        %3745 = vdwg.mxu0
        %3746 = vmatprep.subr.bf16.mxu0 0
        %3747 = vmatpush1.bf16.msra.mxu0 0
        %3748 = vmatprep.subr.bf16.mxu0 0
        %3749 = vmatpush1.bf16.msra.mxu0 0
        %3750 = vmatprep.subr.bf16.mxu0 0
        %3751 = vmatpush1.bf16.msra.mxu0 0
        %3752 = vmatprep.subr.bf16.mxu0 0
        %3753 = vmatpush1.bf16.msra.mxu0 0
        %3754 = vmatprep.subr.bf16.mxu0 0
        %3755 = vmatpush1.bf16.msra.mxu0 0
        %3756 = vmatprep.subr.bf16.mxu0 0
        %3757 = vmatpush1.bf16.msra.mxu0 0
        %3758 = vmatprep.subr.bf16.mxu0 0
        %3759 = vmatpush1.bf16.msra.mxu0 0
        %3760 = vmatprep.subr.bf16.mxu0 %v2533
        %3761 = vmatpush1.bf16.msra.mxu0 %v2532
        %3762 = vmatprep.subr.bf16.mxu0 0
        %3763 = vmatpush2.bf16.msra.mxu0 0
        %3764 = vmatprep.subr.bf16.mxu0 0
        %3765 = vmatpush2.bf16.msra.mxu0 0
        %3766 = vmatprep.subr.bf16.mxu0 0
        %3767 = vmatpush2.bf16.msra.mxu0 0
        %3768 = vmatprep.subr.bf16.mxu0 0
        %3769 = vmatpush2.bf16.msra.mxu0 0
        %3770 = vmatprep.subr.bf16.mxu0 0
        %3771 = vmatpush2.bf16.msra.mxu0 0
        %3772 = vmatprep.subr.bf16.mxu0 0
        %3773 = vmatpush2.bf16.msra.mxu0 0
        %3774 = vmatprep.subr.bf16.mxu0 0
        %3775 = vmatpush2.bf16.msra.mxu0 0
        %3776 = vmatprep.subr.bf16.mxu0 0
        %3777 = vmatpush2.bf16.msra.mxu0 0
        %3778 = vmatprep.mubr.bf16.mxu0 0
        %3779 = vmatmul.mubr.bf16.gmra.mxu0 %v2932
        %v3780 = vpop.f32.mrf.mxu0
        %v3781 = vadd.f32 %v3668, %v3780
        %v3782 = vpop.f32.mrf.mxu0
        %v3783 = vadd.f32 %v3670, %v3782
        %v3784 = vpop.f32.mrf.mxu0
        %v3785 = vadd.f32 %v3672, %v3784
        %v3786 = vpop.f32.mrf.mxu0
        %v3787 = vadd.f32 %v3674, %v3786
        %3788 = vmatprep.mubr.bf16.mxu0 0
        %3789 = vmatmul.mubr.bf16.gmra.mxu0 %v2935
        %v3790 = vpop.f32.mrf.mxu0
        %v3791 = vadd.f32 %v3678, %v3790
        %v3792 = vpop.f32.mrf.mxu0
        %v3793 = vadd.f32 %v3680, %v3792
        %v3794 = vpop.f32.mrf.mxu0
        %v3795 = vadd.f32 %v3682, %v3794
        %v3796 = vpop.f32.mrf.mxu0
        %v3797 = vadd.f32 %v3684, %v3796
        %3798 = vmatprep.mubr.bf16.mxu0 0
        %3799 = vmatmul.mubr.bf16.gmra.mxu0 %v2938
        %v3800 = vpop.f32.mrf.mxu0
        %v3801 = vadd.f32 %v3688, %v3800
        %v3802 = vpop.f32.mrf.mxu0
        %v3803 = vadd.f32 %v3690, %v3802
        %v3804 = vpop.f32.mrf.mxu0
        %v3805 = vadd.f32 %v3692, %v3804
        %v3806 = vpop.f32.mrf.mxu0
        %v3807 = vadd.f32 %v3694, %v3806
        %3808 = vmatprep.mubr.bf16.mxu0 0
        %3809 = vmatmul.mubr.bf16.gmra.mxu0 %v2941
        %v3810 = vpop.f32.mrf.mxu0
        %v3811 = vadd.f32 %v3698, %v3810
        %v3812 = vpop.f32.mrf.mxu0
        %v3813 = vadd.f32 %v3700, %v3812
        %v3814 = vpop.f32.mrf.mxu0
        %v3815 = vadd.f32 %v3702, %v3814
        %v3816 = vpop.f32.mrf.mxu0
        %v3817 = vadd.f32 %v3704, %v3816
        %3818 = vmatprep.mubr.bf16.mxu0 0
        %3819 = vmatmul.mubr.bf16.gmra.mxu0 %v2944
        %v3820 = vpop.f32.mrf.mxu0
        %v3821 = vadd.f32 %v3708, %v3820
        %v3822 = vpop.f32.mrf.mxu0
        %v3823 = vadd.f32 %v3710, %v3822
        %v3824 = vpop.f32.mrf.mxu0
        %v3825 = vadd.f32 %v3712, %v3824
        %v3826 = vpop.f32.mrf.mxu0
        %v3827 = vadd.f32 %v3714, %v3826
        %3828 = vmatprep.mubr.bf16.mxu0 0
        %3829 = vmatmul.mubr.bf16.gmra.mxu0 %v2947
        %v3830 = vpop.f32.mrf.mxu0
        %v3831 = vadd.f32 %v3718, %v3830
        %v3832 = vpop.f32.mrf.mxu0
        %v3833 = vadd.f32 %v3720, %v3832
        %v3834 = vpop.f32.mrf.mxu0
        %v3835 = vadd.f32 %v3722, %v3834
        %v3836 = vpop.f32.mrf.mxu0
        %v3837 = vadd.f32 %v3724, %v3836
        %3838 = vmatprep.mubr.bf16.mxu0 0
        %3839 = vmatmul.mubr.bf16.gmra.mxu0 %v2950
        %v3840 = vpop.f32.mrf.mxu0
        %v3841 = vadd.f32 %v3728, %v3840
        %v3842 = vpop.f32.mrf.mxu0
        %v3843 = vadd.f32 %v3730, %v3842
        %v3844 = vpop.f32.mrf.mxu0
        %v3845 = vadd.f32 %v3732, %v3844
        %v3846 = vpop.f32.mrf.mxu0
        %v3847 = vadd.f32 %v3734, %v3846
        %3848 = vmatprep.mubr.bf16.mxu0 0
        %3849 = vmatmul.mubr.bf16.gmra.mxu0 %v2953
        %v3850 = vpop.f32.mrf.mxu0
        %v3851 = vadd.f32 %v3738, %v3850
        %v3852 = vpop.f32.mrf.mxu0
        %v3853 = vadd.f32 %v3740, %v3852
        %v3854 = vpop.f32.mrf.mxu0
        %v3855 = vadd.f32 %v3742, %v3854
        %v3856 = vpop.f32.mrf.mxu0
        %v3857 = vadd.f32 %v3744, %v3856
        %3858 = vdwg.mxu0
        %3859 = vmatprep.subr.bf16.mxu0 %v2207
        %3860 = vmatpush1.bf16.msra.mxu0 %v2206
        %3861 = vmatprep.subr.bf16.mxu0 %v2199
        %3862 = vmatpush1.bf16.msra.mxu0 %v2198
        %3863 = vmatprep.subr.bf16.mxu0 %v2191
        %3864 = vmatpush1.bf16.msra.mxu0 %v2190
        %3865 = vmatprep.subr.bf16.mxu0 %v2183
        %3866 = vmatpush1.bf16.msra.mxu0 %v2182
        %3867 = vmatprep.subr.bf16.mxu0 %v2175
        %3868 = vmatpush1.bf16.msra.mxu0 %v2174
        %3869 = vmatprep.subr.bf16.mxu0 %v2167
        %3870 = vmatpush1.bf16.msra.mxu0 %v2166
        %3871 = vmatprep.subr.bf16.mxu0 %v2159
        %3872 = vmatpush1.bf16.msra.mxu0 %v2158
        %3873 = vmatprep.subr.bf16.mxu0 %v2151
        %3874 = vmatpush1.bf16.msra.mxu0 %v2150
        %3875 = vmatprep.subr.bf16.mxu0 %v2271
        %3876 = vmatpush2.bf16.msra.mxu0 %v2270
        %3877 = vmatprep.subr.bf16.mxu0 %v2263
        %3878 = vmatpush2.bf16.msra.mxu0 %v2262
        %3879 = vmatprep.subr.bf16.mxu0 %v2255
        %3880 = vmatpush2.bf16.msra.mxu0 %v2254
        %3881 = vmatprep.subr.bf16.mxu0 %v2247
        %3882 = vmatpush2.bf16.msra.mxu0 %v2246
        %3883 = vmatprep.subr.bf16.mxu0 %v2239
        %3884 = vmatpush2.bf16.msra.mxu0 %v2238
        %3885 = vmatprep.subr.bf16.mxu0 %v2231
        %3886 = vmatpush2.bf16.msra.mxu0 %v2230
        %3887 = vmatprep.subr.bf16.mxu0 %v2223
        %3888 = vmatpush2.bf16.msra.mxu0 %v2222
        %3889 = vmatprep.subr.bf16.mxu0 %v2215
        %3890 = vmatpush2.bf16.msra.mxu0 %v2214
        %3891 = vmatprep.mubr.bf16.mxu0 %v481
        %3892 = vmatmul.mubr.bf16.gmra.mxu0 %v480
        %v3893 = vpop.f32.mrf.mxu0
        %v3894 = vadd.f32 %v949, %v3893
        %v3895 = vpop.f32.mrf.mxu0
        %v3896 = vadd.f32 %v953, %v3895
        %v3897 = vpop.f32.mrf.mxu0
        %v3898 = vadd.f32 %v949, %v3897
        %v3899 = vpop.f32.mrf.mxu0
        %v3900 = vadd.f32 %v953, %v3899
        %3901 = vmatprep.mubr.bf16.mxu0 %v488
        %3902 = vmatmul.mubr.bf16.gmra.mxu0 %v487
        %v3903 = vpop.f32.mrf.mxu0
        %v3904 = vadd.f32 %v949, %v3903
        %v3905 = vpop.f32.mrf.mxu0
        %v3906 = vadd.f32 %v953, %v3905
        %v3907 = vpop.f32.mrf.mxu0
        %v3908 = vadd.f32 %v949, %v3907
        %v3909 = vpop.f32.mrf.mxu0
        %v3910 = vadd.f32 %v953, %v3909
        %3911 = vmatprep.mubr.bf16.mxu0 %v495
        %3912 = vmatmul.mubr.bf16.gmra.mxu0 %v494
        %v3913 = vpop.f32.mrf.mxu0
        %v3914 = vadd.f32 %v949, %v3913
        %v3915 = vpop.f32.mrf.mxu0
        %v3916 = vadd.f32 %v953, %v3915
        %v3917 = vpop.f32.mrf.mxu0
        %v3918 = vadd.f32 %v949, %v3917
        %v3919 = vpop.f32.mrf.mxu0
        %v3920 = vadd.f32 %v953, %v3919
        %3921 = vmatprep.mubr.bf16.mxu0 %v502
        %3922 = vmatmul.mubr.bf16.gmra.mxu0 %v501
        %v3923 = vpop.f32.mrf.mxu0
        %v3924 = vadd.f32 %v949, %v3923
        %v3925 = vpop.f32.mrf.mxu0
        %v3926 = vadd.f32 %v953, %v3925
        %v3927 = vpop.f32.mrf.mxu0
        %v3928 = vadd.f32 %v949, %v3927
        %v3929 = vpop.f32.mrf.mxu0
        %v3930 = vadd.f32 %v953, %v3929
        %3931 = vmatprep.mubr.bf16.mxu0 %v509
        %3932 = vmatmul.mubr.bf16.gmra.mxu0 %v508
        %v3933 = vpop.f32.mrf.mxu0
        %v3934 = vadd.f32 %v949, %v3933
        %v3935 = vpop.f32.mrf.mxu0
        %v3936 = vadd.f32 %v953, %v3935
        %v3937 = vpop.f32.mrf.mxu0
        %v3938 = vadd.f32 %v949, %v3937
        %v3939 = vpop.f32.mrf.mxu0
        %v3940 = vadd.f32 %v953, %v3939
        %3941 = vmatprep.mubr.bf16.mxu0 %v516
        %3942 = vmatmul.mubr.bf16.gmra.mxu0 %v515
        %v3943 = vpop.f32.mrf.mxu0
        %v3944 = vadd.f32 %v949, %v3943
        %v3945 = vpop.f32.mrf.mxu0
        %v3946 = vadd.f32 %v953, %v3945
        %v3947 = vpop.f32.mrf.mxu0
        %v3948 = vadd.f32 %v949, %v3947
        %v3949 = vpop.f32.mrf.mxu0
        %v3950 = vadd.f32 %v953, %v3949
        %3951 = vmatprep.mubr.bf16.mxu0 %v523
        %3952 = vmatmul.mubr.bf16.gmra.mxu0 %v522
        %v3953 = vpop.f32.mrf.mxu0
        %v3954 = vadd.f32 %v949, %v3953
        %v3955 = vpop.f32.mrf.mxu0
        %v3956 = vadd.f32 %v953, %v3955
        %v3957 = vpop.f32.mrf.mxu0
        %v3958 = vadd.f32 %v949, %v3957
        %v3959 = vpop.f32.mrf.mxu0
        %v3960 = vadd.f32 %v953, %v3959
        %3961 = vmatprep.mubr.bf16.mxu0 %v530
        %3962 = vmatmul.mubr.bf16.gmra.mxu0 %v529
        %v3963 = vpop.f32.mrf.mxu0
        %v3964 = vadd.f32 %v949, %v3963
        %v3965 = vpop.f32.mrf.mxu0
        %v3966 = vadd.f32 %v953, %v3965
        %v3967 = vpop.f32.mrf.mxu0
        %v3968 = vadd.f32 %v949, %v3967
        %v3969 = vpop.f32.mrf.mxu0
        %v3970 = vadd.f32 %v953, %v3969
        %3971 = vdwg.mxu0
        %3972 = vmatprep.subr.bf16.mxu0 %v2335
        %3973 = vmatpush1.bf16.msra.mxu0 %v2334
        %3974 = vmatprep.subr.bf16.mxu0 %v2327
        %3975 = vmatpush1.bf16.msra.mxu0 %v2326
        %3976 = vmatprep.subr.bf16.mxu0 %v2319
        %3977 = vmatpush1.bf16.msra.mxu0 %v2318
        %3978 = vmatprep.subr.bf16.mxu0 %v2311
        %3979 = vmatpush1.bf16.msra.mxu0 %v2310
        %3980 = vmatprep.subr.bf16.mxu0 %v2303
        %3981 = vmatpush1.bf16.msra.mxu0 %v2302
        %3982 = vmatprep.subr.bf16.mxu0 %v2295
        %3983 = vmatpush1.bf16.msra.mxu0 %v2294
        %3984 = vmatprep.subr.bf16.mxu0 %v2287
        %3985 = vmatpush1.bf16.msra.mxu0 %v2286
        %3986 = vmatprep.subr.bf16.mxu0 %v2279
        %3987 = vmatpush1.bf16.msra.mxu0 %v2278
        %3988 = vmatprep.subr.bf16.mxu0 %v2399
        %3989 = vmatpush2.bf16.msra.mxu0 %v2398
        %3990 = vmatprep.subr.bf16.mxu0 %v2391
        %3991 = vmatpush2.bf16.msra.mxu0 %v2390
        %3992 = vmatprep.subr.bf16.mxu0 %v2383
        %3993 = vmatpush2.bf16.msra.mxu0 %v2382
        %3994 = vmatprep.subr.bf16.mxu0 %v2375
        %3995 = vmatpush2.bf16.msra.mxu0 %v2374
        %3996 = vmatprep.subr.bf16.mxu0 %v2367
        %3997 = vmatpush2.bf16.msra.mxu0 %v2366
        %3998 = vmatprep.subr.bf16.mxu0 %v2359
        %3999 = vmatpush2.bf16.msra.mxu0 %v2358
        %4000 = vmatprep.subr.bf16.mxu0 %v2351
        %4001 = vmatpush2.bf16.msra.mxu0 %v2350
        %4002 = vmatprep.subr.bf16.mxu0 %v2343
        %4003 = vmatpush2.bf16.msra.mxu0 %v2342
        %4004 = vmatprep.mubr.bf16.mxu0 %v483
        %4005 = vmatmul.mubr.bf16.gmra.mxu0 %v482
        %v4006 = vpop.f32.mrf.mxu0
        %v4007 = vadd.f32 %v3894, %v4006
        %v4008 = vpop.f32.mrf.mxu0
        %v4009 = vadd.f32 %v3896, %v4008
        %v4010 = vpop.f32.mrf.mxu0
        %v4011 = vadd.f32 %v3898, %v4010
        %v4012 = vpop.f32.mrf.mxu0
        %v4013 = vadd.f32 %v3900, %v4012
        %4014 = vmatprep.mubr.bf16.mxu0 %v490
        %4015 = vmatmul.mubr.bf16.gmra.mxu0 %v489
        %v4016 = vpop.f32.mrf.mxu0
        %v4017 = vadd.f32 %v3904, %v4016
        %v4018 = vpop.f32.mrf.mxu0
        %v4019 = vadd.f32 %v3906, %v4018
        %v4020 = vpop.f32.mrf.mxu0
        %v4021 = vadd.f32 %v3908, %v4020
        %v4022 = vpop.f32.mrf.mxu0
        %v4023 = vadd.f32 %v3910, %v4022
        %4024 = vmatprep.mubr.bf16.mxu0 %v497
        %4025 = vmatmul.mubr.bf16.gmra.mxu0 %v496
        %v4026 = vpop.f32.mrf.mxu0
        %v4027 = vadd.f32 %v3914, %v4026
        %v4028 = vpop.f32.mrf.mxu0
        %v4029 = vadd.f32 %v3916, %v4028
        %v4030 = vpop.f32.mrf.mxu0
        %v4031 = vadd.f32 %v3918, %v4030
        %v4032 = vpop.f32.mrf.mxu0
        %v4033 = vadd.f32 %v3920, %v4032
        %4034 = vmatprep.mubr.bf16.mxu0 %v504
        %4035 = vmatmul.mubr.bf16.gmra.mxu0 %v503
        %v4036 = vpop.f32.mrf.mxu0
        %v4037 = vadd.f32 %v3924, %v4036
        %v4038 = vpop.f32.mrf.mxu0
        %v4039 = vadd.f32 %v3926, %v4038
        %v4040 = vpop.f32.mrf.mxu0
        %v4041 = vadd.f32 %v3928, %v4040
        %v4042 = vpop.f32.mrf.mxu0
        %v4043 = vadd.f32 %v3930, %v4042
        %4044 = vmatprep.mubr.bf16.mxu0 %v511
        %4045 = vmatmul.mubr.bf16.gmra.mxu0 %v510
        %v4046 = vpop.f32.mrf.mxu0
        %v4047 = vadd.f32 %v3934, %v4046
        %v4048 = vpop.f32.mrf.mxu0
        %v4049 = vadd.f32 %v3936, %v4048
        %v4050 = vpop.f32.mrf.mxu0
        %v4051 = vadd.f32 %v3938, %v4050
        %v4052 = vpop.f32.mrf.mxu0
        %v4053 = vadd.f32 %v3940, %v4052
        %4054 = vmatprep.mubr.bf16.mxu0 %v518
        %4055 = vmatmul.mubr.bf16.gmra.mxu0 %v517
        %v4056 = vpop.f32.mrf.mxu0
        %v4057 = vadd.f32 %v3944, %v4056
        %v4058 = vpop.f32.mrf.mxu0
        %v4059 = vadd.f32 %v3946, %v4058
        %v4060 = vpop.f32.mrf.mxu0
        %v4061 = vadd.f32 %v3948, %v4060
        %v4062 = vpop.f32.mrf.mxu0
        %v4063 = vadd.f32 %v3950, %v4062
        %4064 = vmatprep.mubr.bf16.mxu0 %v525
        %4065 = vmatmul.mubr.bf16.gmra.mxu0 %v524
        %v4066 = vpop.f32.mrf.mxu0
        %v4067 = vadd.f32 %v3954, %v4066
        %v4068 = vpop.f32.mrf.mxu0
        %v4069 = vadd.f32 %v3956, %v4068
        %v4070 = vpop.f32.mrf.mxu0
        %v4071 = vadd.f32 %v3958, %v4070
        %v4072 = vpop.f32.mrf.mxu0
        %v4073 = vadd.f32 %v3960, %v4072
        %4074 = vmatprep.mubr.bf16.mxu0 %v532
        %4075 = vmatmul.mubr.bf16.gmra.mxu0 %v531
        %v4076 = vpop.f32.mrf.mxu0
        %v4077 = vadd.f32 %v3964, %v4076
        %v4078 = vpop.f32.mrf.mxu0
        %v4079 = vadd.f32 %v3966, %v4078
        %v4080 = vpop.f32.mrf.mxu0
        %v4081 = vadd.f32 %v3968, %v4080
        %v4082 = vpop.f32.mrf.mxu0
        %v4083 = vadd.f32 %v3970, %v4082
        %4084 = vdwg.mxu0
        %4085 = vmatprep.subr.bf16.mxu0 %v2463
        %4086 = vmatpush1.bf16.msra.mxu0 %v2462
        %4087 = vmatprep.subr.bf16.mxu0 %v2455
        %4088 = vmatpush1.bf16.msra.mxu0 %v2454
        %4089 = vmatprep.subr.bf16.mxu0 %v2447
        %4090 = vmatpush1.bf16.msra.mxu0 %v2446
        %4091 = vmatprep.subr.bf16.mxu0 %v2439
        %4092 = vmatpush1.bf16.msra.mxu0 %v2438
        %4093 = vmatprep.subr.bf16.mxu0 %v2431
        %4094 = vmatpush1.bf16.msra.mxu0 %v2430
        %4095 = vmatprep.subr.bf16.mxu0 %v2423
        %4096 = vmatpush1.bf16.msra.mxu0 %v2422
        %4097 = vmatprep.subr.bf16.mxu0 %v2415
        %4098 = vmatpush1.bf16.msra.mxu0 %v2414
        %4099 = vmatprep.subr.bf16.mxu0 %v2407
        %4100 = vmatpush1.bf16.msra.mxu0 %v2406
        %4101 = vmatprep.subr.bf16.mxu0 %v2527
        %4102 = vmatpush2.bf16.msra.mxu0 %v2526
        %4103 = vmatprep.subr.bf16.mxu0 %v2519
        %4104 = vmatpush2.bf16.msra.mxu0 %v2518
        %4105 = vmatprep.subr.bf16.mxu0 %v2511
        %4106 = vmatpush2.bf16.msra.mxu0 %v2510
        %4107 = vmatprep.subr.bf16.mxu0 %v2503
        %4108 = vmatpush2.bf16.msra.mxu0 %v2502
        %4109 = vmatprep.subr.bf16.mxu0 %v2495
        %4110 = vmatpush2.bf16.msra.mxu0 %v2494
        %4111 = vmatprep.subr.bf16.mxu0 %v2487
        %4112 = vmatpush2.bf16.msra.mxu0 %v2486
        %4113 = vmatprep.subr.bf16.mxu0 %v2479
        %4114 = vmatpush2.bf16.msra.mxu0 %v2478
        %4115 = vmatprep.subr.bf16.mxu0 %v2471
        %4116 = vmatpush2.bf16.msra.mxu0 %v2470
        %4117 = vmatprep.mubr.bf16.mxu0 %v485
        %4118 = vmatmul.mubr.bf16.gmra.mxu0 %v484
        %v4119 = vpop.f32.mrf.mxu0
        %v4120 = vadd.f32 %v4007, %v4119
        %v4121 = vpop.f32.mrf.mxu0
        %v4122 = vadd.f32 %v4009, %v4121
        %v4123 = vpop.f32.mrf.mxu0
        %v4124 = vadd.f32 %v4011, %v4123
        %v4125 = vpop.f32.mrf.mxu0
        %v4126 = vadd.f32 %v4013, %v4125
        %4127 = vmatprep.mubr.bf16.mxu0 %v492
        %4128 = vmatmul.mubr.bf16.gmra.mxu0 %v491
        %v4129 = vpop.f32.mrf.mxu0
        %v4130 = vadd.f32 %v4017, %v4129
        %v4131 = vpop.f32.mrf.mxu0
        %v4132 = vadd.f32 %v4019, %v4131
        %v4133 = vpop.f32.mrf.mxu0
        %v4134 = vadd.f32 %v4021, %v4133
        %v4135 = vpop.f32.mrf.mxu0
        %v4136 = vadd.f32 %v4023, %v4135
        %4137 = vmatprep.mubr.bf16.mxu0 %v499
        %4138 = vmatmul.mubr.bf16.gmra.mxu0 %v498
        %v4139 = vpop.f32.mrf.mxu0
        %v4140 = vadd.f32 %v4027, %v4139
        %v4141 = vpop.f32.mrf.mxu0
        %v4142 = vadd.f32 %v4029, %v4141
        %v4143 = vpop.f32.mrf.mxu0
        %v4144 = vadd.f32 %v4031, %v4143
        %v4145 = vpop.f32.mrf.mxu0
        %v4146 = vadd.f32 %v4033, %v4145
        %4147 = vmatprep.mubr.bf16.mxu0 %v506
        %4148 = vmatmul.mubr.bf16.gmra.mxu0 %v505
        %v4149 = vpop.f32.mrf.mxu0
        %v4150 = vadd.f32 %v4037, %v4149
        %v4151 = vpop.f32.mrf.mxu0
        %v4152 = vadd.f32 %v4039, %v4151
        %v4153 = vpop.f32.mrf.mxu0
        %v4154 = vadd.f32 %v4041, %v4153
        %v4155 = vpop.f32.mrf.mxu0
        %v4156 = vadd.f32 %v4043, %v4155
        %4157 = vmatprep.mubr.bf16.mxu0 %v513
        %4158 = vmatmul.mubr.bf16.gmra.mxu0 %v512
        %v4159 = vpop.f32.mrf.mxu0
        %v4160 = vadd.f32 %v4047, %v4159
        %v4161 = vpop.f32.mrf.mxu0
        %v4162 = vadd.f32 %v4049, %v4161
        %v4163 = vpop.f32.mrf.mxu0
        %v4164 = vadd.f32 %v4051, %v4163
        %v4165 = vpop.f32.mrf.mxu0
        %v4166 = vadd.f32 %v4053, %v4165
        %4167 = vmatprep.mubr.bf16.mxu0 %v520
        %4168 = vmatmul.mubr.bf16.gmra.mxu0 %v519
        %v4169 = vpop.f32.mrf.mxu0
        %v4170 = vadd.f32 %v4057, %v4169
        %v4171 = vpop.f32.mrf.mxu0
        %v4172 = vadd.f32 %v4059, %v4171
        %v4173 = vpop.f32.mrf.mxu0
        %v4174 = vadd.f32 %v4061, %v4173
        %v4175 = vpop.f32.mrf.mxu0
        %v4176 = vadd.f32 %v4063, %v4175
        %4177 = vmatprep.mubr.bf16.mxu0 %v527
        %4178 = vmatmul.mubr.bf16.gmra.mxu0 %v526
        %v4179 = vpop.f32.mrf.mxu0
        %v4180 = vadd.f32 %v4067, %v4179
        %v4181 = vpop.f32.mrf.mxu0
        %v4182 = vadd.f32 %v4069, %v4181
        %v4183 = vpop.f32.mrf.mxu0
        %v4184 = vadd.f32 %v4071, %v4183
        %v4185 = vpop.f32.mrf.mxu0
        %v4186 = vadd.f32 %v4073, %v4185
        %4187 = vmatprep.mubr.bf16.mxu0 %v534
        %4188 = vmatmul.mubr.bf16.gmra.mxu0 %v533
        %v4189 = vpop.f32.mrf.mxu0
        %v4190 = vadd.f32 %v4077, %v4189
        %v4191 = vpop.f32.mrf.mxu0
        %v4192 = vadd.f32 %v4079, %v4191
        %v4193 = vpop.f32.mrf.mxu0
        %v4194 = vadd.f32 %v4081, %v4193
        %v4195 = vpop.f32.mrf.mxu0
        %v4196 = vadd.f32 %v4083, %v4195
        %4197 = vdwg.mxu0
        %4198 = vmatprep.subr.bf16.mxu0 0
        %4199 = vmatpush1.bf16.msra.mxu0 0
        %4200 = vmatprep.subr.bf16.mxu0 0
        %4201 = vmatpush1.bf16.msra.mxu0 0
        %4202 = vmatprep.subr.bf16.mxu0 0
        %4203 = vmatpush1.bf16.msra.mxu0 0
        %4204 = vmatprep.subr.bf16.mxu0 0
        %4205 = vmatpush1.bf16.msra.mxu0 0
        %4206 = vmatprep.subr.bf16.mxu0 0
        %4207 = vmatpush1.bf16.msra.mxu0 0
        %4208 = vmatprep.subr.bf16.mxu0 0
        %4209 = vmatpush1.bf16.msra.mxu0 0
        %4210 = vmatprep.subr.bf16.mxu0 0
        %4211 = vmatpush1.bf16.msra.mxu0 0
        %4212 = vmatprep.subr.bf16.mxu0 %v2535
        %4213 = vmatpush1.bf16.msra.mxu0 %v2534
        %4214 = vmatprep.subr.bf16.mxu0 0
        %4215 = vmatpush2.bf16.msra.mxu0 0
        %4216 = vmatprep.subr.bf16.mxu0 0
        %4217 = vmatpush2.bf16.msra.mxu0 0
        %4218 = vmatprep.subr.bf16.mxu0 0
        %4219 = vmatpush2.bf16.msra.mxu0 0
        %4220 = vmatprep.subr.bf16.mxu0 0
        %4221 = vmatpush2.bf16.msra.mxu0 0
        %4222 = vmatprep.subr.bf16.mxu0 0
        %4223 = vmatpush2.bf16.msra.mxu0 0
        %4224 = vmatprep.subr.bf16.mxu0 0
        %4225 = vmatpush2.bf16.msra.mxu0 0
        %4226 = vmatprep.subr.bf16.mxu0 0
        %4227 = vmatpush2.bf16.msra.mxu0 0
        %4228 = vmatprep.subr.bf16.mxu0 0
        %4229 = vmatpush2.bf16.msra.mxu0 0
        %4230 = vmatprep.mubr.bf16.mxu0 0
        %4231 = vmatmul.mubr.bf16.gmra.mxu0 %v2932
        %v4232 = vpop.f32.mrf.mxu0
        %v4233 = vadd.f32 %v4120, %v4232
        %v4234 = vpop.f32.mrf.mxu0
        %v4235 = vadd.f32 %v4122, %v4234
        %v4236 = vpop.f32.mrf.mxu0
        %v4237 = vadd.f32 %v4124, %v4236
        %v4238 = vpop.f32.mrf.mxu0
        %v4239 = vadd.f32 %v4126, %v4238
        %4240 = vmatprep.mubr.bf16.mxu0 0
        %4241 = vmatmul.mubr.bf16.gmra.mxu0 %v2935
        %v4242 = vpop.f32.mrf.mxu0
        %v4243 = vadd.f32 %v4130, %v4242
        %v4244 = vpop.f32.mrf.mxu0
        %v4245 = vadd.f32 %v4132, %v4244
        %v4246 = vpop.f32.mrf.mxu0
        %v4247 = vadd.f32 %v4134, %v4246
        %v4248 = vpop.f32.mrf.mxu0
        %v4249 = vadd.f32 %v4136, %v4248
        %4250 = vmatprep.mubr.bf16.mxu0 0
        %4251 = vmatmul.mubr.bf16.gmra.mxu0 %v2938
        %v4252 = vpop.f32.mrf.mxu0
        %v4253 = vadd.f32 %v4140, %v4252
        %v4254 = vpop.f32.mrf.mxu0
        %v4255 = vadd.f32 %v4142, %v4254
        %v4256 = vpop.f32.mrf.mxu0
        %v4257 = vadd.f32 %v4144, %v4256
        %v4258 = vpop.f32.mrf.mxu0
        %v4259 = vadd.f32 %v4146, %v4258
        %4260 = vmatprep.mubr.bf16.mxu0 0
        %4261 = vmatmul.mubr.bf16.gmra.mxu0 %v2941
        %v4262 = vpop.f32.mrf.mxu0
        %v4263 = vadd.f32 %v4150, %v4262
        %v4264 = vpop.f32.mrf.mxu0
        %v4265 = vadd.f32 %v4152, %v4264
        %v4266 = vpop.f32.mrf.mxu0
        %v4267 = vadd.f32 %v4154, %v4266
        %v4268 = vpop.f32.mrf.mxu0
        %v4269 = vadd.f32 %v4156, %v4268
        %4270 = vmatprep.mubr.bf16.mxu0 0
        %4271 = vmatmul.mubr.bf16.gmra.mxu0 %v2944
        %v4272 = vpop.f32.mrf.mxu0
        %v4273 = vadd.f32 %v4160, %v4272
        %v4274 = vpop.f32.mrf.mxu0
        %v4275 = vadd.f32 %v4162, %v4274
        %v4276 = vpop.f32.mrf.mxu0
        %v4277 = vadd.f32 %v4164, %v4276
        %v4278 = vpop.f32.mrf.mxu0
        %v4279 = vadd.f32 %v4166, %v4278
        %4280 = vmatprep.mubr.bf16.mxu0 0
        %4281 = vmatmul.mubr.bf16.gmra.mxu0 %v2947
        %v4282 = vpop.f32.mrf.mxu0
        %v4283 = vadd.f32 %v4170, %v4282
        %v4284 = vpop.f32.mrf.mxu0
        %v4285 = vadd.f32 %v4172, %v4284
        %v4286 = vpop.f32.mrf.mxu0
        %v4287 = vadd.f32 %v4174, %v4286
        %v4288 = vpop.f32.mrf.mxu0
        %v4289 = vadd.f32 %v4176, %v4288
        %4290 = vmatprep.mubr.bf16.mxu0 0
        %4291 = vmatmul.mubr.bf16.gmra.mxu0 %v2950
        %v4292 = vpop.f32.mrf.mxu0
        %v4293 = vadd.f32 %v4180, %v4292
        %v4294 = vpop.f32.mrf.mxu0
        %v4295 = vadd.f32 %v4182, %v4294
        %v4296 = vpop.f32.mrf.mxu0
        %v4297 = vadd.f32 %v4184, %v4296
        %v4298 = vpop.f32.mrf.mxu0
        %v4299 = vadd.f32 %v4186, %v4298
        %4300 = vmatprep.mubr.bf16.mxu0 0
        %4301 = vmatmul.mubr.bf16.gmra.mxu0 %v2953
        %v4302 = vpop.f32.mrf.mxu0
        %v4303 = vadd.f32 %v4190, %v4302
        %v4304 = vpop.f32.mrf.mxu0
        %v4305 = vadd.f32 %v4192, %v4304
        %v4306 = vpop.f32.mrf.mxu0
        %v4307 = vadd.f32 %v4194, %v4306
        %v4308 = vpop.f32.mrf.mxu0
        %v4309 = vadd.f32 %v4196, %v4308
        %4310 = vdwg.mxu0
        %4311 = vmatprep.subr.bf16.mxu0 %v2209
        %4312 = vmatpush1.bf16.msra.mxu0 %v2208
        %4313 = vmatprep.subr.bf16.mxu0 %v2201
        %4314 = vmatpush1.bf16.msra.mxu0 %v2200
        %4315 = vmatprep.subr.bf16.mxu0 %v2193
        %4316 = vmatpush1.bf16.msra.mxu0 %v2192
        %4317 = vmatprep.subr.bf16.mxu0 %v2185
        %4318 = vmatpush1.bf16.msra.mxu0 %v2184
        %4319 = vmatprep.subr.bf16.mxu0 %v2177
        %4320 = vmatpush1.bf16.msra.mxu0 %v2176
        %4321 = vmatprep.subr.bf16.mxu0 %v2169
        %4322 = vmatpush1.bf16.msra.mxu0 %v2168
        %4323 = vmatprep.subr.bf16.mxu0 %v2161
        %4324 = vmatpush1.bf16.msra.mxu0 %v2160
        %4325 = vmatprep.subr.bf16.mxu0 %v2153
        %4326 = vmatpush1.bf16.msra.mxu0 %v2152
        %4327 = vmatprep.subr.bf16.mxu0 %v2273
        %4328 = vmatpush2.bf16.msra.mxu0 %v2272
        %4329 = vmatprep.subr.bf16.mxu0 %v2265
        %4330 = vmatpush2.bf16.msra.mxu0 %v2264
        %4331 = vmatprep.subr.bf16.mxu0 %v2257
        %4332 = vmatpush2.bf16.msra.mxu0 %v2256
        %4333 = vmatprep.subr.bf16.mxu0 %v2249
        %4334 = vmatpush2.bf16.msra.mxu0 %v2248
        %4335 = vmatprep.subr.bf16.mxu0 %v2241
        %4336 = vmatpush2.bf16.msra.mxu0 %v2240
        %4337 = vmatprep.subr.bf16.mxu0 %v2233
        %4338 = vmatpush2.bf16.msra.mxu0 %v2232
        %4339 = vmatprep.subr.bf16.mxu0 %v2225
        %4340 = vmatpush2.bf16.msra.mxu0 %v2224
        %4341 = vmatprep.subr.bf16.mxu0 %v2217
        %4342 = vmatpush2.bf16.msra.mxu0 %v2216
        %4343 = vmatprep.mubr.bf16.mxu0 %v481
        %4344 = vmatmul.mubr.bf16.gmra.mxu0 %v480
        %v4345 = vpop.f32.mrf.mxu0
        %v4346 = vadd.f32 %v957, %v4345
        %v4347 = vpop.f32.mrf.mxu0
        %v4348 = vadd.f32 %v961, %v4347
        %v4349 = vpop.f32.mrf.mxu0
        %v4350 = vadd.f32 %v957, %v4349
        %v4351 = vpop.f32.mrf.mxu0
        %v4352 = vadd.f32 %v961, %v4351
        %4353 = vmatprep.mubr.bf16.mxu0 %v488
        %4354 = vmatmul.mubr.bf16.gmra.mxu0 %v487
        %v4355 = vpop.f32.mrf.mxu0
        %v4356 = vadd.f32 %v957, %v4355
        %v4357 = vpop.f32.mrf.mxu0
        %v4358 = vadd.f32 %v961, %v4357
        %v4359 = vpop.f32.mrf.mxu0
        %v4360 = vadd.f32 %v957, %v4359
        %v4361 = vpop.f32.mrf.mxu0
        %v4362 = vadd.f32 %v961, %v4361
        %4363 = vmatprep.mubr.bf16.mxu0 %v495
        %4364 = vmatmul.mubr.bf16.gmra.mxu0 %v494
        %v4365 = vpop.f32.mrf.mxu0
        %v4366 = vadd.f32 %v957, %v4365
        %v4367 = vpop.f32.mrf.mxu0
        %v4368 = vadd.f32 %v961, %v4367
        %v4369 = vpop.f32.mrf.mxu0
        %v4370 = vadd.f32 %v957, %v4369
        %v4371 = vpop.f32.mrf.mxu0
        %v4372 = vadd.f32 %v961, %v4371
        %4373 = vmatprep.mubr.bf16.mxu0 %v502
        %4374 = vmatmul.mubr.bf16.gmra.mxu0 %v501
        %v4375 = vpop.f32.mrf.mxu0
        %v4376 = vadd.f32 %v957, %v4375
        %v4377 = vpop.f32.mrf.mxu0
        %v4378 = vadd.f32 %v961, %v4377
        %v4379 = vpop.f32.mrf.mxu0
        %v4380 = vadd.f32 %v957, %v4379
        %v4381 = vpop.f32.mrf.mxu0
        %v4382 = vadd.f32 %v961, %v4381
        %4383 = vmatprep.mubr.bf16.mxu0 %v509
        %4384 = vmatmul.mubr.bf16.gmra.mxu0 %v508
        %v4385 = vpop.f32.mrf.mxu0
        %v4386 = vadd.f32 %v957, %v4385
        %v4387 = vpop.f32.mrf.mxu0
        %v4388 = vadd.f32 %v961, %v4387
        %v4389 = vpop.f32.mrf.mxu0
        %v4390 = vadd.f32 %v957, %v4389
        %v4391 = vpop.f32.mrf.mxu0
        %v4392 = vadd.f32 %v961, %v4391
        %4393 = vmatprep.mubr.bf16.mxu0 %v516
        %4394 = vmatmul.mubr.bf16.gmra.mxu0 %v515
        %v4395 = vpop.f32.mrf.mxu0
        %v4396 = vadd.f32 %v957, %v4395
        %v4397 = vpop.f32.mrf.mxu0
        %v4398 = vadd.f32 %v961, %v4397
        %v4399 = vpop.f32.mrf.mxu0
        %v4400 = vadd.f32 %v957, %v4399
        %v4401 = vpop.f32.mrf.mxu0
        %v4402 = vadd.f32 %v961, %v4401
        %4403 = vmatprep.mubr.bf16.mxu0 %v523
        %4404 = vmatmul.mubr.bf16.gmra.mxu0 %v522
        %v4405 = vpop.f32.mrf.mxu0
        %v4406 = vadd.f32 %v957, %v4405
        %v4407 = vpop.f32.mrf.mxu0
        %v4408 = vadd.f32 %v961, %v4407
        %v4409 = vpop.f32.mrf.mxu0
        %v4410 = vadd.f32 %v957, %v4409
        %v4411 = vpop.f32.mrf.mxu0
        %v4412 = vadd.f32 %v961, %v4411
        %4413 = vmatprep.mubr.bf16.mxu0 %v530
        %4414 = vmatmul.mubr.bf16.gmra.mxu0 %v529
        %v4415 = vpop.f32.mrf.mxu0
        %v4416 = vadd.f32 %v957, %v4415
        %v4417 = vpop.f32.mrf.mxu0
        %v4418 = vadd.f32 %v961, %v4417
        %v4419 = vpop.f32.mrf.mxu0
        %v4420 = vadd.f32 %v957, %v4419
        %v4421 = vpop.f32.mrf.mxu0
        %v4422 = vadd.f32 %v961, %v4421
        %4423 = vdwg.mxu0
        %4424 = vmatprep.subr.bf16.mxu0 %v2337
        %4425 = vmatpush1.bf16.msra.mxu0 %v2336
        %4426 = vmatprep.subr.bf16.mxu0 %v2329
        %4427 = vmatpush1.bf16.msra.mxu0 %v2328
        %4428 = vmatprep.subr.bf16.mxu0 %v2321
        %4429 = vmatpush1.bf16.msra.mxu0 %v2320
        %4430 = vmatprep.subr.bf16.mxu0 %v2313
        %4431 = vmatpush1.bf16.msra.mxu0 %v2312
        %4432 = vmatprep.subr.bf16.mxu0 %v2305
        %4433 = vmatpush1.bf16.msra.mxu0 %v2304
        %4434 = vmatprep.subr.bf16.mxu0 %v2297
        %4435 = vmatpush1.bf16.msra.mxu0 %v2296
        %4436 = vmatprep.subr.bf16.mxu0 %v2289
        %4437 = vmatpush1.bf16.msra.mxu0 %v2288
        %4438 = vmatprep.subr.bf16.mxu0 %v2281
        %4439 = vmatpush1.bf16.msra.mxu0 %v2280
        %4440 = vmatprep.subr.bf16.mxu0 %v2401
        %4441 = vmatpush2.bf16.msra.mxu0 %v2400
        %4442 = vmatprep.subr.bf16.mxu0 %v2393
        %4443 = vmatpush2.bf16.msra.mxu0 %v2392
        %4444 = vmatprep.subr.bf16.mxu0 %v2385
        %4445 = vmatpush2.bf16.msra.mxu0 %v2384
        %4446 = vmatprep.subr.bf16.mxu0 %v2377
        %4447 = vmatpush2.bf16.msra.mxu0 %v2376
        %4448 = vmatprep.subr.bf16.mxu0 %v2369
        %4449 = vmatpush2.bf16.msra.mxu0 %v2368
        %4450 = vmatprep.subr.bf16.mxu0 %v2361
        %4451 = vmatpush2.bf16.msra.mxu0 %v2360
        %4452 = vmatprep.subr.bf16.mxu0 %v2353
        %4453 = vmatpush2.bf16.msra.mxu0 %v2352
        %4454 = vmatprep.subr.bf16.mxu0 %v2345
        %4455 = vmatpush2.bf16.msra.mxu0 %v2344
        %4456 = vmatprep.mubr.bf16.mxu0 %v483
        %4457 = vmatmul.mubr.bf16.gmra.mxu0 %v482
        %v4458 = vpop.f32.mrf.mxu0
        %v4459 = vadd.f32 %v4346, %v4458
        %v4460 = vpop.f32.mrf.mxu0
        %v4461 = vadd.f32 %v4348, %v4460
        %v4462 = vpop.f32.mrf.mxu0
        %v4463 = vadd.f32 %v4350, %v4462
        %v4464 = vpop.f32.mrf.mxu0
        %v4465 = vadd.f32 %v4352, %v4464
        %4466 = vmatprep.mubr.bf16.mxu0 %v490
        %4467 = vmatmul.mubr.bf16.gmra.mxu0 %v489
        %v4468 = vpop.f32.mrf.mxu0
        %v4469 = vadd.f32 %v4356, %v4468
        %v4470 = vpop.f32.mrf.mxu0
        %v4471 = vadd.f32 %v4358, %v4470
        %v4472 = vpop.f32.mrf.mxu0
        %v4473 = vadd.f32 %v4360, %v4472
        %v4474 = vpop.f32.mrf.mxu0
        %v4475 = vadd.f32 %v4362, %v4474
        %4476 = vmatprep.mubr.bf16.mxu0 %v497
        %4477 = vmatmul.mubr.bf16.gmra.mxu0 %v496
        %v4478 = vpop.f32.mrf.mxu0
        %v4479 = vadd.f32 %v4366, %v4478
        %v4480 = vpop.f32.mrf.mxu0
        %v4481 = vadd.f32 %v4368, %v4480
        %v4482 = vpop.f32.mrf.mxu0
        %v4483 = vadd.f32 %v4370, %v4482
        %v4484 = vpop.f32.mrf.mxu0
        %v4485 = vadd.f32 %v4372, %v4484
        %4486 = vmatprep.mubr.bf16.mxu0 %v504
        %4487 = vmatmul.mubr.bf16.gmra.mxu0 %v503
        %v4488 = vpop.f32.mrf.mxu0
        %v4489 = vadd.f32 %v4376, %v4488
        %v4490 = vpop.f32.mrf.mxu0
        %v4491 = vadd.f32 %v4378, %v4490
        %v4492 = vpop.f32.mrf.mxu0
        %v4493 = vadd.f32 %v4380, %v4492
        %v4494 = vpop.f32.mrf.mxu0
        %v4495 = vadd.f32 %v4382, %v4494
        %4496 = vmatprep.mubr.bf16.mxu0 %v511
        %4497 = vmatmul.mubr.bf16.gmra.mxu0 %v510
        %v4498 = vpop.f32.mrf.mxu0
        %v4499 = vadd.f32 %v4386, %v4498
        %v4500 = vpop.f32.mrf.mxu0
        %v4501 = vadd.f32 %v4388, %v4500
        %v4502 = vpop.f32.mrf.mxu0
        %v4503 = vadd.f32 %v4390, %v4502
        %v4504 = vpop.f32.mrf.mxu0
        %v4505 = vadd.f32 %v4392, %v4504
        %4506 = vmatprep.mubr.bf16.mxu0 %v518
        %4507 = vmatmul.mubr.bf16.gmra.mxu0 %v517
        %v4508 = vpop.f32.mrf.mxu0
        %v4509 = vadd.f32 %v4396, %v4508
        %v4510 = vpop.f32.mrf.mxu0
        %v4511 = vadd.f32 %v4398, %v4510
        %v4512 = vpop.f32.mrf.mxu0
        %v4513 = vadd.f32 %v4400, %v4512
        %v4514 = vpop.f32.mrf.mxu0
        %v4515 = vadd.f32 %v4402, %v4514
        %4516 = vmatprep.mubr.bf16.mxu0 %v525
        %4517 = vmatmul.mubr.bf16.gmra.mxu0 %v524
        %v4518 = vpop.f32.mrf.mxu0
        %v4519 = vadd.f32 %v4406, %v4518
        %v4520 = vpop.f32.mrf.mxu0
        %v4521 = vadd.f32 %v4408, %v4520
        %v4522 = vpop.f32.mrf.mxu0
        %v4523 = vadd.f32 %v4410, %v4522
        %v4524 = vpop.f32.mrf.mxu0
        %v4525 = vadd.f32 %v4412, %v4524
        %4526 = vmatprep.mubr.bf16.mxu0 %v532
        %4527 = vmatmul.mubr.bf16.gmra.mxu0 %v531
        %v4528 = vpop.f32.mrf.mxu0
        %v4529 = vadd.f32 %v4416, %v4528
        %v4530 = vpop.f32.mrf.mxu0
        %v4531 = vadd.f32 %v4418, %v4530
        %v4532 = vpop.f32.mrf.mxu0
        %v4533 = vadd.f32 %v4420, %v4532
        %v4534 = vpop.f32.mrf.mxu0
        %v4535 = vadd.f32 %v4422, %v4534
        %4536 = vdwg.mxu0
        %4537 = vmatprep.subr.bf16.mxu0 %v2465
        %4538 = vmatpush1.bf16.msra.mxu0 %v2464
        %4539 = vmatprep.subr.bf16.mxu0 %v2457
        %4540 = vmatpush1.bf16.msra.mxu0 %v2456
        %4541 = vmatprep.subr.bf16.mxu0 %v2449
        %4542 = vmatpush1.bf16.msra.mxu0 %v2448
        %4543 = vmatprep.subr.bf16.mxu0 %v2441
        %4544 = vmatpush1.bf16.msra.mxu0 %v2440
        %4545 = vmatprep.subr.bf16.mxu0 %v2433
        %4546 = vmatpush1.bf16.msra.mxu0 %v2432
        %4547 = vmatprep.subr.bf16.mxu0 %v2425
        %4548 = vmatpush1.bf16.msra.mxu0 %v2424
        %4549 = vmatprep.subr.bf16.mxu0 %v2417
        %4550 = vmatpush1.bf16.msra.mxu0 %v2416
        %4551 = vmatprep.subr.bf16.mxu0 %v2409
        %4552 = vmatpush1.bf16.msra.mxu0 %v2408
        %4553 = vmatprep.subr.bf16.mxu0 %v2529
        %4554 = vmatpush2.bf16.msra.mxu0 %v2528
        %4555 = vmatprep.subr.bf16.mxu0 %v2521
        %4556 = vmatpush2.bf16.msra.mxu0 %v2520
        %4557 = vmatprep.subr.bf16.mxu0 %v2513
        %4558 = vmatpush2.bf16.msra.mxu0 %v2512
        %4559 = vmatprep.subr.bf16.mxu0 %v2505
        %4560 = vmatpush2.bf16.msra.mxu0 %v2504
        %4561 = vmatprep.subr.bf16.mxu0 %v2497
        %4562 = vmatpush2.bf16.msra.mxu0 %v2496
        %4563 = vmatprep.subr.bf16.mxu0 %v2489
        %4564 = vmatpush2.bf16.msra.mxu0 %v2488
        %4565 = vmatprep.subr.bf16.mxu0 %v2481
        %4566 = vmatpush2.bf16.msra.mxu0 %v2480
        %4567 = vmatprep.subr.bf16.mxu0 %v2473
        %4568 = vmatpush2.bf16.msra.mxu0 %v2472
        %4569 = vmatprep.mubr.bf16.mxu0 %v485
        %4570 = vmatmul.mubr.bf16.gmra.mxu0 %v484
        %v4571 = vpop.f32.mrf.mxu0
        %v4572 = vadd.f32 %v4459, %v4571
        %v4573 = vpop.f32.mrf.mxu0
        %v4574 = vadd.f32 %v4461, %v4573
        %v4575 = vpop.f32.mrf.mxu0
        %v4576 = vadd.f32 %v4463, %v4575
        %v4577 = vpop.f32.mrf.mxu0
        %v4578 = vadd.f32 %v4465, %v4577
        %4579 = vmatprep.mubr.bf16.mxu0 %v492
        %4580 = vmatmul.mubr.bf16.gmra.mxu0 %v491
        %v4581 = vpop.f32.mrf.mxu0
        %v4582 = vadd.f32 %v4469, %v4581
        %v4583 = vpop.f32.mrf.mxu0
        %v4584 = vadd.f32 %v4471, %v4583
        %v4585 = vpop.f32.mrf.mxu0
        %v4586 = vadd.f32 %v4473, %v4585
        %v4587 = vpop.f32.mrf.mxu0
        %v4588 = vadd.f32 %v4475, %v4587
        %4589 = vmatprep.mubr.bf16.mxu0 %v499
        %4590 = vmatmul.mubr.bf16.gmra.mxu0 %v498
        %v4591 = vpop.f32.mrf.mxu0
        %v4592 = vadd.f32 %v4479, %v4591
        %v4593 = vpop.f32.mrf.mxu0
        %v4594 = vadd.f32 %v4481, %v4593
        %v4595 = vpop.f32.mrf.mxu0
        %v4596 = vadd.f32 %v4483, %v4595
        %v4597 = vpop.f32.mrf.mxu0
        %v4598 = vadd.f32 %v4485, %v4597
        %4599 = vmatprep.mubr.bf16.mxu0 %v506
        %4600 = vmatmul.mubr.bf16.gmra.mxu0 %v505
        %v4601 = vpop.f32.mrf.mxu0
        %v4602 = vadd.f32 %v4489, %v4601
        %v4603 = vpop.f32.mrf.mxu0
        %v4604 = vadd.f32 %v4491, %v4603
        %v4605 = vpop.f32.mrf.mxu0
        %v4606 = vadd.f32 %v4493, %v4605
        %v4607 = vpop.f32.mrf.mxu0
        %v4608 = vadd.f32 %v4495, %v4607
        %4609 = vmatprep.mubr.bf16.mxu0 %v513
        %4610 = vmatmul.mubr.bf16.gmra.mxu0 %v512
        %v4611 = vpop.f32.mrf.mxu0
        %v4612 = vadd.f32 %v4499, %v4611
        %v4613 = vpop.f32.mrf.mxu0
        %v4614 = vadd.f32 %v4501, %v4613
        %v4615 = vpop.f32.mrf.mxu0
        %v4616 = vadd.f32 %v4503, %v4615
        %v4617 = vpop.f32.mrf.mxu0
        %v4618 = vadd.f32 %v4505, %v4617
        %4619 = vmatprep.mubr.bf16.mxu0 %v520
        %4620 = vmatmul.mubr.bf16.gmra.mxu0 %v519
        %v4621 = vpop.f32.mrf.mxu0
        %v4622 = vadd.f32 %v4509, %v4621
        %v4623 = vpop.f32.mrf.mxu0
        %v4624 = vadd.f32 %v4511, %v4623
        %v4625 = vpop.f32.mrf.mxu0
        %v4626 = vadd.f32 %v4513, %v4625
        %v4627 = vpop.f32.mrf.mxu0
        %v4628 = vadd.f32 %v4515, %v4627
        %4629 = vmatprep.mubr.bf16.mxu0 %v527
        %4630 = vmatmul.mubr.bf16.gmra.mxu0 %v526
        %v4631 = vpop.f32.mrf.mxu0
        %v4632 = vadd.f32 %v4519, %v4631
        %v4633 = vpop.f32.mrf.mxu0
        %v4634 = vadd.f32 %v4521, %v4633
        %v4635 = vpop.f32.mrf.mxu0
        %v4636 = vadd.f32 %v4523, %v4635
        %v4637 = vpop.f32.mrf.mxu0
        %v4638 = vadd.f32 %v4525, %v4637
        %4639 = vmatprep.mubr.bf16.mxu0 %v534
        %4640 = vmatmul.mubr.bf16.gmra.mxu0 %v533
        %v4641 = vpop.f32.mrf.mxu0
        %v4642 = vadd.f32 %v4529, %v4641
        %v4643 = vpop.f32.mrf.mxu0
        %v4644 = vadd.f32 %v4531, %v4643
        %v4645 = vpop.f32.mrf.mxu0
        %v4646 = vadd.f32 %v4533, %v4645
        %v4647 = vpop.f32.mrf.mxu0
        %v4648 = vadd.f32 %v4535, %v4647
        %4649 = vdwg.mxu0
        %4650 = vmatprep.subr.bf16.mxu0 0
        %4651 = vmatpush1.bf16.msra.mxu0 0
        %4652 = vmatprep.subr.bf16.mxu0 0
        %4653 = vmatpush1.bf16.msra.mxu0 0
        %4654 = vmatprep.subr.bf16.mxu0 0
        %4655 = vmatpush1.bf16.msra.mxu0 0
        %4656 = vmatprep.subr.bf16.mxu0 0
        %4657 = vmatpush1.bf16.msra.mxu0 0
        %4658 = vmatprep.subr.bf16.mxu0 0
        %4659 = vmatpush1.bf16.msra.mxu0 0
        %4660 = vmatprep.subr.bf16.mxu0 0
        %4661 = vmatpush1.bf16.msra.mxu0 0
        %4662 = vmatprep.subr.bf16.mxu0 0
        %4663 = vmatpush1.bf16.msra.mxu0 0
        %4664 = vmatprep.subr.bf16.mxu0 %v2537
        %4665 = vmatpush1.bf16.msra.mxu0 %v2536
        %4666 = vmatprep.subr.bf16.mxu0 0
        %4667 = vmatpush2.bf16.msra.mxu0 0
        %4668 = vmatprep.subr.bf16.mxu0 0
        %4669 = vmatpush2.bf16.msra.mxu0 0
        %4670 = vmatprep.subr.bf16.mxu0 0
        %4671 = vmatpush2.bf16.msra.mxu0 0
        %4672 = vmatprep.subr.bf16.mxu0 0
        %4673 = vmatpush2.bf16.msra.mxu0 0
        %4674 = vmatprep.subr.bf16.mxu0 0
        %4675 = vmatpush2.bf16.msra.mxu0 0
        %4676 = vmatprep.subr.bf16.mxu0 0
        %4677 = vmatpush2.bf16.msra.mxu0 0
        %4678 = vmatprep.subr.bf16.mxu0 0
        %4679 = vmatpush2.bf16.msra.mxu0 0
        %4680 = vmatprep.subr.bf16.mxu0 0
        %4681 = vmatpush2.bf16.msra.mxu0 0
        %4682 = vmatprep.mubr.bf16.mxu0 0
        %4683 = vmatmul.mubr.bf16.gmra.mxu0 %v2932
        %v4684 = vpop.f32.mrf.mxu0
        %v4685 = vadd.f32 %v4572, %v4684
        %v4686 = vpop.f32.mrf.mxu0
        %v4687 = vadd.f32 %v4574, %v4686
        %v4688 = vpop.f32.mrf.mxu0
        %v4689 = vadd.f32 %v4576, %v4688
        %v4690 = vpop.f32.mrf.mxu0
        %v4691 = vadd.f32 %v4578, %v4690
        %4692 = vmatprep.mubr.bf16.mxu0 0
        %4693 = vmatmul.mubr.bf16.gmra.mxu0 %v2935
        %v4694 = vpop.f32.mrf.mxu0
        %v4695 = vadd.f32 %v4582, %v4694
        %v4696 = vpop.f32.mrf.mxu0
        %v4697 = vadd.f32 %v4584, %v4696
        %v4698 = vpop.f32.mrf.mxu0
        %v4699 = vadd.f32 %v4586, %v4698
        %v4700 = vpop.f32.mrf.mxu0
        %v4701 = vadd.f32 %v4588, %v4700
        %4702 = vmatprep.mubr.bf16.mxu0 0
        %4703 = vmatmul.mubr.bf16.gmra.mxu0 %v2938
        %v4704 = vpop.f32.mrf.mxu0
        %v4705 = vadd.f32 %v4592, %v4704
        %v4706 = vpop.f32.mrf.mxu0
        %v4707 = vadd.f32 %v4594, %v4706
        %v4708 = vpop.f32.mrf.mxu0
        %v4709 = vadd.f32 %v4596, %v4708
        %v4710 = vpop.f32.mrf.mxu0
        %v4711 = vadd.f32 %v4598, %v4710
        %4712 = vmatprep.mubr.bf16.mxu0 0
        %4713 = vmatmul.mubr.bf16.gmra.mxu0 %v2941
        %v4714 = vpop.f32.mrf.mxu0
        %v4715 = vadd.f32 %v4602, %v4714
        %v4716 = vpop.f32.mrf.mxu0
        %v4717 = vadd.f32 %v4604, %v4716
        %v4718 = vpop.f32.mrf.mxu0
        %v4719 = vadd.f32 %v4606, %v4718
        %v4720 = vpop.f32.mrf.mxu0
        %v4721 = vadd.f32 %v4608, %v4720
        %4722 = vmatprep.mubr.bf16.mxu0 0
        %4723 = vmatmul.mubr.bf16.gmra.mxu0 %v2944
        %v4724 = vpop.f32.mrf.mxu0
        %v4725 = vadd.f32 %v4612, %v4724
        %v4726 = vpop.f32.mrf.mxu0
        %v4727 = vadd.f32 %v4614, %v4726
        %v4728 = vpop.f32.mrf.mxu0
        %v4729 = vadd.f32 %v4616, %v4728
        %v4730 = vpop.f32.mrf.mxu0
        %v4731 = vadd.f32 %v4618, %v4730
        %4732 = vmatprep.mubr.bf16.mxu0 0
        %4733 = vmatmul.mubr.bf16.gmra.mxu0 %v2947
        %v4734 = vpop.f32.mrf.mxu0
        %v4735 = vadd.f32 %v4622, %v4734
        %v4736 = vpop.f32.mrf.mxu0
        %v4737 = vadd.f32 %v4624, %v4736
        %v4738 = vpop.f32.mrf.mxu0
        %v4739 = vadd.f32 %v4626, %v4738
        %v4740 = vpop.f32.mrf.mxu0
        %v4741 = vadd.f32 %v4628, %v4740
        %4742 = vmatprep.mubr.bf16.mxu0 0
        %4743 = vmatmul.mubr.bf16.gmra.mxu0 %v2950
        %v4744 = vpop.f32.mrf.mxu0
        %v4745 = vadd.f32 %v4632, %v4744
        %v4746 = vpop.f32.mrf.mxu0
        %v4747 = vadd.f32 %v4634, %v4746
        %v4748 = vpop.f32.mrf.mxu0
        %v4749 = vadd.f32 %v4636, %v4748
        %v4750 = vpop.f32.mrf.mxu0
        %v4751 = vadd.f32 %v4638, %v4750
        %4752 = vmatprep.mubr.bf16.mxu0 0
        %4753 = vmatmul.mubr.bf16.gmra.mxu0 %v2953
        %v4754 = vpop.f32.mrf.mxu0
        %v4755 = vadd.f32 %v4642, %v4754
        %v4756 = vpop.f32.mrf.mxu0
        %v4757 = vadd.f32 %v4644, %v4756
        %v4758 = vpop.f32.mrf.mxu0
        %v4759 = vadd.f32 %v4646, %v4758
        %v4760 = vpop.f32.mrf.mxu0
        %v4761 = vadd.f32 %v4648, %v4760
        %4762 = vdwg.mxu0
        %vm4763 = vcmp.gt.f32.partialorder %v3329, 0.0
        %vm4764 = vcmp.gt.f32.partialorder %v3331, 0.0
        %vm4765 = vcmp.gt.f32.partialorder %v3781, 0.0
        %vm4766 = vcmp.gt.f32.partialorder %v3783, 0.0
        %vm4767 = vcmp.gt.f32.partialorder %v4233, 0.0
        %vm4768 = vcmp.gt.f32.partialorder %v4235, 0.0
        %vm4769 = vcmp.gt.f32.partialorder %v4685, 0.0
        %vm4770 = vcmp.gt.f32.partialorder %v4687, 0.0
        %vm4771 = vcmp.gt.f32.partialorder %v3333, 0.0
        %vm4772 = vcmp.gt.f32.partialorder %v3335, 0.0
        %vm4773 = vcmp.gt.f32.partialorder %v3785, 0.0
        %vm4774 = vcmp.gt.f32.partialorder %v3787, 0.0
        %vm4775 = vcmp.gt.f32.partialorder %v4237, 0.0
        %vm4776 = vcmp.gt.f32.partialorder %v4239, 0.0
        %vm4777 = vcmp.gt.f32.partialorder %v4689, 0.0
        %vm4778 = vcmp.gt.f32.partialorder %v4691, 0.0
        %vm4779 = vcmp.gt.f32.partialorder %v3339, 0.0
        %vm4780 = vcmp.gt.f32.partialorder %v3341, 0.0
        %vm4781 = vcmp.gt.f32.partialorder %v3791, 0.0
        %vm4782 = vcmp.gt.f32.partialorder %v3793, 0.0
        %vm4783 = vcmp.gt.f32.partialorder %v4243, 0.0
        %vm4784 = vcmp.gt.f32.partialorder %v4245, 0.0
        %vm4785 = vcmp.gt.f32.partialorder %v4695, 0.0
        %vm4786 = vcmp.gt.f32.partialorder %v4697, 0.0
        %vm4787 = vcmp.gt.f32.partialorder %v3343, 0.0
        %vm4788 = vcmp.gt.f32.partialorder %v3345, 0.0
        %vm4789 = vcmp.gt.f32.partialorder %v3795, 0.0
        %vm4790 = vcmp.gt.f32.partialorder %v3797, 0.0
        %vm4791 = vcmp.gt.f32.partialorder %v4247, 0.0
        %vm4792 = vcmp.gt.f32.partialorder %v4249, 0.0
        %vm4793 = vcmp.gt.f32.partialorder %v4699, 0.0
        %vm4794 = vcmp.gt.f32.partialorder %v4701, 0.0
        %vm4795 = vcmp.gt.f32.partialorder %v3349, 0.0
        %vm4796 = vcmp.gt.f32.partialorder %v3351, 0.0
        %vm4797 = vcmp.gt.f32.partialorder %v3801, 0.0
        %vm4798 = vcmp.gt.f32.partialorder %v3803, 0.0
        %vm4799 = vcmp.gt.f32.partialorder %v4253, 0.0
        %vm4800 = vcmp.gt.f32.partialorder %v4255, 0.0
        %vm4801 = vcmp.gt.f32.partialorder %v4705, 0.0
        %vm4802 = vcmp.gt.f32.partialorder %v4707, 0.0
        %vm4803 = vcmp.gt.f32.partialorder %v3353, 0.0
        %vm4804 = vcmp.gt.f32.partialorder %v3355, 0.0
        %vm4805 = vcmp.gt.f32.partialorder %v3805, 0.0
        %vm4806 = vcmp.gt.f32.partialorder %v3807, 0.0
        %vm4807 = vcmp.gt.f32.partialorder %v4257, 0.0
        %vm4808 = vcmp.gt.f32.partialorder %v4259, 0.0
        %vm4809 = vcmp.gt.f32.partialorder %v4709, 0.0
        %vm4810 = vcmp.gt.f32.partialorder %v4711, 0.0
        %vm4811 = vcmp.gt.f32.partialorder %v3359, 0.0
        %vm4812 = vcmp.gt.f32.partialorder %v3361, 0.0
        %vm4813 = vcmp.gt.f32.partialorder %v3811, 0.0
        %vm4814 = vcmp.gt.f32.partialorder %v3813, 0.0
        %vm4815 = vcmp.gt.f32.partialorder %v4263, 0.0
        %vm4816 = vcmp.gt.f32.partialorder %v4265, 0.0
        %vm4817 = vcmp.gt.f32.partialorder %v4715, 0.0
        %vm4818 = vcmp.gt.f32.partialorder %v4717, 0.0
        %vm4819 = vcmp.gt.f32.partialorder %v3363, 0.0
        %vm4820 = vcmp.gt.f32.partialorder %v3365, 0.0
        %vm4821 = vcmp.gt.f32.partialorder %v3815, 0.0
        %vm4822 = vcmp.gt.f32.partialorder %v3817, 0.0
        %vm4823 = vcmp.gt.f32.partialorder %v4267, 0.0
        %vm4824 = vcmp.gt.f32.partialorder %v4269, 0.0
        %vm4825 = vcmp.gt.f32.partialorder %v4719, 0.0
        %vm4826 = vcmp.gt.f32.partialorder %v4721, 0.0
        %vm4827 = vcmp.gt.f32.partialorder %v3369, 0.0
        %vm4828 = vcmp.gt.f32.partialorder %v3371, 0.0
        %vm4829 = vcmp.gt.f32.partialorder %v3821, 0.0
        %vm4830 = vcmp.gt.f32.partialorder %v3823, 0.0
        %vm4831 = vcmp.gt.f32.partialorder %v4273, 0.0
        %vm4832 = vcmp.gt.f32.partialorder %v4275, 0.0
        %vm4833 = vcmp.gt.f32.partialorder %v4725, 0.0
        %vm4834 = vcmp.gt.f32.partialorder %v4727, 0.0
        %vm4835 = vcmp.gt.f32.partialorder %v3373, 0.0
        %vm4836 = vcmp.gt.f32.partialorder %v3375, 0.0
        %vm4837 = vcmp.gt.f32.partialorder %v3825, 0.0
        %vm4838 = vcmp.gt.f32.partialorder %v3827, 0.0
        %vm4839 = vcmp.gt.f32.partialorder %v4277, 0.0
        %vm4840 = vcmp.gt.f32.partialorder %v4279, 0.0
        %vm4841 = vcmp.gt.f32.partialorder %v4729, 0.0
        %vm4842 = vcmp.gt.f32.partialorder %v4731, 0.0
        %vm4843 = vcmp.gt.f32.partialorder %v3379, 0.0
        %vm4844 = vcmp.gt.f32.partialorder %v3381, 0.0
        %vm4845 = vcmp.gt.f32.partialorder %v3831, 0.0
        %vm4846 = vcmp.gt.f32.partialorder %v3833, 0.0
        %vm4847 = vcmp.gt.f32.partialorder %v4283, 0.0
        %vm4848 = vcmp.gt.f32.partialorder %v4285, 0.0
        %vm4849 = vcmp.gt.f32.partialorder %v4735, 0.0
        %vm4850 = vcmp.gt.f32.partialorder %v4737, 0.0
        %vm4851 = vcmp.gt.f32.partialorder %v3383, 0.0
        %vm4852 = vcmp.gt.f32.partialorder %v3385, 0.0
        %vm4853 = vcmp.gt.f32.partialorder %v3835, 0.0
        %vm4854 = vcmp.gt.f32.partialorder %v3837, 0.0
        %vm4855 = vcmp.gt.f32.partialorder %v4287, 0.0
        %vm4856 = vcmp.gt.f32.partialorder %v4289, 0.0
        %vm4857 = vcmp.gt.f32.partialorder %v4739, 0.0
        %vm4858 = vcmp.gt.f32.partialorder %v4741, 0.0
        %vm4859 = vcmp.gt.f32.partialorder %v3389, 0.0
        %vm4860 = vcmp.gt.f32.partialorder %v3391, 0.0
        %vm4861 = vcmp.gt.f32.partialorder %v3841, 0.0
        %vm4862 = vcmp.gt.f32.partialorder %v3843, 0.0
        %vm4863 = vcmp.gt.f32.partialorder %v4293, 0.0
        %vm4864 = vcmp.gt.f32.partialorder %v4295, 0.0
        %vm4865 = vcmp.gt.f32.partialorder %v4745, 0.0
        %vm4866 = vcmp.gt.f32.partialorder %v4747, 0.0
        %vm4867 = vcmp.gt.f32.partialorder %v3393, 0.0
        %vm4868 = vcmp.gt.f32.partialorder %v3395, 0.0
        %vm4869 = vcmp.gt.f32.partialorder %v3845, 0.0
        %vm4870 = vcmp.gt.f32.partialorder %v3847, 0.0
        %vm4871 = vcmp.gt.f32.partialorder %v4297, 0.0
        %vm4872 = vcmp.gt.f32.partialorder %v4299, 0.0
        %vm4873 = vcmp.gt.f32.partialorder %v4749, 0.0
        %vm4874 = vcmp.gt.f32.partialorder %v4751, 0.0
        %vm4875 = vcmp.gt.f32.partialorder %v3399, 0.0
        %vm4876 = vcmp.gt.f32.partialorder %v3401, 0.0
        %vm4877 = vcmp.gt.f32.partialorder %v3851, 0.0
        %vm4878 = vcmp.gt.f32.partialorder %v3853, 0.0
        %vm4879 = vcmp.gt.f32.partialorder %v4303, 0.0
        %vm4880 = vcmp.gt.f32.partialorder %v4305, 0.0
        %vm4881 = vcmp.gt.f32.partialorder %v4755, 0.0
        %vm4882 = vcmp.gt.f32.partialorder %v4757, 0.0
        %vm4883 = vcmp.gt.f32.partialorder %v3403, 0.0
        %vm4884 = vcmp.gt.f32.partialorder %v3405, 0.0
        %vm4885 = vcmp.gt.f32.partialorder %v3855, 0.0
        %vm4886 = vcmp.gt.f32.partialorder %v3857, 0.0
        %vm4887 = vcmp.gt.f32.partialorder %v4307, 0.0
        %vm4888 = vcmp.gt.f32.partialorder %v4309, 0.0
        %vm4889 = vcmp.gt.f32.partialorder %v4759, 0.0
        %vm4890 = vcmp.gt.f32.partialorder %v4761, 0.0
        %v4891 = vmul.f32 %v3329, 0.2
        %v4892 = vmul.f32 %v3331, 0.2
        %v4893 = vmul.f32 %v3781, 0.2
        %v4894 = vmul.f32 %v3783, 0.2
        %v4895 = vmul.f32 %v4233, 0.2
        %v4896 = vmul.f32 %v4235, 0.2
        %v4897 = vmul.f32 %v4685, 0.2
        %v4898 = vmul.f32 %v4687, 0.2
        %v4899 = vmul.f32 %v3333, 0.2
        %v4900 = vmul.f32 %v3335, 0.2
        %v4901 = vmul.f32 %v3785, 0.2
        %v4902 = vmul.f32 %v3787, 0.2
        %v4903 = vmul.f32 %v4237, 0.2
        %v4904 = vmul.f32 %v4239, 0.2
        %v4905 = vmul.f32 %v4689, 0.2
        %v4906 = vmul.f32 %v4691, 0.2
        %v4907 = vmul.f32 %v3339, 0.2
        %v4908 = vmul.f32 %v3341, 0.2
        %v4909 = vmul.f32 %v3791, 0.2
        %v4910 = vmul.f32 %v3793, 0.2
        %v4911 = vmul.f32 %v4243, 0.2
        %v4912 = vmul.f32 %v4245, 0.2
        %v4913 = vmul.f32 %v4695, 0.2
        %v4914 = vmul.f32 %v4697, 0.2
        %v4915 = vmul.f32 %v3343, 0.2
        %v4916 = vmul.f32 %v3345, 0.2
        %v4917 = vmul.f32 %v3795, 0.2
        %v4918 = vmul.f32 %v3797, 0.2
        %v4919 = vmul.f32 %v4247, 0.2
        %v4920 = vmul.f32 %v4249, 0.2
        %v4921 = vmul.f32 %v4699, 0.2
        %v4922 = vmul.f32 %v4701, 0.2
        %v4923 = vmul.f32 %v3349, 0.2
        %v4924 = vmul.f32 %v3351, 0.2
        %v4925 = vmul.f32 %v3801, 0.2
        %v4926 = vmul.f32 %v3803, 0.2
        %v4927 = vmul.f32 %v4253, 0.2
        %v4928 = vmul.f32 %v4255, 0.2
        %v4929 = vmul.f32 %v4705, 0.2
        %v4930 = vmul.f32 %v4707, 0.2
        %v4931 = vmul.f32 %v3353, 0.2
        %v4932 = vmul.f32 %v3355, 0.2
        %v4933 = vmul.f32 %v3805, 0.2
        %v4934 = vmul.f32 %v3807, 0.2
        %v4935 = vmul.f32 %v4257, 0.2
        %v4936 = vmul.f32 %v4259, 0.2
        %v4937 = vmul.f32 %v4709, 0.2
        %v4938 = vmul.f32 %v4711, 0.2
        %v4939 = vmul.f32 %v3359, 0.2
        %v4940 = vmul.f32 %v3361, 0.2
        %v4941 = vmul.f32 %v3811, 0.2
        %v4942 = vmul.f32 %v3813, 0.2
        %v4943 = vmul.f32 %v4263, 0.2
        %v4944 = vmul.f32 %v4265, 0.2
        %v4945 = vmul.f32 %v4715, 0.2
        %v4946 = vmul.f32 %v4717, 0.2
        %v4947 = vmul.f32 %v3363, 0.2
        %v4948 = vmul.f32 %v3365, 0.2
        %v4949 = vmul.f32 %v3815, 0.2
        %v4950 = vmul.f32 %v3817, 0.2
        %v4951 = vmul.f32 %v4267, 0.2
        %v4952 = vmul.f32 %v4269, 0.2
        %v4953 = vmul.f32 %v4719, 0.2
        %v4954 = vmul.f32 %v4721, 0.2
        %v4955 = vmul.f32 %v3369, 0.2
        %v4956 = vmul.f32 %v3371, 0.2
        %v4957 = vmul.f32 %v3821, 0.2
        %v4958 = vmul.f32 %v3823, 0.2
        %v4959 = vmul.f32 %v4273, 0.2
        %v4960 = vmul.f32 %v4275, 0.2
        %v4961 = vmul.f32 %v4725, 0.2
        %v4962 = vmul.f32 %v4727, 0.2
        %v4963 = vmul.f32 %v3373, 0.2
        %v4964 = vmul.f32 %v3375, 0.2
        %v4965 = vmul.f32 %v3825, 0.2
        %v4966 = vmul.f32 %v3827, 0.2
        %v4967 = vmul.f32 %v4277, 0.2
        %v4968 = vmul.f32 %v4279, 0.2
        %v4969 = vmul.f32 %v4729, 0.2
        %v4970 = vmul.f32 %v4731, 0.2
        %v4971 = vmul.f32 %v3379, 0.2
        %v4972 = vmul.f32 %v3381, 0.2
        %v4973 = vmul.f32 %v3831, 0.2
        %v4974 = vmul.f32 %v3833, 0.2
        %v4975 = vmul.f32 %v4283, 0.2
        %v4976 = vmul.f32 %v4285, 0.2
        %v4977 = vmul.f32 %v4735, 0.2
        %v4978 = vmul.f32 %v4737, 0.2
        %v4979 = vmul.f32 %v3383, 0.2
        %v4980 = vmul.f32 %v3385, 0.2
        %v4981 = vmul.f32 %v3835, 0.2
        %v4982 = vmul.f32 %v3837, 0.2
        %v4983 = vmul.f32 %v4287, 0.2
        %v4984 = vmul.f32 %v4289, 0.2
        %v4985 = vmul.f32 %v4739, 0.2
        %v4986 = vmul.f32 %v4741, 0.2
        %v4987 = vmul.f32 %v3389, 0.2
        %v4988 = vmul.f32 %v3391, 0.2
        %v4989 = vmul.f32 %v3841, 0.2
        %v4990 = vmul.f32 %v3843, 0.2
        %v4991 = vmul.f32 %v4293, 0.2
        %v4992 = vmul.f32 %v4295, 0.2
        %v4993 = vmul.f32 %v4745, 0.2
        %v4994 = vmul.f32 %v4747, 0.2
        %v4995 = vmul.f32 %v3393, 0.2
        %v4996 = vmul.f32 %v3395, 0.2
        %v4997 = vmul.f32 %v3845, 0.2
        %v4998 = vmul.f32 %v3847, 0.2
        %v4999 = vmul.f32 %v4297, 0.2
        %v5000 = vmul.f32 %v4299, 0.2
        %v5001 = vmul.f32 %v4749, 0.2
        %v5002 = vmul.f32 %v4751, 0.2
        %v5003 = vmul.f32 %v3399, 0.2
        %v5004 = vmul.f32 %v3401, 0.2
        %v5005 = vmul.f32 %v3851, 0.2
        %v5006 = vmul.f32 %v3853, 0.2
        %v5007 = vmul.f32 %v4303, 0.2
        %v5008 = vmul.f32 %v4305, 0.2
        %v5009 = vmul.f32 %v4755, 0.2
        %v5010 = vmul.f32 %v4757, 0.2
        %v5011 = vmul.f32 %v3403, 0.2
        %v5012 = vmul.f32 %v3405, 0.2
        %v5013 = vmul.f32 %v3855, 0.2
        %v5014 = vmul.f32 %v3857, 0.2
        %v5015 = vmul.f32 %v4307, 0.2
        %v5016 = vmul.f32 %v4309, 0.2
        %v5017 = vmul.f32 %v4759, 0.2
        %v5018 = vmul.f32 %v4761, 0.2
        %v5019 = vsel %vm4763, %v3329, %v4891
        %v5020 = vsel %vm4764, %v3331, %v4892
        %v5021 = vsel %vm4765, %v3781, %v4893
        %v5022 = vsel %vm4766, %v3783, %v4894
        %v5023 = vsel %vm4767, %v4233, %v4895
        %v5024 = vsel %vm4768, %v4235, %v4896
        %v5025 = vsel %vm4769, %v4685, %v4897
        %v5026 = vsel %vm4770, %v4687, %v4898
        %v5027 = vsel %vm4771, %v3333, %v4899
        %v5028 = vsel %vm4772, %v3335, %v4900
        %v5029 = vsel %vm4773, %v3785, %v4901
        %v5030 = vsel %vm4774, %v3787, %v4902
        %v5031 = vsel %vm4775, %v4237, %v4903
        %v5032 = vsel %vm4776, %v4239, %v4904
        %v5033 = vsel %vm4777, %v4689, %v4905
        %v5034 = vsel %vm4778, %v4691, %v4906
        %v5035 = vsel %vm4779, %v3339, %v4907
        %v5036 = vsel %vm4780, %v3341, %v4908
        %v5037 = vsel %vm4781, %v3791, %v4909
        %v5038 = vsel %vm4782, %v3793, %v4910
        %v5039 = vsel %vm4783, %v4243, %v4911
        %v5040 = vsel %vm4784, %v4245, %v4912
        %v5041 = vsel %vm4785, %v4695, %v4913
        %v5042 = vsel %vm4786, %v4697, %v4914
        %v5043 = vsel %vm4787, %v3343, %v4915
        %v5044 = vsel %vm4788, %v3345, %v4916
        %v5045 = vsel %vm4789, %v3795, %v4917
        %v5046 = vsel %vm4790, %v3797, %v4918
        %v5047 = vsel %vm4791, %v4247, %v4919
        %v5048 = vsel %vm4792, %v4249, %v4920
        %v5049 = vsel %vm4793, %v4699, %v4921
        %v5050 = vsel %vm4794, %v4701, %v4922
        %v5051 = vsel %vm4795, %v3349, %v4923
        %v5052 = vsel %vm4796, %v3351, %v4924
        %v5053 = vsel %vm4797, %v3801, %v4925
        %v5054 = vsel %vm4798, %v3803, %v4926
        %v5055 = vsel %vm4799, %v4253, %v4927
        %v5056 = vsel %vm4800, %v4255, %v4928
        %v5057 = vsel %vm4801, %v4705, %v4929
        %v5058 = vsel %vm4802, %v4707, %v4930
        %v5059 = vsel %vm4803, %v3353, %v4931
        %v5060 = vsel %vm4804, %v3355, %v4932
        %v5061 = vsel %vm4805, %v3805, %v4933
        %v5062 = vsel %vm4806, %v3807, %v4934
        %v5063 = vsel %vm4807, %v4257, %v4935
        %v5064 = vsel %vm4808, %v4259, %v4936
        %v5065 = vsel %vm4809, %v4709, %v4937
        %v5066 = vsel %vm4810, %v4711, %v4938
        %v5067 = vsel %vm4811, %v3359, %v4939
        %v5068 = vsel %vm4812, %v3361, %v4940
        %v5069 = vsel %vm4813, %v3811, %v4941
        %v5070 = vsel %vm4814, %v3813, %v4942
        %v5071 = vsel %vm4815, %v4263, %v4943
        %v5072 = vsel %vm4816, %v4265, %v4944
        %v5073 = vsel %vm4817, %v4715, %v4945
        %v5074 = vsel %vm4818, %v4717, %v4946
        %v5075 = vsel %vm4819, %v3363, %v4947
        %v5076 = vsel %vm4820, %v3365, %v4948
        %v5077 = vsel %vm4821, %v3815, %v4949
        %v5078 = vsel %vm4822, %v3817, %v4950
        %v5079 = vsel %vm4823, %v4267, %v4951
        %v5080 = vsel %vm4824, %v4269, %v4952
        %v5081 = vsel %vm4825, %v4719, %v4953
        %v5082 = vsel %vm4826, %v4721, %v4954
        %v5083 = vsel %vm4827, %v3369, %v4955
        %v5084 = vsel %vm4828, %v3371, %v4956
        %v5085 = vsel %vm4829, %v3821, %v4957
        %v5086 = vsel %vm4830, %v3823, %v4958
        %v5087 = vsel %vm4831, %v4273, %v4959
        %v5088 = vsel %vm4832, %v4275, %v4960
        %v5089 = vsel %vm4833, %v4725, %v4961
        %v5090 = vsel %vm4834, %v4727, %v4962
        %v5091 = vsel %vm4835, %v3373, %v4963
        %v5092 = vsel %vm4836, %v3375, %v4964
        %v5093 = vsel %vm4837, %v3825, %v4965
        %v5094 = vsel %vm4838, %v3827, %v4966
        %v5095 = vsel %vm4839, %v4277, %v4967
        %v5096 = vsel %vm4840, %v4279, %v4968
        %v5097 = vsel %vm4841, %v4729, %v4969
        %v5098 = vsel %vm4842, %v4731, %v4970
        %v5099 = vsel %vm4843, %v3379, %v4971
        %v5100 = vsel %vm4844, %v3381, %v4972
        %v5101 = vsel %vm4845, %v3831, %v4973
        %v5102 = vsel %vm4846, %v3833, %v4974
        %v5103 = vsel %vm4847, %v4283, %v4975
        %v5104 = vsel %vm4848, %v4285, %v4976
        %v5105 = vsel %vm4849, %v4735, %v4977
        %v5106 = vsel %vm4850, %v4737, %v4978
        %v5107 = vsel %vm4851, %v3383, %v4979
        %v5108 = vsel %vm4852, %v3385, %v4980
        %v5109 = vsel %vm4853, %v3835, %v4981
        %v5110 = vsel %vm4854, %v3837, %v4982
        %v5111 = vsel %vm4855, %v4287, %v4983
        %v5112 = vsel %vm4856, %v4289, %v4984
        %v5113 = vsel %vm4857, %v4739, %v4985
        %v5114 = vsel %vm4858, %v4741, %v4986
        %v5115 = vsel %vm4859, %v3389, %v4987
        %v5116 = vsel %vm4860, %v3391, %v4988
        %v5117 = vsel %vm4861, %v3841, %v4989
        %v5118 = vsel %vm4862, %v3843, %v4990
        %v5119 = vsel %vm4863, %v4293, %v4991
        %v5120 = vsel %vm4864, %v4295, %v4992
        %v5121 = vsel %vm4865, %v4745, %v4993
        %v5122 = vsel %vm4866, %v4747, %v4994
        %v5123 = vsel %vm4867, %v3393, %v4995
        %v5124 = vsel %vm4868, %v3395, %v4996
        %v5125 = vsel %vm4869, %v3845, %v4997
        %v5126 = vsel %vm4870, %v3847, %v4998
        %v5127 = vsel %vm4871, %v4297, %v4999
        %v5128 = vsel %vm4872, %v4299, %v5000
        %v5129 = vsel %vm4873, %v4749, %v5001
        %v5130 = vsel %vm4874, %v4751, %v5002
        %v5131 = vsel %vm4875, %v3399, %v5003
        %v5132 = vsel %vm4876, %v3401, %v5004
        %v5133 = vsel %vm4877, %v3851, %v5005
        %v5134 = vsel %vm4878, %v3853, %v5006
        %v5135 = vsel %vm4879, %v4303, %v5007
        %v5136 = vsel %vm4880, %v4305, %v5008
        %v5137 = vsel %vm4881, %v4755, %v5009
        %v5138 = vsel %vm4882, %v4757, %v5010
        %v5139 = vsel %vm4883, %v3403, %v5011
        %v5140 = vsel %vm4884, %v3405, %v5012
        %v5141 = vsel %vm4885, %v3855, %v5013
        %v5142 = vsel %vm4886, %v3857, %v5014
        %v5143 = vsel %vm4887, %v4307, %v5015
        %v5144 = vsel %vm4888, %v4309, %v5016
        %v5145 = vsel %vm4889, %v4759, %v5017
        %v5146 = vsel %vm4890, %v4761, %v5018
        %v5147 = vpack.c.bf16 %v5027, %v5019
        %v5148 = vpack.c.bf16 %v5028, %v5020
        %v5149 = vpack.c.bf16 %v5029, %v5021
        %v5150 = vpack.c.bf16 %v5030, %v5022
        %v5151 = vpack.c.bf16 %v5031, %v5023
        %v5152 = vpack.c.bf16 %v5032, %v5024
        %v5153 = vpack.c.bf16 %v5033, %v5025
        %v5154 = vpack.c.bf16 %v5034, %v5026
        %v5155 = vpack.c.bf16 %v5043, %v5035
        %v5156 = vpack.c.bf16 %v5044, %v5036
        %v5157 = vpack.c.bf16 %v5045, %v5037
        %v5158 = vpack.c.bf16 %v5046, %v5038
        %v5159 = vpack.c.bf16 %v5047, %v5039
        %v5160 = vpack.c.bf16 %v5048, %v5040
        %v5161 = vpack.c.bf16 %v5049, %v5041
        %v5162 = vpack.c.bf16 %v5050, %v5042
        %v5163 = vpack.c.bf16 %v5059, %v5051
        %v5164 = vpack.c.bf16 %v5060, %v5052
        %v5165 = vpack.c.bf16 %v5061, %v5053
        %v5166 = vpack.c.bf16 %v5062, %v5054
        %v5167 = vpack.c.bf16 %v5063, %v5055
        %v5168 = vpack.c.bf16 %v5064, %v5056
        %v5169 = vpack.c.bf16 %v5065, %v5057
        %v5170 = vpack.c.bf16 %v5066, %v5058
        %v5171 = vpack.c.bf16 %v5075, %v5067
        %v5172 = vpack.c.bf16 %v5076, %v5068
        %v5173 = vpack.c.bf16 %v5077, %v5069
        %v5174 = vpack.c.bf16 %v5078, %v5070
        %v5175 = vpack.c.bf16 %v5079, %v5071
        %v5176 = vpack.c.bf16 %v5080, %v5072
        %v5177 = vpack.c.bf16 %v5081, %v5073
        %v5178 = vpack.c.bf16 %v5082, %v5074
        %v5179 = vpack.c.bf16 %v5091, %v5083
        %v5180 = vpack.c.bf16 %v5092, %v5084
        %v5181 = vpack.c.bf16 %v5093, %v5085
        %v5182 = vpack.c.bf16 %v5094, %v5086
        %v5183 = vpack.c.bf16 %v5095, %v5087
        %v5184 = vpack.c.bf16 %v5096, %v5088
        %v5185 = vpack.c.bf16 %v5097, %v5089
        %v5186 = vpack.c.bf16 %v5098, %v5090
        %v5187 = vpack.c.bf16 %v5107, %v5099
        %v5188 = vpack.c.bf16 %v5108, %v5100
        %v5189 = vpack.c.bf16 %v5109, %v5101
        %v5190 = vpack.c.bf16 %v5110, %v5102
        %v5191 = vpack.c.bf16 %v5111, %v5103
        %v5192 = vpack.c.bf16 %v5112, %v5104
        %v5193 = vpack.c.bf16 %v5113, %v5105
        %v5194 = vpack.c.bf16 %v5114, %v5106
        %v5195 = vpack.c.bf16 %v5123, %v5115
        %v5196 = vpack.c.bf16 %v5124, %v5116
        %v5197 = vpack.c.bf16 %v5125, %v5117
        %v5198 = vpack.c.bf16 %v5126, %v5118
        %v5199 = vpack.c.bf16 %v5127, %v5119
        %v5200 = vpack.c.bf16 %v5128, %v5120
        %v5201 = vpack.c.bf16 %v5129, %v5121
        %v5202 = vpack.c.bf16 %v5130, %v5122
        %v5203 = vpack.c.bf16 %v5139, %v5131
        %v5204 = vpack.c.bf16 %v5140, %v5132
        %v5205 = vpack.c.bf16 %v5141, %v5133
        %v5206 = vpack.c.bf16 %v5142, %v5134
        %v5207 = vpack.c.bf16 %v5143, %v5135
        %v5208 = vpack.c.bf16 %v5144, %v5136
        %v5209 = vpack.c.bf16 %v5145, %v5137
        %v5210 = vpack.c.bf16 %v5146, %v5138
        %v5211 = vld [vmem:[#allocation3] sm:$0xff]
        %v5212 = vld [vmem:[#allocation3 + $0x8] sm:$0xff]
        %v5213 = vld [vmem:[#allocation3 + $0x10] sm:$0xff]
        %v5214 = vld [vmem:[#allocation3 + $0x18] sm:$0xff]
        %v5215 = vld [vmem:[#allocation3 + $0x20] sm:$0xff]
        %v5216 = vld [vmem:[#allocation3 + $0x28] sm:$0xff]
        %v5217 = vld [vmem:[#allocation3 + $0x30] sm:$0xff]
        %v5218 = vld [vmem:[#allocation3 + $0x38] sm:$0xff]
        %v5219 = vld [vmem:[#allocation3 + $0x40] sm:$0xff]
        %v5220 = vld [vmem:[#allocation3 + $0x48] sm:$0xff]
        %v5221 = vld [vmem:[#allocation3 + $0x50] sm:$0xff]
        %v5222 = vld [vmem:[#allocation3 + $0x58] sm:$0xff]
        %v5223 = vld [vmem:[#allocation3 + $0x60] sm:$0xff]
        %v5224 = vld [vmem:[#allocation3 + $0x68] sm:$0xff]
        %v5225 = vld [vmem:[#allocation3 + $0x70] sm:$0xff]
        %v5226 = vld [vmem:[#allocation3 + $0x78] sm:$0xff]
        %v5227 = vld [vmem:[#allocation3 + $0x80] sm:$0xff]
        %v5228 = vld [vmem:[#allocation3 + $0x88] sm:$0xff]
        %v5229 = vld [vmem:[#allocation3 + $0x90] sm:$0xff]
        %v5230 = vld [vmem:[#allocation3 + $0x98] sm:$0xff]
        %v5231 = vld [vmem:[#allocation3 + $0xa0] sm:$0xff]
        %v5232 = vld [vmem:[#allocation3 + $0xa8] sm:$0xff]
        %v5233 = vld [vmem:[#allocation3 + $0xb0] sm:$0xff]
        %v5234 = vld [vmem:[#allocation3 + $0xb8] sm:$0xff]
        %v5235 = vld [vmem:[#allocation3 + $0xc0] sm:$0xff]
        %v5236 = vld [vmem:[#allocation3 + $0xc8] sm:$0xff]
        %v5237 = vld [vmem:[#allocation3 + $0xd0] sm:$0xff]
        %v5238 = vld [vmem:[#allocation3 + $0xd8] sm:$0xff]
        %v5239 = vld [vmem:[#allocation3 + $0xe0] sm:$0xff]
        %v5240 = vld [vmem:[#allocation3 + $0xe8] sm:$0xff]
        %v5241 = vld [vmem:[#allocation3 + $0xf0] sm:$0xff]
        %v5242 = vld [vmem:[#allocation3 + $0xf8] sm:$0xff]
        %v5243 = vld [vmem:[#allocation3 + $0x100] sm:$0xff]
        %v5244 = vld [vmem:[#allocation3 + $0x108] sm:$0xff]
        %v5245 = vld [vmem:[#allocation3 + $0x110] sm:$0xff]
        %v5246 = vld [vmem:[#allocation3 + $0x118] sm:$0xff]
        %v5247 = vld [vmem:[#allocation3 + $0x120] sm:$0xff]
        %v5248 = vld [vmem:[#allocation3 + $0x128] sm:$0xff]
        %v5249 = vld [vmem:[#allocation3 + $0x130] sm:$0xff]
        %v5250 = vld [vmem:[#allocation3 + $0x138] sm:$0xff]
        %v5251 = vld [vmem:[#allocation3 + $0x140] sm:$0xff]
        %v5252 = vld [vmem:[#allocation3 + $0x148] sm:$0xff]
        %v5253 = vld [vmem:[#allocation3 + $0x150] sm:$0xff]
        %v5254 = vld [vmem:[#allocation3 + $0x158] sm:$0xff]
        %v5255 = vld [vmem:[#allocation3 + $0x160] sm:$0xff]
        %v5256 = vld [vmem:[#allocation3 + $0x168] sm:$0xff]
        %v5257 = vld [vmem:[#allocation3 + $0x170] sm:$0xff]
        %v5258 = vld [vmem:[#allocation3 + $0x178] sm:$0xff]
        %v5259 = vld [vmem:[#allocation3 + $0x180] sm:$0xff]
        %v5260 = vld [vmem:[#allocation3 + $0x188] sm:$0xff]
        %v5261 = vld [vmem:[#allocation3 + $0x190] sm:$0xff]
        %v5262 = vld [vmem:[#allocation3 + $0x198] sm:$0xff]
        %v5263 = vld [vmem:[#allocation3 + $0x1a0] sm:$0xff]
        %v5264 = vld [vmem:[#allocation3 + $0x1a8] sm:$0xff]
        %v5265 = vld [vmem:[#allocation3 + $0x1b0] sm:$0xff]
        %v5266 = vld [vmem:[#allocation3 + $0x1b8] sm:$0xff]
        %v5267 = vld [vmem:[#allocation3 + $0x1c0] sm:$0xff]
        %v5268 = vld [vmem:[#allocation3 + $0x1c8] sm:$0xff]
        %v5269 = vld [vmem:[#allocation3 + $0x1d0] sm:$0xff]
        %v5270 = vld [vmem:[#allocation3 + $0x1d8] sm:$0xff]
        %v5271 = vld [vmem:[#allocation3 + $0x1e0] sm:$0xff]
        %v5272 = vld [vmem:[#allocation3 + $0x1e8] sm:$0xff]
        %v5273 = vld [vmem:[#allocation3 + $0x1f0] sm:$0xff]
        %v5274 = vld [vmem:[#allocation3 + $0x1f8] sm:$0xff]
        %v5275 = vld [vmem:[#allocation3 + $0x200] sm:$0xff]
        %v5276 = vld [vmem:[#allocation3 + $0x208] sm:$0xff]
        %v5277 = vld [vmem:[#allocation3 + $0x210] sm:$0xff]
        %v5278 = vld [vmem:[#allocation3 + $0x218] sm:$0xff]
        %v5279 = vld [vmem:[#allocation3 + $0x220] sm:$0xff]
        %v5280 = vld [vmem:[#allocation3 + $0x228] sm:$0xff]
        %v5281 = vld [vmem:[#allocation3 + $0x230] sm:$0xff]
        %v5282 = vld [vmem:[#allocation3 + $0x238] sm:$0xff]
        %v5283 = vld [vmem:[#allocation3 + $0x240] sm:$0xff]
        %v5284 = vld [vmem:[#allocation3 + $0x248] sm:$0xff]
        %v5285 = vld [vmem:[#allocation3 + $0x250] sm:$0xff]
        %v5286 = vld [vmem:[#allocation3 + $0x258] sm:$0xff]
        %v5287 = vld [vmem:[#allocation3 + $0x260] sm:$0xff]
        %v5288 = vld [vmem:[#allocation3 + $0x268] sm:$0xff]
        %v5289 = vld [vmem:[#allocation3 + $0x270] sm:$0xff]
        %v5290 = vld [vmem:[#allocation3 + $0x278] sm:$0xff]
        %v5291 = vld [vmem:[#allocation3 + $0x280] sm:$0xff]
        %v5292 = vld [vmem:[#allocation3 + $0x288] sm:$0xff]
        %v5293 = vld [vmem:[#allocation3 + $0x290] sm:$0xff]
        %v5294 = vld [vmem:[#allocation3 + $0x298] sm:$0xff]
        %v5295 = vld [vmem:[#allocation3 + $0x2a0] sm:$0xff]
        %v5296 = vld [vmem:[#allocation3 + $0x2a8] sm:$0xff]
        %v5297 = vld [vmem:[#allocation3 + $0x2b0] sm:$0xff]
        %v5298 = vld [vmem:[#allocation3 + $0x2b8] sm:$0xff]
        %v5299 = vld [vmem:[#allocation3 + $0x2c0] sm:$0xff]
        %v5300 = vld [vmem:[#allocation3 + $0x2c8] sm:$0xff]
        %v5301 = vld [vmem:[#allocation3 + $0x2d0] sm:$0xff]
        %v5302 = vld [vmem:[#allocation3 + $0x2d8] sm:$0xff]
        %v5303 = vld [vmem:[#allocation3 + $0x2e0] sm:$0xff]
        %v5304 = vld [vmem:[#allocation3 + $0x2e8] sm:$0xff]
        %v5305 = vld [vmem:[#allocation3 + $0x2f0] sm:$0xff]
        %v5306 = vld [vmem:[#allocation3 + $0x2f8] sm:$0xff]
        %v5307 = vld [vmem:[#allocation3 + $0x300] sm:$0xff]
        %v5308 = vld [vmem:[#allocation3 + $0x308] sm:$0xff]
        %v5309 = vld [vmem:[#allocation3 + $0x310] sm:$0xff]
        %v5310 = vld [vmem:[#allocation3 + $0x318] sm:$0xff]
        %v5311 = vld [vmem:[#allocation3 + $0x320] sm:$0xff]
        %v5312 = vld [vmem:[#allocation3 + $0x328] sm:$0xff]
        %v5313 = vld [vmem:[#allocation3 + $0x330] sm:$0xff]
        %v5314 = vld [vmem:[#allocation3 + $0x338] sm:$0xff]
        %v5315 = vld [vmem:[#allocation3 + $0x340] sm:$0xff]
        %v5316 = vld [vmem:[#allocation3 + $0x348] sm:$0xff]
        %v5317 = vld [vmem:[#allocation3 + $0x350] sm:$0xff]
        %v5318 = vld [vmem:[#allocation3 + $0x358] sm:$0xff]
        %v5319 = vld [vmem:[#allocation3 + $0x360] sm:$0xff]
        %v5320 = vld [vmem:[#allocation3 + $0x368] sm:$0xff]
        %v5321 = vld [vmem:[#allocation3 + $0x370] sm:$0xff]
        %v5322 = vld [vmem:[#allocation3 + $0x378] sm:$0xff]
        %v5323 = vld [vmem:[#allocation3 + $0x380] sm:$0xff]
        %v5324 = vld [vmem:[#allocation3 + $0x388] sm:$0xff]
        %v5325 = vld [vmem:[#allocation3 + $0x390] sm:$0xff]
        %v5326 = vld [vmem:[#allocation3 + $0x398] sm:$0xff]
        %v5327 = vld [vmem:[#allocation3 + $0x3a0] sm:$0xff]
        %v5328 = vld [vmem:[#allocation3 + $0x3a8] sm:$0xff]
        %v5329 = vld [vmem:[#allocation3 + $0x3b0] sm:$0xff]
        %v5330 = vld [vmem:[#allocation3 + $0x3b8] sm:$0xff]
        %v5331 = vld [vmem:[#allocation3 + $0x3c0] sm:$0xff]
        %v5332 = vld [vmem:[#allocation3 + $0x3c8] sm:$0xff]
        %v5333 = vld [vmem:[#allocation3 + $0x3d0] sm:$0xff]
        %v5334 = vld [vmem:[#allocation3 + $0x3d8] sm:$0xff]
        %v5335 = vld [vmem:[#allocation3 + $0x3e0] sm:$0xff]
        %v5336 = vld [vmem:[#allocation3 + $0x3e8] sm:$0xff]
        %v5337 = vld [vmem:[#allocation3 + $0x3f0] sm:$0xff]
        %v5338 = vld [vmem:[#allocation3 + $0x3f8] sm:$0xff]
        %v5339 = vld [vmem:[#allocation3 + $0x400] sm:$0xff]
        %v5340 = vld [vmem:[#allocation3 + $0x408] sm:$0xff]
        %v5341 = vld [vmem:[#allocation3 + $0x410] sm:$0xff]
        %v5342 = vld [vmem:[#allocation3 + $0x418] sm:$0xff]
        %v5343 = vld [vmem:[#allocation3 + $0x420] sm:$0xff]
        %v5344 = vld [vmem:[#allocation3 + $0x428] sm:$0xff]
        %v5345 = vld [vmem:[#allocation3 + $0x430] sm:$0xff]
        %v5346 = vld [vmem:[#allocation3 + $0x438] sm:$0xff]
        %v5347 = vld [vmem:[#allocation3 + $0x440] sm:$0xff]
        %v5348 = vld [vmem:[#allocation3 + $0x448] sm:$0xff]
        %v5349 = vld [vmem:[#allocation3 + $0x450] sm:$0xff]
        %v5350 = vld [vmem:[#allocation3 + $0x458] sm:$0xff]
        %v5351 = vld [vmem:[#allocation3 + $0x460] sm:$0xff]
        %v5352 = vld [vmem:[#allocation3 + $0x468] sm:$0xff]
        %v5353 = vld [vmem:[#allocation3 + $0x470] sm:$0xff]
        %v5354 = vld [vmem:[#allocation3 + $0x478] sm:$0xff]
        %v5355 = vld [vmem:[#allocation3 + $0x480] sm:$0xff]
        %v5356 = vld [vmem:[#allocation3 + $0x488] sm:$0xff]
        %v5357 = vld [vmem:[#allocation3 + $0x490] sm:$0xff]
        %v5358 = vld [vmem:[#allocation3 + $0x498] sm:$0xff]
        %v5359 = vld [vmem:[#allocation3 + $0x4a0] sm:$0xff]
        %v5360 = vld [vmem:[#allocation3 + $0x4a8] sm:$0xff]
        %v5361 = vld [vmem:[#allocation3 + $0x4b0] sm:$0xff]
        %v5362 = vld [vmem:[#allocation3 + $0x4b8] sm:$0xff]
        %v5363 = vld [vmem:[#allocation3 + $0x4c0] sm:$0xff]
        %v5364 = vld [vmem:[#allocation3 + $0x4c8] sm:$0xff]
        %v5365 = vld [vmem:[#allocation3 + $0x4d0] sm:$0xff]
        %v5366 = vld [vmem:[#allocation3 + $0x4d8] sm:$0xff]
        %v5367 = vld [vmem:[#allocation3 + $0x4e0] sm:$0xff]
        %v5368 = vld [vmem:[#allocation3 + $0x4e8] sm:$0xff]
        %v5369 = vld [vmem:[#allocation3 + $0x4f0] sm:$0xff]
        %v5370 = vld [vmem:[#allocation3 + $0x4f8] sm:$0xff]
        %v5371 = vld [vmem:[#allocation3 + $0x500] sm:$0xff]
        %v5372 = vld [vmem:[#allocation3 + $0x508] sm:$0xff]
        %v5373 = vld [vmem:[#allocation3 + $0x510] sm:$0xff]
        %v5374 = vld [vmem:[#allocation3 + $0x518] sm:$0xff]
        %v5375 = vld [vmem:[#allocation3 + $0x520] sm:$0xff]
        %v5376 = vld [vmem:[#allocation3 + $0x528] sm:$0xff]
        %v5377 = vld [vmem:[#allocation3 + $0x530] sm:$0xff]
        %v5378 = vld [vmem:[#allocation3 + $0x538] sm:$0xff]
        %v5379 = vld [vmem:[#allocation3 + $0x540] sm:$0xff]
        %v5380 = vld [vmem:[#allocation3 + $0x548] sm:$0xff]
        %v5381 = vld [vmem:[#allocation3 + $0x550] sm:$0xff]
        %v5382 = vld [vmem:[#allocation3 + $0x558] sm:$0xff]
        %v5383 = vld [vmem:[#allocation3 + $0x560] sm:$0xff]
        %v5384 = vld [vmem:[#allocation3 + $0x568] sm:$0xff]
        %v5385 = vld [vmem:[#allocation3 + $0x570] sm:$0xff]
        %v5386 = vld [vmem:[#allocation3 + $0x578] sm:$0xff]
        %v5387 = vld [vmem:[#allocation3 + $0x580] sm:$0xff]
        %v5388 = vld [vmem:[#allocation3 + $0x588] sm:$0xff]
        %v5389 = vld [vmem:[#allocation3 + $0x590] sm:$0xff]
        %v5390 = vld [vmem:[#allocation3 + $0x598] sm:$0xff]
        %v5391 = vld [vmem:[#allocation3 + $0x5a0] sm:$0xff]
        %v5392 = vld [vmem:[#allocation3 + $0x5a8] sm:$0xff]
        %v5393 = vld [vmem:[#allocation3 + $0x5b0] sm:$0xff]
        %v5394 = vld [vmem:[#allocation3 + $0x5b8] sm:$0xff]
        %v5395 = vld [vmem:[#allocation3 + $0x5c0] sm:$0xff]
        %v5396 = vld [vmem:[#allocation3 + $0x5c8] sm:$0xff]
        %v5397 = vld [vmem:[#allocation3 + $0x5d0] sm:$0xff]
        %v5398 = vld [vmem:[#allocation3 + $0x5d8] sm:$0xff]
        %v5399 = vld [vmem:[#allocation3 + $0x5e0] sm:$0xff]
        %v5400 = vld [vmem:[#allocation3 + $0x5e8] sm:$0xff]
        %v5401 = vld [vmem:[#allocation3 + $0x5f0] sm:$0xff]
        %v5402 = vld [vmem:[#allocation3 + $0x5f8] sm:$0xff]
        %v5403 = vld [vmem:[#allocation3 + $0x600] sm:$0xff]
        %v5404 = vld [vmem:[#allocation3 + $0x608] sm:$0xff]
        %v5405 = vld [vmem:[#allocation3 + $0x610] sm:$0xff]
        %v5406 = vld [vmem:[#allocation3 + $0x618] sm:$0xff]
        %v5407 = vld [vmem:[#allocation3 + $0x620] sm:$0xff]
        %v5408 = vld [vmem:[#allocation3 + $0x628] sm:$0xff]
        %v5409 = vld [vmem:[#allocation3 + $0x630] sm:$0xff]
        %v5410 = vld [vmem:[#allocation3 + $0x638] sm:$0xff]
        %v5411 = vld [vmem:[#allocation3 + $0x640] sm:$0xff]
        %v5412 = vld [vmem:[#allocation3 + $0x648] sm:$0xff]
        %v5413 = vld [vmem:[#allocation3 + $0x650] sm:$0xff]
        %v5414 = vld [vmem:[#allocation3 + $0x658] sm:$0xff]
        %v5415 = vld [vmem:[#allocation3 + $0x660] sm:$0xff]
        %v5416 = vld [vmem:[#allocation3 + $0x668] sm:$0xff]
        %v5417 = vld [vmem:[#allocation3 + $0x670] sm:$0xff]
        %v5418 = vld [vmem:[#allocation3 + $0x678] sm:$0xff]
        %v5419 = vld [vmem:[#allocation3 + $0x680] sm:$0xff]
        %v5420 = vld [vmem:[#allocation3 + $0x688] sm:$0xff]
        %v5421 = vld [vmem:[#allocation3 + $0x690] sm:$0xff]
        %v5422 = vld [vmem:[#allocation3 + $0x698] sm:$0xff]
        %v5423 = vld [vmem:[#allocation3 + $0x6a0] sm:$0xff]
        %v5424 = vld [vmem:[#allocation3 + $0x6a8] sm:$0xff]
        %v5425 = vld [vmem:[#allocation3 + $0x6b0] sm:$0xff]
        %v5426 = vld [vmem:[#allocation3 + $0x6b8] sm:$0xff]
        %v5427 = vld [vmem:[#allocation3 + $0x6c0] sm:$0xff]
        %v5428 = vld [vmem:[#allocation3 + $0x6c8] sm:$0xff]
        %v5429 = vld [vmem:[#allocation3 + $0x6d0] sm:$0xff]
        %v5430 = vld [vmem:[#allocation3 + $0x6d8] sm:$0xff]
        %v5431 = vld [vmem:[#allocation3 + $0x6e0] sm:$0xff]
        %v5432 = vld [vmem:[#allocation3 + $0x6e8] sm:$0xff]
        %v5433 = vld [vmem:[#allocation3 + $0x6f0] sm:$0xff]
        %v5434 = vld [vmem:[#allocation3 + $0x6f8] sm:$0xff]
        %v5435 = vld [vmem:[#allocation3 + $0x700] sm:$0xff]
        %v5436 = vld [vmem:[#allocation3 + $0x708] sm:$0xff]
        %v5437 = vld [vmem:[#allocation3 + $0x710] sm:$0xff]
        %v5438 = vld [vmem:[#allocation3 + $0x718] sm:$0xff]
        %v5439 = vld [vmem:[#allocation3 + $0x720] sm:$0xff]
        %v5440 = vld [vmem:[#allocation3 + $0x728] sm:$0xff]
        %v5441 = vld [vmem:[#allocation3 + $0x730] sm:$0xff]
        %v5442 = vld [vmem:[#allocation3 + $0x738] sm:$0xff]
        %v5443 = vld [vmem:[#allocation3 + $0x740] sm:$0xff]
        %v5444 = vld [vmem:[#allocation3 + $0x748] sm:$0xff]
        %v5445 = vld [vmem:[#allocation3 + $0x750] sm:$0xff]
        %v5446 = vld [vmem:[#allocation3 + $0x758] sm:$0xff]
        %v5447 = vld [vmem:[#allocation3 + $0x760] sm:$0xff]
        %v5448 = vld [vmem:[#allocation3 + $0x768] sm:$0xff]
        %v5449 = vld [vmem:[#allocation3 + $0x770] sm:$0xff]
        %v5450 = vld [vmem:[#allocation3 + $0x778] sm:$0xff]
        %v5451 = vld [vmem:[#allocation3 + $0x780] sm:$0xff]
        %v5452 = vld [vmem:[#allocation3 + $0x788] sm:$0xff]
        %v5453 = vld [vmem:[#allocation3 + $0x790] sm:$0xff]
        %v5454 = vld [vmem:[#allocation3 + $0x798] sm:$0xff]
        %v5455 = vld [vmem:[#allocation3 + $0x7a0] sm:$0xff]
        %v5456 = vld [vmem:[#allocation3 + $0x7a8] sm:$0xff]
        %v5457 = vld [vmem:[#allocation3 + $0x7b0] sm:$0xff]
        %v5458 = vld [vmem:[#allocation3 + $0x7b8] sm:$0xff]
        %v5459 = vld [vmem:[#allocation3 + $0x7c0] sm:$0xff]
        %v5460 = vld [vmem:[#allocation3 + $0x7c8] sm:$0xff]
        %v5461 = vld [vmem:[#allocation3 + $0x7d0] sm:$0xff]
        %v5462 = vld [vmem:[#allocation3 + $0x7d8] sm:$0xff]
        %v5463 = vld [vmem:[#allocation3 + $0x7e0] sm:$0xff]
        %v5464 = vld [vmem:[#allocation3 + $0x7e8] sm:$0xff]
        %v5465 = vld [vmem:[#allocation3 + $0x7f0] sm:$0xff]
        %v5466 = vld [vmem:[#allocation3 + $0x7f8] sm:$0xff]
        %v5467 = vld [vmem:[%s4] sm:$0xf]
        %v5469 = vlaneseq
        %v5470 = vshrl.u32 %v5469, 7
        %v5471 = vsub.s32 0, %v5470
        %v5472 = vrot.slane %v5467, %v5471
        %v5473 = vlaneseq
        %v5474 = vshrl.u32 %v5473, 7
        %v5475 = vsub.s32 1, %v5474
        %v5476 = vrot.slane %v5467, %v5475
        %v5477 = vlaneseq
        %v5478 = vshrl.u32 %v5477, 7
        %v5479 = vsub.s32 2, %v5478
        %v5480 = vrot.slane %v5467, %v5479
        %v5481 = vlaneseq
        %v5482 = vshrl.u32 %v5481, 7
        %v5483 = vsub.s32 3, %v5482
        %v5484 = vrot.slane %v5467, %v5483
        %v5745 = vunpack.c.l.b16 %v5211
        %v5746 = vunpack.c.h.b16 %v5211
        %v5747 = vunpack.c.l.b16 %v5212
        %v5748 = vunpack.c.h.b16 %v5212
        %v5749 = vunpack.c.l.b16 %v5213
        %v5750 = vunpack.c.h.b16 %v5213
        %v5751 = vunpack.c.l.b16 %v5214
        %v5752 = vunpack.c.h.b16 %v5214
        %v5753 = vunpack.c.l.b16 %v5215
        %v5754 = vunpack.c.h.b16 %v5215
        %v5755 = vunpack.c.l.b16 %v5216
        %v5756 = vunpack.c.h.b16 %v5216
        %v5757 = vunpack.c.l.b16 %v5217
        %v5758 = vunpack.c.h.b16 %v5217
        %v5759 = vunpack.c.l.b16 %v5218
        %v5760 = vunpack.c.h.b16 %v5218
        %v5761 = vunpack.c.l.b16 %v5219
        %v5762 = vunpack.c.h.b16 %v5219
        %v5763 = vunpack.c.l.b16 %v5220
        %v5764 = vunpack.c.h.b16 %v5220
        %v5765 = vunpack.c.l.b16 %v5221
        %v5766 = vunpack.c.h.b16 %v5221
        %v5767 = vunpack.c.l.b16 %v5222
        %v5768 = vunpack.c.h.b16 %v5222
        %v5769 = vunpack.c.l.b16 %v5223
        %v5770 = vunpack.c.h.b16 %v5223
        %v5771 = vunpack.c.l.b16 %v5224
        %v5772 = vunpack.c.h.b16 %v5224
        %v5773 = vunpack.c.l.b16 %v5225
        %v5774 = vunpack.c.h.b16 %v5225
        %v5775 = vunpack.c.l.b16 %v5226
        %v5776 = vunpack.c.h.b16 %v5226
        %v5777 = vunpack.c.l.b16 %v5227
        %v5778 = vunpack.c.h.b16 %v5227
        %v5779 = vunpack.c.l.b16 %v5228
        %v5780 = vunpack.c.h.b16 %v5228
        %v5781 = vunpack.c.l.b16 %v5229
        %v5782 = vunpack.c.h.b16 %v5229
        %v5783 = vunpack.c.l.b16 %v5230
        %v5784 = vunpack.c.h.b16 %v5230
        %v5785 = vunpack.c.l.b16 %v5231
        %v5786 = vunpack.c.h.b16 %v5231
        %v5787 = vunpack.c.l.b16 %v5232
        %v5788 = vunpack.c.h.b16 %v5232
        %v5789 = vunpack.c.l.b16 %v5233
        %v5790 = vunpack.c.h.b16 %v5233
        %v5791 = vunpack.c.l.b16 %v5234
        %v5792 = vunpack.c.h.b16 %v5234
        %v5793 = vunpack.c.l.b16 %v5235
        %v5794 = vunpack.c.h.b16 %v5235
        %v5795 = vunpack.c.l.b16 %v5236
        %v5796 = vunpack.c.h.b16 %v5236
        %v5797 = vunpack.c.l.b16 %v5237
        %v5798 = vunpack.c.h.b16 %v5237
        %v5799 = vunpack.c.l.b16 %v5238
        %v5800 = vunpack.c.h.b16 %v5238
        %v5801 = vunpack.c.l.b16 %v5239
        %v5802 = vunpack.c.h.b16 %v5239
        %v5803 = vunpack.c.l.b16 %v5240
        %v5804 = vunpack.c.h.b16 %v5240
        %v5805 = vunpack.c.l.b16 %v5241
        %v5806 = vunpack.c.h.b16 %v5241
        %v5807 = vunpack.c.l.b16 %v5242
        %v5808 = vunpack.c.h.b16 %v5242
        %v5809 = vunpack.c.l.b16 %v5243
        %v5810 = vunpack.c.h.b16 %v5243
        %v5811 = vunpack.c.l.b16 %v5244
        %v5812 = vunpack.c.h.b16 %v5244
        %v5813 = vunpack.c.l.b16 %v5245
        %v5814 = vunpack.c.h.b16 %v5245
        %v5815 = vunpack.c.l.b16 %v5246
        %v5816 = vunpack.c.h.b16 %v5246
        %v5817 = vunpack.c.l.b16 %v5247
        %v5818 = vunpack.c.h.b16 %v5247
        %v5819 = vunpack.c.l.b16 %v5248
        %v5820 = vunpack.c.h.b16 %v5248
        %v5821 = vunpack.c.l.b16 %v5249
        %v5822 = vunpack.c.h.b16 %v5249
        %v5823 = vunpack.c.l.b16 %v5250
        %v5824 = vunpack.c.h.b16 %v5250
        %v5825 = vunpack.c.l.b16 %v5251
        %v5826 = vunpack.c.h.b16 %v5251
        %v5827 = vunpack.c.l.b16 %v5252
        %v5828 = vunpack.c.h.b16 %v5252
        %v5829 = vunpack.c.l.b16 %v5253
        %v5830 = vunpack.c.h.b16 %v5253
        %v5831 = vunpack.c.l.b16 %v5254
        %v5832 = vunpack.c.h.b16 %v5254
        %v5833 = vunpack.c.l.b16 %v5255
        %v5834 = vunpack.c.h.b16 %v5255
        %v5835 = vunpack.c.l.b16 %v5256
        %v5836 = vunpack.c.h.b16 %v5256
        %v5837 = vunpack.c.l.b16 %v5257
        %v5838 = vunpack.c.h.b16 %v5257
        %v5839 = vunpack.c.l.b16 %v5258
        %v5840 = vunpack.c.h.b16 %v5258
        %v5841 = vunpack.c.l.b16 %v5259
        %v5842 = vunpack.c.h.b16 %v5259
        %v5843 = vunpack.c.l.b16 %v5260
        %v5844 = vunpack.c.h.b16 %v5260
        %v5845 = vunpack.c.l.b16 %v5261
        %v5846 = vunpack.c.h.b16 %v5261
        %v5847 = vunpack.c.l.b16 %v5262
        %v5848 = vunpack.c.h.b16 %v5262
        %v5849 = vunpack.c.l.b16 %v5263
        %v5850 = vunpack.c.h.b16 %v5263
        %v5851 = vunpack.c.l.b16 %v5264
        %v5852 = vunpack.c.h.b16 %v5264
        %v5853 = vunpack.c.l.b16 %v5265
        %v5854 = vunpack.c.h.b16 %v5265
        %v5855 = vunpack.c.l.b16 %v5266
        %v5856 = vunpack.c.h.b16 %v5266
        %v5857 = vunpack.c.l.b16 %v5267
        %v5858 = vunpack.c.h.b16 %v5267
        %v5859 = vunpack.c.l.b16 %v5268
        %v5860 = vunpack.c.h.b16 %v5268
        %v5861 = vunpack.c.l.b16 %v5269
        %v5862 = vunpack.c.h.b16 %v5269
        %v5863 = vunpack.c.l.b16 %v5270
        %v5864 = vunpack.c.h.b16 %v5270
        %v5865 = vunpack.c.l.b16 %v5271
        %v5866 = vunpack.c.h.b16 %v5271
        %v5867 = vunpack.c.l.b16 %v5272
        %v5868 = vunpack.c.h.b16 %v5272
        %v5869 = vunpack.c.l.b16 %v5273
        %v5870 = vunpack.c.h.b16 %v5273
        %v5871 = vunpack.c.l.b16 %v5274
        %v5872 = vunpack.c.h.b16 %v5274
        %v5873 = vunpack.c.l.b16 %v5275
        %v5874 = vunpack.c.h.b16 %v5275
        %v5875 = vunpack.c.l.b16 %v5276
        %v5876 = vunpack.c.h.b16 %v5276
        %v5877 = vunpack.c.l.b16 %v5277
        %v5878 = vunpack.c.h.b16 %v5277
        %v5879 = vunpack.c.l.b16 %v5278
        %v5880 = vunpack.c.h.b16 %v5278
        %v5881 = vunpack.c.l.b16 %v5279
        %v5882 = vunpack.c.h.b16 %v5279
        %v5883 = vunpack.c.l.b16 %v5280
        %v5884 = vunpack.c.h.b16 %v5280
        %v5885 = vunpack.c.l.b16 %v5281
        %v5886 = vunpack.c.h.b16 %v5281
        %v5887 = vunpack.c.l.b16 %v5282
        %v5888 = vunpack.c.h.b16 %v5282
        %v5889 = vunpack.c.l.b16 %v5283
        %v5890 = vunpack.c.h.b16 %v5283
        %v5891 = vunpack.c.l.b16 %v5284
        %v5892 = vunpack.c.h.b16 %v5284
        %v5893 = vunpack.c.l.b16 %v5285
        %v5894 = vunpack.c.h.b16 %v5285
        %v5895 = vunpack.c.l.b16 %v5286
        %v5896 = vunpack.c.h.b16 %v5286
        %v5897 = vunpack.c.l.b16 %v5287
        %v5898 = vunpack.c.h.b16 %v5287
        %v5899 = vunpack.c.l.b16 %v5288
        %v5900 = vunpack.c.h.b16 %v5288
        %v5901 = vunpack.c.l.b16 %v5289
        %v5902 = vunpack.c.h.b16 %v5289
        %v5903 = vunpack.c.l.b16 %v5290
        %v5904 = vunpack.c.h.b16 %v5290
        %v5905 = vunpack.c.l.b16 %v5291
        %v5906 = vunpack.c.h.b16 %v5291
        %v5907 = vunpack.c.l.b16 %v5292
        %v5908 = vunpack.c.h.b16 %v5292
        %v5909 = vunpack.c.l.b16 %v5293
        %v5910 = vunpack.c.h.b16 %v5293
        %v5911 = vunpack.c.l.b16 %v5294
        %v5912 = vunpack.c.h.b16 %v5294
        %v5913 = vunpack.c.l.b16 %v5295
        %v5914 = vunpack.c.h.b16 %v5295
        %v5915 = vunpack.c.l.b16 %v5296
        %v5916 = vunpack.c.h.b16 %v5296
        %v5917 = vunpack.c.l.b16 %v5297
        %v5918 = vunpack.c.h.b16 %v5297
        %v5919 = vunpack.c.l.b16 %v5298
        %v5920 = vunpack.c.h.b16 %v5298
        %v5921 = vunpack.c.l.b16 %v5299
        %v5922 = vunpack.c.h.b16 %v5299
        %v5923 = vunpack.c.l.b16 %v5300
        %v5924 = vunpack.c.h.b16 %v5300
        %v5925 = vunpack.c.l.b16 %v5301
        %v5926 = vunpack.c.h.b16 %v5301
        %v5927 = vunpack.c.l.b16 %v5302
        %v5928 = vunpack.c.h.b16 %v5302
        %v5929 = vunpack.c.l.b16 %v5303
        %v5930 = vunpack.c.h.b16 %v5303
        %v5931 = vunpack.c.l.b16 %v5304
        %v5932 = vunpack.c.h.b16 %v5304
        %v5933 = vunpack.c.l.b16 %v5305
        %v5934 = vunpack.c.h.b16 %v5305
        %v5935 = vunpack.c.l.b16 %v5306
        %v5936 = vunpack.c.h.b16 %v5306
        %v5937 = vunpack.c.l.b16 %v5307
        %v5938 = vunpack.c.h.b16 %v5307
        %v5939 = vunpack.c.l.b16 %v5308
        %v5940 = vunpack.c.h.b16 %v5308
        %v5941 = vunpack.c.l.b16 %v5309
        %v5942 = vunpack.c.h.b16 %v5309
        %v5943 = vunpack.c.l.b16 %v5310
        %v5944 = vunpack.c.h.b16 %v5310
        %v5945 = vunpack.c.l.b16 %v5311
        %v5946 = vunpack.c.h.b16 %v5311
        %v5947 = vunpack.c.l.b16 %v5312
        %v5948 = vunpack.c.h.b16 %v5312
        %v5949 = vunpack.c.l.b16 %v5313
        %v5950 = vunpack.c.h.b16 %v5313
        %v5951 = vunpack.c.l.b16 %v5314
        %v5952 = vunpack.c.h.b16 %v5314
        %v5953 = vunpack.c.l.b16 %v5315
        %v5954 = vunpack.c.h.b16 %v5315
        %v5955 = vunpack.c.l.b16 %v5316
        %v5956 = vunpack.c.h.b16 %v5316
        %v5957 = vunpack.c.l.b16 %v5317
        %v5958 = vunpack.c.h.b16 %v5317
        %v5959 = vunpack.c.l.b16 %v5318
        %v5960 = vunpack.c.h.b16 %v5318
        %v5961 = vunpack.c.l.b16 %v5319
        %v5962 = vunpack.c.h.b16 %v5319
        %v5963 = vunpack.c.l.b16 %v5320
        %v5964 = vunpack.c.h.b16 %v5320
        %v5965 = vunpack.c.l.b16 %v5321
        %v5966 = vunpack.c.h.b16 %v5321
        %v5967 = vunpack.c.l.b16 %v5322
        %v5968 = vunpack.c.h.b16 %v5322
        %v5969 = vunpack.c.l.b16 %v5323
        %v5970 = vunpack.c.h.b16 %v5323
        %v5971 = vunpack.c.l.b16 %v5324
        %v5972 = vunpack.c.h.b16 %v5324
        %v5973 = vunpack.c.l.b16 %v5325
        %v5974 = vunpack.c.h.b16 %v5325
        %v5975 = vunpack.c.l.b16 %v5326
        %v5976 = vunpack.c.h.b16 %v5326
        %v5977 = vunpack.c.l.b16 %v5327
        %v5978 = vunpack.c.h.b16 %v5327
        %v5979 = vunpack.c.l.b16 %v5328
        %v5980 = vunpack.c.h.b16 %v5328
        %v5981 = vunpack.c.l.b16 %v5329
        %v5982 = vunpack.c.h.b16 %v5329
        %v5983 = vunpack.c.l.b16 %v5330
        %v5984 = vunpack.c.h.b16 %v5330
        %v5985 = vunpack.c.l.b16 %v5331
        %v5986 = vunpack.c.h.b16 %v5331
        %v5987 = vunpack.c.l.b16 %v5332
        %v5988 = vunpack.c.h.b16 %v5332
        %v5989 = vunpack.c.l.b16 %v5333
        %v5990 = vunpack.c.h.b16 %v5333
        %v5991 = vunpack.c.l.b16 %v5334
        %v5992 = vunpack.c.h.b16 %v5334
        %v5993 = vunpack.c.l.b16 %v5335
        %v5994 = vunpack.c.h.b16 %v5335
        %v5995 = vunpack.c.l.b16 %v5336
        %v5996 = vunpack.c.h.b16 %v5336
        %v5997 = vunpack.c.l.b16 %v5337
        %v5998 = vunpack.c.h.b16 %v5337
        %v5999 = vunpack.c.l.b16 %v5338
        %v6000 = vunpack.c.h.b16 %v5338
        %v6001 = vunpack.c.l.b16 %v5339
        %v6002 = vunpack.c.h.b16 %v5339
        %v6003 = vunpack.c.l.b16 %v5340
        %v6004 = vunpack.c.h.b16 %v5340
        %v6005 = vunpack.c.l.b16 %v5341
        %v6006 = vunpack.c.h.b16 %v5341
        %v6007 = vunpack.c.l.b16 %v5342
        %v6008 = vunpack.c.h.b16 %v5342
        %v6009 = vunpack.c.l.b16 %v5343
        %v6010 = vunpack.c.h.b16 %v5343
        %v6011 = vunpack.c.l.b16 %v5344
        %v6012 = vunpack.c.h.b16 %v5344
        %v6013 = vunpack.c.l.b16 %v5345
        %v6014 = vunpack.c.h.b16 %v5345
        %v6015 = vunpack.c.l.b16 %v5346
        %v6016 = vunpack.c.h.b16 %v5346
        %v6017 = vunpack.c.l.b16 %v5347
        %v6018 = vunpack.c.h.b16 %v5347
        %v6019 = vunpack.c.l.b16 %v5348
        %v6020 = vunpack.c.h.b16 %v5348
        %v6021 = vunpack.c.l.b16 %v5349
        %v6022 = vunpack.c.h.b16 %v5349
        %v6023 = vunpack.c.l.b16 %v5350
        %v6024 = vunpack.c.h.b16 %v5350
        %v6025 = vunpack.c.l.b16 %v5351
        %v6026 = vunpack.c.h.b16 %v5351
        %v6027 = vunpack.c.l.b16 %v5352
        %v6028 = vunpack.c.h.b16 %v5352
        %v6029 = vunpack.c.l.b16 %v5353
        %v6030 = vunpack.c.h.b16 %v5353
        %v6031 = vunpack.c.l.b16 %v5354
        %v6032 = vunpack.c.h.b16 %v5354
        %v6033 = vunpack.c.l.b16 %v5355
        %v6034 = vunpack.c.h.b16 %v5355
        %v6035 = vunpack.c.l.b16 %v5356
        %v6036 = vunpack.c.h.b16 %v5356
        %v6037 = vunpack.c.l.b16 %v5357
        %v6038 = vunpack.c.h.b16 %v5357
        %v6039 = vunpack.c.l.b16 %v5358
        %v6040 = vunpack.c.h.b16 %v5358
        %v6041 = vunpack.c.l.b16 %v5359
        %v6042 = vunpack.c.h.b16 %v5359
        %v6043 = vunpack.c.l.b16 %v5360
        %v6044 = vunpack.c.h.b16 %v5360
        %v6045 = vunpack.c.l.b16 %v5361
        %v6046 = vunpack.c.h.b16 %v5361
        %v6047 = vunpack.c.l.b16 %v5362
        %v6048 = vunpack.c.h.b16 %v5362
        %v6049 = vunpack.c.l.b16 %v5363
        %v6050 = vunpack.c.h.b16 %v5363
        %v6051 = vunpack.c.l.b16 %v5364
        %v6052 = vunpack.c.h.b16 %v5364
        %v6053 = vunpack.c.l.b16 %v5365
        %v6054 = vunpack.c.h.b16 %v5365
        %v6055 = vunpack.c.l.b16 %v5366
        %v6056 = vunpack.c.h.b16 %v5366
        %v6057 = vunpack.c.l.b16 %v5367
        %v6058 = vunpack.c.h.b16 %v5367
        %v6059 = vunpack.c.l.b16 %v5368
        %v6060 = vunpack.c.h.b16 %v5368
        %v6061 = vunpack.c.l.b16 %v5369
        %v6062 = vunpack.c.h.b16 %v5369
        %v6063 = vunpack.c.l.b16 %v5370
        %v6064 = vunpack.c.h.b16 %v5370
        %v6065 = vunpack.c.l.b16 %v5371
        %v6066 = vunpack.c.h.b16 %v5371
        %v6067 = vunpack.c.l.b16 %v5372
        %v6068 = vunpack.c.h.b16 %v5372
        %v6069 = vunpack.c.l.b16 %v5373
        %v6070 = vunpack.c.h.b16 %v5373
        %v6071 = vunpack.c.l.b16 %v5374
        %v6072 = vunpack.c.h.b16 %v5374
        %v6073 = vunpack.c.l.b16 %v5375
        %v6074 = vunpack.c.h.b16 %v5375
        %v6075 = vunpack.c.l.b16 %v5376
        %v6076 = vunpack.c.h.b16 %v5376
        %v6077 = vunpack.c.l.b16 %v5377
        %v6078 = vunpack.c.h.b16 %v5377
        %v6079 = vunpack.c.l.b16 %v5378
        %v6080 = vunpack.c.h.b16 %v5378
        %v6081 = vunpack.c.l.b16 %v5379
        %v6082 = vunpack.c.h.b16 %v5379
        %v6083 = vunpack.c.l.b16 %v5380
        %v6084 = vunpack.c.h.b16 %v5380
        %v6085 = vunpack.c.l.b16 %v5381
        %v6086 = vunpack.c.h.b16 %v5381
        %v6087 = vunpack.c.l.b16 %v5382
        %v6088 = vunpack.c.h.b16 %v5382
        %v6089 = vunpack.c.l.b16 %v5383
        %v6090 = vunpack.c.h.b16 %v5383
        %v6091 = vunpack.c.l.b16 %v5384
        %v6092 = vunpack.c.h.b16 %v5384
        %v6093 = vunpack.c.l.b16 %v5385
        %v6094 = vunpack.c.h.b16 %v5385
        %v6095 = vunpack.c.l.b16 %v5386
        %v6096 = vunpack.c.h.b16 %v5386
        %v6097 = vunpack.c.l.b16 %v5387
        %v6098 = vunpack.c.h.b16 %v5387
        %v6099 = vunpack.c.l.b16 %v5388
        %v6100 = vunpack.c.h.b16 %v5388
        %v6101 = vunpack.c.l.b16 %v5389
        %v6102 = vunpack.c.h.b16 %v5389
        %v6103 = vunpack.c.l.b16 %v5390
        %v6104 = vunpack.c.h.b16 %v5390
        %v6105 = vunpack.c.l.b16 %v5391
        %v6106 = vunpack.c.h.b16 %v5391
        %v6107 = vunpack.c.l.b16 %v5392
        %v6108 = vunpack.c.h.b16 %v5392
        %v6109 = vunpack.c.l.b16 %v5393
        %v6110 = vunpack.c.h.b16 %v5393
        %v6111 = vunpack.c.l.b16 %v5394
        %v6112 = vunpack.c.h.b16 %v5394
        %v6113 = vunpack.c.l.b16 %v5395
        %v6114 = vunpack.c.h.b16 %v5395
        %v6115 = vunpack.c.l.b16 %v5396
        %v6116 = vunpack.c.h.b16 %v5396
        %v6117 = vunpack.c.l.b16 %v5397
        %v6118 = vunpack.c.h.b16 %v5397
        %v6119 = vunpack.c.l.b16 %v5398
        %v6120 = vunpack.c.h.b16 %v5398
        %v6121 = vunpack.c.l.b16 %v5399
        %v6122 = vunpack.c.h.b16 %v5399
        %v6123 = vunpack.c.l.b16 %v5400
        %v6124 = vunpack.c.h.b16 %v5400
        %v6125 = vunpack.c.l.b16 %v5401
        %v6126 = vunpack.c.h.b16 %v5401
        %v6127 = vunpack.c.l.b16 %v5402
        %v6128 = vunpack.c.h.b16 %v5402
        %v6129 = vunpack.c.l.b16 %v5403
        %v6130 = vunpack.c.h.b16 %v5403
        %v6131 = vunpack.c.l.b16 %v5404
        %v6132 = vunpack.c.h.b16 %v5404
        %v6133 = vunpack.c.l.b16 %v5405
        %v6134 = vunpack.c.h.b16 %v5405
        %v6135 = vunpack.c.l.b16 %v5406
        %v6136 = vunpack.c.h.b16 %v5406
        %v6137 = vunpack.c.l.b16 %v5407
        %v6138 = vunpack.c.h.b16 %v5407
        %v6139 = vunpack.c.l.b16 %v5408
        %v6140 = vunpack.c.h.b16 %v5408
        %v6141 = vunpack.c.l.b16 %v5409
        %v6142 = vunpack.c.h.b16 %v5409
        %v6143 = vunpack.c.l.b16 %v5410
        %v6144 = vunpack.c.h.b16 %v5410
        %v6145 = vunpack.c.l.b16 %v5411
        %v6146 = vunpack.c.h.b16 %v5411
        %v6147 = vunpack.c.l.b16 %v5412
        %v6148 = vunpack.c.h.b16 %v5412
        %v6149 = vunpack.c.l.b16 %v5413
        %v6150 = vunpack.c.h.b16 %v5413
        %v6151 = vunpack.c.l.b16 %v5414
        %v6152 = vunpack.c.h.b16 %v5414
        %v6153 = vunpack.c.l.b16 %v5415
        %v6154 = vunpack.c.h.b16 %v5415
        %v6155 = vunpack.c.l.b16 %v5416
        %v6156 = vunpack.c.h.b16 %v5416
        %v6157 = vunpack.c.l.b16 %v5417
        %v6158 = vunpack.c.h.b16 %v5417
        %v6159 = vunpack.c.l.b16 %v5418
        %v6160 = vunpack.c.h.b16 %v5418
        %v6161 = vunpack.c.l.b16 %v5419
        %v6162 = vunpack.c.h.b16 %v5419
        %v6163 = vunpack.c.l.b16 %v5420
        %v6164 = vunpack.c.h.b16 %v5420
        %v6165 = vunpack.c.l.b16 %v5421
        %v6166 = vunpack.c.h.b16 %v5421
        %v6167 = vunpack.c.l.b16 %v5422
        %v6168 = vunpack.c.h.b16 %v5422
        %v6169 = vunpack.c.l.b16 %v5423
        %v6170 = vunpack.c.h.b16 %v5423
        %v6171 = vunpack.c.l.b16 %v5424
        %v6172 = vunpack.c.h.b16 %v5424
        %v6173 = vunpack.c.l.b16 %v5425
        %v6174 = vunpack.c.h.b16 %v5425
        %v6175 = vunpack.c.l.b16 %v5426
        %v6176 = vunpack.c.h.b16 %v5426
        %v6177 = vunpack.c.l.b16 %v5427
        %v6178 = vunpack.c.h.b16 %v5427
        %v6179 = vunpack.c.l.b16 %v5428
        %v6180 = vunpack.c.h.b16 %v5428
        %v6181 = vunpack.c.l.b16 %v5429
        %v6182 = vunpack.c.h.b16 %v5429
        %v6183 = vunpack.c.l.b16 %v5430
        %v6184 = vunpack.c.h.b16 %v5430
        %v6185 = vunpack.c.l.b16 %v5431
        %v6186 = vunpack.c.h.b16 %v5431
        %v6187 = vunpack.c.l.b16 %v5432
        %v6188 = vunpack.c.h.b16 %v5432
        %v6189 = vunpack.c.l.b16 %v5433
        %v6190 = vunpack.c.h.b16 %v5433
        %v6191 = vunpack.c.l.b16 %v5434
        %v6192 = vunpack.c.h.b16 %v5434
        %v6193 = vunpack.c.l.b16 %v5435
        %v6194 = vunpack.c.h.b16 %v5435
        %v6195 = vunpack.c.l.b16 %v5436
        %v6196 = vunpack.c.h.b16 %v5436
        %v6197 = vunpack.c.l.b16 %v5437
        %v6198 = vunpack.c.h.b16 %v5437
        %v6199 = vunpack.c.l.b16 %v5438
        %v6200 = vunpack.c.h.b16 %v5438
        %v6201 = vunpack.c.l.b16 %v5439
        %v6202 = vunpack.c.h.b16 %v5439
        %v6203 = vunpack.c.l.b16 %v5440
        %v6204 = vunpack.c.h.b16 %v5440
        %v6205 = vunpack.c.l.b16 %v5441
        %v6206 = vunpack.c.h.b16 %v5441
        %v6207 = vunpack.c.l.b16 %v5442
        %v6208 = vunpack.c.h.b16 %v5442
        %v6209 = vunpack.c.l.b16 %v5443
        %v6210 = vunpack.c.h.b16 %v5443
        %v6211 = vunpack.c.l.b16 %v5444
        %v6212 = vunpack.c.h.b16 %v5444
        %v6213 = vunpack.c.l.b16 %v5445
        %v6214 = vunpack.c.h.b16 %v5445
        %v6215 = vunpack.c.l.b16 %v5446
        %v6216 = vunpack.c.h.b16 %v5446
        %v6217 = vunpack.c.l.b16 %v5447
        %v6218 = vunpack.c.h.b16 %v5447
        %v6219 = vunpack.c.l.b16 %v5448
        %v6220 = vunpack.c.h.b16 %v5448
        %v6221 = vunpack.c.l.b16 %v5449
        %v6222 = vunpack.c.h.b16 %v5449
        %v6223 = vunpack.c.l.b16 %v5450
        %v6224 = vunpack.c.h.b16 %v5450
        %v6225 = vunpack.c.l.b16 %v5451
        %v6226 = vunpack.c.h.b16 %v5451
        %v6227 = vunpack.c.l.b16 %v5452
        %v6228 = vunpack.c.h.b16 %v5452
        %v6229 = vunpack.c.l.b16 %v5453
        %v6230 = vunpack.c.h.b16 %v5453
        %v6231 = vunpack.c.l.b16 %v5454
        %v6232 = vunpack.c.h.b16 %v5454
        %v6233 = vunpack.c.l.b16 %v5455
        %v6234 = vunpack.c.h.b16 %v5455
        %v6235 = vunpack.c.l.b16 %v5456
        %v6236 = vunpack.c.h.b16 %v5456
        %v6237 = vunpack.c.l.b16 %v5457
        %v6238 = vunpack.c.h.b16 %v5457
        %v6239 = vunpack.c.l.b16 %v5458
        %v6240 = vunpack.c.h.b16 %v5458
        %v6241 = vunpack.c.l.b16 %v5459
        %v6242 = vunpack.c.h.b16 %v5459
        %v6243 = vunpack.c.l.b16 %v5460
        %v6244 = vunpack.c.h.b16 %v5460
        %v6245 = vunpack.c.l.b16 %v5461
        %v6246 = vunpack.c.h.b16 %v5461
        %v6247 = vunpack.c.l.b16 %v5462
        %v6248 = vunpack.c.h.b16 %v5462
        %v6249 = vunpack.c.l.b16 %v5463
        %v6250 = vunpack.c.h.b16 %v5463
        %v6251 = vunpack.c.l.b16 %v5464
        %v6252 = vunpack.c.h.b16 %v5464
        %v6253 = vunpack.c.l.b16 %v5465
        %v6254 = vunpack.c.h.b16 %v5465
        %v6255 = vunpack.c.l.b16 %v5466
        %v6256 = vunpack.c.h.b16 %v5466
        %v6257 = vpack.c.b16 %v5749, %v5745
        %v6258 = vpack.c.b16 %v5750, %v5746
        %v6259 = vpack.c.b16 %v5751, %v5747
        %v6260 = vpack.c.b16 %v5752, %v5748
        %v6261 = vpack.c.b16 %v5757, %v5753
        %v6262 = vpack.c.b16 %v5758, %v5754
        %v6263 = vpack.c.b16 %v5759, %v5755
        %v6264 = vpack.c.b16 %v5760, %v5756
        %v6265 = vpack.c.b16 %v5765, %v5761
        %v6266 = vpack.c.b16 %v5766, %v5762
        %v6267 = vpack.c.b16 %v5767, %v5763
        %v6268 = vpack.c.b16 %v5768, %v5764
        %v6269 = vpack.c.b16 %v5773, %v5769
        %v6270 = vpack.c.b16 %v5774, %v5770
        %v6271 = vpack.c.b16 %v5775, %v5771
        %v6272 = vpack.c.b16 %v5776, %v5772
        %v6273 = vpack.c.b16 %v5781, %v5777
        %v6274 = vpack.c.b16 %v5782, %v5778
        %v6275 = vpack.c.b16 %v5783, %v5779
        %v6276 = vpack.c.b16 %v5784, %v5780
        %v6277 = vpack.c.b16 %v5789, %v5785
        %v6278 = vpack.c.b16 %v5790, %v5786
        %v6279 = vpack.c.b16 %v5791, %v5787
        %v6280 = vpack.c.b16 %v5792, %v5788
        %v6281 = vpack.c.b16 %v5797, %v5793
        %v6282 = vpack.c.b16 %v5798, %v5794
        %v6283 = vpack.c.b16 %v5799, %v5795
        %v6284 = vpack.c.b16 %v5800, %v5796
        %v6285 = vpack.c.b16 %v5805, %v5801
        %v6286 = vpack.c.b16 %v5806, %v5802
        %v6287 = vpack.c.b16 %v5807, %v5803
        %v6288 = vpack.c.b16 %v5808, %v5804
        %v6289 = vpack.c.b16 %v5813, %v5809
        %v6290 = vpack.c.b16 %v5814, %v5810
        %v6291 = vpack.c.b16 %v5815, %v5811
        %v6292 = vpack.c.b16 %v5816, %v5812
        %v6293 = vpack.c.b16 %v5821, %v5817
        %v6294 = vpack.c.b16 %v5822, %v5818
        %v6295 = vpack.c.b16 %v5823, %v5819
        %v6296 = vpack.c.b16 %v5824, %v5820
        %v6297 = vpack.c.b16 %v5829, %v5825
        %v6298 = vpack.c.b16 %v5830, %v5826
        %v6299 = vpack.c.b16 %v5831, %v5827
        %v6300 = vpack.c.b16 %v5832, %v5828
        %v6301 = vpack.c.b16 %v5837, %v5833
        %v6302 = vpack.c.b16 %v5838, %v5834
        %v6303 = vpack.c.b16 %v5839, %v5835
        %v6304 = vpack.c.b16 %v5840, %v5836
        %v6305 = vpack.c.b16 %v5845, %v5841
        %v6306 = vpack.c.b16 %v5846, %v5842
        %v6307 = vpack.c.b16 %v5847, %v5843
        %v6308 = vpack.c.b16 %v5848, %v5844
        %v6309 = vpack.c.b16 %v5853, %v5849
        %v6310 = vpack.c.b16 %v5854, %v5850
        %v6311 = vpack.c.b16 %v5855, %v5851
        %v6312 = vpack.c.b16 %v5856, %v5852
        %v6313 = vpack.c.b16 %v5861, %v5857
        %v6314 = vpack.c.b16 %v5862, %v5858
        %v6315 = vpack.c.b16 %v5863, %v5859
        %v6316 = vpack.c.b16 %v5864, %v5860
        %v6317 = vpack.c.b16 %v5869, %v5865
        %v6318 = vpack.c.b16 %v5870, %v5866
        %v6319 = vpack.c.b16 %v5871, %v5867
        %v6320 = vpack.c.b16 %v5872, %v5868
        %v6321 = vpack.c.b16 %v5877, %v5873
        %v6322 = vpack.c.b16 %v5878, %v5874
        %v6323 = vpack.c.b16 %v5879, %v5875
        %v6324 = vpack.c.b16 %v5880, %v5876
        %v6325 = vpack.c.b16 %v5885, %v5881
        %v6326 = vpack.c.b16 %v5886, %v5882
        %v6327 = vpack.c.b16 %v5887, %v5883
        %v6328 = vpack.c.b16 %v5888, %v5884
        %v6329 = vpack.c.b16 %v5893, %v5889
        %v6330 = vpack.c.b16 %v5894, %v5890
        %v6331 = vpack.c.b16 %v5895, %v5891
        %v6332 = vpack.c.b16 %v5896, %v5892
        %v6333 = vpack.c.b16 %v5901, %v5897
        %v6334 = vpack.c.b16 %v5902, %v5898
        %v6335 = vpack.c.b16 %v5903, %v5899
        %v6336 = vpack.c.b16 %v5904, %v5900
        %v6337 = vpack.c.b16 %v5909, %v5905
        %v6338 = vpack.c.b16 %v5910, %v5906
        %v6339 = vpack.c.b16 %v5911, %v5907
        %v6340 = vpack.c.b16 %v5912, %v5908
        %v6341 = vpack.c.b16 %v5917, %v5913
        %v6342 = vpack.c.b16 %v5918, %v5914
        %v6343 = vpack.c.b16 %v5919, %v5915
        %v6344 = vpack.c.b16 %v5920, %v5916
        %v6345 = vpack.c.b16 %v5925, %v5921
        %v6346 = vpack.c.b16 %v5926, %v5922
        %v6347 = vpack.c.b16 %v5927, %v5923
        %v6348 = vpack.c.b16 %v5928, %v5924
        %v6349 = vpack.c.b16 %v5933, %v5929
        %v6350 = vpack.c.b16 %v5934, %v5930
        %v6351 = vpack.c.b16 %v5935, %v5931
        %v6352 = vpack.c.b16 %v5936, %v5932
        %v6353 = vpack.c.b16 %v5941, %v5937
        %v6354 = vpack.c.b16 %v5942, %v5938
        %v6355 = vpack.c.b16 %v5943, %v5939
        %v6356 = vpack.c.b16 %v5944, %v5940
        %v6357 = vpack.c.b16 %v5949, %v5945
        %v6358 = vpack.c.b16 %v5950, %v5946
        %v6359 = vpack.c.b16 %v5951, %v5947
        %v6360 = vpack.c.b16 %v5952, %v5948
        %v6361 = vpack.c.b16 %v5957, %v5953
        %v6362 = vpack.c.b16 %v5958, %v5954
        %v6363 = vpack.c.b16 %v5959, %v5955
        %v6364 = vpack.c.b16 %v5960, %v5956
        %v6365 = vpack.c.b16 %v5965, %v5961
        %v6366 = vpack.c.b16 %v5966, %v5962
        %v6367 = vpack.c.b16 %v5967, %v5963
        %v6368 = vpack.c.b16 %v5968, %v5964
        %v6369 = vpack.c.b16 %v5973, %v5969
        %v6370 = vpack.c.b16 %v5974, %v5970
        %v6371 = vpack.c.b16 %v5975, %v5971
        %v6372 = vpack.c.b16 %v5976, %v5972
        %v6373 = vpack.c.b16 %v5981, %v5977
        %v6374 = vpack.c.b16 %v5982, %v5978
        %v6375 = vpack.c.b16 %v5983, %v5979
        %v6376 = vpack.c.b16 %v5984, %v5980
        %v6377 = vpack.c.b16 %v5989, %v5985
        %v6378 = vpack.c.b16 %v5990, %v5986
        %v6379 = vpack.c.b16 %v5991, %v5987
        %v6380 = vpack.c.b16 %v5992, %v5988
        %v6381 = vpack.c.b16 %v5997, %v5993
        %v6382 = vpack.c.b16 %v5998, %v5994
        %v6383 = vpack.c.b16 %v5999, %v5995
        %v6384 = vpack.c.b16 %v6000, %v5996
        %v6385 = vpack.c.b16 %v6005, %v6001
        %v6386 = vpack.c.b16 %v6006, %v6002
        %v6387 = vpack.c.b16 %v6007, %v6003
        %v6388 = vpack.c.b16 %v6008, %v6004
        %v6389 = vpack.c.b16 %v6013, %v6009
        %v6390 = vpack.c.b16 %v6014, %v6010
        %v6391 = vpack.c.b16 %v6015, %v6011
        %v6392 = vpack.c.b16 %v6016, %v6012
        %v6393 = vpack.c.b16 %v6021, %v6017
        %v6394 = vpack.c.b16 %v6022, %v6018
        %v6395 = vpack.c.b16 %v6023, %v6019
        %v6396 = vpack.c.b16 %v6024, %v6020
        %v6397 = vpack.c.b16 %v6029, %v6025
        %v6398 = vpack.c.b16 %v6030, %v6026
        %v6399 = vpack.c.b16 %v6031, %v6027
        %v6400 = vpack.c.b16 %v6032, %v6028
        %v6401 = vpack.c.b16 %v6037, %v6033
        %v6402 = vpack.c.b16 %v6038, %v6034
        %v6403 = vpack.c.b16 %v6039, %v6035
        %v6404 = vpack.c.b16 %v6040, %v6036
        %v6405 = vpack.c.b16 %v6045, %v6041
        %v6406 = vpack.c.b16 %v6046, %v6042
        %v6407 = vpack.c.b16 %v6047, %v6043
        %v6408 = vpack.c.b16 %v6048, %v6044
        %v6409 = vpack.c.b16 %v6053, %v6049
        %v6410 = vpack.c.b16 %v6054, %v6050
        %v6411 = vpack.c.b16 %v6055, %v6051
        %v6412 = vpack.c.b16 %v6056, %v6052
        %v6413 = vpack.c.b16 %v6061, %v6057
        %v6414 = vpack.c.b16 %v6062, %v6058
        %v6415 = vpack.c.b16 %v6063, %v6059
        %v6416 = vpack.c.b16 %v6064, %v6060
        %v6417 = vpack.c.b16 %v6069, %v6065
        %v6418 = vpack.c.b16 %v6070, %v6066
        %v6419 = vpack.c.b16 %v6071, %v6067
        %v6420 = vpack.c.b16 %v6072, %v6068
        %v6421 = vpack.c.b16 %v6077, %v6073
        %v6422 = vpack.c.b16 %v6078, %v6074
        %v6423 = vpack.c.b16 %v6079, %v6075
        %v6424 = vpack.c.b16 %v6080, %v6076
        %v6425 = vpack.c.b16 %v6085, %v6081
        %v6426 = vpack.c.b16 %v6086, %v6082
        %v6427 = vpack.c.b16 %v6087, %v6083
        %v6428 = vpack.c.b16 %v6088, %v6084
        %v6429 = vpack.c.b16 %v6093, %v6089
        %v6430 = vpack.c.b16 %v6094, %v6090
        %v6431 = vpack.c.b16 %v6095, %v6091
        %v6432 = vpack.c.b16 %v6096, %v6092
        %v6433 = vpack.c.b16 %v6101, %v6097
        %v6434 = vpack.c.b16 %v6102, %v6098
        %v6435 = vpack.c.b16 %v6103, %v6099
        %v6436 = vpack.c.b16 %v6104, %v6100
        %v6437 = vpack.c.b16 %v6109, %v6105
        %v6438 = vpack.c.b16 %v6110, %v6106
        %v6439 = vpack.c.b16 %v6111, %v6107
        %v6440 = vpack.c.b16 %v6112, %v6108
        %v6441 = vpack.c.b16 %v6117, %v6113
        %v6442 = vpack.c.b16 %v6118, %v6114
        %v6443 = vpack.c.b16 %v6119, %v6115
        %v6444 = vpack.c.b16 %v6120, %v6116
        %v6445 = vpack.c.b16 %v6125, %v6121
        %v6446 = vpack.c.b16 %v6126, %v6122
        %v6447 = vpack.c.b16 %v6127, %v6123
        %v6448 = vpack.c.b16 %v6128, %v6124
        %v6449 = vpack.c.b16 %v6133, %v6129
        %v6450 = vpack.c.b16 %v6134, %v6130
        %v6451 = vpack.c.b16 %v6135, %v6131
        %v6452 = vpack.c.b16 %v6136, %v6132
        %v6453 = vpack.c.b16 %v6141, %v6137
        %v6454 = vpack.c.b16 %v6142, %v6138
        %v6455 = vpack.c.b16 %v6143, %v6139
        %v6456 = vpack.c.b16 %v6144, %v6140
        %v6457 = vpack.c.b16 %v6149, %v6145
        %v6458 = vpack.c.b16 %v6150, %v6146
        %v6459 = vpack.c.b16 %v6151, %v6147
        %v6460 = vpack.c.b16 %v6152, %v6148
        %v6461 = vpack.c.b16 %v6157, %v6153
        %v6462 = vpack.c.b16 %v6158, %v6154
        %v6463 = vpack.c.b16 %v6159, %v6155
        %v6464 = vpack.c.b16 %v6160, %v6156
        %v6465 = vpack.c.b16 %v6165, %v6161
        %v6466 = vpack.c.b16 %v6166, %v6162
        %v6467 = vpack.c.b16 %v6167, %v6163
        %v6468 = vpack.c.b16 %v6168, %v6164
        %v6469 = vpack.c.b16 %v6173, %v6169
        %v6470 = vpack.c.b16 %v6174, %v6170
        %v6471 = vpack.c.b16 %v6175, %v6171
        %v6472 = vpack.c.b16 %v6176, %v6172
        %v6473 = vpack.c.b16 %v6181, %v6177
        %v6474 = vpack.c.b16 %v6182, %v6178
        %v6475 = vpack.c.b16 %v6183, %v6179
        %v6476 = vpack.c.b16 %v6184, %v6180
        %v6477 = vpack.c.b16 %v6189, %v6185
        %v6478 = vpack.c.b16 %v6190, %v6186
        %v6479 = vpack.c.b16 %v6191, %v6187
        %v6480 = vpack.c.b16 %v6192, %v6188
        %v6481 = vpack.c.b16 %v6197, %v6193
        %v6482 = vpack.c.b16 %v6198, %v6194
        %v6483 = vpack.c.b16 %v6199, %v6195
        %v6484 = vpack.c.b16 %v6200, %v6196
        %v6485 = vpack.c.b16 %v6205, %v6201
        %v6486 = vpack.c.b16 %v6206, %v6202
        %v6487 = vpack.c.b16 %v6207, %v6203
        %v6488 = vpack.c.b16 %v6208, %v6204
        %v6489 = vpack.c.b16 %v6213, %v6209
        %v6490 = vpack.c.b16 %v6214, %v6210
        %v6491 = vpack.c.b16 %v6215, %v6211
        %v6492 = vpack.c.b16 %v6216, %v6212
        %v6493 = vpack.c.b16 %v6221, %v6217
        %v6494 = vpack.c.b16 %v6222, %v6218
        %v6495 = vpack.c.b16 %v6223, %v6219
        %v6496 = vpack.c.b16 %v6224, %v6220
        %v6497 = vpack.c.b16 %v6229, %v6225
        %v6498 = vpack.c.b16 %v6230, %v6226
        %v6499 = vpack.c.b16 %v6231, %v6227
        %v6500 = vpack.c.b16 %v6232, %v6228
        %v6501 = vpack.c.b16 %v6237, %v6233
        %v6502 = vpack.c.b16 %v6238, %v6234
        %v6503 = vpack.c.b16 %v6239, %v6235
        %v6504 = vpack.c.b16 %v6240, %v6236
        %v6505 = vpack.c.b16 %v6245, %v6241
        %v6506 = vpack.c.b16 %v6246, %v6242
        %v6507 = vpack.c.b16 %v6247, %v6243
        %v6508 = vpack.c.b16 %v6248, %v6244
        %v6509 = vpack.c.b16 %v6253, %v6249
        %v6510 = vpack.c.b16 %v6254, %v6250
        %v6511 = vpack.c.b16 %v6255, %v6251
        %v6512 = vpack.c.b16 %v6256, %v6252
        %6769 = vmatprep.subr.bf16.mxu0 %v6286
        %6770 = vmatpush1.bf16.msra.mxu0 %v6285
        %6771 = vmatprep.subr.bf16.mxu0 %v6282
        %6772 = vmatpush1.bf16.msra.mxu0 %v6281
        %6773 = vmatprep.subr.bf16.mxu0 %v6278
        %6774 = vmatpush1.bf16.msra.mxu0 %v6277
        %6775 = vmatprep.subr.bf16.mxu0 %v6274
        %6776 = vmatpush1.bf16.msra.mxu0 %v6273
        %6777 = vmatprep.subr.bf16.mxu0 %v6270
        %6778 = vmatpush1.bf16.msra.mxu0 %v6269
        %6779 = vmatprep.subr.bf16.mxu0 %v6266
        %6780 = vmatpush1.bf16.msra.mxu0 %v6265
        %6781 = vmatprep.subr.bf16.mxu0 %v6262
        %6782 = vmatpush1.bf16.msra.mxu0 %v6261
        %6783 = vmatprep.subr.bf16.mxu0 %v6258
        %6784 = vmatpush1.bf16.msra.mxu0 %v6257
        %6785 = vmatprep.subr.bf16.mxu0 %v6318
        %6786 = vmatpush2.bf16.msra.mxu0 %v6317
        %6787 = vmatprep.subr.bf16.mxu0 %v6314
        %6788 = vmatpush2.bf16.msra.mxu0 %v6313
        %6789 = vmatprep.subr.bf16.mxu0 %v6310
        %6790 = vmatpush2.bf16.msra.mxu0 %v6309
        %6791 = vmatprep.subr.bf16.mxu0 %v6306
        %6792 = vmatpush2.bf16.msra.mxu0 %v6305
        %6793 = vmatprep.subr.bf16.mxu0 %v6302
        %6794 = vmatpush2.bf16.msra.mxu0 %v6301
        %6795 = vmatprep.subr.bf16.mxu0 %v6298
        %6796 = vmatpush2.bf16.msra.mxu0 %v6297
        %6797 = vmatprep.subr.bf16.mxu0 %v6294
        %6798 = vmatpush2.bf16.msra.mxu0 %v6293
        %6799 = vmatprep.subr.bf16.mxu0 %v6290
        %6800 = vmatpush2.bf16.msra.mxu0 %v6289
        %6801 = vmatprep.mubr.bf16.mxu0 %v5148
        %6802 = vmatmul.mubr.bf16.gmra.mxu0 %v5147
        %v6803 = vpop.f32.mrf.mxu0
        %v6804 = vadd.f32 %v5472, %v6803
        %v6805 = vpop.f32.mrf.mxu0
        %v6806 = vadd.f32 %v5476, %v6805
        %v6807 = vpop.f32.mrf.mxu0
        %v6808 = vadd.f32 %v5472, %v6807
        %v6809 = vpop.f32.mrf.mxu0
        %v6810 = vadd.f32 %v5476, %v6809
        %6811 = vmatprep.mubr.bf16.mxu0 %v5156
        %6812 = vmatmul.mubr.bf16.gmra.mxu0 %v5155
        %v6813 = vpop.f32.mrf.mxu0
        %v6814 = vadd.f32 %v5472, %v6813
        %v6815 = vpop.f32.mrf.mxu0
        %v6816 = vadd.f32 %v5476, %v6815
        %v6817 = vpop.f32.mrf.mxu0
        %v6818 = vadd.f32 %v5472, %v6817
        %v6819 = vpop.f32.mrf.mxu0
        %v6820 = vadd.f32 %v5476, %v6819
        %6821 = vmatprep.mubr.bf16.mxu0 %v5164
        %6822 = vmatmul.mubr.bf16.gmra.mxu0 %v5163
        %v6823 = vpop.f32.mrf.mxu0
        %v6824 = vadd.f32 %v5472, %v6823
        %v6825 = vpop.f32.mrf.mxu0
        %v6826 = vadd.f32 %v5476, %v6825
        %v6827 = vpop.f32.mrf.mxu0
        %v6828 = vadd.f32 %v5472, %v6827
        %v6829 = vpop.f32.mrf.mxu0
        %v6830 = vadd.f32 %v5476, %v6829
        %6831 = vmatprep.mubr.bf16.mxu0 %v5172
        %6832 = vmatmul.mubr.bf16.gmra.mxu0 %v5171
        %v6833 = vpop.f32.mrf.mxu0
        %v6834 = vadd.f32 %v5472, %v6833
        %v6835 = vpop.f32.mrf.mxu0
        %v6836 = vadd.f32 %v5476, %v6835
        %v6837 = vpop.f32.mrf.mxu0
        %v6838 = vadd.f32 %v5472, %v6837
        %v6839 = vpop.f32.mrf.mxu0
        %v6840 = vadd.f32 %v5476, %v6839
        %6841 = vmatprep.mubr.bf16.mxu0 %v5180
        %6842 = vmatmul.mubr.bf16.gmra.mxu0 %v5179
        %v6843 = vpop.f32.mrf.mxu0
        %v6844 = vadd.f32 %v5472, %v6843
        %v6845 = vpop.f32.mrf.mxu0
        %v6846 = vadd.f32 %v5476, %v6845
        %v6847 = vpop.f32.mrf.mxu0
        %v6848 = vadd.f32 %v5472, %v6847
        %v6849 = vpop.f32.mrf.mxu0
        %v6850 = vadd.f32 %v5476, %v6849
        %6851 = vmatprep.mubr.bf16.mxu0 %v5188
        %6852 = vmatmul.mubr.bf16.gmra.mxu0 %v5187
        %v6853 = vpop.f32.mrf.mxu0
        %v6854 = vadd.f32 %v5472, %v6853
        %v6855 = vpop.f32.mrf.mxu0
        %v6856 = vadd.f32 %v5476, %v6855
        %v6857 = vpop.f32.mrf.mxu0
        %v6858 = vadd.f32 %v5472, %v6857
        %v6859 = vpop.f32.mrf.mxu0
        %v6860 = vadd.f32 %v5476, %v6859
        %6861 = vmatprep.mubr.bf16.mxu0 %v5196
        %6862 = vmatmul.mubr.bf16.gmra.mxu0 %v5195
        %v6863 = vpop.f32.mrf.mxu0
        %v6864 = vadd.f32 %v5472, %v6863
        %v6865 = vpop.f32.mrf.mxu0
        %v6866 = vadd.f32 %v5476, %v6865
        %v6867 = vpop.f32.mrf.mxu0
        %v6868 = vadd.f32 %v5472, %v6867
        %v6869 = vpop.f32.mrf.mxu0
        %v6870 = vadd.f32 %v5476, %v6869
        %6871 = vmatprep.mubr.bf16.mxu0 %v5204
        %6872 = vmatmul.mubr.bf16.gmra.mxu0 %v5203
        %v6873 = vpop.f32.mrf.mxu0
        %v6874 = vadd.f32 %v5472, %v6873
        %v6875 = vpop.f32.mrf.mxu0
        %v6876 = vadd.f32 %v5476, %v6875
        %v6877 = vpop.f32.mrf.mxu0
        %v6878 = vadd.f32 %v5472, %v6877
        %v6879 = vpop.f32.mrf.mxu0
        %v6880 = vadd.f32 %v5476, %v6879
        %6881 = vdwg.mxu0
        %6882 = vmatprep.subr.bf16.mxu0 %v6350
        %6883 = vmatpush1.bf16.msra.mxu0 %v6349
        %6884 = vmatprep.subr.bf16.mxu0 %v6346
        %6885 = vmatpush1.bf16.msra.mxu0 %v6345
        %6886 = vmatprep.subr.bf16.mxu0 %v6342
        %6887 = vmatpush1.bf16.msra.mxu0 %v6341
        %6888 = vmatprep.subr.bf16.mxu0 %v6338
        %6889 = vmatpush1.bf16.msra.mxu0 %v6337
        %6890 = vmatprep.subr.bf16.mxu0 %v6334
        %6891 = vmatpush1.bf16.msra.mxu0 %v6333
        %6892 = vmatprep.subr.bf16.mxu0 %v6330
        %6893 = vmatpush1.bf16.msra.mxu0 %v6329
        %6894 = vmatprep.subr.bf16.mxu0 %v6326
        %6895 = vmatpush1.bf16.msra.mxu0 %v6325
        %6896 = vmatprep.subr.bf16.mxu0 %v6322
        %6897 = vmatpush1.bf16.msra.mxu0 %v6321
        %6898 = vmatprep.subr.bf16.mxu0 %v6382
        %6899 = vmatpush2.bf16.msra.mxu0 %v6381
        %6900 = vmatprep.subr.bf16.mxu0 %v6378
        %6901 = vmatpush2.bf16.msra.mxu0 %v6377
        %6902 = vmatprep.subr.bf16.mxu0 %v6374
        %6903 = vmatpush2.bf16.msra.mxu0 %v6373
        %6904 = vmatprep.subr.bf16.mxu0 %v6370
        %6905 = vmatpush2.bf16.msra.mxu0 %v6369
        %6906 = vmatprep.subr.bf16.mxu0 %v6366
        %6907 = vmatpush2.bf16.msra.mxu0 %v6365
        %6908 = vmatprep.subr.bf16.mxu0 %v6362
        %6909 = vmatpush2.bf16.msra.mxu0 %v6361
        %6910 = vmatprep.subr.bf16.mxu0 %v6358
        %6911 = vmatpush2.bf16.msra.mxu0 %v6357
        %6912 = vmatprep.subr.bf16.mxu0 %v6354
        %6913 = vmatpush2.bf16.msra.mxu0 %v6353
        %6914 = vmatprep.mubr.bf16.mxu0 %v5150
        %6915 = vmatmul.mubr.bf16.gmra.mxu0 %v5149
        %v6916 = vpop.f32.mrf.mxu0
        %v6917 = vadd.f32 %v6804, %v6916
        %v6918 = vpop.f32.mrf.mxu0
        %v6919 = vadd.f32 %v6806, %v6918
        %v6920 = vpop.f32.mrf.mxu0
        %v6921 = vadd.f32 %v6808, %v6920
        %v6922 = vpop.f32.mrf.mxu0
        %v6923 = vadd.f32 %v6810, %v6922
        %6924 = vmatprep.mubr.bf16.mxu0 %v5158
        %6925 = vmatmul.mubr.bf16.gmra.mxu0 %v5157
        %v6926 = vpop.f32.mrf.mxu0
        %v6927 = vadd.f32 %v6814, %v6926
        %v6928 = vpop.f32.mrf.mxu0
        %v6929 = vadd.f32 %v6816, %v6928
        %v6930 = vpop.f32.mrf.mxu0
        %v6931 = vadd.f32 %v6818, %v6930
        %v6932 = vpop.f32.mrf.mxu0
        %v6933 = vadd.f32 %v6820, %v6932
        %6934 = vmatprep.mubr.bf16.mxu0 %v5166
        %6935 = vmatmul.mubr.bf16.gmra.mxu0 %v5165
        %v6936 = vpop.f32.mrf.mxu0
        %v6937 = vadd.f32 %v6824, %v6936
        %v6938 = vpop.f32.mrf.mxu0
        %v6939 = vadd.f32 %v6826, %v6938
        %v6940 = vpop.f32.mrf.mxu0
        %v6941 = vadd.f32 %v6828, %v6940
        %v6942 = vpop.f32.mrf.mxu0
        %v6943 = vadd.f32 %v6830, %v6942
        %6944 = vmatprep.mubr.bf16.mxu0 %v5174
        %6945 = vmatmul.mubr.bf16.gmra.mxu0 %v5173
        %v6946 = vpop.f32.mrf.mxu0
        %v6947 = vadd.f32 %v6834, %v6946
        %v6948 = vpop.f32.mrf.mxu0
        %v6949 = vadd.f32 %v6836, %v6948
        %v6950 = vpop.f32.mrf.mxu0
        %v6951 = vadd.f32 %v6838, %v6950
        %v6952 = vpop.f32.mrf.mxu0
        %v6953 = vadd.f32 %v6840, %v6952
        %6954 = vmatprep.mubr.bf16.mxu0 %v5182
        %6955 = vmatmul.mubr.bf16.gmra.mxu0 %v5181
        %v6956 = vpop.f32.mrf.mxu0
        %v6957 = vadd.f32 %v6844, %v6956
        %v6958 = vpop.f32.mrf.mxu0
        %v6959 = vadd.f32 %v6846, %v6958
        %v6960 = vpop.f32.mrf.mxu0
        %v6961 = vadd.f32 %v6848, %v6960
        %v6962 = vpop.f32.mrf.mxu0
        %v6963 = vadd.f32 %v6850, %v6962
        %6964 = vmatprep.mubr.bf16.mxu0 %v5190
        %6965 = vmatmul.mubr.bf16.gmra.mxu0 %v5189
        %v6966 = vpop.f32.mrf.mxu0
        %v6967 = vadd.f32 %v6854, %v6966
        %v6968 = vpop.f32.mrf.mxu0
        %v6969 = vadd.f32 %v6856, %v6968
        %v6970 = vpop.f32.mrf.mxu0
        %v6971 = vadd.f32 %v6858, %v6970
        %v6972 = vpop.f32.mrf.mxu0
        %v6973 = vadd.f32 %v6860, %v6972
        %6974 = vmatprep.mubr.bf16.mxu0 %v5198
        %6975 = vmatmul.mubr.bf16.gmra.mxu0 %v5197
        %v6976 = vpop.f32.mrf.mxu0
        %v6977 = vadd.f32 %v6864, %v6976
        %v6978 = vpop.f32.mrf.mxu0
        %v6979 = vadd.f32 %v6866, %v6978
        %v6980 = vpop.f32.mrf.mxu0
        %v6981 = vadd.f32 %v6868, %v6980
        %v6982 = vpop.f32.mrf.mxu0
        %v6983 = vadd.f32 %v6870, %v6982
        %6984 = vmatprep.mubr.bf16.mxu0 %v5206
        %6985 = vmatmul.mubr.bf16.gmra.mxu0 %v5205
        %v6986 = vpop.f32.mrf.mxu0
        %v6987 = vadd.f32 %v6874, %v6986
        %v6988 = vpop.f32.mrf.mxu0
        %v6989 = vadd.f32 %v6876, %v6988
        %v6990 = vpop.f32.mrf.mxu0
        %v6991 = vadd.f32 %v6878, %v6990
        %v6992 = vpop.f32.mrf.mxu0
        %v6993 = vadd.f32 %v6880, %v6992
        %6994 = vdwg.mxu0
        %6995 = vmatprep.subr.bf16.mxu0 %v6414
        %6996 = vmatpush1.bf16.msra.mxu0 %v6413
        %6997 = vmatprep.subr.bf16.mxu0 %v6410
        %6998 = vmatpush1.bf16.msra.mxu0 %v6409
        %6999 = vmatprep.subr.bf16.mxu0 %v6406
        %7000 = vmatpush1.bf16.msra.mxu0 %v6405
        %7001 = vmatprep.subr.bf16.mxu0 %v6402
        %7002 = vmatpush1.bf16.msra.mxu0 %v6401
        %7003 = vmatprep.subr.bf16.mxu0 %v6398
        %7004 = vmatpush1.bf16.msra.mxu0 %v6397
        %7005 = vmatprep.subr.bf16.mxu0 %v6394
        %7006 = vmatpush1.bf16.msra.mxu0 %v6393
        %7007 = vmatprep.subr.bf16.mxu0 %v6390
        %7008 = vmatpush1.bf16.msra.mxu0 %v6389
        %7009 = vmatprep.subr.bf16.mxu0 %v6386
        %7010 = vmatpush1.bf16.msra.mxu0 %v6385
        %7011 = vmatprep.subr.bf16.mxu0 %v6446
        %7012 = vmatpush2.bf16.msra.mxu0 %v6445
        %7013 = vmatprep.subr.bf16.mxu0 %v6442
        %7014 = vmatpush2.bf16.msra.mxu0 %v6441
        %7015 = vmatprep.subr.bf16.mxu0 %v6438
        %7016 = vmatpush2.bf16.msra.mxu0 %v6437
        %7017 = vmatprep.subr.bf16.mxu0 %v6434
        %7018 = vmatpush2.bf16.msra.mxu0 %v6433
        %7019 = vmatprep.subr.bf16.mxu0 %v6430
        %7020 = vmatpush2.bf16.msra.mxu0 %v6429
        %7021 = vmatprep.subr.bf16.mxu0 %v6426
        %7022 = vmatpush2.bf16.msra.mxu0 %v6425
        %7023 = vmatprep.subr.bf16.mxu0 %v6422
        %7024 = vmatpush2.bf16.msra.mxu0 %v6421
        %7025 = vmatprep.subr.bf16.mxu0 %v6418
        %7026 = vmatpush2.bf16.msra.mxu0 %v6417
        %7027 = vmatprep.mubr.bf16.mxu0 %v5152
        %7028 = vmatmul.mubr.bf16.gmra.mxu0 %v5151
        %v7029 = vpop.f32.mrf.mxu0
        %v7030 = vadd.f32 %v6917, %v7029
        %v7031 = vpop.f32.mrf.mxu0
        %v7032 = vadd.f32 %v6919, %v7031
        %v7033 = vpop.f32.mrf.mxu0
        %v7034 = vadd.f32 %v6921, %v7033
        %v7035 = vpop.f32.mrf.mxu0
        %v7036 = vadd.f32 %v6923, %v7035
        %7037 = vmatprep.mubr.bf16.mxu0 %v5160
        %7038 = vmatmul.mubr.bf16.gmra.mxu0 %v5159
        %v7039 = vpop.f32.mrf.mxu0
        %v7040 = vadd.f32 %v6927, %v7039
        %v7041 = vpop.f32.mrf.mxu0
        %v7042 = vadd.f32 %v6929, %v7041
        %v7043 = vpop.f32.mrf.mxu0
        %v7044 = vadd.f32 %v6931, %v7043
        %v7045 = vpop.f32.mrf.mxu0
        %v7046 = vadd.f32 %v6933, %v7045
        %7047 = vmatprep.mubr.bf16.mxu0 %v5168
        %7048 = vmatmul.mubr.bf16.gmra.mxu0 %v5167
        %v7049 = vpop.f32.mrf.mxu0
        %v7050 = vadd.f32 %v6937, %v7049
        %v7051 = vpop.f32.mrf.mxu0
        %v7052 = vadd.f32 %v6939, %v7051
        %v7053 = vpop.f32.mrf.mxu0
        %v7054 = vadd.f32 %v6941, %v7053
        %v7055 = vpop.f32.mrf.mxu0
        %v7056 = vadd.f32 %v6943, %v7055
        %7057 = vmatprep.mubr.bf16.mxu0 %v5176
        %7058 = vmatmul.mubr.bf16.gmra.mxu0 %v5175
        %v7059 = vpop.f32.mrf.mxu0
        %v7060 = vadd.f32 %v6947, %v7059
        %v7061 = vpop.f32.mrf.mxu0
        %v7062 = vadd.f32 %v6949, %v7061
        %v7063 = vpop.f32.mrf.mxu0
        %v7064 = vadd.f32 %v6951, %v7063
        %v7065 = vpop.f32.mrf.mxu0
        %v7066 = vadd.f32 %v6953, %v7065
        %7067 = vmatprep.mubr.bf16.mxu0 %v5184
        %7068 = vmatmul.mubr.bf16.gmra.mxu0 %v5183
        %v7069 = vpop.f32.mrf.mxu0
        %v7070 = vadd.f32 %v6957, %v7069
        %v7071 = vpop.f32.mrf.mxu0
        %v7072 = vadd.f32 %v6959, %v7071
        %v7073 = vpop.f32.mrf.mxu0
        %v7074 = vadd.f32 %v6961, %v7073
        %v7075 = vpop.f32.mrf.mxu0
        %v7076 = vadd.f32 %v6963, %v7075
        %7077 = vmatprep.mubr.bf16.mxu0 %v5192
        %7078 = vmatmul.mubr.bf16.gmra.mxu0 %v5191
        %v7079 = vpop.f32.mrf.mxu0
        %v7080 = vadd.f32 %v6967, %v7079
        %v7081 = vpop.f32.mrf.mxu0
        %v7082 = vadd.f32 %v6969, %v7081
        %v7083 = vpop.f32.mrf.mxu0
        %v7084 = vadd.f32 %v6971, %v7083
        %v7085 = vpop.f32.mrf.mxu0
        %v7086 = vadd.f32 %v6973, %v7085
        %7087 = vmatprep.mubr.bf16.mxu0 %v5200
        %7088 = vmatmul.mubr.bf16.gmra.mxu0 %v5199
        %v7089 = vpop.f32.mrf.mxu0
        %v7090 = vadd.f32 %v6977, %v7089
        %v7091 = vpop.f32.mrf.mxu0
        %v7092 = vadd.f32 %v6979, %v7091
        %v7093 = vpop.f32.mrf.mxu0
        %v7094 = vadd.f32 %v6981, %v7093
        %v7095 = vpop.f32.mrf.mxu0
        %v7096 = vadd.f32 %v6983, %v7095
        %7097 = vmatprep.mubr.bf16.mxu0 %v5208
        %7098 = vmatmul.mubr.bf16.gmra.mxu0 %v5207
        %v7099 = vpop.f32.mrf.mxu0
        %v7100 = vadd.f32 %v6987, %v7099
        %v7101 = vpop.f32.mrf.mxu0
        %v7102 = vadd.f32 %v6989, %v7101
        %v7103 = vpop.f32.mrf.mxu0
        %v7104 = vadd.f32 %v6991, %v7103
        %v7105 = vpop.f32.mrf.mxu0
        %v7106 = vadd.f32 %v6993, %v7105
        %7107 = vdwg.mxu0
        %7108 = vmatprep.subr.bf16.mxu0 %v6478
        %7109 = vmatpush1.bf16.msra.mxu0 %v6477
        %7110 = vmatprep.subr.bf16.mxu0 %v6474
        %7111 = vmatpush1.bf16.msra.mxu0 %v6473
        %7112 = vmatprep.subr.bf16.mxu0 %v6470
        %7113 = vmatpush1.bf16.msra.mxu0 %v6469
        %7114 = vmatprep.subr.bf16.mxu0 %v6466
        %7115 = vmatpush1.bf16.msra.mxu0 %v6465
        %7116 = vmatprep.subr.bf16.mxu0 %v6462
        %7117 = vmatpush1.bf16.msra.mxu0 %v6461
        %7118 = vmatprep.subr.bf16.mxu0 %v6458
        %7119 = vmatpush1.bf16.msra.mxu0 %v6457
        %7120 = vmatprep.subr.bf16.mxu0 %v6454
        %7121 = vmatpush1.bf16.msra.mxu0 %v6453
        %7122 = vmatprep.subr.bf16.mxu0 %v6450
        %7123 = vmatpush1.bf16.msra.mxu0 %v6449
        %7124 = vmatprep.subr.bf16.mxu0 %v6510
        %7125 = vmatpush2.bf16.msra.mxu0 %v6509
        %7126 = vmatprep.subr.bf16.mxu0 %v6506
        %7127 = vmatpush2.bf16.msra.mxu0 %v6505
        %7128 = vmatprep.subr.bf16.mxu0 %v6502
        %7129 = vmatpush2.bf16.msra.mxu0 %v6501
        %7130 = vmatprep.subr.bf16.mxu0 %v6498
        %7131 = vmatpush2.bf16.msra.mxu0 %v6497
        %7132 = vmatprep.subr.bf16.mxu0 %v6494
        %7133 = vmatpush2.bf16.msra.mxu0 %v6493
        %7134 = vmatprep.subr.bf16.mxu0 %v6490
        %7135 = vmatpush2.bf16.msra.mxu0 %v6489
        %7136 = vmatprep.subr.bf16.mxu0 %v6486
        %7137 = vmatpush2.bf16.msra.mxu0 %v6485
        %7138 = vmatprep.subr.bf16.mxu0 %v6482
        %7139 = vmatpush2.bf16.msra.mxu0 %v6481
        %7140 = vmatprep.mubr.bf16.mxu0 %v5154
        %7141 = vmatmul.mubr.bf16.gmra.mxu0 %v5153
        %v7142 = vpop.f32.mrf.mxu0
        %v7143 = vadd.f32 %v7030, %v7142
        %v7144 = vpop.f32.mrf.mxu0
        %v7145 = vadd.f32 %v7032, %v7144
        %v7146 = vpop.f32.mrf.mxu0
        %v7147 = vadd.f32 %v7034, %v7146
        %v7148 = vpop.f32.mrf.mxu0
        %v7149 = vadd.f32 %v7036, %v7148
        %7150 = vmatprep.mubr.bf16.mxu0 %v5162
        %7151 = vmatmul.mubr.bf16.gmra.mxu0 %v5161
        %v7152 = vpop.f32.mrf.mxu0
        %v7153 = vadd.f32 %v7040, %v7152
        %v7154 = vpop.f32.mrf.mxu0
        %v7155 = vadd.f32 %v7042, %v7154
        %v7156 = vpop.f32.mrf.mxu0
        %v7157 = vadd.f32 %v7044, %v7156
        %v7158 = vpop.f32.mrf.mxu0
        %v7159 = vadd.f32 %v7046, %v7158
        %7160 = vmatprep.mubr.bf16.mxu0 %v5170
        %7161 = vmatmul.mubr.bf16.gmra.mxu0 %v5169
        %v7162 = vpop.f32.mrf.mxu0
        %v7163 = vadd.f32 %v7050, %v7162
        %v7164 = vpop.f32.mrf.mxu0
        %v7165 = vadd.f32 %v7052, %v7164
        %v7166 = vpop.f32.mrf.mxu0
        %v7167 = vadd.f32 %v7054, %v7166
        %v7168 = vpop.f32.mrf.mxu0
        %v7169 = vadd.f32 %v7056, %v7168
        %7170 = vmatprep.mubr.bf16.mxu0 %v5178
        %7171 = vmatmul.mubr.bf16.gmra.mxu0 %v5177
        %v7172 = vpop.f32.mrf.mxu0
        %v7173 = vadd.f32 %v7060, %v7172
        %v7174 = vpop.f32.mrf.mxu0
        %v7175 = vadd.f32 %v7062, %v7174
        %v7176 = vpop.f32.mrf.mxu0
        %v7177 = vadd.f32 %v7064, %v7176
        %v7178 = vpop.f32.mrf.mxu0
        %v7179 = vadd.f32 %v7066, %v7178
        %7180 = vmatprep.mubr.bf16.mxu0 %v5186
        %7181 = vmatmul.mubr.bf16.gmra.mxu0 %v5185
        %v7182 = vpop.f32.mrf.mxu0
        %v7183 = vadd.f32 %v7070, %v7182
        %v7184 = vpop.f32.mrf.mxu0
        %v7185 = vadd.f32 %v7072, %v7184
        %v7186 = vpop.f32.mrf.mxu0
        %v7187 = vadd.f32 %v7074, %v7186
        %v7188 = vpop.f32.mrf.mxu0
        %v7189 = vadd.f32 %v7076, %v7188
        %7190 = vmatprep.mubr.bf16.mxu0 %v5194
        %7191 = vmatmul.mubr.bf16.gmra.mxu0 %v5193
        %v7192 = vpop.f32.mrf.mxu0
        %v7193 = vadd.f32 %v7080, %v7192
        %v7194 = vpop.f32.mrf.mxu0
        %v7195 = vadd.f32 %v7082, %v7194
        %v7196 = vpop.f32.mrf.mxu0
        %v7197 = vadd.f32 %v7084, %v7196
        %v7198 = vpop.f32.mrf.mxu0
        %v7199 = vadd.f32 %v7086, %v7198
        %7200 = vmatprep.mubr.bf16.mxu0 %v5202
        %7201 = vmatmul.mubr.bf16.gmra.mxu0 %v5201
        %v7202 = vpop.f32.mrf.mxu0
        %v7203 = vadd.f32 %v7090, %v7202
        %v7204 = vpop.f32.mrf.mxu0
        %v7205 = vadd.f32 %v7092, %v7204
        %v7206 = vpop.f32.mrf.mxu0
        %v7207 = vadd.f32 %v7094, %v7206
        %v7208 = vpop.f32.mrf.mxu0
        %v7209 = vadd.f32 %v7096, %v7208
        %7210 = vmatprep.mubr.bf16.mxu0 %v5210
        %7211 = vmatmul.mubr.bf16.gmra.mxu0 %v5209
        %v7212 = vpop.f32.mrf.mxu0
        %v7213 = vadd.f32 %v7100, %v7212
        %v7214 = vpop.f32.mrf.mxu0
        %v7215 = vadd.f32 %v7102, %v7214
        %v7216 = vpop.f32.mrf.mxu0
        %v7217 = vadd.f32 %v7104, %v7216
        %v7218 = vpop.f32.mrf.mxu0
        %v7219 = vadd.f32 %v7106, %v7218
        %7220 = vdwg.mxu0
        %7221 = vmatprep.subr.bf16.mxu0 %v6288
        %7222 = vmatpush1.bf16.msra.mxu0 %v6287
        %7223 = vmatprep.subr.bf16.mxu0 %v6284
        %7224 = vmatpush1.bf16.msra.mxu0 %v6283
        %7225 = vmatprep.subr.bf16.mxu0 %v6280
        %7226 = vmatpush1.bf16.msra.mxu0 %v6279
        %7227 = vmatprep.subr.bf16.mxu0 %v6276
        %7228 = vmatpush1.bf16.msra.mxu0 %v6275
        %7229 = vmatprep.subr.bf16.mxu0 %v6272
        %7230 = vmatpush1.bf16.msra.mxu0 %v6271
        %7231 = vmatprep.subr.bf16.mxu0 %v6268
        %7232 = vmatpush1.bf16.msra.mxu0 %v6267
        %7233 = vmatprep.subr.bf16.mxu0 %v6264
        %7234 = vmatpush1.bf16.msra.mxu0 %v6263
        %7235 = vmatprep.subr.bf16.mxu0 %v6260
        %7236 = vmatpush1.bf16.msra.mxu0 %v6259
        %7237 = vmatprep.subr.bf16.mxu0 %v6320
        %7238 = vmatpush2.bf16.msra.mxu0 %v6319
        %7239 = vmatprep.subr.bf16.mxu0 %v6316
        %7240 = vmatpush2.bf16.msra.mxu0 %v6315
        %7241 = vmatprep.subr.bf16.mxu0 %v6312
        %7242 = vmatpush2.bf16.msra.mxu0 %v6311
        %7243 = vmatprep.subr.bf16.mxu0 %v6308
        %7244 = vmatpush2.bf16.msra.mxu0 %v6307
        %7245 = vmatprep.subr.bf16.mxu0 %v6304
        %7246 = vmatpush2.bf16.msra.mxu0 %v6303
        %7247 = vmatprep.subr.bf16.mxu0 %v6300
        %7248 = vmatpush2.bf16.msra.mxu0 %v6299
        %7249 = vmatprep.subr.bf16.mxu0 %v6296
        %7250 = vmatpush2.bf16.msra.mxu0 %v6295
        %7251 = vmatprep.subr.bf16.mxu0 %v6292
        %7252 = vmatpush2.bf16.msra.mxu0 %v6291
        %7253 = vmatprep.mubr.bf16.mxu0 %v5148
        %7254 = vmatmul.mubr.bf16.gmra.mxu0 %v5147
        %v7255 = vpop.f32.mrf.mxu0
        %v7256 = vadd.f32 %v5480, %v7255
        %v7257 = vpop.f32.mrf.mxu0
        %v7258 = vadd.f32 %v5484, %v7257
        %v7259 = vpop.f32.mrf.mxu0
        %v7260 = vadd.f32 %v5480, %v7259
        %v7261 = vpop.f32.mrf.mxu0
        %v7262 = vadd.f32 %v5484, %v7261
        %7263 = vmatprep.mubr.bf16.mxu0 %v5156
        %7264 = vmatmul.mubr.bf16.gmra.mxu0 %v5155
        %v7265 = vpop.f32.mrf.mxu0
        %v7266 = vadd.f32 %v5480, %v7265
        %v7267 = vpop.f32.mrf.mxu0
        %v7268 = vadd.f32 %v5484, %v7267
        %v7269 = vpop.f32.mrf.mxu0
        %v7270 = vadd.f32 %v5480, %v7269
        %v7271 = vpop.f32.mrf.mxu0
        %v7272 = vadd.f32 %v5484, %v7271
        %7273 = vmatprep.mubr.bf16.mxu0 %v5164
        %7274 = vmatmul.mubr.bf16.gmra.mxu0 %v5163
        %v7275 = vpop.f32.mrf.mxu0
        %v7276 = vadd.f32 %v5480, %v7275
        %v7277 = vpop.f32.mrf.mxu0
        %v7278 = vadd.f32 %v5484, %v7277
        %v7279 = vpop.f32.mrf.mxu0
        %v7280 = vadd.f32 %v5480, %v7279
        %v7281 = vpop.f32.mrf.mxu0
        %v7282 = vadd.f32 %v5484, %v7281
        %7283 = vmatprep.mubr.bf16.mxu0 %v5172
        %7284 = vmatmul.mubr.bf16.gmra.mxu0 %v5171
        %v7285 = vpop.f32.mrf.mxu0
        %v7286 = vadd.f32 %v5480, %v7285
        %v7287 = vpop.f32.mrf.mxu0
        %v7288 = vadd.f32 %v5484, %v7287
        %v7289 = vpop.f32.mrf.mxu0
        %v7290 = vadd.f32 %v5480, %v7289
        %v7291 = vpop.f32.mrf.mxu0
        %v7292 = vadd.f32 %v5484, %v7291
        %7293 = vmatprep.mubr.bf16.mxu0 %v5180
        %7294 = vmatmul.mubr.bf16.gmra.mxu0 %v5179
        %v7295 = vpop.f32.mrf.mxu0
        %v7296 = vadd.f32 %v5480, %v7295
        %v7297 = vpop.f32.mrf.mxu0
        %v7298 = vadd.f32 %v5484, %v7297
        %v7299 = vpop.f32.mrf.mxu0
        %v7300 = vadd.f32 %v5480, %v7299
        %v7301 = vpop.f32.mrf.mxu0
        %v7302 = vadd.f32 %v5484, %v7301
        %7303 = vmatprep.mubr.bf16.mxu0 %v5188
        %7304 = vmatmul.mubr.bf16.gmra.mxu0 %v5187
        %v7305 = vpop.f32.mrf.mxu0
        %v7306 = vadd.f32 %v5480, %v7305
        %v7307 = vpop.f32.mrf.mxu0
        %v7308 = vadd.f32 %v5484, %v7307
        %v7309 = vpop.f32.mrf.mxu0
        %v7310 = vadd.f32 %v5480, %v7309
        %v7311 = vpop.f32.mrf.mxu0
        %v7312 = vadd.f32 %v5484, %v7311
        %7313 = vmatprep.mubr.bf16.mxu0 %v5196
        %7314 = vmatmul.mubr.bf16.gmra.mxu0 %v5195
        %v7315 = vpop.f32.mrf.mxu0
        %v7316 = vadd.f32 %v5480, %v7315
        %v7317 = vpop.f32.mrf.mxu0
        %v7318 = vadd.f32 %v5484, %v7317
        %v7319 = vpop.f32.mrf.mxu0
        %v7320 = vadd.f32 %v5480, %v7319
        %v7321 = vpop.f32.mrf.mxu0
        %v7322 = vadd.f32 %v5484, %v7321
        %7323 = vmatprep.mubr.bf16.mxu0 %v5204
        %7324 = vmatmul.mubr.bf16.gmra.mxu0 %v5203
        %v7325 = vpop.f32.mrf.mxu0
        %v7326 = vadd.f32 %v5480, %v7325
        %v7327 = vpop.f32.mrf.mxu0
        %v7328 = vadd.f32 %v5484, %v7327
        %v7329 = vpop.f32.mrf.mxu0
        %v7330 = vadd.f32 %v5480, %v7329
        %v7331 = vpop.f32.mrf.mxu0
        %v7332 = vadd.f32 %v5484, %v7331
        %7333 = vdwg.mxu0
        %7334 = vmatprep.subr.bf16.mxu0 %v6352
        %7335 = vmatpush1.bf16.msra.mxu0 %v6351
        %7336 = vmatprep.subr.bf16.mxu0 %v6348
        %7337 = vmatpush1.bf16.msra.mxu0 %v6347
        %7338 = vmatprep.subr.bf16.mxu0 %v6344
        %7339 = vmatpush1.bf16.msra.mxu0 %v6343
        %7340 = vmatprep.subr.bf16.mxu0 %v6340
        %7341 = vmatpush1.bf16.msra.mxu0 %v6339
        %7342 = vmatprep.subr.bf16.mxu0 %v6336
        %7343 = vmatpush1.bf16.msra.mxu0 %v6335
        %7344 = vmatprep.subr.bf16.mxu0 %v6332
        %7345 = vmatpush1.bf16.msra.mxu0 %v6331
        %7346 = vmatprep.subr.bf16.mxu0 %v6328
        %7347 = vmatpush1.bf16.msra.mxu0 %v6327
        %7348 = vmatprep.subr.bf16.mxu0 %v6324
        %7349 = vmatpush1.bf16.msra.mxu0 %v6323
        %7350 = vmatprep.subr.bf16.mxu0 %v6384
        %7351 = vmatpush2.bf16.msra.mxu0 %v6383
        %7352 = vmatprep.subr.bf16.mxu0 %v6380
        %7353 = vmatpush2.bf16.msra.mxu0 %v6379
        %7354 = vmatprep.subr.bf16.mxu0 %v6376
        %7355 = vmatpush2.bf16.msra.mxu0 %v6375
        %7356 = vmatprep.subr.bf16.mxu0 %v6372
        %7357 = vmatpush2.bf16.msra.mxu0 %v6371
        %7358 = vmatprep.subr.bf16.mxu0 %v6368
        %7359 = vmatpush2.bf16.msra.mxu0 %v6367
        %7360 = vmatprep.subr.bf16.mxu0 %v6364
        %7361 = vmatpush2.bf16.msra.mxu0 %v6363
        %7362 = vmatprep.subr.bf16.mxu0 %v6360
        %7363 = vmatpush2.bf16.msra.mxu0 %v6359
        %7364 = vmatprep.subr.bf16.mxu0 %v6356
        %7365 = vmatpush2.bf16.msra.mxu0 %v6355
        %7366 = vmatprep.mubr.bf16.mxu0 %v5150
        %7367 = vmatmul.mubr.bf16.gmra.mxu0 %v5149
        %v7368 = vpop.f32.mrf.mxu0
        %v7369 = vadd.f32 %v7256, %v7368
        %v7370 = vpop.f32.mrf.mxu0
        %v7371 = vadd.f32 %v7258, %v7370
        %v7372 = vpop.f32.mrf.mxu0
        %v7373 = vadd.f32 %v7260, %v7372
        %v7374 = vpop.f32.mrf.mxu0
        %v7375 = vadd.f32 %v7262, %v7374
        %7376 = vmatprep.mubr.bf16.mxu0 %v5158
        %7377 = vmatmul.mubr.bf16.gmra.mxu0 %v5157
        %v7378 = vpop.f32.mrf.mxu0
        %v7379 = vadd.f32 %v7266, %v7378
        %v7380 = vpop.f32.mrf.mxu0
        %v7381 = vadd.f32 %v7268, %v7380
        %v7382 = vpop.f32.mrf.mxu0
        %v7383 = vadd.f32 %v7270, %v7382
        %v7384 = vpop.f32.mrf.mxu0
        %v7385 = vadd.f32 %v7272, %v7384
        %7386 = vmatprep.mubr.bf16.mxu0 %v5166
        %7387 = vmatmul.mubr.bf16.gmra.mxu0 %v5165
        %v7388 = vpop.f32.mrf.mxu0
        %v7389 = vadd.f32 %v7276, %v7388
        %v7390 = vpop.f32.mrf.mxu0
        %v7391 = vadd.f32 %v7278, %v7390
        %v7392 = vpop.f32.mrf.mxu0
        %v7393 = vadd.f32 %v7280, %v7392
        %v7394 = vpop.f32.mrf.mxu0
        %v7395 = vadd.f32 %v7282, %v7394
        %7396 = vmatprep.mubr.bf16.mxu0 %v5174
        %7397 = vmatmul.mubr.bf16.gmra.mxu0 %v5173
        %v7398 = vpop.f32.mrf.mxu0
        %v7399 = vadd.f32 %v7286, %v7398
        %v7400 = vpop.f32.mrf.mxu0
        %v7401 = vadd.f32 %v7288, %v7400
        %v7402 = vpop.f32.mrf.mxu0
        %v7403 = vadd.f32 %v7290, %v7402
        %v7404 = vpop.f32.mrf.mxu0
        %v7405 = vadd.f32 %v7292, %v7404
        %7406 = vmatprep.mubr.bf16.mxu0 %v5182
        %7407 = vmatmul.mubr.bf16.gmra.mxu0 %v5181
        %v7408 = vpop.f32.mrf.mxu0
        %v7409 = vadd.f32 %v7296, %v7408
        %v7410 = vpop.f32.mrf.mxu0
        %v7411 = vadd.f32 %v7298, %v7410
        %v7412 = vpop.f32.mrf.mxu0
        %v7413 = vadd.f32 %v7300, %v7412
        %v7414 = vpop.f32.mrf.mxu0
        %v7415 = vadd.f32 %v7302, %v7414
        %7416 = vmatprep.mubr.bf16.mxu0 %v5190
        %7417 = vmatmul.mubr.bf16.gmra.mxu0 %v5189
        %v7418 = vpop.f32.mrf.mxu0
        %v7419 = vadd.f32 %v7306, %v7418
        %v7420 = vpop.f32.mrf.mxu0
        %v7421 = vadd.f32 %v7308, %v7420
        %v7422 = vpop.f32.mrf.mxu0
        %v7423 = vadd.f32 %v7310, %v7422
        %v7424 = vpop.f32.mrf.mxu0
        %v7425 = vadd.f32 %v7312, %v7424
        %7426 = vmatprep.mubr.bf16.mxu0 %v5198
        %7427 = vmatmul.mubr.bf16.gmra.mxu0 %v5197
        %v7428 = vpop.f32.mrf.mxu0
        %v7429 = vadd.f32 %v7316, %v7428
        %v7430 = vpop.f32.mrf.mxu0
        %v7431 = vadd.f32 %v7318, %v7430
        %v7432 = vpop.f32.mrf.mxu0
        %v7433 = vadd.f32 %v7320, %v7432
        %v7434 = vpop.f32.mrf.mxu0
        %v7435 = vadd.f32 %v7322, %v7434
        %7436 = vmatprep.mubr.bf16.mxu0 %v5206
        %7437 = vmatmul.mubr.bf16.gmra.mxu0 %v5205
        %v7438 = vpop.f32.mrf.mxu0
        %v7439 = vadd.f32 %v7326, %v7438
        %v7440 = vpop.f32.mrf.mxu0
        %v7441 = vadd.f32 %v7328, %v7440
        %v7442 = vpop.f32.mrf.mxu0
        %v7443 = vadd.f32 %v7330, %v7442
        %v7444 = vpop.f32.mrf.mxu0
        %v7445 = vadd.f32 %v7332, %v7444
        %7446 = vdwg.mxu0
        %7447 = vmatprep.subr.bf16.mxu0 %v6416
        %7448 = vmatpush1.bf16.msra.mxu0 %v6415
        %7449 = vmatprep.subr.bf16.mxu0 %v6412
        %7450 = vmatpush1.bf16.msra.mxu0 %v6411
        %7451 = vmatprep.subr.bf16.mxu0 %v6408
        %7452 = vmatpush1.bf16.msra.mxu0 %v6407
        %7453 = vmatprep.subr.bf16.mxu0 %v6404
        %7454 = vmatpush1.bf16.msra.mxu0 %v6403
        %7455 = vmatprep.subr.bf16.mxu0 %v6400
        %7456 = vmatpush1.bf16.msra.mxu0 %v6399
        %7457 = vmatprep.subr.bf16.mxu0 %v6396
        %7458 = vmatpush1.bf16.msra.mxu0 %v6395
        %7459 = vmatprep.subr.bf16.mxu0 %v6392
        %7460 = vmatpush1.bf16.msra.mxu0 %v6391
        %7461 = vmatprep.subr.bf16.mxu0 %v6388
        %7462 = vmatpush1.bf16.msra.mxu0 %v6387
        %7463 = vmatprep.subr.bf16.mxu0 %v6448
        %7464 = vmatpush2.bf16.msra.mxu0 %v6447
        %7465 = vmatprep.subr.bf16.mxu0 %v6444
        %7466 = vmatpush2.bf16.msra.mxu0 %v6443
        %7467 = vmatprep.subr.bf16.mxu0 %v6440
        %7468 = vmatpush2.bf16.msra.mxu0 %v6439
        %7469 = vmatprep.subr.bf16.mxu0 %v6436
        %7470 = vmatpush2.bf16.msra.mxu0 %v6435
        %7471 = vmatprep.subr.bf16.mxu0 %v6432
        %7472 = vmatpush2.bf16.msra.mxu0 %v6431
        %7473 = vmatprep.subr.bf16.mxu0 %v6428
        %7474 = vmatpush2.bf16.msra.mxu0 %v6427
        %7475 = vmatprep.subr.bf16.mxu0 %v6424
        %7476 = vmatpush2.bf16.msra.mxu0 %v6423
        %7477 = vmatprep.subr.bf16.mxu0 %v6420
        %7478 = vmatpush2.bf16.msra.mxu0 %v6419
        %7479 = vmatprep.mubr.bf16.mxu0 %v5152
        %7480 = vmatmul.mubr.bf16.gmra.mxu0 %v5151
        %v7481 = vpop.f32.mrf.mxu0
        %v7482 = vadd.f32 %v7369, %v7481
        %v7483 = vpop.f32.mrf.mxu0
        %v7484 = vadd.f32 %v7371, %v7483
        %v7485 = vpop.f32.mrf.mxu0
        %v7486 = vadd.f32 %v7373, %v7485
        %v7487 = vpop.f32.mrf.mxu0
        %v7488 = vadd.f32 %v7375, %v7487
        %7489 = vmatprep.mubr.bf16.mxu0 %v5160
        %7490 = vmatmul.mubr.bf16.gmra.mxu0 %v5159
        %v7491 = vpop.f32.mrf.mxu0
        %v7492 = vadd.f32 %v7379, %v7491
        %v7493 = vpop.f32.mrf.mxu0
        %v7494 = vadd.f32 %v7381, %v7493
        %v7495 = vpop.f32.mrf.mxu0
        %v7496 = vadd.f32 %v7383, %v7495
        %v7497 = vpop.f32.mrf.mxu0
        %v7498 = vadd.f32 %v7385, %v7497
        %7499 = vmatprep.mubr.bf16.mxu0 %v5168
        %7500 = vmatmul.mubr.bf16.gmra.mxu0 %v5167
        %v7501 = vpop.f32.mrf.mxu0
        %v7502 = vadd.f32 %v7389, %v7501
        %v7503 = vpop.f32.mrf.mxu0
        %v7504 = vadd.f32 %v7391, %v7503
        %v7505 = vpop.f32.mrf.mxu0
        %v7506 = vadd.f32 %v7393, %v7505
        %v7507 = vpop.f32.mrf.mxu0
        %v7508 = vadd.f32 %v7395, %v7507
        %7509 = vmatprep.mubr.bf16.mxu0 %v5176
        %7510 = vmatmul.mubr.bf16.gmra.mxu0 %v5175
        %v7511 = vpop.f32.mrf.mxu0
        %v7512 = vadd.f32 %v7399, %v7511
        %v7513 = vpop.f32.mrf.mxu0
        %v7514 = vadd.f32 %v7401, %v7513
        %v7515 = vpop.f32.mrf.mxu0
        %v7516 = vadd.f32 %v7403, %v7515
        %v7517 = vpop.f32.mrf.mxu0
        %v7518 = vadd.f32 %v7405, %v7517
        %7519 = vmatprep.mubr.bf16.mxu0 %v5184
        %7520 = vmatmul.mubr.bf16.gmra.mxu0 %v5183
        %v7521 = vpop.f32.mrf.mxu0
        %v7522 = vadd.f32 %v7409, %v7521
        %v7523 = vpop.f32.mrf.mxu0
        %v7524 = vadd.f32 %v7411, %v7523
        %v7525 = vpop.f32.mrf.mxu0
        %v7526 = vadd.f32 %v7413, %v7525
        %v7527 = vpop.f32.mrf.mxu0
        %v7528 = vadd.f32 %v7415, %v7527
        %7529 = vmatprep.mubr.bf16.mxu0 %v5192
        %7530 = vmatmul.mubr.bf16.gmra.mxu0 %v5191
        %v7531 = vpop.f32.mrf.mxu0
        %v7532 = vadd.f32 %v7419, %v7531
        %v7533 = vpop.f32.mrf.mxu0
        %v7534 = vadd.f32 %v7421, %v7533
        %v7535 = vpop.f32.mrf.mxu0
        %v7536 = vadd.f32 %v7423, %v7535
        %v7537 = vpop.f32.mrf.mxu0
        %v7538 = vadd.f32 %v7425, %v7537
        %7539 = vmatprep.mubr.bf16.mxu0 %v5200
        %7540 = vmatmul.mubr.bf16.gmra.mxu0 %v5199
        %v7541 = vpop.f32.mrf.mxu0
        %v7542 = vadd.f32 %v7429, %v7541
        %v7543 = vpop.f32.mrf.mxu0
        %v7544 = vadd.f32 %v7431, %v7543
        %v7545 = vpop.f32.mrf.mxu0
        %v7546 = vadd.f32 %v7433, %v7545
        %v7547 = vpop.f32.mrf.mxu0
        %v7548 = vadd.f32 %v7435, %v7547
        %7549 = vmatprep.mubr.bf16.mxu0 %v5208
        %7550 = vmatmul.mubr.bf16.gmra.mxu0 %v5207
        %v7551 = vpop.f32.mrf.mxu0
        %v7552 = vadd.f32 %v7439, %v7551
        %v7553 = vpop.f32.mrf.mxu0
        %v7554 = vadd.f32 %v7441, %v7553
        %v7555 = vpop.f32.mrf.mxu0
        %v7556 = vadd.f32 %v7443, %v7555
        %v7557 = vpop.f32.mrf.mxu0
        %v7558 = vadd.f32 %v7445, %v7557
        %7559 = vdwg.mxu0
        %7560 = vmatprep.subr.bf16.mxu0 %v6480
        %7561 = vmatpush1.bf16.msra.mxu0 %v6479
        %7562 = vmatprep.subr.bf16.mxu0 %v6476
        %7563 = vmatpush1.bf16.msra.mxu0 %v6475
        %7564 = vmatprep.subr.bf16.mxu0 %v6472
        %7565 = vmatpush1.bf16.msra.mxu0 %v6471
        %7566 = vmatprep.subr.bf16.mxu0 %v6468
        %7567 = vmatpush1.bf16.msra.mxu0 %v6467
        %7568 = vmatprep.subr.bf16.mxu0 %v6464
        %7569 = vmatpush1.bf16.msra.mxu0 %v6463
        %7570 = vmatprep.subr.bf16.mxu0 %v6460
        %7571 = vmatpush1.bf16.msra.mxu0 %v6459
        %7572 = vmatprep.subr.bf16.mxu0 %v6456
        %7573 = vmatpush1.bf16.msra.mxu0 %v6455
        %7574 = vmatprep.subr.bf16.mxu0 %v6452
        %7575 = vmatpush1.bf16.msra.mxu0 %v6451
        %7576 = vmatprep.subr.bf16.mxu0 %v6512
        %7577 = vmatpush2.bf16.msra.mxu0 %v6511
        %7578 = vmatprep.subr.bf16.mxu0 %v6508
        %7579 = vmatpush2.bf16.msra.mxu0 %v6507
        %7580 = vmatprep.subr.bf16.mxu0 %v6504
        %7581 = vmatpush2.bf16.msra.mxu0 %v6503
        %7582 = vmatprep.subr.bf16.mxu0 %v6500
        %7583 = vmatpush2.bf16.msra.mxu0 %v6499
        %7584 = vmatprep.subr.bf16.mxu0 %v6496
        %7585 = vmatpush2.bf16.msra.mxu0 %v6495
        %7586 = vmatprep.subr.bf16.mxu0 %v6492
        %7587 = vmatpush2.bf16.msra.mxu0 %v6491
        %7588 = vmatprep.subr.bf16.mxu0 %v6488
        %7589 = vmatpush2.bf16.msra.mxu0 %v6487
        %7590 = vmatprep.subr.bf16.mxu0 %v6484
        %7591 = vmatpush2.bf16.msra.mxu0 %v6483
        %7592 = vmatprep.mubr.bf16.mxu0 %v5154
        %7593 = vmatmul.mubr.bf16.gmra.mxu0 %v5153
        %v7594 = vpop.f32.mrf.mxu0
        %v7595 = vadd.f32 %v7482, %v7594
        %v7596 = vpop.f32.mrf.mxu0
        %v7597 = vadd.f32 %v7484, %v7596
        %v7598 = vpop.f32.mrf.mxu0
        %v7599 = vadd.f32 %v7486, %v7598
        %v7600 = vpop.f32.mrf.mxu0
        %v7601 = vadd.f32 %v7488, %v7600
        %7602 = vmatprep.mubr.bf16.mxu0 %v5162
        %7603 = vmatmul.mubr.bf16.gmra.mxu0 %v5161
        %v7604 = vpop.f32.mrf.mxu0
        %v7605 = vadd.f32 %v7492, %v7604
        %v7606 = vpop.f32.mrf.mxu0
        %v7607 = vadd.f32 %v7494, %v7606
        %v7608 = vpop.f32.mrf.mxu0
        %v7609 = vadd.f32 %v7496, %v7608
        %v7610 = vpop.f32.mrf.mxu0
        %v7611 = vadd.f32 %v7498, %v7610
        %7612 = vmatprep.mubr.bf16.mxu0 %v5170
        %7613 = vmatmul.mubr.bf16.gmra.mxu0 %v5169
        %v7614 = vpop.f32.mrf.mxu0
        %v7615 = vadd.f32 %v7502, %v7614
        %v7616 = vpop.f32.mrf.mxu0
        %v7617 = vadd.f32 %v7504, %v7616
        %v7618 = vpop.f32.mrf.mxu0
        %v7619 = vadd.f32 %v7506, %v7618
        %v7620 = vpop.f32.mrf.mxu0
        %v7621 = vadd.f32 %v7508, %v7620
        %7622 = vmatprep.mubr.bf16.mxu0 %v5178
        %7623 = vmatmul.mubr.bf16.gmra.mxu0 %v5177
        %v7624 = vpop.f32.mrf.mxu0
        %v7625 = vadd.f32 %v7512, %v7624
        %v7626 = vpop.f32.mrf.mxu0
        %v7627 = vadd.f32 %v7514, %v7626
        %v7628 = vpop.f32.mrf.mxu0
        %v7629 = vadd.f32 %v7516, %v7628
        %v7630 = vpop.f32.mrf.mxu0
        %v7631 = vadd.f32 %v7518, %v7630
        %7632 = vmatprep.mubr.bf16.mxu0 %v5186
        %7633 = vmatmul.mubr.bf16.gmra.mxu0 %v5185
        %v7634 = vpop.f32.mrf.mxu0
        %v7635 = vadd.f32 %v7522, %v7634
        %v7636 = vpop.f32.mrf.mxu0
        %v7637 = vadd.f32 %v7524, %v7636
        %v7638 = vpop.f32.mrf.mxu0
        %v7639 = vadd.f32 %v7526, %v7638
        %v7640 = vpop.f32.mrf.mxu0
        %v7641 = vadd.f32 %v7528, %v7640
        %7642 = vmatprep.mubr.bf16.mxu0 %v5194
        %7643 = vmatmul.mubr.bf16.gmra.mxu0 %v5193
        %v7644 = vpop.f32.mrf.mxu0
        %v7645 = vadd.f32 %v7532, %v7644
        %v7646 = vpop.f32.mrf.mxu0
        %v7647 = vadd.f32 %v7534, %v7646
        %v7648 = vpop.f32.mrf.mxu0
        %v7649 = vadd.f32 %v7536, %v7648
        %v7650 = vpop.f32.mrf.mxu0
        %v7651 = vadd.f32 %v7538, %v7650
        %7652 = vmatprep.mubr.bf16.mxu0 %v5202
        %7653 = vmatmul.mubr.bf16.gmra.mxu0 %v5201
        %v7654 = vpop.f32.mrf.mxu0
        %v7655 = vadd.f32 %v7542, %v7654
        %v7656 = vpop.f32.mrf.mxu0
        %v7657 = vadd.f32 %v7544, %v7656
        %v7658 = vpop.f32.mrf.mxu0
        %v7659 = vadd.f32 %v7546, %v7658
        %v7660 = vpop.f32.mrf.mxu0
        %v7661 = vadd.f32 %v7548, %v7660
        %7662 = vmatprep.mubr.bf16.mxu0 %v5210
        %7663 = vmatmul.mubr.bf16.gmra.mxu0 %v5209
        %v7664 = vpop.f32.mrf.mxu0
        %v7665 = vadd.f32 %v7552, %v7664
        %v7666 = vpop.f32.mrf.mxu0
        %v7667 = vadd.f32 %v7554, %v7666
        %v7668 = vpop.f32.mrf.mxu0
        %v7669 = vadd.f32 %v7556, %v7668
        %v7670 = vpop.f32.mrf.mxu0
        %v7671 = vadd.f32 %v7558, %v7670
        %7672 = vdwg.mxu0
        %vm7673 = vcmp.gt.f32.partialorder %v7143, 0.0
        %vm7674 = vcmp.gt.f32.partialorder %v7145, 0.0
        %vm7675 = vcmp.gt.f32.partialorder %v7595, 0.0
        %vm7676 = vcmp.gt.f32.partialorder %v7597, 0.0
        %vm7677 = vcmp.gt.f32.partialorder %v7147, 0.0
        %vm7678 = vcmp.gt.f32.partialorder %v7149, 0.0
        %vm7679 = vcmp.gt.f32.partialorder %v7599, 0.0
        %vm7680 = vcmp.gt.f32.partialorder %v7601, 0.0
        %vm7681 = vcmp.gt.f32.partialorder %v7153, 0.0
        %vm7682 = vcmp.gt.f32.partialorder %v7155, 0.0
        %vm7683 = vcmp.gt.f32.partialorder %v7605, 0.0
        %vm7684 = vcmp.gt.f32.partialorder %v7607, 0.0
        %vm7685 = vcmp.gt.f32.partialorder %v7157, 0.0
        %vm7686 = vcmp.gt.f32.partialorder %v7159, 0.0
        %vm7687 = vcmp.gt.f32.partialorder %v7609, 0.0
        %vm7688 = vcmp.gt.f32.partialorder %v7611, 0.0
        %vm7689 = vcmp.gt.f32.partialorder %v7163, 0.0
        %vm7690 = vcmp.gt.f32.partialorder %v7165, 0.0
        %vm7691 = vcmp.gt.f32.partialorder %v7615, 0.0
        %vm7692 = vcmp.gt.f32.partialorder %v7617, 0.0
        %vm7693 = vcmp.gt.f32.partialorder %v7167, 0.0
        %vm7694 = vcmp.gt.f32.partialorder %v7169, 0.0
        %vm7695 = vcmp.gt.f32.partialorder %v7619, 0.0
        %vm7696 = vcmp.gt.f32.partialorder %v7621, 0.0
        %vm7697 = vcmp.gt.f32.partialorder %v7173, 0.0
        %vm7698 = vcmp.gt.f32.partialorder %v7175, 0.0
        %vm7699 = vcmp.gt.f32.partialorder %v7625, 0.0
        %vm7700 = vcmp.gt.f32.partialorder %v7627, 0.0
        %vm7701 = vcmp.gt.f32.partialorder %v7177, 0.0
        %vm7702 = vcmp.gt.f32.partialorder %v7179, 0.0
        %vm7703 = vcmp.gt.f32.partialorder %v7629, 0.0
        %vm7704 = vcmp.gt.f32.partialorder %v7631, 0.0
        %vm7705 = vcmp.gt.f32.partialorder %v7183, 0.0
        %vm7706 = vcmp.gt.f32.partialorder %v7185, 0.0
        %vm7707 = vcmp.gt.f32.partialorder %v7635, 0.0
        %vm7708 = vcmp.gt.f32.partialorder %v7637, 0.0
        %vm7709 = vcmp.gt.f32.partialorder %v7187, 0.0
        %vm7710 = vcmp.gt.f32.partialorder %v7189, 0.0
        %vm7711 = vcmp.gt.f32.partialorder %v7639, 0.0
        %vm7712 = vcmp.gt.f32.partialorder %v7641, 0.0
        %vm7713 = vcmp.gt.f32.partialorder %v7193, 0.0
        %vm7714 = vcmp.gt.f32.partialorder %v7195, 0.0
        %vm7715 = vcmp.gt.f32.partialorder %v7645, 0.0
        %vm7716 = vcmp.gt.f32.partialorder %v7647, 0.0
        %vm7717 = vcmp.gt.f32.partialorder %v7197, 0.0
        %vm7718 = vcmp.gt.f32.partialorder %v7199, 0.0
        %vm7719 = vcmp.gt.f32.partialorder %v7649, 0.0
        %vm7720 = vcmp.gt.f32.partialorder %v7651, 0.0
        %vm7721 = vcmp.gt.f32.partialorder %v7203, 0.0
        %vm7722 = vcmp.gt.f32.partialorder %v7205, 0.0
        %vm7723 = vcmp.gt.f32.partialorder %v7655, 0.0
        %vm7724 = vcmp.gt.f32.partialorder %v7657, 0.0
        %vm7725 = vcmp.gt.f32.partialorder %v7207, 0.0
        %vm7726 = vcmp.gt.f32.partialorder %v7209, 0.0
        %vm7727 = vcmp.gt.f32.partialorder %v7659, 0.0
        %vm7728 = vcmp.gt.f32.partialorder %v7661, 0.0
        %vm7729 = vcmp.gt.f32.partialorder %v7213, 0.0
        %vm7730 = vcmp.gt.f32.partialorder %v7215, 0.0
        %vm7731 = vcmp.gt.f32.partialorder %v7665, 0.0
        %vm7732 = vcmp.gt.f32.partialorder %v7667, 0.0
        %vm7733 = vcmp.gt.f32.partialorder %v7217, 0.0
        %vm7734 = vcmp.gt.f32.partialorder %v7219, 0.0
        %vm7735 = vcmp.gt.f32.partialorder %v7669, 0.0
        %vm7736 = vcmp.gt.f32.partialorder %v7671, 0.0
        %v7737 = vmul.f32 %v7143, 0.2
        %v7738 = vmul.f32 %v7145, 0.2
        %v7739 = vmul.f32 %v7595, 0.2
        %v7740 = vmul.f32 %v7597, 0.2
        %v7741 = vmul.f32 %v7147, 0.2
        %v7742 = vmul.f32 %v7149, 0.2
        %v7743 = vmul.f32 %v7599, 0.2
        %v7744 = vmul.f32 %v7601, 0.2
        %v7745 = vmul.f32 %v7153, 0.2
        %v7746 = vmul.f32 %v7155, 0.2
        %v7747 = vmul.f32 %v7605, 0.2
        %v7748 = vmul.f32 %v7607, 0.2
        %v7749 = vmul.f32 %v7157, 0.2
        %v7750 = vmul.f32 %v7159, 0.2
        %v7751 = vmul.f32 %v7609, 0.2
        %v7752 = vmul.f32 %v7611, 0.2
        %v7753 = vmul.f32 %v7163, 0.2
        %v7754 = vmul.f32 %v7165, 0.2
        %v7755 = vmul.f32 %v7615, 0.2
        %v7756 = vmul.f32 %v7617, 0.2
        %v7757 = vmul.f32 %v7167, 0.2
        %v7758 = vmul.f32 %v7169, 0.2
        %v7759 = vmul.f32 %v7619, 0.2
        %v7760 = vmul.f32 %v7621, 0.2
        %v7761 = vmul.f32 %v7173, 0.2
        %v7762 = vmul.f32 %v7175, 0.2
        %v7763 = vmul.f32 %v7625, 0.2
        %v7764 = vmul.f32 %v7627, 0.2
        %v7765 = vmul.f32 %v7177, 0.2
        %v7766 = vmul.f32 %v7179, 0.2
        %v7767 = vmul.f32 %v7629, 0.2
        %v7768 = vmul.f32 %v7631, 0.2
        %v7769 = vmul.f32 %v7183, 0.2
        %v7770 = vmul.f32 %v7185, 0.2
        %v7771 = vmul.f32 %v7635, 0.2
        %v7772 = vmul.f32 %v7637, 0.2
        %v7773 = vmul.f32 %v7187, 0.2
        %v7774 = vmul.f32 %v7189, 0.2
        %v7775 = vmul.f32 %v7639, 0.2
        %v7776 = vmul.f32 %v7641, 0.2
        %v7777 = vmul.f32 %v7193, 0.2
        %v7778 = vmul.f32 %v7195, 0.2
        %v7779 = vmul.f32 %v7645, 0.2
        %v7780 = vmul.f32 %v7647, 0.2
        %v7781 = vmul.f32 %v7197, 0.2
        %v7782 = vmul.f32 %v7199, 0.2
        %v7783 = vmul.f32 %v7649, 0.2
        %v7784 = vmul.f32 %v7651, 0.2
        %v7785 = vmul.f32 %v7203, 0.2
        %v7786 = vmul.f32 %v7205, 0.2
        %v7787 = vmul.f32 %v7655, 0.2
        %v7788 = vmul.f32 %v7657, 0.2
        %v7789 = vmul.f32 %v7207, 0.2
        %v7790 = vmul.f32 %v7209, 0.2
        %v7791 = vmul.f32 %v7659, 0.2
        %v7792 = vmul.f32 %v7661, 0.2
        %v7793 = vmul.f32 %v7213, 0.2
        %v7794 = vmul.f32 %v7215, 0.2
        %v7795 = vmul.f32 %v7665, 0.2
        %v7796 = vmul.f32 %v7667, 0.2
        %v7797 = vmul.f32 %v7217, 0.2
        %v7798 = vmul.f32 %v7219, 0.2
        %v7799 = vmul.f32 %v7669, 0.2
        %v7800 = vmul.f32 %v7671, 0.2
        %v7801 = vsel %vm7673, %v7143, %v7737
        %v7802 = vsel %vm7674, %v7145, %v7738
        %v7803 = vsel %vm7675, %v7595, %v7739
        %v7804 = vsel %vm7676, %v7597, %v7740
        %v7805 = vsel %vm7677, %v7147, %v7741
        %v7806 = vsel %vm7678, %v7149, %v7742
        %v7807 = vsel %vm7679, %v7599, %v7743
        %v7808 = vsel %vm7680, %v7601, %v7744
        %v7809 = vsel %vm7681, %v7153, %v7745
        %v7810 = vsel %vm7682, %v7155, %v7746
        %v7811 = vsel %vm7683, %v7605, %v7747
        %v7812 = vsel %vm7684, %v7607, %v7748
        %v7813 = vsel %vm7685, %v7157, %v7749
        %v7814 = vsel %vm7686, %v7159, %v7750
        %v7815 = vsel %vm7687, %v7609, %v7751
        %v7816 = vsel %vm7688, %v7611, %v7752
        %v7817 = vsel %vm7689, %v7163, %v7753
        %v7818 = vsel %vm7690, %v7165, %v7754
        %v7819 = vsel %vm7691, %v7615, %v7755
        %v7820 = vsel %vm7692, %v7617, %v7756
        %v7821 = vsel %vm7693, %v7167, %v7757
        %v7822 = vsel %vm7694, %v7169, %v7758
        %v7823 = vsel %vm7695, %v7619, %v7759
        %v7824 = vsel %vm7696, %v7621, %v7760
        %v7825 = vsel %vm7697, %v7173, %v7761
        %v7826 = vsel %vm7698, %v7175, %v7762
        %v7827 = vsel %vm7699, %v7625, %v7763
        %v7828 = vsel %vm7700, %v7627, %v7764
        %v7829 = vsel %vm7701, %v7177, %v7765
        %v7830 = vsel %vm7702, %v7179, %v7766
        %v7831 = vsel %vm7703, %v7629, %v7767
        %v7832 = vsel %vm7704, %v7631, %v7768
        %v7833 = vsel %vm7705, %v7183, %v7769
        %v7834 = vsel %vm7706, %v7185, %v7770
        %v7835 = vsel %vm7707, %v7635, %v7771
        %v7836 = vsel %vm7708, %v7637, %v7772
        %v7837 = vsel %vm7709, %v7187, %v7773
        %v7838 = vsel %vm7710, %v7189, %v7774
        %v7839 = vsel %vm7711, %v7639, %v7775
        %v7840 = vsel %vm7712, %v7641, %v7776
        %v7841 = vsel %vm7713, %v7193, %v7777
        %v7842 = vsel %vm7714, %v7195, %v7778
        %v7843 = vsel %vm7715, %v7645, %v7779
        %v7844 = vsel %vm7716, %v7647, %v7780
        %v7845 = vsel %vm7717, %v7197, %v7781
        %v7846 = vsel %vm7718, %v7199, %v7782
        %v7847 = vsel %vm7719, %v7649, %v7783
        %v7848 = vsel %vm7720, %v7651, %v7784
        %v7849 = vsel %vm7721, %v7203, %v7785
        %v7850 = vsel %vm7722, %v7205, %v7786
        %v7851 = vsel %vm7723, %v7655, %v7787
        %v7852 = vsel %vm7724, %v7657, %v7788
        %v7853 = vsel %vm7725, %v7207, %v7789
        %v7854 = vsel %vm7726, %v7209, %v7790
        %v7855 = vsel %vm7727, %v7659, %v7791
        %v7856 = vsel %vm7728, %v7661, %v7792
        %v7857 = vsel %vm7729, %v7213, %v7793
        %v7858 = vsel %vm7730, %v7215, %v7794
        %v7859 = vsel %vm7731, %v7665, %v7795
        %v7860 = vsel %vm7732, %v7667, %v7796
        %v7861 = vsel %vm7733, %v7217, %v7797
        %v7862 = vsel %vm7734, %v7219, %v7798
        %v7863 = vsel %vm7735, %v7669, %v7799
        %v7864 = vsel %vm7736, %v7671, %v7800
        %v7865 = vpack.c.bf16 %v7805, %v7801
        %v7866 = vpack.c.bf16 %v7806, %v7802
        %v7867 = vpack.c.bf16 %v7807, %v7803
        %v7868 = vpack.c.bf16 %v7808, %v7804
        %v7869 = vpack.c.bf16 %v7813, %v7809
        %v7870 = vpack.c.bf16 %v7814, %v7810
        %v7871 = vpack.c.bf16 %v7815, %v7811
        %v7872 = vpack.c.bf16 %v7816, %v7812
        %v7873 = vpack.c.bf16 %v7821, %v7817
        %v7874 = vpack.c.bf16 %v7822, %v7818
        %v7875 = vpack.c.bf16 %v7823, %v7819
        %v7876 = vpack.c.bf16 %v7824, %v7820
        %v7877 = vpack.c.bf16 %v7829, %v7825
        %v7878 = vpack.c.bf16 %v7830, %v7826
        %v7879 = vpack.c.bf16 %v7831, %v7827
        %v7880 = vpack.c.bf16 %v7832, %v7828
        %v7881 = vpack.c.bf16 %v7837, %v7833
        %v7882 = vpack.c.bf16 %v7838, %v7834
        %v7883 = vpack.c.bf16 %v7839, %v7835
        %v7884 = vpack.c.bf16 %v7840, %v7836
        %v7885 = vpack.c.bf16 %v7845, %v7841
        %v7886 = vpack.c.bf16 %v7846, %v7842
        %v7887 = vpack.c.bf16 %v7847, %v7843
        %v7888 = vpack.c.bf16 %v7848, %v7844
        %v7889 = vpack.c.bf16 %v7853, %v7849
        %v7890 = vpack.c.bf16 %v7854, %v7850
        %v7891 = vpack.c.bf16 %v7855, %v7851
        %v7892 = vpack.c.bf16 %v7856, %v7852
        %v7893 = vpack.c.bf16 %v7861, %v7857
        %v7894 = vpack.c.bf16 %v7862, %v7858
        %v7895 = vpack.c.bf16 %v7863, %v7859
        %v7896 = vpack.c.bf16 %v7864, %v7860
        %v7897 = vld [vmem:[#allocation6] sm:$0xff]
        %v7898 = vld [vmem:[#allocation6 + $0x8] sm:$0xff]
        %v7899 = vld [vmem:[#allocation6 + $0x10] sm:$0xff]
        %v7900 = vld [vmem:[#allocation6 + $0x18] sm:$0xff]
        %v7901 = vld [vmem:[#allocation6 + $0x20] sm:$0xff]
        %v7902 = vld [vmem:[#allocation6 + $0x28] sm:$0xff]
        %v7903 = vld [vmem:[#allocation6 + $0x30] sm:$0xff]
        %v7904 = vld [vmem:[#allocation6 + $0x38] sm:$0xff]
        %v7905 = vld [vmem:[#allocation6 + $0x40] sm:$0xff]
        %v7906 = vld [vmem:[#allocation6 + $0x48] sm:$0xff]
        %v7907 = vld [vmem:[#allocation6 + $0x50] sm:$0xff]
        %v7908 = vld [vmem:[#allocation6 + $0x58] sm:$0xff]
        %v7909 = vld [vmem:[#allocation6 + $0x60] sm:$0xff]
        %v7910 = vld [vmem:[#allocation6 + $0x68] sm:$0xff]
        %v7911 = vld [vmem:[#allocation6 + $0x70] sm:$0xff]
        %v7912 = vld [vmem:[#allocation6 + $0x78] sm:$0xff]
        %v7913 = vld [vmem:[#allocation6 + $0x80] sm:$0xff]
        %v7914 = vld [vmem:[#allocation6 + $0x88] sm:$0xff]
        %v7915 = vld [vmem:[#allocation6 + $0x90] sm:$0xff]
        %v7916 = vld [vmem:[#allocation6 + $0x98] sm:$0xff]
        %v7917 = vld [vmem:[#allocation6 + $0xa0] sm:$0xff]
        %v7918 = vld [vmem:[#allocation6 + $0xa8] sm:$0xff]
        %v7919 = vld [vmem:[#allocation6 + $0xb0] sm:$0xff]
        %v7920 = vld [vmem:[#allocation6 + $0xb8] sm:$0xff]
        %v7921 = vld [vmem:[#allocation6 + $0xc0] sm:$0xff]
        %v7922 = vld [vmem:[#allocation6 + $0xc8] sm:$0xff]
        %v7923 = vld [vmem:[#allocation6 + $0xd0] sm:$0xff]
        %v7924 = vld [vmem:[#allocation6 + $0xd8] sm:$0xff]
        %v7925 = vld [vmem:[#allocation6 + $0xe0] sm:$0xff]
        %v7926 = vld [vmem:[#allocation6 + $0xe8] sm:$0xff]
        %v7927 = vld [vmem:[#allocation6 + $0xf0] sm:$0xff]
        %v7928 = vld [vmem:[#allocation6 + $0xf8] sm:$0xff]
        %v7929 = vld [vmem:[#allocation6 + $0x100] sm:$0xff]
        %v7930 = vld [vmem:[#allocation6 + $0x108] sm:$0xff]
        %v7931 = vld [vmem:[#allocation6 + $0x110] sm:$0xff]
        %v7932 = vld [vmem:[#allocation6 + $0x118] sm:$0xff]
        %v7933 = vld [vmem:[#allocation6 + $0x120] sm:$0xff]
        %v7934 = vld [vmem:[#allocation6 + $0x128] sm:$0xff]
        %v7935 = vld [vmem:[#allocation6 + $0x130] sm:$0xff]
        %v7936 = vld [vmem:[#allocation6 + $0x138] sm:$0xff]
        %v7937 = vld [vmem:[#allocation6 + $0x140] sm:$0xff]
        %v7938 = vld [vmem:[#allocation6 + $0x148] sm:$0xff]
        %v7939 = vld [vmem:[#allocation6 + $0x150] sm:$0xff]
        %v7940 = vld [vmem:[#allocation6 + $0x158] sm:$0xff]
        %v7941 = vld [vmem:[#allocation6 + $0x160] sm:$0xff]
        %v7942 = vld [vmem:[#allocation6 + $0x168] sm:$0xff]
        %v7943 = vld [vmem:[#allocation6 + $0x170] sm:$0xff]
        %v7944 = vld [vmem:[#allocation6 + $0x178] sm:$0xff]
        %v7945 = vld [vmem:[#allocation6 + $0x180] sm:$0xff]
        %v7946 = vld [vmem:[#allocation6 + $0x188] sm:$0xff]
        %v7947 = vld [vmem:[#allocation6 + $0x190] sm:$0xff]
        %v7948 = vld [vmem:[#allocation6 + $0x198] sm:$0xff]
        %v7949 = vld [vmem:[#allocation6 + $0x1a0] sm:$0xff]
        %v7950 = vld [vmem:[#allocation6 + $0x1a8] sm:$0xff]
        %v7951 = vld [vmem:[#allocation6 + $0x1b0] sm:$0xff]
        %v7952 = vld [vmem:[#allocation6 + $0x1b8] sm:$0xff]
        %v7953 = vld [vmem:[#allocation6 + $0x1c0] sm:$0xff]
        %v7954 = vld [vmem:[#allocation6 + $0x1c8] sm:$0xff]
        %v7955 = vld [vmem:[#allocation6 + $0x1d0] sm:$0xff]
        %v7956 = vld [vmem:[#allocation6 + $0x1d8] sm:$0xff]
        %v7957 = vld [vmem:[#allocation6 + $0x1e0] sm:$0xff]
        %v7958 = vld [vmem:[#allocation6 + $0x1e8] sm:$0xff]
        %v7959 = vld [vmem:[#allocation6 + $0x1f0] sm:$0xff]
        %v7960 = vld [vmem:[#allocation6 + $0x1f8] sm:$0xff]
        %v7961 = vld [vmem:[%s6] sm:$0x3]
        %v7963 = vlaneseq
        %v7964 = vshrl.u32 %v7963, 7
        %v7965 = vsub.s32 0, %v7964
        %v7966 = vrot.slane %v7961, %v7965
        %v7967 = vlaneseq
        %v7968 = vshrl.u32 %v7967, 7
        %v7969 = vsub.s32 1, %v7968
        %v7970 = vrot.slane %v7961, %v7969
        %v8037 = vunpack.c.l.b16 %v7897
        %v8038 = vunpack.c.h.b16 %v7897
        %v8039 = vunpack.c.l.b16 %v7898
        %v8040 = vunpack.c.h.b16 %v7898
        %v8041 = vunpack.c.l.b16 %v7899
        %v8042 = vunpack.c.h.b16 %v7899
        %v8043 = vunpack.c.l.b16 %v7900
        %v8044 = vunpack.c.h.b16 %v7900
        %v8045 = vunpack.c.l.b16 %v7901
        %v8046 = vunpack.c.h.b16 %v7901
        %v8047 = vunpack.c.l.b16 %v7902
        %v8048 = vunpack.c.h.b16 %v7902
        %v8049 = vunpack.c.l.b16 %v7903
        %v8050 = vunpack.c.h.b16 %v7903
        %v8051 = vunpack.c.l.b16 %v7904
        %v8052 = vunpack.c.h.b16 %v7904
        %v8053 = vunpack.c.l.b16 %v7905
        %v8054 = vunpack.c.h.b16 %v7905
        %v8055 = vunpack.c.l.b16 %v7906
        %v8056 = vunpack.c.h.b16 %v7906
        %v8057 = vunpack.c.l.b16 %v7907
        %v8058 = vunpack.c.h.b16 %v7907
        %v8059 = vunpack.c.l.b16 %v7908
        %v8060 = vunpack.c.h.b16 %v7908
        %v8061 = vunpack.c.l.b16 %v7909
        %v8062 = vunpack.c.h.b16 %v7909
        %v8063 = vunpack.c.l.b16 %v7910
        %v8064 = vunpack.c.h.b16 %v7910
        %v8065 = vunpack.c.l.b16 %v7911
        %v8066 = vunpack.c.h.b16 %v7911
        %v8067 = vunpack.c.l.b16 %v7912
        %v8068 = vunpack.c.h.b16 %v7912
        %v8069 = vunpack.c.l.b16 %v7913
        %v8070 = vunpack.c.h.b16 %v7913
        %v8071 = vunpack.c.l.b16 %v7914
        %v8072 = vunpack.c.h.b16 %v7914
        %v8073 = vunpack.c.l.b16 %v7915
        %v8074 = vunpack.c.h.b16 %v7915
        %v8075 = vunpack.c.l.b16 %v7916
        %v8076 = vunpack.c.h.b16 %v7916
        %v8077 = vunpack.c.l.b16 %v7917
        %v8078 = vunpack.c.h.b16 %v7917
        %v8079 = vunpack.c.l.b16 %v7918
        %v8080 = vunpack.c.h.b16 %v7918
        %v8081 = vunpack.c.l.b16 %v7919
        %v8082 = vunpack.c.h.b16 %v7919
        %v8083 = vunpack.c.l.b16 %v7920
        %v8084 = vunpack.c.h.b16 %v7920
        %v8085 = vunpack.c.l.b16 %v7921
        %v8086 = vunpack.c.h.b16 %v7921
        %v8087 = vunpack.c.l.b16 %v7922
        %v8088 = vunpack.c.h.b16 %v7922
        %v8089 = vunpack.c.l.b16 %v7923
        %v8090 = vunpack.c.h.b16 %v7923
        %v8091 = vunpack.c.l.b16 %v7924
        %v8092 = vunpack.c.h.b16 %v7924
        %v8093 = vunpack.c.l.b16 %v7925
        %v8094 = vunpack.c.h.b16 %v7925
        %v8095 = vunpack.c.l.b16 %v7926
        %v8096 = vunpack.c.h.b16 %v7926
        %v8097 = vunpack.c.l.b16 %v7927
        %v8098 = vunpack.c.h.b16 %v7927
        %v8099 = vunpack.c.l.b16 %v7928
        %v8100 = vunpack.c.h.b16 %v7928
        %v8101 = vunpack.c.l.b16 %v7929
        %v8102 = vunpack.c.h.b16 %v7929
        %v8103 = vunpack.c.l.b16 %v7930
        %v8104 = vunpack.c.h.b16 %v7930
        %v8105 = vunpack.c.l.b16 %v7931
        %v8106 = vunpack.c.h.b16 %v7931
        %v8107 = vunpack.c.l.b16 %v7932
        %v8108 = vunpack.c.h.b16 %v7932
        %v8109 = vunpack.c.l.b16 %v7933
        %v8110 = vunpack.c.h.b16 %v7933
        %v8111 = vunpack.c.l.b16 %v7934
        %v8112 = vunpack.c.h.b16 %v7934
        %v8113 = vunpack.c.l.b16 %v7935
        %v8114 = vunpack.c.h.b16 %v7935
        %v8115 = vunpack.c.l.b16 %v7936
        %v8116 = vunpack.c.h.b16 %v7936
        %v8117 = vunpack.c.l.b16 %v7937
        %v8118 = vunpack.c.h.b16 %v7937
        %v8119 = vunpack.c.l.b16 %v7938
        %v8120 = vunpack.c.h.b16 %v7938
        %v8121 = vunpack.c.l.b16 %v7939
        %v8122 = vunpack.c.h.b16 %v7939
        %v8123 = vunpack.c.l.b16 %v7940
        %v8124 = vunpack.c.h.b16 %v7940
        %v8125 = vunpack.c.l.b16 %v7941
        %v8126 = vunpack.c.h.b16 %v7941
        %v8127 = vunpack.c.l.b16 %v7942
        %v8128 = vunpack.c.h.b16 %v7942
        %v8129 = vunpack.c.l.b16 %v7943
        %v8130 = vunpack.c.h.b16 %v7943
        %v8131 = vunpack.c.l.b16 %v7944
        %v8132 = vunpack.c.h.b16 %v7944
        %v8133 = vunpack.c.l.b16 %v7945
        %v8134 = vunpack.c.h.b16 %v7945
        %v8135 = vunpack.c.l.b16 %v7946
        %v8136 = vunpack.c.h.b16 %v7946
        %v8137 = vunpack.c.l.b16 %v7947
        %v8138 = vunpack.c.h.b16 %v7947
        %v8139 = vunpack.c.l.b16 %v7948
        %v8140 = vunpack.c.h.b16 %v7948
        %v8141 = vunpack.c.l.b16 %v7949
        %v8142 = vunpack.c.h.b16 %v7949
        %v8143 = vunpack.c.l.b16 %v7950
        %v8144 = vunpack.c.h.b16 %v7950
        %v8145 = vunpack.c.l.b16 %v7951
        %v8146 = vunpack.c.h.b16 %v7951
        %v8147 = vunpack.c.l.b16 %v7952
        %v8148 = vunpack.c.h.b16 %v7952
        %v8149 = vunpack.c.l.b16 %v7953
        %v8150 = vunpack.c.h.b16 %v7953
        %v8151 = vunpack.c.l.b16 %v7954
        %v8152 = vunpack.c.h.b16 %v7954
        %v8153 = vunpack.c.l.b16 %v7955
        %v8154 = vunpack.c.h.b16 %v7955
        %v8155 = vunpack.c.l.b16 %v7956
        %v8156 = vunpack.c.h.b16 %v7956
        %v8157 = vunpack.c.l.b16 %v7957
        %v8158 = vunpack.c.h.b16 %v7957
        %v8159 = vunpack.c.l.b16 %v7958
        %v8160 = vunpack.c.h.b16 %v7958
        %v8161 = vunpack.c.l.b16 %v7959
        %v8162 = vunpack.c.h.b16 %v7959
        %v8163 = vunpack.c.l.b16 %v7960
        %v8164 = vunpack.c.h.b16 %v7960
        %v8165 = vpack.c.b16 %v8039, %v8037
        %v8166 = vpack.c.b16 %v8040, %v8038
        %v8167 = vpack.c.b16 %v8043, %v8041
        %v8168 = vpack.c.b16 %v8044, %v8042
        %v8169 = vpack.c.b16 %v8047, %v8045
        %v8170 = vpack.c.b16 %v8048, %v8046
        %v8171 = vpack.c.b16 %v8051, %v8049
        %v8172 = vpack.c.b16 %v8052, %v8050
        %v8173 = vpack.c.b16 %v8055, %v8053
        %v8174 = vpack.c.b16 %v8056, %v8054
        %v8175 = vpack.c.b16 %v8059, %v8057
        %v8176 = vpack.c.b16 %v8060, %v8058
        %v8177 = vpack.c.b16 %v8063, %v8061
        %v8178 = vpack.c.b16 %v8064, %v8062
        %v8179 = vpack.c.b16 %v8067, %v8065
        %v8180 = vpack.c.b16 %v8068, %v8066
        %v8181 = vpack.c.b16 %v8071, %v8069
        %v8182 = vpack.c.b16 %v8072, %v8070
        %v8183 = vpack.c.b16 %v8075, %v8073
        %v8184 = vpack.c.b16 %v8076, %v8074
        %v8185 = vpack.c.b16 %v8079, %v8077
        %v8186 = vpack.c.b16 %v8080, %v8078
        %v8187 = vpack.c.b16 %v8083, %v8081
        %v8188 = vpack.c.b16 %v8084, %v8082
        %v8189 = vpack.c.b16 %v8087, %v8085
        %v8190 = vpack.c.b16 %v8088, %v8086
        %v8191 = vpack.c.b16 %v8091, %v8089
        %v8192 = vpack.c.b16 %v8092, %v8090
        %v8193 = vpack.c.b16 %v8095, %v8093
        %v8194 = vpack.c.b16 %v8096, %v8094
        %v8195 = vpack.c.b16 %v8099, %v8097
        %v8196 = vpack.c.b16 %v8100, %v8098
        %v8197 = vpack.c.b16 %v8103, %v8101
        %v8198 = vpack.c.b16 %v8104, %v8102
        %v8199 = vpack.c.b16 %v8107, %v8105
        %v8200 = vpack.c.b16 %v8108, %v8106
        %v8201 = vpack.c.b16 %v8111, %v8109
        %v8202 = vpack.c.b16 %v8112, %v8110
        %v8203 = vpack.c.b16 %v8115, %v8113
        %v8204 = vpack.c.b16 %v8116, %v8114
        %v8205 = vpack.c.b16 %v8119, %v8117
        %v8206 = vpack.c.b16 %v8120, %v8118
        %v8207 = vpack.c.b16 %v8123, %v8121
        %v8208 = vpack.c.b16 %v8124, %v8122
        %v8209 = vpack.c.b16 %v8127, %v8125
        %v8210 = vpack.c.b16 %v8128, %v8126
        %v8211 = vpack.c.b16 %v8131, %v8129
        %v8212 = vpack.c.b16 %v8132, %v8130
        %v8213 = vpack.c.b16 %v8135, %v8133
        %v8214 = vpack.c.b16 %v8136, %v8134
        %v8215 = vpack.c.b16 %v8139, %v8137
        %v8216 = vpack.c.b16 %v8140, %v8138
        %v8217 = vpack.c.b16 %v8143, %v8141
        %v8218 = vpack.c.b16 %v8144, %v8142
        %v8219 = vpack.c.b16 %v8147, %v8145
        %v8220 = vpack.c.b16 %v8148, %v8146
        %v8221 = vpack.c.b16 %v8151, %v8149
        %v8222 = vpack.c.b16 %v8152, %v8150
        %v8223 = vpack.c.b16 %v8155, %v8153
        %v8224 = vpack.c.b16 %v8156, %v8154
        %v8225 = vpack.c.b16 %v8159, %v8157
        %v8226 = vpack.c.b16 %v8160, %v8158
        %v8227 = vpack.c.b16 %v8163, %v8161
        %v8228 = vpack.c.b16 %v8164, %v8162
        %8293 = vmatprep.subr.bf16.mxu0 %v8180
        %8294 = vmatpush1.bf16.msra.mxu0 %v8179
        %8295 = vmatprep.subr.bf16.mxu0 %v8178
        %8296 = vmatpush1.bf16.msra.mxu0 %v8177
        %8297 = vmatprep.subr.bf16.mxu0 %v8176
        %8298 = vmatpush1.bf16.msra.mxu0 %v8175
        %8299 = vmatprep.subr.bf16.mxu0 %v8174
        %8300 = vmatpush1.bf16.msra.mxu0 %v8173
        %8301 = vmatprep.subr.bf16.mxu0 %v8172
        %8302 = vmatpush1.bf16.msra.mxu0 %v8171
        %8303 = vmatprep.subr.bf16.mxu0 %v8170
        %8304 = vmatpush1.bf16.msra.mxu0 %v8169
        %8305 = vmatprep.subr.bf16.mxu0 %v8168
        %8306 = vmatpush1.bf16.msra.mxu0 %v8167
        %8307 = vmatprep.subr.bf16.mxu0 %v8166
        %8308 = vmatpush1.bf16.msra.mxu0 %v8165
        %8309 = vmatprep.subr.bf16.mxu0 %v8196
        %8310 = vmatpush2.bf16.msra.mxu0 %v8195
        %8311 = vmatprep.subr.bf16.mxu0 %v8194
        %8312 = vmatpush2.bf16.msra.mxu0 %v8193
        %8313 = vmatprep.subr.bf16.mxu0 %v8192
        %8314 = vmatpush2.bf16.msra.mxu0 %v8191
        %8315 = vmatprep.subr.bf16.mxu0 %v8190
        %8316 = vmatpush2.bf16.msra.mxu0 %v8189
        %8317 = vmatprep.subr.bf16.mxu0 %v8188
        %8318 = vmatpush2.bf16.msra.mxu0 %v8187
        %8319 = vmatprep.subr.bf16.mxu0 %v8186
        %8320 = vmatpush2.bf16.msra.mxu0 %v8185
        %8321 = vmatprep.subr.bf16.mxu0 %v8184
        %8322 = vmatpush2.bf16.msra.mxu0 %v8183
        %8323 = vmatprep.subr.bf16.mxu0 %v8182
        %8324 = vmatpush2.bf16.msra.mxu0 %v8181
        %8325 = vmatprep.mubr.bf16.mxu0 %v7866
        %8326 = vmatmul.mubr.bf16.gmra.mxu0 %v7865
        %v8327 = vpop.f32.mrf.mxu0
        %v8328 = vadd.f32 %v7966, %v8327
        %v8329 = vpop.f32.mrf.mxu0
        %v8330 = vadd.f32 %v7970, %v8329
        %v8331 = vpop.f32.mrf.mxu0
        %v8332 = vadd.f32 %v7966, %v8331
        %v8333 = vpop.f32.mrf.mxu0
        %v8334 = vadd.f32 %v7970, %v8333
        %8335 = vmatprep.mubr.bf16.mxu0 %v7870
        %8336 = vmatmul.mubr.bf16.gmra.mxu0 %v7869
        %v8337 = vpop.f32.mrf.mxu0
        %v8338 = vadd.f32 %v7966, %v8337
        %v8339 = vpop.f32.mrf.mxu0
        %v8340 = vadd.f32 %v7970, %v8339
        %v8341 = vpop.f32.mrf.mxu0
        %v8342 = vadd.f32 %v7966, %v8341
        %v8343 = vpop.f32.mrf.mxu0
        %v8344 = vadd.f32 %v7970, %v8343
        %8345 = vmatprep.mubr.bf16.mxu0 %v7874
        %8346 = vmatmul.mubr.bf16.gmra.mxu0 %v7873
        %v8347 = vpop.f32.mrf.mxu0
        %v8348 = vadd.f32 %v7966, %v8347
        %v8349 = vpop.f32.mrf.mxu0
        %v8350 = vadd.f32 %v7970, %v8349
        %v8351 = vpop.f32.mrf.mxu0
        %v8352 = vadd.f32 %v7966, %v8351
        %v8353 = vpop.f32.mrf.mxu0
        %v8354 = vadd.f32 %v7970, %v8353
        %8355 = vmatprep.mubr.bf16.mxu0 %v7878
        %8356 = vmatmul.mubr.bf16.gmra.mxu0 %v7877
        %v8357 = vpop.f32.mrf.mxu0
        %v8358 = vadd.f32 %v7966, %v8357
        %v8359 = vpop.f32.mrf.mxu0
        %v8360 = vadd.f32 %v7970, %v8359
        %v8361 = vpop.f32.mrf.mxu0
        %v8362 = vadd.f32 %v7966, %v8361
        %v8363 = vpop.f32.mrf.mxu0
        %v8364 = vadd.f32 %v7970, %v8363
        %8365 = vmatprep.mubr.bf16.mxu0 %v7882
        %8366 = vmatmul.mubr.bf16.gmra.mxu0 %v7881
        %v8367 = vpop.f32.mrf.mxu0
        %v8368 = vadd.f32 %v7966, %v8367
        %v8369 = vpop.f32.mrf.mxu0
        %v8370 = vadd.f32 %v7970, %v8369
        %v8371 = vpop.f32.mrf.mxu0
        %v8372 = vadd.f32 %v7966, %v8371
        %v8373 = vpop.f32.mrf.mxu0
        %v8374 = vadd.f32 %v7970, %v8373
        %8375 = vmatprep.mubr.bf16.mxu0 %v7886
        %8376 = vmatmul.mubr.bf16.gmra.mxu0 %v7885
        %v8377 = vpop.f32.mrf.mxu0
        %v8378 = vadd.f32 %v7966, %v8377
        %v8379 = vpop.f32.mrf.mxu0
        %v8380 = vadd.f32 %v7970, %v8379
        %v8381 = vpop.f32.mrf.mxu0
        %v8382 = vadd.f32 %v7966, %v8381
        %v8383 = vpop.f32.mrf.mxu0
        %v8384 = vadd.f32 %v7970, %v8383
        %8385 = vmatprep.mubr.bf16.mxu0 %v7890
        %8386 = vmatmul.mubr.bf16.gmra.mxu0 %v7889
        %v8387 = vpop.f32.mrf.mxu0
        %v8388 = vadd.f32 %v7966, %v8387
        %v8389 = vpop.f32.mrf.mxu0
        %v8390 = vadd.f32 %v7970, %v8389
        %v8391 = vpop.f32.mrf.mxu0
        %v8392 = vadd.f32 %v7966, %v8391
        %v8393 = vpop.f32.mrf.mxu0
        %v8394 = vadd.f32 %v7970, %v8393
        %8395 = vmatprep.mubr.bf16.mxu0 %v7894
        %8396 = vmatmul.mubr.bf16.gmra.mxu0 %v7893
        %v8397 = vpop.f32.mrf.mxu0
        %v8398 = vadd.f32 %v7966, %v8397
        %v8399 = vpop.f32.mrf.mxu0
        %v8400 = vadd.f32 %v7970, %v8399
        %v8401 = vpop.f32.mrf.mxu0
        %v8402 = vadd.f32 %v7966, %v8401
        %v8403 = vpop.f32.mrf.mxu0
        %v8404 = vadd.f32 %v7970, %v8403
        %8405 = vdwg.mxu0
        %8406 = vmatprep.subr.bf16.mxu0 %v8212
        %8407 = vmatpush1.bf16.msra.mxu0 %v8211
        %8408 = vmatprep.subr.bf16.mxu0 %v8210
        %8409 = vmatpush1.bf16.msra.mxu0 %v8209
        %8410 = vmatprep.subr.bf16.mxu0 %v8208
        %8411 = vmatpush1.bf16.msra.mxu0 %v8207
        %8412 = vmatprep.subr.bf16.mxu0 %v8206
        %8413 = vmatpush1.bf16.msra.mxu0 %v8205
        %8414 = vmatprep.subr.bf16.mxu0 %v8204
        %8415 = vmatpush1.bf16.msra.mxu0 %v8203
        %8416 = vmatprep.subr.bf16.mxu0 %v8202
        %8417 = vmatpush1.bf16.msra.mxu0 %v8201
        %8418 = vmatprep.subr.bf16.mxu0 %v8200
        %8419 = vmatpush1.bf16.msra.mxu0 %v8199
        %8420 = vmatprep.subr.bf16.mxu0 %v8198
        %8421 = vmatpush1.bf16.msra.mxu0 %v8197
        %8422 = vmatprep.subr.bf16.mxu0 %v8228
        %8423 = vmatpush2.bf16.msra.mxu0 %v8227
        %8424 = vmatprep.subr.bf16.mxu0 %v8226
        %8425 = vmatpush2.bf16.msra.mxu0 %v8225
        %8426 = vmatprep.subr.bf16.mxu0 %v8224
        %8427 = vmatpush2.bf16.msra.mxu0 %v8223
        %8428 = vmatprep.subr.bf16.mxu0 %v8222
        %8429 = vmatpush2.bf16.msra.mxu0 %v8221
        %8430 = vmatprep.subr.bf16.mxu0 %v8220
        %8431 = vmatpush2.bf16.msra.mxu0 %v8219
        %8432 = vmatprep.subr.bf16.mxu0 %v8218
        %8433 = vmatpush2.bf16.msra.mxu0 %v8217
        %8434 = vmatprep.subr.bf16.mxu0 %v8216
        %8435 = vmatpush2.bf16.msra.mxu0 %v8215
        %8436 = vmatprep.subr.bf16.mxu0 %v8214
        %8437 = vmatpush2.bf16.msra.mxu0 %v8213
        %8438 = vmatprep.mubr.bf16.mxu0 %v7868
        %8439 = vmatmul.mubr.bf16.gmra.mxu0 %v7867
        %v8440 = vpop.f32.mrf.mxu0
        %v8441 = vadd.f32 %v8328, %v8440
        %v8442 = vpop.f32.mrf.mxu0
        %v8443 = vadd.f32 %v8330, %v8442
        %v8444 = vpop.f32.mrf.mxu0
        %v8445 = vadd.f32 %v8332, %v8444
        %v8446 = vpop.f32.mrf.mxu0
        %v8447 = vadd.f32 %v8334, %v8446
        %8448 = vmatprep.mubr.bf16.mxu0 %v7872
        %8449 = vmatmul.mubr.bf16.gmra.mxu0 %v7871
        %v8450 = vpop.f32.mrf.mxu0
        %v8451 = vadd.f32 %v8338, %v8450
        %v8452 = vpop.f32.mrf.mxu0
        %v8453 = vadd.f32 %v8340, %v8452
        %v8454 = vpop.f32.mrf.mxu0
        %v8455 = vadd.f32 %v8342, %v8454
        %v8456 = vpop.f32.mrf.mxu0
        %v8457 = vadd.f32 %v8344, %v8456
        %8458 = vmatprep.mubr.bf16.mxu0 %v7876
        %8459 = vmatmul.mubr.bf16.gmra.mxu0 %v7875
        %v8460 = vpop.f32.mrf.mxu0
        %v8461 = vadd.f32 %v8348, %v8460
        %v8462 = vpop.f32.mrf.mxu0
        %v8463 = vadd.f32 %v8350, %v8462
        %v8464 = vpop.f32.mrf.mxu0
        %v8465 = vadd.f32 %v8352, %v8464
        %v8466 = vpop.f32.mrf.mxu0
        %v8467 = vadd.f32 %v8354, %v8466
        %8468 = vmatprep.mubr.bf16.mxu0 %v7880
        %8469 = vmatmul.mubr.bf16.gmra.mxu0 %v7879
        %v8470 = vpop.f32.mrf.mxu0
        %v8471 = vadd.f32 %v8358, %v8470
        %v8472 = vpop.f32.mrf.mxu0
        %v8473 = vadd.f32 %v8360, %v8472
        %v8474 = vpop.f32.mrf.mxu0
        %v8475 = vadd.f32 %v8362, %v8474
        %v8476 = vpop.f32.mrf.mxu0
        %v8477 = vadd.f32 %v8364, %v8476
        %8478 = vmatprep.mubr.bf16.mxu0 %v7884
        %8479 = vmatmul.mubr.bf16.gmra.mxu0 %v7883
        %v8480 = vpop.f32.mrf.mxu0
        %v8481 = vadd.f32 %v8368, %v8480
        %v8482 = vpop.f32.mrf.mxu0
        %v8483 = vadd.f32 %v8370, %v8482
        %v8484 = vpop.f32.mrf.mxu0
        %v8485 = vadd.f32 %v8372, %v8484
        %v8486 = vpop.f32.mrf.mxu0
        %v8487 = vadd.f32 %v8374, %v8486
        %8488 = vmatprep.mubr.bf16.mxu0 %v7888
        %8489 = vmatmul.mubr.bf16.gmra.mxu0 %v7887
        %v8490 = vpop.f32.mrf.mxu0
        %v8491 = vadd.f32 %v8378, %v8490
        %v8492 = vpop.f32.mrf.mxu0
        %v8493 = vadd.f32 %v8380, %v8492
        %v8494 = vpop.f32.mrf.mxu0
        %v8495 = vadd.f32 %v8382, %v8494
        %v8496 = vpop.f32.mrf.mxu0
        %v8497 = vadd.f32 %v8384, %v8496
        %8498 = vmatprep.mubr.bf16.mxu0 %v7892
        %8499 = vmatmul.mubr.bf16.gmra.mxu0 %v7891
        %v8500 = vpop.f32.mrf.mxu0
        %v8501 = vadd.f32 %v8388, %v8500
        %v8502 = vpop.f32.mrf.mxu0
        %v8503 = vadd.f32 %v8390, %v8502
        %v8504 = vpop.f32.mrf.mxu0
        %v8505 = vadd.f32 %v8392, %v8504
        %v8506 = vpop.f32.mrf.mxu0
        %v8507 = vadd.f32 %v8394, %v8506
        %8508 = vmatprep.mubr.bf16.mxu0 %v7896
        %8509 = vmatmul.mubr.bf16.gmra.mxu0 %v7895
        %v8510 = vpop.f32.mrf.mxu0
        %v8511 = vadd.f32 %v8398, %v8510
        %v8512 = vpop.f32.mrf.mxu0
        %v8513 = vadd.f32 %v8400, %v8512
        %v8514 = vpop.f32.mrf.mxu0
        %v8515 = vadd.f32 %v8402, %v8514
        %v8516 = vpop.f32.mrf.mxu0
        %v8517 = vadd.f32 %v8404, %v8516
        %8518 = vdwg.mxu0
        %vm8519 = vcmp.gt.f32.partialorder %v8441, 0.0
        %vm8520 = vcmp.gt.f32.partialorder %v8443, 0.0
        %vm8521 = vcmp.gt.f32.partialorder %v8445, 0.0
        %vm8522 = vcmp.gt.f32.partialorder %v8447, 0.0
        %vm8523 = vcmp.gt.f32.partialorder %v8451, 0.0
        %vm8524 = vcmp.gt.f32.partialorder %v8453, 0.0
        %vm8525 = vcmp.gt.f32.partialorder %v8455, 0.0
        %vm8526 = vcmp.gt.f32.partialorder %v8457, 0.0
        %vm8527 = vcmp.gt.f32.partialorder %v8461, 0.0
        %vm8528 = vcmp.gt.f32.partialorder %v8463, 0.0
        %vm8529 = vcmp.gt.f32.partialorder %v8465, 0.0
        %vm8530 = vcmp.gt.f32.partialorder %v8467, 0.0
        %vm8531 = vcmp.gt.f32.partialorder %v8471, 0.0
        %vm8532 = vcmp.gt.f32.partialorder %v8473, 0.0
        %vm8533 = vcmp.gt.f32.partialorder %v8475, 0.0
        %vm8534 = vcmp.gt.f32.partialorder %v8477, 0.0
        %vm8535 = vcmp.gt.f32.partialorder %v8481, 0.0
        %vm8536 = vcmp.gt.f32.partialorder %v8483, 0.0
        %vm8537 = vcmp.gt.f32.partialorder %v8485, 0.0
        %vm8538 = vcmp.gt.f32.partialorder %v8487, 0.0
        %vm8539 = vcmp.gt.f32.partialorder %v8491, 0.0
        %vm8540 = vcmp.gt.f32.partialorder %v8493, 0.0
        %vm8541 = vcmp.gt.f32.partialorder %v8495, 0.0
        %vm8542 = vcmp.gt.f32.partialorder %v8497, 0.0
        %vm8543 = vcmp.gt.f32.partialorder %v8501, 0.0
        %vm8544 = vcmp.gt.f32.partialorder %v8503, 0.0
        %vm8545 = vcmp.gt.f32.partialorder %v8505, 0.0
        %vm8546 = vcmp.gt.f32.partialorder %v8507, 0.0
        %vm8547 = vcmp.gt.f32.partialorder %v8511, 0.0
        %vm8548 = vcmp.gt.f32.partialorder %v8513, 0.0
        %vm8549 = vcmp.gt.f32.partialorder %v8515, 0.0
        %vm8550 = vcmp.gt.f32.partialorder %v8517, 0.0
        %v8551 = vmul.f32 %v8441, 0.2
        %v8552 = vmul.f32 %v8443, 0.2
        %v8553 = vmul.f32 %v8445, 0.2
        %v8554 = vmul.f32 %v8447, 0.2
        %v8555 = vmul.f32 %v8451, 0.2
        %v8556 = vmul.f32 %v8453, 0.2
        %v8557 = vmul.f32 %v8455, 0.2
        %v8558 = vmul.f32 %v8457, 0.2
        %v8559 = vmul.f32 %v8461, 0.2
        %v8560 = vmul.f32 %v8463, 0.2
        %v8561 = vmul.f32 %v8465, 0.2
        %v8562 = vmul.f32 %v8467, 0.2
        %v8563 = vmul.f32 %v8471, 0.2
        %v8564 = vmul.f32 %v8473, 0.2
        %v8565 = vmul.f32 %v8475, 0.2
        %v8566 = vmul.f32 %v8477, 0.2
        %v8567 = vmul.f32 %v8481, 0.2
        %v8568 = vmul.f32 %v8483, 0.2
        %v8569 = vmul.f32 %v8485, 0.2
        %v8570 = vmul.f32 %v8487, 0.2
        %v8571 = vmul.f32 %v8491, 0.2
        %v8572 = vmul.f32 %v8493, 0.2
        %v8573 = vmul.f32 %v8495, 0.2
        %v8574 = vmul.f32 %v8497, 0.2
        %v8575 = vmul.f32 %v8501, 0.2
        %v8576 = vmul.f32 %v8503, 0.2
        %v8577 = vmul.f32 %v8505, 0.2
        %v8578 = vmul.f32 %v8507, 0.2
        %v8579 = vmul.f32 %v8511, 0.2
        %v8580 = vmul.f32 %v8513, 0.2
        %v8581 = vmul.f32 %v8515, 0.2
        %v8582 = vmul.f32 %v8517, 0.2
        %v8583 = vsel %vm8519, %v8441, %v8551
        %v8584 = vsel %vm8520, %v8443, %v8552
        %v8585 = vsel %vm8521, %v8445, %v8553
        %v8586 = vsel %vm8522, %v8447, %v8554
        %v8587 = vsel %vm8523, %v8451, %v8555
        %v8588 = vsel %vm8524, %v8453, %v8556
        %v8589 = vsel %vm8525, %v8455, %v8557
        %v8590 = vsel %vm8526, %v8457, %v8558
        %v8591 = vsel %vm8527, %v8461, %v8559
        %v8592 = vsel %vm8528, %v8463, %v8560
        %v8593 = vsel %vm8529, %v8465, %v8561
        %v8594 = vsel %vm8530, %v8467, %v8562
        %v8595 = vsel %vm8531, %v8471, %v8563
        %v8596 = vsel %vm8532, %v8473, %v8564
        %v8597 = vsel %vm8533, %v8475, %v8565
        %v8598 = vsel %vm8534, %v8477, %v8566
        %v8599 = vsel %vm8535, %v8481, %v8567
        %v8600 = vsel %vm8536, %v8483, %v8568
        %v8601 = vsel %vm8537, %v8485, %v8569
        %v8602 = vsel %vm8538, %v8487, %v8570
        %v8603 = vsel %vm8539, %v8491, %v8571
        %v8604 = vsel %vm8540, %v8493, %v8572
        %v8605 = vsel %vm8541, %v8495, %v8573
        %v8606 = vsel %vm8542, %v8497, %v8574
        %v8607 = vsel %vm8543, %v8501, %v8575
        %v8608 = vsel %vm8544, %v8503, %v8576
        %v8609 = vsel %vm8545, %v8505, %v8577
        %v8610 = vsel %vm8546, %v8507, %v8578
        %v8611 = vsel %vm8547, %v8511, %v8579
        %v8612 = vsel %vm8548, %v8513, %v8580
        %v8613 = vsel %vm8549, %v8515, %v8581
        %v8614 = vsel %vm8550, %v8517, %v8582
        %v8615 = vld [vmem:[%s7] sm:$0x3]
        %v8616 = vpack.c.bf16 %v8585, %v8583
        %v8617 = vpack.c.bf16 %v8586, %v8584
        %v8618 = vpack.c.bf16 %v8589, %v8587
        %v8619 = vpack.c.bf16 %v8590, %v8588
        %v8620 = vpack.c.bf16 %v8593, %v8591
        %v8621 = vpack.c.bf16 %v8594, %v8592
        %v8622 = vpack.c.bf16 %v8597, %v8595
        %v8623 = vpack.c.bf16 %v8598, %v8596
        %v8624 = vpack.c.bf16 %v8601, %v8599
        %v8625 = vpack.c.bf16 %v8602, %v8600
        %v8626 = vpack.c.bf16 %v8605, %v8603
        %v8627 = vpack.c.bf16 %v8606, %v8604
        %v8628 = vpack.c.bf16 %v8609, %v8607
        %v8629 = vpack.c.bf16 %v8610, %v8608
        %v8630 = vpack.c.bf16 %v8613, %v8611
        %v8631 = vpack.c.bf16 %v8614, %v8612
        %v8632 = vld [vmem:[#allocation2] sm:$0x1]
        %8634 = vset.pattern.permute.xlu0 0
        %8635 = vperm.xlu0 %8634, %v8632
        %v8636 = vpop.permute.xlu0 %8635
        %v8638 = vlaneseq
        %v8639 = vshrl.u32 %v8638, 7
        %v8640 = vsub.s32 0, %v8639
        %v8641 = vrot.slane %v8636, %v8640
        %v8644 = vunpack.c.l.s4 1966171168
        %v8645 = vunpack.c.0.s8 %v8644
        %v8646 = vlaneseq
        %v8647 = vshrl.u32 %v8646, 7
        %v8648 = vsub.s32 %v8645, %v8647
        %v8649 = vrot.slane %v8615, %v8648
        %v8650 = vcombine.high %v8649, %v8649
        %v8652 = vunpack.c.l.s4 1966171168
        %v8653 = vunpack.c.0.s8 %v8652
        %v8654 = vlaneseq
        %v8655 = vshrl.u32 %v8654, 7
        %v8656 = vsub.s32 %v8653, %v8655
        %v8657 = vrot.slane %v8649, %v8656
        %v8659 = vunpack.c.l.s4 1966171168
        %v8660 = vunpack.c.0.s8 %v8659
        %v8661 = vlaneseq
        %v8662 = vshrl.u32 %v8661, 7
        %v8663 = vsub.s32 %v8660, %v8662
        %v8664 = vrot.slane %v8650, %v8663
        %8667 = vmatprep.subr.bf16.mxu0 %v8631
        %8668 = vmatpush1.bf16.xpose.msra.mxu0 %v8630
        %8669 = vmatprep.subr.bf16.mxu0 %v8629
        %8670 = vmatpush1.bf16.xpose.msra.mxu0 %v8628
        %8671 = vmatprep.subr.bf16.mxu0 %v8627
        %8672 = vmatpush1.bf16.xpose.msra.mxu0 %v8626
        %8673 = vmatprep.subr.bf16.mxu0 %v8625
        %8674 = vmatpush1.bf16.xpose.msra.mxu0 %v8624
        %8675 = vmatprep.subr.bf16.mxu0 %v8623
        %8676 = vmatpush1.bf16.xpose.msra.mxu0 %v8622
        %8677 = vmatprep.subr.bf16.mxu0 %v8621
        %8678 = vmatpush1.bf16.xpose.msra.mxu0 %v8620
        %8679 = vmatprep.subr.bf16.mxu0 %v8619
        %8680 = vmatpush1.bf16.xpose.msra.mxu0 %v8618
        %8681 = vmatprep.subr.bf16.mxu0 %v8617
        %8682 = vmatpush1.bf16.xpose.msra.mxu0 %v8616
        %8683 = vmatprep.subr.bf16.mxu0 0
        %8684 = vmatpush2.bf16.xpose.msra.mxu0 0
        %8685 = vmatprep.subr.bf16.mxu0 0
        %8686 = vmatpush2.bf16.xpose.msra.mxu0 0
        %8687 = vmatprep.subr.bf16.mxu0 0
        %8688 = vmatpush2.bf16.xpose.msra.mxu0 0
        %8689 = vmatprep.subr.bf16.mxu0 0
        %8690 = vmatpush2.bf16.xpose.msra.mxu0 0
        %8691 = vmatprep.subr.bf16.mxu0 0
        %8692 = vmatpush2.bf16.xpose.msra.mxu0 0
        %8693 = vmatprep.subr.bf16.mxu0 0
        %8694 = vmatpush2.bf16.xpose.msra.mxu0 0
        %8695 = vmatprep.subr.bf16.mxu0 0
        %8696 = vmatpush2.bf16.xpose.msra.mxu0 0
        %8697 = vmatprep.subr.bf16.mxu0 0
        %8698 = vmatpush2.bf16.xpose.msra.mxu0 0
        %8699 = vmatprep.mubr.bf16.mxu0 %v8664
        %8700 = vmatmul.mubr.bf16.gmra.mxu0 %v8657
        %v8701 = vpop.f32.mrf.mxu0
        %v8702 = vadd.f32 %v8641, %v8701
        %v8703 = vpop.f32.mrf.mxu0
        %v8704 = vpop.f32.mrf.mxu0
        %v8705 = vpop.f32.mrf.mxu0
        %8706 = vdwg.mxu0
        %v8707 = vxor.u32 %v8702, 2147483648
        %v8708 = vmul.f32 %v8707, 1.442695
        %v8709 = vpow.pop %v8708
        %v8710 = vadd.f32 %v8709, 1.0
        %v8711 = vrcp.pop %v8710
        %v8712 = vmul.f32 1.0, %v8711
        %8713 = vst [vmem:[%s359] sm:$0x1] %v8712
        %s8714 = sand.u32 %s229, 1
        %s8715 = scalar_lea.sflag [#allocation5], %s8714
        %s8716 = sand.u32 %s229, 1
        %s8717 = scalar_lea.vmem [#allocation8], %s8716
        // Predicated region
        $region65: #{tpu_custom_call.1} parent=55 // pred_check
          %p8718 = pneg %p239
        $region66: #{tpu_custom_call.1} parent=55 // pred_check_branch
          %8720 = sbr.rel (%p8718) target = $region68
        $region67: #{tpu_custom_call.1} parent=55 // pred_region
          %s8722 = ssub.s32 16, 16
          %8723 = vsyncadd %s8715, %s8722
          %s8724 = smul.addr %s27, 16
          %s8725 = scalar_lea.hbm %s9, %s8724
          %s8727 = sshll.u32 %s8717, 4
          %s8728 = int_to_ptr.vmem [resolvable:$true] %s8727
          %8730 = dma.vmem_to_hbm [thread:$0]  %s8728, 16, %s8725, %s8715
        $region68: #{tpu_custom_call.1} parent=55 // pred_fallthru
          _
      $region56: #{tpu_custom_call.1} parent=5 // pred_fallthru
        _
      %p8731 = scmp.le.s32.totalorder 2, %s22
      // Predicated region
      $region69: #{tpu_custom_call.1} parent=5 // pred_check
        %p8732 = pneg %p8731
      $region70: #{tpu_custom_call.1} parent=5 // pred_check_branch
        %8734 = sbr.rel (%p8732) target = $region72
      $region71: #{tpu_custom_call.1} parent=5 // pred_region
        %s8735 = ssub.s32 %s22, 2
        // Predicated region
        $region73: #{tpu_custom_call.1} parent=71 // pred_check
          %p8736 = pneg %p245
        $region74: #{tpu_custom_call.1} parent=71 // pred_check_branch
          %8738 = sbr.rel (%p8736) target = $region76
        $region75: #{tpu_custom_call.1} parent=71 // pred_region
          %s8739 = sand.u32 %s230, 1
          %s8740 = scalar_lea.sflag [#allocation5], %s8739
          %s8741 = sand.u32 %s230, 1
          %s8742 = scalar_lea.vmem [#allocation8], %s8741
          %8743 = dma.done %s8740, 16
        $region76: #{tpu_custom_call.1} parent=71 // pred_fallthru
          _
      $region72: #{tpu_custom_call.1} parent=5 // pred_fallthru
        _
    $region6: #{tpu_custom_call.1} parent=1 // loop_footer
      %s26 = sadd.s32 1, %s22
    $region7: #{tpu_custom_call.1} parent=1 // loop_footer_branch
      %21 = sbr.rel target = $region3
    $region8: #{tpu_custom_call.1} parent=1 // loop_exit
      _
    %8744 = vsyncpa [#allocation4], 1
    %s8745 = scalar_lea.sflag [#allocation4], 1
    %8746 = vsyncpa %s8745, 1
    %8747 = vsyncpa [#allocation7], 1
    %8748 = vsyncpa [#allocation5], 1
    %s8749 = scalar_lea.sflag [#allocation5], 1
    %8750 = vsyncpa %s8749, 1

</llo_original>
